<compile_context>
chip_gen: v7x
topology: tpu7x:2x2x1
jax: 0.10.0
libtpu: 0.0.40
codegen_flags: <defaults>
</compile_context>

<pallas_src>
import functools

import jax
import jax.numpy as jnp
import numpy as np
from jax import lax
from jax.experimental import pallas as pl
from jax.experimental.pallas import tpu as pltpu

# Keep the XLA reference matmuls in true f32 so the correctness check is meaningful.
jax.config.update("jax_default_matmul_precision", "highest")


def _pick_query_tile(l, max_tile=256):
    """Largest query tile <= max_tile that divides l and is a multiple of 8 (else l).

    Fallback returns the full extent as one block (block == full dim is always legal).
    # TODO(synk): for very large L with no 8-aligned divisor, switch to a pl.cdiv
    # grid with a masked tail tile instead of a single giant block.
    """
    if l <= max_tile:
        return l
    for t in range(max_tile, 7, -8):
        if l % t == 0:
            return t
    return l


# ---------------------------------------------------------------------------
# Fused kernel: edge->bias Linear + multi-head attention for one (batch, q-tile)
# ---------------------------------------------------------------------------
def _fused_attention_kernel(q_ref, k_ref, v_ref, p_ref,
                            we_ref, be_ref,
                            wq_ref, wk_ref, wv_ref,
                            bq_ref, bk_ref, bv_ref,
                            wo_ref, bo_ref,
                            out_ref,
                            kp_ref, vp_ref,
                            *, num_heads, compute_dtype):
    TQ, E = q_ref.shape                 # (tq, E) after squeezed batch dim
    LK = k_ref.shape[0]
    Ed = p_ref.shape[-1]
    H = num_heads
    Dh = E // H
    scale = 1.0 / float(Dh) ** 0.5
    cdt = compute_dtype

    # ---- per-batch K/V projection cache: computed once at the first query tile,
    #      reused for all later tiles of this batch (query-tile axis is "arbitrary").
    @pl.when(pl.program_id(1) == 0)
    def _():
        k = k_ref[...].astype(cdt)
        v = v_ref[...].astype(cdt)
        kp_ref[...] = (jnp.dot(k, wk_ref[...], preferred_element_type=jnp.float32)
                       + bk_ref[...]).astype(kp_ref.dtype)
        vp_ref[...] = (jnp.dot(v, wv_ref[...], preferred_element_type=jnp.float32)
                       + bv_ref[...]).astype(vp_ref.dtype)

    # ---- Q projection with 1/sqrt(Dh) folded in (PyTorch scales q after +bq too).
    q = q_ref[...].astype(cdt)
    qp = (jnp.dot(q, wq_ref[...], preferred_element_type=jnp.float32)
          + bq_ref[...]) * scale                                   # (TQ, E) f32

    # ---- fused edge->bias Linear: ONE MXU matmul over the (tq*LK, Ed) rows of
    #      this grid step's p tile; no HBM round trip for the bias tensor.
    p2 = p_ref[...].reshape(TQ * LK, Ed).astype(cdt)
    bias = (jnp.dot(p2, we_ref[...], preferred_element_type=jnp.float32)
            + be_ref[...]).reshape(TQ, LK, H)                      # (TQ, LK, H) f32

    kp = kp_ref[...]                                               # (LK, E) cdt
    vp = vp_ref[...]
    wo = wo_ref[...]                                               # (E, E)  cdt

    # ---- per-head scores -> softmax -> context, folded into the out projection
    #      (no jnp.concatenate over heads).
    acc = jnp.zeros((TQ, E), jnp.float32)
    for h in range(H):
        sl = slice(h * Dh, (h + 1) * Dh)
        qh = qp[:, sl].astype(cdt)                                 # (TQ, Dh)
        kh = kp[:, sl]                                             # (LK, Dh)
        vh = vp[:, sl]                                             # (LK, Dh)

        # Q @ K^T without materializing the transpose (contract on Dh of both).
        scores = lax.dot_general(qh, kh, (((1,), (1,)), ((), ())),
                                 preferred_element_type=jnp.float32)   # (TQ, LK)
        scores = scores + bias[:, :, h]

        # Numerically-safe softmax with deferred normalization; divide on the EUP.
        m = jnp.max(scores, axis=-1, keepdims=True)                # (TQ, 1)
        e = jnp.exp(scores - m)                                    # (TQ, LK) f32
        s = jnp.sum(e, axis=-1, keepdims=True)                     # (TQ, 1)
        ctx_h = jnp.dot(e.astype(cdt), vh,
                        preferred_element_type=jnp.float32)        # (TQ, Dh)
        ctx_h = ctx_h * pl.reciprocal(s, approx=True)

        # Fold the head concat into the output projection.
        acc = acc + jnp.dot(ctx_h.astype(cdt), wo[sl, :],
                            preferred_element_type=jnp.float32)

    out_ref[...] = acc + bo_ref[...]


# ---------------------------------------------------------------------------
# Wrapper
# ---------------------------------------------------------------------------
def attention_layer_pallas(q, k, v, p, params, *, num_heads, add_bias_2d=True,
                           compute_dtype=jnp.float32, q_tile=None):
    """Returns attn_output (B, L, E)."""
    B, L, E = q.shape
    LK = k.shape[1]
    Ed = p.shape[-1]
    H = num_heads
    assert E % H == 0, "embed_dim must be divisible by num_heads"

    tq = q_tile if q_tile is not None else _pick_query_tile(L)
    n_qt = L // tq
    cdt = compute_dtype

    # MXU operands (weights) in compute dtype; all additive biases stay f32.
    we_t = params["we_t"].astype(cdt)                       # (Ed, H)
    be = (params["be"].reshape(1, H).astype(jnp.float32) if add_bias_2d
          else jnp.zeros((1, H), jnp.float32))
    wq_t = params["wq_t"].astype(cdt)
    wk_t = params["wk_t"].astype(cdt)
    wv_t = params["wv_t"].astype(cdt)
    wo_t = params["wo_t"].astype(cdt)
    bq = params["bq"].reshape(1, E).astype(jnp.float32)
    bk = params["bk"].reshape(1, E).astype(jnp.float32)
    bv = params["bv"].reshape(1, E).astype(jnp.float32)
    bo = params["bo"].reshape(1, E).astype(jnp.float32)

    kernel = functools.partial(_fused_attention_kernel,
                               num_heads=H, compute_dtype=cdt)

    # Constant-index (grid-invariant) blocks.
    # TODO(synk): pipeline_mode=pl.Buffered(1) on these would halve their VMEM
    # footprint (most useful on v7x's 64 MiB); left off to minimize compile risk.
    const2 = lambda shape: pl.BlockSpec(shape, lambda b, t: (0, 0))

    out = pl.pallas_call(
        kernel,
        out_shape=jax.ShapeDtypeStruct((B, L, E), jnp.float32),
        grid=(B, n_qt),
        in_specs=[
            pl.BlockSpec((None, tq, E), lambda b, t: (b, t, 0)),         # q tile
            pl.BlockSpec((None, LK, E), lambda b, t: (b, 0, 0)),         # k (full)
            pl.BlockSpec((None, LK, E), lambda b, t: (b, 0, 0)),         # v (full)
            pl.BlockSpec((None, tq, LK, Ed), lambda b, t: (b, t, 0, 0)),  # p tile
            const2((Ed, H)), const2((1, H)),                             # We^T, be
            const2((E, E)), const2((E, E)), const2((E, E)),              # Wq^T Wk^T Wv^T
            const2((1, E)), const2((1, E)), const2((1, E)),              # bq bk bv
            const2((E, E)), const2((1, E)),                              # Wo^T bo
        ],
        out_specs=pl.BlockSpec((None, tq, E), lambda b, t: (b, t, 0)),
        scratch_shapes=[pltpu.VMEM((LK, E), cdt),                        # cached Kp
                        pltpu.VMEM((LK, E), cdt)],                       # cached Vp
        compiler_params=pltpu.CompilerParams(
            # batch axis parallel (megacore); query-tile axis arbitrary because the
            # Kp/Vp scratch cache is carried across query tiles of the same batch.
            # TODO(synk): for very large L (esp. v7x 64 MiB VMEM) add a streamed KV
            # grid axis with online-softmax scratch and raise vmem_limit_bytes.
            dimension_semantics=("parallel", "arbitrary")),
    )(q, k, v, p,
      we_t, be,
      wq_t, wk_t, wv_t,
      bq, bk, bv,
      wo_t, bo)
    return out


# ---------------------------------------------------------------------------
# Pure-JAX reference mirroring PyTorch nn.MultiheadAttention + edge bias
# ---------------------------------------------------------------------------
def attention_layer_reference(q, k, v, p, params, *, num_heads, add_bias_2d=True):
    B, L, E = q.shape
    H = num_heads
    Dh = E // H
    scale = 1.0 / float(Dh) ** 0.5

    bias = jnp.einsum("bije,eh->bijh", p, params["we_t"])
    if add_bias_2d:
        bias = bias + params["be"]
    bias = jnp.transpose(bias, (0, 3, 1, 2))                      # (B, H, L, L)

    qp = q @ params["wq_t"] + params["bq"]
    kp = k @ params["wk_t"] + params["bk"]
    vp = v @ params["wv_t"] + params["bv"]

    def split(x):
        return jnp.transpose(x.reshape(B, L, H, Dh), (0, 2, 1, 3))

    qh, kh, vh = split(qp), split(kp), split(vp)
    scores = jnp.einsum("bhid,bhjd->bhij", qh, kh) * scale + bias
    attn = jax.nn.softmax(scores, axis=-1)
    ctx = jnp.einsum("bhij,bhjd->bhid", attn, vh)
    ctx = jnp.transpose(ctx, (0, 2, 1, 3)).reshape(B, L, E)
    return ctx @ params["wo_t"] + params["bo"]


def init_params(key, embed_dim, num_heads, edge_dim):
    """Deterministic synthetic parameters (same shapes as the PyTorch __init__)."""
    E, H, Ed = embed_dim, num_heads, edge_dim
    ks = jax.random.split(key, 8)
    s = 0.1
    wq = jax.random.normal(ks[0], (E, E), jnp.float32) * s
    wk = jax.random.normal(ks[1], (E, E), jnp.float32) * s
    wv = jax.random.normal(ks[2], (E, E), jnp.float32) * s
    bq = jax.random.normal(ks[3], (3 * E,), jnp.float32) * s
    wo = jax.random.normal(ks[4], (E, E), jnp.float32) * s
    bo = jax.random.normal(ks[5], (E,), jnp.float32) * s
    we = jax.random.normal(ks[6], (H, Ed), jnp.float32) * s
    be = jax.random.normal(ks[7], (H,), jnp.float32) * s
    return {
        "wq_t": wq.T, "wk_t": wk.T, "wv_t": wv.T,
        "bq": bq[:E], "bk": bq[E:2 * E], "bv": bq[2 * E:],
        "wo_t": wo.T, "bo": bo,
        "we_t": we.T, "be": be,
    }


if __name__ == "__main__":
    # Small shapes consistent with the module: batch=2, seq=8, embed=32, heads=4, edge_dim=16
    B, L, E, H, Ed = 2, 8, 32, 4, 16

    key = jax.random.PRNGKey(0)
    kq, kk, kv, kp_, kparam = jax.random.split(key, 5)
    q = jax.random.normal(kq, (B, L, E), jnp.float32)
    k = jax.random.normal(kk, (B, L, E), jnp.float32)
    v = jax.random.normal(kv, (B, L, E), jnp.float32)
    p = jax.random.normal(kp_, (B, L, L, Ed), jnp.float32)

    params = init_params(kparam, E, H, Ed)

    ref = attention_layer_reference(q, k, v, p, params, num_heads=H, add_bias_2d=True)
    ref = jax.block_until_ready(ref)

    # f32 MXU operands: strict check.
    out_f32 = attention_layer_pallas(q, k, v, p, params, num_heads=H,
                                     add_bias_2d=True, compute_dtype=jnp.float32)
    out_f32 = jax.block_until_ready(out_f32)
    np.testing.assert_allclose(np.asarray(out_f32), np.asarray(ref),
                               atol=2e-3, rtol=2e-3)

    # bf16 MXU operands, f32 accumulation (the v5e/v6e/v7x fast path): looser check.
    out_bf16 = attention_layer_pallas(q, k, v, p, params, num_heads=H,
                                      add_bias_2d=True, compute_dtype=jnp.bfloat16)
    out_bf16 = jax.block_until_ready(out_bf16)
    np.testing.assert_allclose(np.asarray(out_bf16), np.asarray(ref),
                               atol=3e-2, rtol=3e-2)

    print("KERNEL_OK")
</pallas_src>

<mosaic_0001>
module attributes {stable_mosaic.version = 11 : i64} {
  func.func @_fused_attention_kernel(%arg0: i32, %arg1: i32, %arg2: memref<1x8x32xf32, #tpu.memory_space<vmem>>, %arg3: memref<1x8x32xf32, #tpu.memory_space<vmem>>, %arg4: memref<1x8x32xf32, #tpu.memory_space<vmem>>, %arg5: memref<1x8x8x16xf32, #tpu.memory_space<vmem>>, %arg6: memref<16x4xf32, #tpu.memory_space<vmem>>, %arg7: memref<1x4xf32, #tpu.memory_space<vmem>>, %arg8: memref<32x32xf32, #tpu.memory_space<vmem>>, %arg9: memref<32x32xf32, #tpu.memory_space<vmem>>, %arg10: memref<32x32xf32, #tpu.memory_space<vmem>>, %arg11: memref<1x32xf32, #tpu.memory_space<vmem>>, %arg12: memref<1x32xf32, #tpu.memory_space<vmem>>, %arg13: memref<1x32xf32, #tpu.memory_space<vmem>>, %arg14: memref<32x32xf32, #tpu.memory_space<vmem>>, %arg15: memref<1x32xf32, #tpu.memory_space<vmem>>, %arg16: memref<1x8x32xf32, #tpu.memory_space<vmem>>, %arg17: memref<8x32xf32, #tpu.memory_space<vmem>>, %arg18: memref<8x32xf32, #tpu.memory_space<vmem>>) attributes {dimension_semantics = [#tpu.dimension_semantics<parallel>, #tpu.dimension_semantics<arbitrary>], iteration_bounds = array<i64: 2, 1>, scalar_prefetch = 0 : i64, scratch_operands = 2 : i64, tpu.core_type = #tpu.core_type<tc>, window_params = [{transform_indices = @transform_0, window_bounds = array<i64: 1, 8, 32>}, {transform_indices = @transform_1, window_bounds = array<i64: 1, 8, 32>}, {transform_indices = @transform_2, window_bounds = array<i64: 1, 8, 32>}, {transform_indices = @transform_3, window_bounds = array<i64: 1, 8, 8, 16>}, {pipeline_mode = #tpu.pipeline_mode<synchronous>, transform_indices = @transform_4, window_bounds = array<i64: 16, 4>}, {pipeline_mode = #tpu.pipeline_mode<synchronous>, transform_indices = @transform_5, window_bounds = array<i64: 1, 4>}, {pipeline_mode = #tpu.pipeline_mode<synchronous>, transform_indices = @transform_6, window_bounds = array<i64: 32, 32>}, {pipeline_mode = #tpu.pipeline_mode<synchronous>, transform_indices = @transform_7, window_bounds = array<i64: 32, 32>}, {pipeline_mode = #tpu.pipeline_mode<synchronous>, transform_indices = @transform_8, window_bounds = array<i64: 32, 32>}, {pipeline_mode = #tpu.pipeline_mode<synchronous>, transform_indices = @transform_9, window_bounds = array<i64: 1, 32>}, {pipeline_mode = #tpu.pipeline_mode<synchronous>, transform_indices = @transform_10, window_bounds = array<i64: 1, 32>}, {pipeline_mode = #tpu.pipeline_mode<synchronous>, transform_indices = @transform_11, window_bounds = array<i64: 1, 32>}, {pipeline_mode = #tpu.pipeline_mode<synchronous>, transform_indices = @transform_12, window_bounds = array<i64: 32, 32>}, {pipeline_mode = #tpu.pipeline_mode<synchronous>, transform_indices = @transform_13, window_bounds = array<i64: 1, 32>}, {transform_indices = @transform_14, window_bounds = array<i64: 1, 8, 32>}]} {
    %c0_i32 = arith.constant 0 : i32
    %0 = arith.cmpi eq, %arg1, %c0_i32 : i32
    %1 = arith.extui %0 : i1 to i32
    %c0_i32_0 = arith.constant 0 : i32
    %2 = arith.cmpi ne, %1, %c0_i32_0 : i32
    scf.if %2 {
      %c0_49 = arith.constant 0 : index
      %c0_50 = arith.constant 0 : index
      %c0_51 = arith.constant 0 : index
      %115 = vector.load %arg3[%c0_49, %c0_50, %c0_51] : memref<1x8x32xf32, #tpu.memory_space<vmem>>, vector<1x8x32xf32>
      %116 = vector.shape_cast %115 : vector<1x8x32xf32> to vector<8x32xf32>
      %c0_52 = arith.constant 0 : index
      %c0_53 = arith.constant 0 : index
      %c0_54 = arith.constant 0 : index
      %117 = vector.load %arg4[%c0_52, %c0_53, %c0_54] : memref<1x8x32xf32, #tpu.memory_space<vmem>>, vector<1x8x32xf32>
      %118 = vector.shape_cast %117 : vector<1x8x32xf32> to vector<8x32xf32>
      %c0_55 = arith.constant 0 : index
      %c0_56 = arith.constant 0 : index
      %119 = vector.load %arg9[%c0_55, %c0_56] : memref<32x32xf32, #tpu.memory_space<vmem>>, vector<32x32xf32>
      %cst_57 = arith.constant dense<0.000000e+00> : vector<8x32xf32>
      %120 = tpu.matmul %116, %119, %cst_57 {dimension_numbers = #tpu.dot_dimension_numbers<[1], [0], [0], [1], [0, 0, 1, 1], [], []>, precision = #tpu.contract_precision<fp32>} : vector<8x32xf32>, vector<32x32xf32>, vector<8x32xf32> -> vector<8x32xf32>
      %c0_58 = arith.constant 0 : index
      %c0_59 = arith.constant 0 : index
      %121 = vector.load %arg12[%c0_58, %c0_59] : memref<1x32xf32, #tpu.memory_space<vmem>>, vector<1x32xf32>
      %122 = vector.broadcast %121 : vector<1x32xf32> to vector<8x32xf32>
      %123 = arith.addf %120, %122 : vector<8x32xf32>
      %c0_60 = arith.constant 0 : index
      %c0_61 = arith.constant 0 : index
      %124 = vector.load %arg17[%c0_60, %c0_61] : memref<8x32xf32, #tpu.memory_space<vmem>>, vector<8x32xf32>
      tpu.vector_store %arg17[%c0_60, %c0_61], %123 {strides = array<i32>} : memref<8x32xf32, #tpu.memory_space<vmem>>, vector<8x32xf32>,
      %c0_62 = arith.constant 0 : index
      %c0_63 = arith.constant 0 : index
      %125 = vector.load %arg10[%c0_62, %c0_63] : memref<32x32xf32, #tpu.memory_space<vmem>>, vector<32x32xf32>
      %cst_64 = arith.constant dense<0.000000e+00> : vector<8x32xf32>
      %126 = tpu.matmul %118, %125, %cst_64 {dimension_numbers = #tpu.dot_dimension_numbers<[1], [0], [0], [1], [0, 0, 1, 1], [], []>, precision = #tpu.contract_precision<fp32>} : vector<8x32xf32>, vector<32x32xf32>, vector<8x32xf32> -> vector<8x32xf32>
      %c0_65 = arith.constant 0 : index
      %c0_66 = arith.constant 0 : index
      %127 = vector.load %arg13[%c0_65, %c0_66] : memref<1x32xf32, #tpu.memory_space<vmem>>, vector<1x32xf32>
      %128 = vector.broadcast %127 : vector<1x32xf32> to vector<8x32xf32>
      %129 = arith.addf %126, %128 : vector<8x32xf32>
      %c0_67 = arith.constant 0 : index
      %c0_68 = arith.constant 0 : index
      %130 = vector.load %arg18[%c0_67, %c0_68] : memref<8x32xf32, #tpu.memory_space<vmem>>, vector<8x32xf32>
      tpu.vector_store %arg18[%c0_67, %c0_68], %129 {strides = array<i32>} : memref<8x32xf32, #tpu.memory_space<vmem>>, vector<8x32xf32>,
    } else {
    }
    %c0 = arith.constant 0 : index
    %c0_1 = arith.constant 0 : index
    %c0_2 = arith.constant 0 : index
    %3 = vector.load %arg2[%c0, %c0_1, %c0_2] : memref<1x8x32xf32, #tpu.memory_space<vmem>>, vector<1x8x32xf32>
    %4 = vector.shape_cast %3 : vector<1x8x32xf32> to vector<8x32xf32>
    %c0_3 = arith.constant 0 : index
    %c0_4 = arith.constant 0 : index
    %5 = vector.load %arg8[%c0_3, %c0_4] : memref<32x32xf32, #tpu.memory_space<vmem>>, vector<32x32xf32>
    %cst = arith.constant dense<0.000000e+00> : vector<8x32xf32>
    %6 = tpu.matmul %4, %5, %cst {dimension_numbers = #tpu.dot_dimension_numbers<[1], [0], [0], [1], [0, 0, 1, 1], [], []>, precision = #tpu.contract_precision<fp32>} : vector<8x32xf32>, vector<32x32xf32>, vector<8x32xf32> -> vector<8x32xf32>
    %c0_5 = arith.constant 0 : index
    %c0_6 = arith.constant 0 : index
    %7 = vector.load %arg11[%c0_5, %c0_6] : memref<1x32xf32, #tpu.memory_space<vmem>>, vector<1x32xf32>
    %8 = vector.broadcast %7 : vector<1x32xf32> to vector<8x32xf32>
    %9 = arith.addf %6, %8 : vector<8x32xf32>
    %cst_7 = arith.constant 0.353553385 : f32
    %10 = vector.broadcast %cst_7 : f32 to vector<8x32xf32>
    %11 = arith.mulf %9, %10 : vector<8x32xf32>
    %c0_8 = arith.constant 0 : index
    %c0_9 = arith.constant 0 : index
    %c0_10 = arith.constant 0 : index
    %c0_11 = arith.constant 0 : index
    %12 = vector.load %arg5[%c0_8, %c0_9, %c0_10, %c0_11] : memref<1x8x8x16xf32, #tpu.memory_space<vmem>>, vector<1x8x8x16xf32>
    %13 = vector.shape_cast %12 : vector<1x8x8x16xf32> to vector<8x8x16xf32>
    %14 = vector.shape_cast %13 : vector<8x8x16xf32> to vector<64x16xf32>
    %c0_12 = arith.constant 0 : index
    %c0_13 = arith.constant 0 : index
    %15 = vector.load %arg6[%c0_12, %c0_13] : memref<16x4xf32, #tpu.memory_space<vmem>>, vector<16x4xf32>
    %cst_14 = arith.constant dense<0.000000e+00> : vector<64x4xf32>
    %16 = tpu.matmul %14, %15, %cst_14 {dimension_numbers = #tpu.dot_dimension_numbers<[1], [0], [0], [1], [0, 0, 1, 1], [], []>, precision = #tpu.contract_precision<fp32>} : vector<64x16xf32>, vector<16x4xf32>, vector<64x4xf32> -> vector<64x4xf32>
    %c0_15 = arith.constant 0 : index
    %c0_16 = arith.constant 0 : index
    %17 = vector.load %arg7[%c0_15, %c0_16] : memref<1x4xf32, #tpu.memory_space<vmem>>, vector<1x4xf32>
    %18 = vector.broadcast %17 : vector<1x4xf32> to vector<64x4xf32>
    %19 = arith.addf %16, %18 : vector<64x4xf32>
    %20 = vector.shape_cast %19 : vector<64x4xf32> to vector<8x8x4xf32>
    %c0_17 = arith.constant 0 : index
    %c0_18 = arith.constant 0 : index
    %21 = vector.load %arg17[%c0_17, %c0_18] : memref<8x32xf32, #tpu.memory_space<vmem>>, vector<8x32xf32>
    %c0_19 = arith.constant 0 : index
    %c0_20 = arith.constant 0 : index
    %22 = vector.load %arg18[%c0_19, %c0_20] : memref<8x32xf32, #tpu.memory_space<vmem>>, vector<8x32xf32>
    %c0_21 = arith.constant 0 : index
    %c0_22 = arith.constant 0 : index
    %23 = vector.load %arg14[%c0_21, %c0_22] : memref<32x32xf32, #tpu.memory_space<vmem>>, vector<32x32xf32>
    %cst_23 = arith.constant 0.000000e+00 : f32
    %24 = vector.broadcast %cst_23 : f32 to vector<8x32xf32>
    %25 = vector.extract_strided_slice %11 {offsets = [0, 0], sizes = [8, 8], strides = [1, 1]} : vector<8x32xf32> to vector<8x8xf32>
    %26 = vector.extract_strided_slice %21 {offsets = [0, 0], sizes = [8, 8], strides = [1, 1]} : vector<8x32xf32> to vector<8x8xf32>
    %27 = vector.extract_strided_slice %22 {offsets = [0, 0], sizes = [8, 8], strides = [1, 1]} : vector<8x32xf32> to vector<8x8xf32>
    %cst_24 = arith.constant dense<0.000000e+00> : vector<8x8xf32>
    %28 = tpu.matmul %25, %26, %cst_24 {dimension_numbers = #tpu.dot_dimension_numbers<[1], [1], [0], [0], [0, 0, 1, 0], [], []>, precision = #tpu.contract_precision<fp32>} : vector<8x8xf32>, vector<8x8xf32>, vector<8x8xf32> -> vector<8x8xf32>
    %29 = vector.extract_strided_slice %20 {offsets = [0, 0, 0], sizes = [8, 8, 1], strides = [1, 1, 1]} : vector<8x8x4xf32> to vector<8x8x1xf32>
    %30 = vector.shape_cast %29 : vector<8x8x1xf32> to vector<8x8xf32>
    %31 = arith.addf %28, %30 : vector<8x8xf32>
    %cst_25 = arith.constant dense<0xFF800000> : vector<8xf32>
    %32 = vector.multi_reduction <maximumf>, %31, %cst_25 [1] : vector<8x8xf32> to vector<8xf32>
    %33 = vector.shape_cast %32 : vector<8xf32> to vector<8x1xf32>
    %34 = vector.broadcast %33 : vector<8x1xf32> to vector<8x8xf32>
    %35 = arith.subf %31, %34 : vector<8x8xf32>
    %36 = math.exp %35 : vector<8x8xf32>
    %cst_26 = arith.constant dense<0.000000e+00> : vector<8xf32>
    %37 = vector.multi_reduction <add>, %36, %cst_26 [1] : vector<8x8xf32> to vector<8xf32>
    %38 = vector.shape_cast %37 : vector<8xf32> to vector<8x1xf32>
    %cst_27 = arith.constant dense<0.000000e+00> : vector<8x8xf32>
    %39 = tpu.matmul %36, %27, %cst_27 {dimension_numbers = #tpu.dot_dimension_numbers<[1], [0], [0], [1], [0, 0, 1, 1], [], []>, precision = #tpu.contract_precision<fp32>} : vector<8x8xf32>, vector<8x8xf32>, vector<8x8xf32> -> vector<8x8xf32>
    %40 = tpu.reciprocal %38 {approx = true} : vector<8x1xf32> -> vector<8x1xf32>
    %41 = vector.broadcast %40 : vector<8x1xf32> to vector<8x8xf32>
    %42 = arith.mulf %39, %41 : vector<8x8xf32>
    %43 = vector.extract_strided_slice %23 {offsets = [0, 0], sizes = [8, 32], strides = [1, 1]} : vector<32x32xf32> to vector<8x32xf32>
    %cst_28 = arith.constant dense<0.000000e+00> : vector<8x32xf32>
    %44 = tpu.matmul %42, %43, %cst_28 {dimension_numbers = #tpu.dot_dimension_numbers<[1], [0], [0], [1], [0, 0, 1, 1], [], []>, precision = #tpu.contract_precision<fp32>} : vector<8x8xf32>, vector<8x32xf32>, vector<8x32xf32> -> vector<8x32xf32>
    %45 = arith.addf %24, %44 : vector<8x32xf32>
    %46 = vector.extract_strided_slice %11 {offsets = [0, 8], sizes = [8, 8], strides = [1, 1]} : vector<8x32xf32> to vector<8x8xf32>
    %47 = vector.extract_strided_slice %21 {offsets = [0, 8], sizes = [8, 8], strides = [1, 1]} : vector<8x32xf32> to vector<8x8xf32>
    %48 = vector.extract_strided_slice %22 {offsets = [0, 8], sizes = [8, 8], strides = [1, 1]} : vector<8x32xf32> to vector<8x8xf32>
    %cst_29 = arith.constant dense<0.000000e+00> : vector<8x8xf32>
    %49 = tpu.matmul %46, %47, %cst_29 {dimension_numbers = #tpu.dot_dimension_numbers<[1], [1], [0], [0], [0, 0, 1, 0], [], []>, precision = #tpu.contract_precision<fp32>} : vector<8x8xf32>, vector<8x8xf32>, vector<8x8xf32> -> vector<8x8xf32>
    %50 = vector.extract_strided_slice %20 {offsets = [0, 0, 1], sizes = [8, 8, 1], strides = [1, 1, 1]} : vector<8x8x4xf32> to vector<8x8x1xf32>
    %51 = vector.shape_cast %50 : vector<8x8x1xf32> to vector<8x8xf32>
    %52 = arith.addf %49, %51 : vector<8x8xf32>
    %cst_30 = arith.constant dense<0xFF800000> : vector<8xf32>
    %53 = vector.multi_reduction <maximumf>, %52, %cst_30 [1] : vector<8x8xf32> to vector<8xf32>
    %54 = vector.shape_cast %53 : vector<8xf32> to vector<8x1xf32>
    %55 = vector.broadcast %54 : vector<8x1xf32> to vector<8x8xf32>
    %56 = arith.subf %52, %55 : vector<8x8xf32>
    %57 = math.exp %56 : vector<8x8xf32>
    %cst_31 = arith.constant dense<0.000000e+00> : vector<8xf32>
    %58 = vector.multi_reduction <add>, %57, %cst_31 [1] : vector<8x8xf32> to vector<8xf32>
    %59 = vector.shape_cast %58 : vector<8xf32> to vector<8x1xf32>
    %cst_32 = arith.constant dense<0.000000e+00> : vector<8x8xf32>
    %60 = tpu.matmul %57, %48, %cst_32 {dimension_numbers = #tpu.dot_dimension_numbers<[1], [0], [0], [1], [0, 0, 1, 1], [], []>, precision = #tpu.contract_precision<fp32>} : vector<8x8xf32>, vector<8x8xf32>, vector<8x8xf32> -> vector<8x8xf32>
    %61 = tpu.reciprocal %59 {approx = true} : vector<8x1xf32> -> vector<8x1xf32>
    %62 = vector.broadcast %61 : vector<8x1xf32> to vector<8x8xf32>
    %63 = arith.mulf %60, %62 : vector<8x8xf32>
    %64 = vector.extract_strided_slice %23 {offsets = [8, 0], sizes = [8, 32], strides = [1, 1]} : vector<32x32xf32> to vector<8x32xf32>
    %cst_33 = arith.constant dense<0.000000e+00> : vector<8x32xf32>
    %65 = tpu.matmul %63, %64, %cst_33 {dimension_numbers = #tpu.dot_dimension_numbers<[1], [0], [0], [1], [0, 0, 1, 1], [], []>, precision = #tpu.contract_precision<fp32>} : vector<8x8xf32>, vector<8x32xf32>, vector<8x32xf32> -> vector<8x32xf32>
    %66 = arith.addf %45, %65 : vector<8x32xf32>
    %67 = vector.extract_strided_slice %11 {offsets = [0, 16], sizes = [8, 8], strides = [1, 1]} : vector<8x32xf32> to vector<8x8xf32>
    %68 = vector.extract_strided_slice %21 {offsets = [0, 16], sizes = [8, 8], strides = [1, 1]} : vector<8x32xf32> to vector<8x8xf32>
    %69 = vector.extract_strided_slice %22 {offsets = [0, 16], sizes = [8, 8], strides = [1, 1]} : vector<8x32xf32> to vector<8x8xf32>
    %cst_34 = arith.constant dense<0.000000e+00> : vector<8x8xf32>
    %70 = tpu.matmul %67, %68, %cst_34 {dimension_numbers = #tpu.dot_dimension_numbers<[1], [1], [0], [0], [0, 0, 1, 0], [], []>, precision = #tpu.contract_precision<fp32>} : vector<8x8xf32>, vector<8x8xf32>, vector<8x8xf32> -> vector<8x8xf32>
    %71 = vector.extract_strided_slice %20 {offsets = [0, 0, 2], sizes = [8, 8, 1], strides = [1, 1, 1]} : vector<8x8x4xf32> to vector<8x8x1xf32>
    %72 = vector.shape_cast %71 : vector<8x8x1xf32> to vector<8x8xf32>
    %73 = arith.addf %70, %72 : vector<8x8xf32>
    %cst_35 = arith.constant dense<0xFF800000> : vector<8xf32>
    %74 = vector.multi_reduction <maximumf>, %73, %cst_35 [1] : vector<8x8xf32> to vector<8xf32>
    %75 = vector.shape_cast %74 : vector<8xf32> to vector<8x1xf32>
    %76 = vector.broadcast %75 : vector<8x1xf32> to vector<8x8xf32>
    %77 = arith.subf %73, %76 : vector<8x8xf32>
    %78 = math.exp %77 : vector<8x8xf32>
    %cst_36 = arith.constant dense<0.000000e+00> : vector<8xf32>
    %79 = vector.multi_reduction <add>, %78, %cst_36 [1] : vector<8x8xf32> to vector<8xf32>
    %80 = vector.shape_cast %79 : vector<8xf32> to vector<8x1xf32>
    %cst_37 = arith.constant dense<0.000000e+00> : vector<8x8xf32>
    %81 = tpu.matmul %78, %69, %cst_37 {dimension_numbers = #tpu.dot_dimension_numbers<[1], [0], [0], [1], [0, 0, 1, 1], [], []>, precision = #tpu.contract_precision<fp32>} : vector<8x8xf32>, vector<8x8xf32>, vector<8x8xf32> -> vector<8x8xf32>
    %82 = tpu.reciprocal %80 {approx = true} : vector<8x1xf32> -> vector<8x1xf32>
    %83 = vector.broadcast %82 : vector<8x1xf32> to vector<8x8xf32>
    %84 = arith.mulf %81, %83 : vector<8x8xf32>
    %85 = vector.extract_strided_slice %23 {offsets = [16, 0], sizes = [8, 32], strides = [1, 1]} : vector<32x32xf32> to vector<8x32xf32>
    %cst_38 = arith.constant dense<0.000000e+00> : vector<8x32xf32>
    %86 = tpu.matmul %84, %85, %cst_38 {dimension_numbers = #tpu.dot_dimension_numbers<[1], [0], [0], [1], [0, 0, 1, 1], [], []>, precision = #tpu.contract_precision<fp32>} : vector<8x8xf32>, vector<8x32xf32>, vector<8x32xf32> -> vector<8x32xf32>
    %87 = arith.addf %66, %86 : vector<8x32xf32>
    %88 = vector.extract_strided_slice %11 {offsets = [0, 24], sizes = [8, 8], strides = [1, 1]} : vector<8x32xf32> to vector<8x8xf32>
    %89 = vector.extract_strided_slice %21 {offsets = [0, 24], sizes = [8, 8], strides = [1, 1]} : vector<8x32xf32> to vector<8x8xf32>
    %90 = vector.extract_strided_slice %22 {offsets = [0, 24], sizes = [8, 8], strides = [1, 1]} : vector<8x32xf32> to vector<8x8xf32>
    %cst_39 = arith.constant dense<0.000000e+00> : vector<8x8xf32>
    %91 = tpu.matmul %88, %89, %cst_39 {dimension_numbers = #tpu.dot_dimension_numbers<[1], [1], [0], [0], [0, 0, 1, 0], [], []>, precision = #tpu.contract_precision<fp32>} : vector<8x8xf32>, vector<8x8xf32>, vector<8x8xf32> -> vector<8x8xf32>
    %92 = vector.extract_strided_slice %20 {offsets = [0, 0, 3], sizes = [8, 8, 1], strides = [1, 1, 1]} : vector<8x8x4xf32> to vector<8x8x1xf32>
    %93 = vector.shape_cast %92 : vector<8x8x1xf32> to vector<8x8xf32>
    %94 = arith.addf %91, %93 : vector<8x8xf32>
    %cst_40 = arith.constant dense<0xFF800000> : vector<8xf32>
    %95 = vector.multi_reduction <maximumf>, %94, %cst_40 [1] : vector<8x8xf32> to vector<8xf32>
    %96 = vector.shape_cast %95 : vector<8xf32> to vector<8x1xf32>
    %97 = vector.broadcast %96 : vector<8x1xf32> to vector<8x8xf32>
    %98 = arith.subf %94, %97 : vector<8x8xf32>
    %99 = math.exp %98 : vector<8x8xf32>
    %cst_41 = arith.constant dense<0.000000e+00> : vector<8xf32>
    %100 = vector.multi_reduction <add>, %99, %cst_41 [1] : vector<8x8xf32> to vector<8xf32>
    %101 = vector.shape_cast %100 : vector<8xf32> to vector<8x1xf32>
    %cst_42 = arith.constant dense<0.000000e+00> : vector<8x8xf32>
    %102 = tpu.matmul %99, %90, %cst_42 {dimension_numbers = #tpu.dot_dimension_numbers<[1], [0], [0], [1], [0, 0, 1, 1], [], []>, precision = #tpu.contract_precision<fp32>} : vector<8x8xf32>, vector<8x8xf32>, vector<8x8xf32> -> vector<8x8xf32>
    %103 = tpu.reciprocal %101 {approx = true} : vector<8x1xf32> -> vector<8x1xf32>
    %104 = vector.broadcast %103 : vector<8x1xf32> to vector<8x8xf32>
    %105 = arith.mulf %102, %104 : vector<8x8xf32>
    %106 = vector.extract_strided_slice %23 {offsets = [24, 0], sizes = [8, 32], strides = [1, 1]} : vector<32x32xf32> to vector<8x32xf32>
    %cst_43 = arith.constant dense<0.000000e+00> : vector<8x32xf32>
    %107 = tpu.matmul %105, %106, %cst_43 {dimension_numbers = #tpu.dot_dimension_numbers<[1], [0], [0], [1], [0, 0, 1, 1], [], []>, precision = #tpu.contract_precision<fp32>} : vector<8x8xf32>, vector<8x32xf32>, vector<8x32xf32> -> vector<8x32xf32>
    %108 = arith.addf %87, %107 : vector<8x32xf32>
    %c0_44 = arith.constant 0 : index
    %c0_45 = arith.constant 0 : index
    %109 = vector.load %arg15[%c0_44, %c0_45] : memref<1x32xf32, #tpu.memory_space<vmem>>, vector<1x32xf32>
    %110 = vector.broadcast %109 : vector<1x32xf32> to vector<8x32xf32>
    %111 = arith.addf %108, %110 : vector<8x32xf32>
    %c0_46 = arith.constant 0 : index
    %c0_47 = arith.constant 0 : index
    %c0_48 = arith.constant 0 : index
    %112 = vector.load %arg16[%c0_46, %c0_47, %c0_48] : memref<1x8x32xf32, #tpu.memory_space<vmem>>, vector<1x8x32xf32>
    %113 = vector.shape_cast %112 : vector<1x8x32xf32> to vector<8x32xf32>
    %114 = vector.shape_cast %111 : vector<8x32xf32> to vector<1x8x32xf32>
    tpu.vector_store %arg16[%c0_46, %c0_47, %c0_48], %114 {strides = array<i32>} : memref<1x8x32xf32, #tpu.memory_space<vmem>>, vector<1x8x32xf32>,
    return
  }
  func.func @transform_0(%arg0: i32, %arg1: i32) -> (i32, i32, i32) {
    %c0_i32 = arith.constant 0 : i32
    %c0_i32_0 = arith.constant 0 : i32
    return %arg0, %arg1, %c0_i32 : i32, i32, i32
  }
  func.func @transform_1(%arg0: i32, %arg1: i32) -> (i32, i32, i32) {
    %c0_i32 = arith.constant 0 : i32
    %c0_i32_0 = arith.constant 0 : i32
    %c0_i32_1 = arith.constant 0 : i32
    return %arg0, %c0_i32, %c0_i32_0 : i32, i32, i32
  }
  func.func @transform_2(%arg0: i32, %arg1: i32) -> (i32, i32, i32) {
    %c0_i32 = arith.constant 0 : i32
    %c0_i32_0 = arith.constant 0 : i32
    %c0_i32_1 = arith.constant 0 : i32
    return %arg0, %c0_i32, %c0_i32_0 : i32, i32, i32
  }
  func.func @transform_3(%arg0: i32, %arg1: i32) -> (i32, i32, i32, i32) {
    %c0_i32 = arith.constant 0 : i32
    %c0_i32_0 = arith.constant 0 : i32
    %c0_i32_1 = arith.constant 0 : i32
    return %arg0, %arg1, %c0_i32, %c0_i32_0 : i32, i32, i32, i32
  }
  func.func @transform_4(%arg0: i32, %arg1: i32) -> (i32, i32) {
    %c0_i32 = arith.constant 0 : i32
    %c0_i32_0 = arith.constant 0 : i32
    %c0_i32_1 = arith.constant 0 : i32
    return %c0_i32, %c0_i32_0 : i32, i32
  }
  func.func @transform_5(%arg0: i32, %arg1: i32) -> (i32, i32) {
    %c0_i32 = arith.constant 0 : i32
    %c0_i32_0 = arith.constant 0 : i32
    %c0_i32_1 = arith.constant 0 : i32
    return %c0_i32, %c0_i32_0 : i32, i32
  }
  func.func @transform_6(%arg0: i32, %arg1: i32) -> (i32, i32) {
    %c0_i32 = arith.constant 0 : i32
    %c0_i32_0 = arith.constant 0 : i32
    %c0_i32_1 = arith.constant 0 : i32
    return %c0_i32, %c0_i32_0 : i32, i32
  }
  func.func @transform_7(%arg0: i32, %arg1: i32) -> (i32, i32) {
    %c0_i32 = arith.constant 0 : i32
    %c0_i32_0 = arith.constant 0 : i32
    %c0_i32_1 = arith.constant 0 : i32
    return %c0_i32, %c0_i32_0 : i32, i32
  }
  func.func @transform_8(%arg0: i32, %arg1: i32) -> (i32, i32) {
    %c0_i32 = arith.constant 0 : i32
    %c0_i32_0 = arith.constant 0 : i32
    %c0_i32_1 = arith.constant 0 : i32
    return %c0_i32, %c0_i32_0 : i32, i32
  }
  func.func @transform_9(%arg0: i32, %arg1: i32) -> (i32, i32) {
    %c0_i32 = arith.constant 0 : i32
    %c0_i32_0 = arith.constant 0 : i32
    %c0_i32_1 = arith.constant 0 : i32
    return %c0_i32, %c0_i32_0 : i32, i32
  }
  func.func @transform_10(%arg0: i32, %arg1: i32) -> (i32, i32) {
    %c0_i32 = arith.constant 0 : i32
    %c0_i32_0 = arith.constant 0 : i32
    %c0_i32_1 = arith.constant 0 : i32
    return %c0_i32, %c0_i32_0 : i32, i32
  }
  func.func @transform_11(%arg0: i32, %arg1: i32) -> (i32, i32) {
    %c0_i32 = arith.constant 0 : i32
    %c0_i32_0 = arith.constant 0 : i32
    %c0_i32_1 = arith.constant 0 : i32
    return %c0_i32, %c0_i32_0 : i32, i32
  }
  func.func @transform_12(%arg0: i32, %arg1: i32) -> (i32, i32) {
    %c0_i32 = arith.constant 0 : i32
    %c0_i32_0 = arith.constant 0 : i32
    %c0_i32_1 = arith.constant 0 : i32
    return %c0_i32, %c0_i32_0 : i32, i32
  }
  func.func @transform_13(%arg0: i32, %arg1: i32) -> (i32, i32) {
    %c0_i32 = arith.constant 0 : i32
    %c0_i32_0 = arith.constant 0 : i32
    %c0_i32_1 = arith.constant 0 : i32
    return %c0_i32, %c0_i32_0 : i32, i32
  }
  func.func @transform_14(%arg0: i32, %arg1: i32) -> (i32, i32, i32) {
    %c0_i32 = arith.constant 0 : i32
    %c0_i32_0 = arith.constant 0 : i32
    return %arg0, %arg1, %c0_i32 : i32, i32, i32
  }
}

</mosaic_0001>

<llo_original>
// kernel: tpu_custom_call.1
$region0: #{tpu_custom_call.1}
  #allocation0 [shape = 'u32[]', space=smem, size = 0x4, offset = 0x4, fixed_abs, tag = 'smem constant byte address 0x4 - core index']
  #allocation1 [shape = 'u32[144,128]{1,0:T(1,128)}', space=vmem, size = 0x12000, scoped, tag = 'internal scratch']
  #allocation2 [shape = 'f32[8,32]{1,0:T(8,128)}', space=vmem, size = 0x1000, scoped, tag = 'scratch operand']
  #allocation3 [shape = 'f32[8,32]{1,0:T(8,128)}', space=vmem, size = 0x1000, scoped, tag = 'scratch operand']
  %s0 = inlined_call_operand.hbm [shape: f32[2,8,32], index: 0, kind: input, shape index: {}]
  %s1 = inlined_call_operand.hbm [shape: f32[2,8,32], index: 1, kind: input, shape index: {}]
  %s2 = inlined_call_operand.hbm [shape: f32[2,8,32], index: 2, kind: input, shape index: {}]
  %s3 = inlined_call_operand.hbm [shape: f32[2,8,8,16], index: 3, kind: input, shape index: {}]
  %s4 = inlined_call_operand.vmem [shape: f32[16,4], index: 4, kind: input, shape index: {}]
  %s5 = inlined_call_operand.vmem [shape: f32[1,4], index: 5, kind: input, shape index: {}]
  %s6 = inlined_call_operand.vmem [shape: f32[32,32], index: 6, kind: input, shape index: {}]
  %s7 = inlined_call_operand.hbm [shape: f32[32,32], index: 7, kind: input, shape index: {}]
  %s8 = inlined_call_operand.hbm [shape: f32[32,32], index: 8, kind: input, shape index: {}]
  %s9 = inlined_call_operand.hbm [shape: f32[1,32], index: 9, kind: input, shape index: {}]
  %s10 = inlined_call_operand.hbm [shape: f32[1,32], index: 10, kind: input, shape index: {}]
  %s11 = inlined_call_operand.hbm [shape: f32[1,32], index: 11, kind: input, shape index: {}]
  %s12 = inlined_call_operand.vmem [shape: f32[32,32], index: 12, kind: input, shape index: {}]
  %s13 = inlined_call_operand.vmem [shape: f32[1,32], index: 13, kind: input, shape index: {}]
  %s14 = inlined_call_operand.hbm [shape: f32[2,8,32], index: 14, kind: output, shape index: {}]
  %s15 = sld [smem:[#allocation0]]
  $region129: #{tpu_custom_call.1} parent=0
    _
  %s17 = ssub.s32 1, %s15
  %s18 = scalar_select 0, %s17, %s15
  $region1: #{tpu_custom_call.1} parent=0
    #allocation4 [shape = 'u8[8192]{0}', space=vmem, size = 0x2000, scoped, tag = 'input window, operand 0']
    #allocation5 [shape = 's32[2]{0}', space=sflag, size = 0x8, scoped, tag = 'scoped memory for tpu_custom_call.1']
    #allocation6 [shape = 's32[2]{0}', space=sflag, size = 0x8, scoped, tag = 'scoped memory for tpu_custom_call.1']
    #allocation7 [shape = 'u8[8192]{0}', space=vmem, size = 0x2000, scoped, tag = 'input window, operand 1']
    #allocation8 [shape = 's32[2]{0}', space=sflag, size = 0x8, scoped, tag = 'scoped memory for tpu_custom_call.1']
    #allocation9 [shape = 'u8[8192]{0}', space=vmem, size = 0x2000, scoped, tag = 'input window, operand 2']
    #allocation10 [shape = 'u8[65536]{0}', space=vmem, size = 0x10000, scoped, tag = 'input window, operand 3']
    #allocation11 [shape = 's32[2]{0}', space=sflag, size = 0x8, scoped, tag = 'scoped memory for tpu_custom_call.1']
    #allocation12 [shape = 'u8[16384]{0}', space=vmem, size = 0x4000, scoped, tag = 'input window, operand 7, single buffered']
    #allocation13 [shape = 'u8[16384]{0}', space=vmem, size = 0x4000, scoped, tag = 'input window, operand 8, single buffered']
    #allocation14 [shape = 's32[1]{0}', space=sflag, size = 0x4, scoped, tag = 'scoped memory for tpu_custom_call.1']
    #allocation15 [shape = 'u8[512]{0}', space=vmem, size = 0x400, scoped, tag = 'input window, operand 9, single buffered']
    #allocation16 [shape = 'u8[512]{0}', space=vmem, size = 0x400, scoped, tag = 'input window, operand 10, single buffered']
    #allocation17 [shape = 's32[1]{0}', space=sflag, size = 0x4, scoped, tag = 'scoped memory for tpu_custom_call.1']
    #allocation18 [shape = 'u8[512]{0}', space=vmem, size = 0x400, scoped, tag = 'input window, operand 11, single buffered']
    #allocation19 [shape = 'u8[8192]{0}', space=vmem, size = 0x2000, scoped, tag = 'output window, operand 0']
    %19 = vsyncpa [#allocation5], 0
    %s20 = scalar_lea.sflag [#allocation5], 1
    %21 = vsyncpa %s20, 0
    %22 = vsyncpa [#allocation8], 0
    %s23 = scalar_lea.sflag [#allocation8], 1
    %24 = vsyncpa %s23, 0
    %25 = vsyncpa [#allocation11], 0
    %s26 = scalar_lea.sflag [#allocation11], 1
    %27 = vsyncpa %s26, 0
    %28 = vsyncpa [#allocation14], 0
    %29 = vsyncpa [#allocation17], 0
    %30 = vsyncpa [#allocation6], 0
    %s31 = scalar_lea.sflag [#allocation6], 1
    %32 = vsyncpa %s31, 0
    loop: start=0, step=1, limit=4
    $region2: #{tpu_custom_call.1} parent=1 // loop_pre_header
      _
    $region3: #{tpu_custom_call.1} parent=1 // loop_header
      %s34 = sphi 0, %s38
      %p35 = scmp.ge.s32.totalorder %s34, 4
      %s41 = sphi 0, %s53
      %s42 = sphi 0, %s49
      %s43 = sphi 0, %s41
      %s44 = sphi 0, %s42
      %s45 = sphi 0, %s43
      %s46 = sphi 0, %s44
      %s58 = sphi 0, %s60
      %s61 = sphi 0, %s58
      %s62 = sphi 0, %s61
      %s78 = sphi 0, %s62
      %s84 = sphi 0, %s86
      %s87 = sphi 0, %s84
      %s88 = sphi 0, %s87
      %s104 = sphi 0, %s88
      %s110 = sphi 0, %s112
      %s113 = sphi 0, %s110
      %s114 = sphi 0, %s113
      %s130 = sphi 0, %s114
      %s138 = sphi 0, %s140
      %s141 = sphi 0, %s138
      %s142 = sphi 0, %s141
      %s158 = sphi 0, %s142
      %s162 = sphi 0, %s162
      %s164 = sphi 0, %s162
      %s165 = sphi 0, %s164
      %s179 = sphi 0, %s165
      %s183 = sphi 0, %s183
      %s185 = sphi 0, %s183
      %s186 = sphi 0, %s185
      %s200 = sphi 0, %s186
      %s204 = sphi 0, %s204
      %s206 = sphi 0, %s204
      %s207 = sphi 0, %s206
      %s221 = sphi 0, %s207
      %s225 = sphi 0, %s225
      %s227 = sphi 0, %s225
      %s228 = sphi 0, %s227
      %s242 = sphi 0, %s228
      %s246 = sphi 0, %s246
      %s248 = sphi 0, %s246
      %s249 = sphi 0, %s248
      %s263 = sphi 0, %s249
      %s267 = sphi 0, %s267
      %s269 = sphi 0, %s267
      %s270 = sphi 0, %s269
      %s284 = sphi 0, %s270
      %s288 = sphi 0, %s288
      %s290 = sphi 0, %s288
      %s291 = sphi 0, %s290
      %s305 = sphi 0, %s291
      %s309 = sphi 0, %s309
      %s311 = sphi 0, %s309
      %s312 = sphi 0, %s311
      %s326 = sphi 0, %s312
      %s330 = sphi 0, %s330
      %s332 = sphi 0, %s330
      %s333 = sphi 0, %s332
      %s347 = sphi 0, %s333
      %s351 = sphi 0, %s351
      %s353 = sphi 0, %s351
      %s354 = sphi 0, %s353
      %s368 = sphi 0, %s354
      %s376 = sphi 0, %s378
      %s379 = sphi 0, %s376
      %s380 = sphi 0, %s379
      %s396 = sphi 0, %s380
    $region4: #{tpu_custom_call.1} parent=1 // loop_header_branch
      %37 = sbr.rel (%p35) target = $region8
    $region5: #{tpu_custom_call.1} parent=1 // loop_body
      %s39 = ssub.s32 %s34, 1
      %s40 = ssub.s32 %s34, 2
      %s47 = sadd.s32 1, %s42
      %p48 = scmp.ge.s32.totalorder %s47, 1
      %s49 = scalar_select %p48, 0, %s47
      %s50 = sadd.s32 1, %s41
      %s51 = scalar_select %p48, %s50, %s41
      %p52 = scmp.ge.s32.totalorder %s51, 2
      %s53 = scalar_select %p52, 0, %s51
      %s54 = ssub.s32 %s41, %s53
      %s55 = ssub.s32 %s42, %s49
      %s56 = sor.u32 %s54, %s55
      %p57 = scmp.eq.s32.totalorder %s56, 0
      %s59 = sadd.s32 %s58, 1
      %s60 = scalar_select %p57, %s58, %s59
      %p63 = pneg %p57
      %p64 = scmp.eq.s32.totalorder %s34, 1
      %p65 = por %p63, %p64
      %p66 = scmp.ne.s32.totalorder %s58, %s61
      %p67 = scmp.eq.s32.totalorder %s34, 0
      %p68 = por %p66, %p67
      %p69 = scmp.ne.s32.totalorder %s58, %s61
      %p70 = scmp.eq.s32.totalorder %s39, 1
      %p71 = por %p69, %p70
      %p72 = scmp.ne.s32.totalorder %s61, %s62
      %p73 = scmp.eq.s32.totalorder %s39, 0
      %p74 = por %p72, %p73
      %p75 = scmp.ne.s32.totalorder %s61, %s62
      %p76 = scmp.eq.s32.totalorder %s40, 1
      %p77 = por %p75, %p76
      %p79 = scmp.ne.s32.totalorder %s62, %s78
      %p80 = scmp.eq.s32.totalorder %s40, 0
      %p81 = por %p79, %p80
      %s82 = ssub.s32 %s41, %s53
      %p83 = scmp.eq.s32.totalorder %s82, 0
      %s85 = sadd.s32 %s84, 1
      %s86 = scalar_select %p83, %s84, %s85
      %p89 = pneg %p83
      %p90 = scmp.eq.s32.totalorder %s34, 1
      %p91 = por %p89, %p90
      %p92 = scmp.ne.s32.totalorder %s84, %s87
      %p93 = scmp.eq.s32.totalorder %s34, 0
      %p94 = por %p92, %p93
      %p95 = scmp.ne.s32.totalorder %s84, %s87
      %p96 = scmp.eq.s32.totalorder %s39, 1
      %p97 = por %p95, %p96
      %p98 = scmp.ne.s32.totalorder %s87, %s88
      %p99 = scmp.eq.s32.totalorder %s39, 0
      %p100 = por %p98, %p99
      %p101 = scmp.ne.s32.totalorder %s87, %s88
      %p102 = scmp.eq.s32.totalorder %s40, 1
      %p103 = por %p101, %p102
      %p105 = scmp.ne.s32.totalorder %s88, %s104
      %p106 = scmp.eq.s32.totalorder %s40, 0
      %p107 = por %p105, %p106
      %s108 = ssub.s32 %s41, %s53
      %p109 = scmp.eq.s32.totalorder %s108, 0
      %s111 = sadd.s32 %s110, 1
      %s112 = scalar_select %p109, %s110, %s111
      %p115 = pneg %p109
      %p116 = scmp.eq.s32.totalorder %s34, 1
      %p117 = por %p115, %p116
      %p118 = scmp.ne.s32.totalorder %s110, %s113
      %p119 = scmp.eq.s32.totalorder %s34, 0
      %p120 = por %p118, %p119
      %p121 = scmp.ne.s32.totalorder %s110, %s113
      %p122 = scmp.eq.s32.totalorder %s39, 1
      %p123 = por %p121, %p122
      %p124 = scmp.ne.s32.totalorder %s113, %s114
      %p125 = scmp.eq.s32.totalorder %s39, 0
      %p126 = por %p124, %p125
      %p127 = scmp.ne.s32.totalorder %s113, %s114
      %p128 = scmp.eq.s32.totalorder %s40, 1
      %p129 = por %p127, %p128
      %p131 = scmp.ne.s32.totalorder %s114, %s130
      %p132 = scmp.eq.s32.totalorder %s40, 0
      %p133 = por %p131, %p132
      %s134 = ssub.s32 %s41, %s53
      %s135 = ssub.s32 %s42, %s49
      %s136 = sor.u32 %s134, %s135
      %p137 = scmp.eq.s32.totalorder %s136, 0
      %s139 = sadd.s32 %s138, 1
      %s140 = scalar_select %p137, %s138, %s139
      %p143 = pneg %p137
      %p144 = scmp.eq.s32.totalorder %s34, 1
      %p145 = por %p143, %p144
      %p146 = scmp.ne.s32.totalorder %s138, %s141
      %p147 = scmp.eq.s32.totalorder %s34, 0
      %p148 = por %p146, %p147
      %p149 = scmp.ne.s32.totalorder %s138, %s141
      %p150 = scmp.eq.s32.totalorder %s39, 1
      %p151 = por %p149, %p150
      %p152 = scmp.ne.s32.totalorder %s141, %s142
      %p153 = scmp.eq.s32.totalorder %s39, 0
      %p154 = por %p152, %p153
      %p155 = scmp.ne.s32.totalorder %s141, %s142
      %p156 = scmp.eq.s32.totalorder %s40, 1
      %p157 = por %p155, %p156
      %p159 = scmp.ne.s32.totalorder %s142, %s158
      %p160 = scmp.eq.s32.totalorder %s40, 0
      %p161 = por %p159, %p160
      %s163 = sadd.s32 %s162, 1
      %p166 = scmp.eq.s32.totalorder %s34, 1
      %p167 = scmp.ne.s32.totalorder %s162, %s164
      %p168 = scmp.eq.s32.totalorder %s34, 0
      %p169 = por %p167, %p168
      %p170 = scmp.ne.s32.totalorder %s162, %s164
      %p171 = scmp.eq.s32.totalorder %s39, 1
      %p172 = por %p170, %p171
      %p173 = scmp.ne.s32.totalorder %s164, %s165
      %p174 = scmp.eq.s32.totalorder %s39, 0
      %p175 = por %p173, %p174
      %p176 = scmp.ne.s32.totalorder %s164, %s165
      %p177 = scmp.eq.s32.totalorder %s40, 1
      %p178 = por %p176, %p177
      %p180 = scmp.ne.s32.totalorder %s165, %s179
      %p181 = scmp.eq.s32.totalorder %s40, 0
      %p182 = por %p180, %p181
      %s184 = sadd.s32 %s183, 1
      %p187 = scmp.eq.s32.totalorder %s34, 1
      %p188 = scmp.ne.s32.totalorder %s183, %s185
      %p189 = scmp.eq.s32.totalorder %s34, 0
      %p190 = por %p188, %p189
      %p191 = scmp.ne.s32.totalorder %s183, %s185
      %p192 = scmp.eq.s32.totalorder %s39, 1
      %p193 = por %p191, %p192
      %p194 = scmp.ne.s32.totalorder %s185, %s186
      %p195 = scmp.eq.s32.totalorder %s39, 0
      %p196 = por %p194, %p195
      %p197 = scmp.ne.s32.totalorder %s185, %s186
      %p198 = scmp.eq.s32.totalorder %s40, 1
      %p199 = por %p197, %p198
      %p201 = scmp.ne.s32.totalorder %s186, %s200
      %p202 = scmp.eq.s32.totalorder %s40, 0
      %p203 = por %p201, %p202
      %s205 = sadd.s32 %s204, 1
      %p208 = scmp.eq.s32.totalorder %s34, 1
      %p209 = scmp.ne.s32.totalorder %s204, %s206
      %p210 = scmp.eq.s32.totalorder %s34, 0
      %p211 = por %p209, %p210
      %p212 = scmp.ne.s32.totalorder %s204, %s206
      %p213 = scmp.eq.s32.totalorder %s39, 1
      %p214 = por %p212, %p213
      %p215 = scmp.ne.s32.totalorder %s206, %s207
      %p216 = scmp.eq.s32.totalorder %s39, 0
      %p217 = por %p215, %p216
      %p218 = scmp.ne.s32.totalorder %s206, %s207
      %p219 = scmp.eq.s32.totalorder %s40, 1
      %p220 = por %p218, %p219
      %p222 = scmp.ne.s32.totalorder %s207, %s221
      %p223 = scmp.eq.s32.totalorder %s40, 0
      %p224 = por %p222, %p223
      %s226 = sadd.s32 %s225, 1
      %p229 = scmp.eq.s32.totalorder %s34, 1
      %p230 = scmp.ne.s32.totalorder %s225, %s227
      %p231 = scmp.eq.s32.totalorder %s34, 0
      %p232 = por %p230, %p231
      %p233 = scmp.ne.s32.totalorder %s225, %s227
      %p234 = scmp.eq.s32.totalorder %s39, 1
      %p235 = por %p233, %p234
      %p236 = scmp.ne.s32.totalorder %s227, %s228
      %p237 = scmp.eq.s32.totalorder %s39, 0
      %p238 = por %p236, %p237
      %p239 = scmp.ne.s32.totalorder %s227, %s228
      %p240 = scmp.eq.s32.totalorder %s40, 1
      %p241 = por %p239, %p240
      %p243 = scmp.ne.s32.totalorder %s228, %s242
      %p244 = scmp.eq.s32.totalorder %s40, 0
      %p245 = por %p243, %p244
      %s247 = sadd.s32 %s246, 1
      %p250 = scmp.eq.s32.totalorder %s34, 1
      %p251 = scmp.ne.s32.totalorder %s246, %s248
      %p252 = scmp.eq.s32.totalorder %s34, 0
      %p253 = por %p251, %p252
      %p254 = scmp.ne.s32.totalorder %s246, %s248
      %p255 = scmp.eq.s32.totalorder %s39, 1
      %p256 = por %p254, %p255
      %p257 = scmp.ne.s32.totalorder %s248, %s249
      %p258 = scmp.eq.s32.totalorder %s39, 0
      %p259 = por %p257, %p258
      %p260 = scmp.ne.s32.totalorder %s248, %s249
      %p261 = scmp.eq.s32.totalorder %s40, 1
      %p262 = por %p260, %p261
      %p264 = scmp.ne.s32.totalorder %s249, %s263
      %p265 = scmp.eq.s32.totalorder %s40, 0
      %p266 = por %p264, %p265
      %s268 = sadd.s32 %s267, 1
      %p271 = scmp.eq.s32.totalorder %s34, 1
      %p272 = scmp.ne.s32.totalorder %s267, %s269
      %p273 = scmp.eq.s32.totalorder %s34, 0
      %p274 = por %p272, %p273
      %p275 = scmp.ne.s32.totalorder %s267, %s269
      %p276 = scmp.eq.s32.totalorder %s39, 1
      %p277 = por %p275, %p276
      %p278 = scmp.ne.s32.totalorder %s269, %s270
      %p279 = scmp.eq.s32.totalorder %s39, 0
      %p280 = por %p278, %p279
      %p281 = scmp.ne.s32.totalorder %s269, %s270
      %p282 = scmp.eq.s32.totalorder %s40, 1
      %p283 = por %p281, %p282
      %p285 = scmp.ne.s32.totalorder %s270, %s284
      %p286 = scmp.eq.s32.totalorder %s40, 0
      %p287 = por %p285, %p286
      %s289 = sadd.s32 %s288, 1
      %p292 = scmp.eq.s32.totalorder %s34, 1
      %p293 = scmp.ne.s32.totalorder %s288, %s290
      %p294 = scmp.eq.s32.totalorder %s34, 0
      %p295 = por %p293, %p294
      %p296 = scmp.ne.s32.totalorder %s288, %s290
      %p297 = scmp.eq.s32.totalorder %s39, 1
      %p298 = por %p296, %p297
      %p299 = scmp.ne.s32.totalorder %s290, %s291
      %p300 = scmp.eq.s32.totalorder %s39, 0
      %p301 = por %p299, %p300
      %p302 = scmp.ne.s32.totalorder %s290, %s291
      %p303 = scmp.eq.s32.totalorder %s40, 1
      %p304 = por %p302, %p303
      %p306 = scmp.ne.s32.totalorder %s291, %s305
      %p307 = scmp.eq.s32.totalorder %s40, 0
      %p308 = por %p306, %p307
      %s310 = sadd.s32 %s309, 1
      %p313 = scmp.eq.s32.totalorder %s34, 1
      %p314 = scmp.ne.s32.totalorder %s309, %s311
      %p315 = scmp.eq.s32.totalorder %s34, 0
      %p316 = por %p314, %p315
      %p317 = scmp.ne.s32.totalorder %s309, %s311
      %p318 = scmp.eq.s32.totalorder %s39, 1
      %p319 = por %p317, %p318
      %p320 = scmp.ne.s32.totalorder %s311, %s312
      %p321 = scmp.eq.s32.totalorder %s39, 0
      %p322 = por %p320, %p321
      %p323 = scmp.ne.s32.totalorder %s311, %s312
      %p324 = scmp.eq.s32.totalorder %s40, 1
      %p325 = por %p323, %p324
      %p327 = scmp.ne.s32.totalorder %s312, %s326
      %p328 = scmp.eq.s32.totalorder %s40, 0
      %p329 = por %p327, %p328
      %s331 = sadd.s32 %s330, 1
      %p334 = scmp.eq.s32.totalorder %s34, 1
      %p335 = scmp.ne.s32.totalorder %s330, %s332
      %p336 = scmp.eq.s32.totalorder %s34, 0
      %p337 = por %p335, %p336
      %p338 = scmp.ne.s32.totalorder %s330, %s332
      %p339 = scmp.eq.s32.totalorder %s39, 1
      %p340 = por %p338, %p339
      %p341 = scmp.ne.s32.totalorder %s332, %s333
      %p342 = scmp.eq.s32.totalorder %s39, 0
      %p343 = por %p341, %p342
      %p344 = scmp.ne.s32.totalorder %s332, %s333
      %p345 = scmp.eq.s32.totalorder %s40, 1
      %p346 = por %p344, %p345
      %p348 = scmp.ne.s32.totalorder %s333, %s347
      %p349 = scmp.eq.s32.totalorder %s40, 0
      %p350 = por %p348, %p349
      %s352 = sadd.s32 %s351, 1
      %p355 = scmp.eq.s32.totalorder %s34, 1
      %p356 = scmp.ne.s32.totalorder %s351, %s353
      %p357 = scmp.eq.s32.totalorder %s34, 0
      %p358 = por %p356, %p357
      %p359 = scmp.ne.s32.totalorder %s351, %s353
      %p360 = scmp.eq.s32.totalorder %s39, 1
      %p361 = por %p359, %p360
      %p362 = scmp.ne.s32.totalorder %s353, %s354
      %p363 = scmp.eq.s32.totalorder %s39, 0
      %p364 = por %p362, %p363
      %p365 = scmp.ne.s32.totalorder %s353, %s354
      %p366 = scmp.eq.s32.totalorder %s40, 1
      %p367 = por %p365, %p366
      %p369 = scmp.ne.s32.totalorder %s354, %s368
      %p370 = scmp.eq.s32.totalorder %s40, 0
      %p371 = por %p369, %p370
      %s372 = ssub.s32 %s41, %s53
      %s373 = ssub.s32 %s42, %s49
      %s374 = sor.u32 %s372, %s373
      %p375 = scmp.eq.s32.totalorder %s374, 0
      %s377 = sadd.s32 %s376, 1
      %s378 = scalar_select %p375, %s376, %s377
      %p381 = pneg %p375
      %p382 = scmp.eq.s32.totalorder %s34, 1
      %p383 = por %p381, %p382
      %p384 = scmp.ne.s32.totalorder %s376, %s379
      %p385 = scmp.eq.s32.totalorder %s34, 0
      %p386 = por %p384, %p385
      %p387 = scmp.ne.s32.totalorder %s376, %s379
      %p388 = scmp.eq.s32.totalorder %s39, 1
      %p389 = por %p387, %p388
      %p390 = scmp.ne.s32.totalorder %s379, %s380
      %p391 = scmp.eq.s32.totalorder %s39, 0
      %p392 = por %p390, %p391
      %p393 = scmp.ne.s32.totalorder %s379, %s380
      %p394 = scmp.eq.s32.totalorder %s40, 1
      %p395 = por %p393, %p394
      %p397 = scmp.ne.s32.totalorder %s380, %s396
      %p398 = scmp.eq.s32.totalorder %s40, 0
      %p399 = por %p397, %p398
      %p400 = scmp.le.s32.totalorder 1, %s34
      %p401 = scmp.lt.s32.totalorder %s34, 3
      %p402 = pnand %p400, %p401
      %p403 = pneg %p402
      // Predicated region
      $region9: #{tpu_custom_call.1} parent=5 // pred_check
        _
      $region10: #{tpu_custom_call.1} parent=5 // pred_check_branch
        %405 = sbr.rel (%p402) target = $region12
      $region11: #{tpu_custom_call.1} parent=5 // pred_region
        %s406 = ssub.s32 %s34, 1
        // Predicated region
        $region13: #{tpu_custom_call.1} parent=11 // pred_check
          %p407 = pneg %p175
        $region14: #{tpu_custom_call.1} parent=11 // pred_check_branch
          %409 = sbr.rel (%p407) target = $region16
        $region15: #{tpu_custom_call.1} parent=11 // pred_region
          _
        $region16: #{tpu_custom_call.1} parent=11 // pred_fallthru
          _
        // Predicated region
        $region17: #{tpu_custom_call.1} parent=11 // pred_check
          %p410 = pneg %p196
        $region18: #{tpu_custom_call.1} parent=11 // pred_check_branch
          %412 = sbr.rel (%p410) target = $region20
        $region19: #{tpu_custom_call.1} parent=11 // pred_region
          _
        $region20: #{tpu_custom_call.1} parent=11 // pred_fallthru
          _
        // Predicated region
        $region21: #{tpu_custom_call.1} parent=11 // pred_check
          %p413 = pneg %p217
        $region22: #{tpu_custom_call.1} parent=11 // pred_check_branch
          %415 = sbr.rel (%p413) target = $region24
        $region23: #{tpu_custom_call.1} parent=11 // pred_region
          _
        $region24: #{tpu_custom_call.1} parent=11 // pred_fallthru
          _
        // Predicated region
        $region25: #{tpu_custom_call.1} parent=11 // pred_check
          %p416 = pneg %p238
        $region26: #{tpu_custom_call.1} parent=11 // pred_check_branch
          %418 = sbr.rel (%p416) target = $region28
        $region27: #{tpu_custom_call.1} parent=11 // pred_region
          %s420 = ssub.s32 512, 512
          %421 = vsyncadd [#allocation11], %s420
          %s422 = sshll.u32 [#allocation12], 4
          %s423 = int_to_ptr.vmem [resolvable:$true] %s422
          %428 = dma.hbm_to_vmem [thread:$0]  %s7, 512, %s423, [#allocation11], 128, 128, 8
        $region28: #{tpu_custom_call.1} parent=11 // pred_fallthru
          _
        // Predicated region
        $region29: #{tpu_custom_call.1} parent=11 // pred_check
          %p429 = pneg %p259
        $region30: #{tpu_custom_call.1} parent=11 // pred_check_branch
          %431 = sbr.rel (%p429) target = $region32
        $region31: #{tpu_custom_call.1} parent=11 // pred_region
          %s433 = ssub.s32 512, 512
          %434 = vsyncadd [#allocation14], %s433
          %s435 = sshll.u32 [#allocation13], 4
          %s436 = int_to_ptr.vmem [resolvable:$true] %s435
          %441 = dma.hbm_to_vmem [thread:$0]  %s8, 512, %s436, [#allocation14], 128, 128, 8
        $region32: #{tpu_custom_call.1} parent=11 // pred_fallthru
          _
        // Predicated region
        $region33: #{tpu_custom_call.1} parent=11 // pred_check
          %p442 = pneg %p280
        $region34: #{tpu_custom_call.1} parent=11 // pred_check_branch
          %444 = sbr.rel (%p442) target = $region36
        $region35: #{tpu_custom_call.1} parent=11 // pred_region
          %s446 = ssub.s32 16, 16
          %447 = vsyncadd [#allocation14], %s446
          %s449 = sshll.u32 [#allocation15], 4
          %s450 = int_to_ptr.vmem [resolvable:$true] %s449
          %452 = dma.hbm_to_vmem [thread:$0]  %s9, 16, %s450, [#allocation14]
        $region36: #{tpu_custom_call.1} parent=11 // pred_fallthru
          _
        // Predicated region
        $region37: #{tpu_custom_call.1} parent=11 // pred_check
          %p453 = pneg %p301
        $region38: #{tpu_custom_call.1} parent=11 // pred_check_branch
          %455 = sbr.rel (%p453) target = $region40
        $region39: #{tpu_custom_call.1} parent=11 // pred_region
          %s457 = ssub.s32 16, 16
          %458 = vsyncadd [#allocation17], %s457
          %s460 = sshll.u32 [#allocation16], 4
          %s461 = int_to_ptr.vmem [resolvable:$true] %s460
          %463 = dma.hbm_to_vmem [thread:$0]  %s10, 16, %s461, [#allocation17]
        $region40: #{tpu_custom_call.1} parent=11 // pred_fallthru
          _
        // Predicated region
        $region41: #{tpu_custom_call.1} parent=11 // pred_check
          %p464 = pneg %p322
        $region42: #{tpu_custom_call.1} parent=11 // pred_check_branch
          %466 = sbr.rel (%p464) target = $region44
        $region43: #{tpu_custom_call.1} parent=11 // pred_region
          %s468 = ssub.s32 16, 16
          %469 = vsyncadd [#allocation17], %s468
          %s471 = sshll.u32 [#allocation18], 4
          %s472 = int_to_ptr.vmem [resolvable:$true] %s471
          %474 = dma.hbm_to_vmem [thread:$0]  %s11, 16, %s472, [#allocation17]
        $region44: #{tpu_custom_call.1} parent=11 // pred_fallthru
          _
        // Predicated region
        $region45: #{tpu_custom_call.1} parent=11 // pred_check
          %p475 = pneg %p343
        $region46: #{tpu_custom_call.1} parent=11 // pred_check_branch
          %477 = sbr.rel (%p475) target = $region48
        $region47: #{tpu_custom_call.1} parent=11 // pred_region
          _
        $region48: #{tpu_custom_call.1} parent=11 // pred_fallthru
          _
        // Predicated region
        $region49: #{tpu_custom_call.1} parent=11 // pred_check
          %p478 = pneg %p364
        $region50: #{tpu_custom_call.1} parent=11 // pred_check_branch
          %480 = sbr.rel (%p478) target = $region52
        $region51: #{tpu_custom_call.1} parent=11 // pred_region
          _
        $region52: #{tpu_custom_call.1} parent=11 // pred_fallthru
          _
      $region12: #{tpu_custom_call.1} parent=5 // pred_fallthru
        _
      %p481 = scmp.lt.s32.totalorder %s34, 2
      // Predicated region
      $region53: #{tpu_custom_call.1} parent=5 // pred_check
        %p482 = pneg %p481
      $region54: #{tpu_custom_call.1} parent=5 // pred_check_branch
        %484 = sbr.rel (%p482) target = $region56
      $region55: #{tpu_custom_call.1} parent=5 // pred_region
        // Predicated region
        $region57: #{tpu_custom_call.1} parent=55 // pred_check
          %p485 = pneg %p68
        $region58: #{tpu_custom_call.1} parent=55 // pred_check_branch
          %487 = sbr.rel (%p485) target = $region60
        $region59: #{tpu_custom_call.1} parent=55 // pred_region
          %s488 = sand.u32 %s58, 1
          %s489 = scalar_lea.sflag [#allocation5], %s488
          %s490 = sand.u32 %s58, 1
          %s491 = smul.addr %s490, 8
          %s492 = scalar_lea.vmem [#allocation4], %s491
          %s494 = ssub.s32 128, 128
          %495 = vsyncadd %s489, %s494
          %s496 = sadd.s32 %s42, %s41
          %s497 = smul.addr %s496, 128
          %s498 = scalar_lea.hbm %s0, %s497
          %s500 = sshll.u32 %s492, 4
          %s501 = int_to_ptr.vmem [resolvable:$true] %s500
          %503 = dma.hbm_to_vmem [thread:$0]  %s498, 128, %s501, %s489
        $region60: #{tpu_custom_call.1} parent=55 // pred_fallthru
          _
        // Predicated region
        $region61: #{tpu_custom_call.1} parent=55 // pred_check
          %p504 = pneg %p94
        $region62: #{tpu_custom_call.1} parent=55 // pred_check_branch
          %506 = sbr.rel (%p504) target = $region64
        $region63: #{tpu_custom_call.1} parent=55 // pred_region
          %s507 = sand.u32 %s34, 1
          %s508 = scalar_lea.sflag [#allocation8], %s507
          %s509 = sand.u32 %s84, 1
          %s510 = smul.addr %s509, 8
          %s511 = scalar_lea.vmem [#allocation7], %s510
          %s513 = ssub.s32 128, 128
          %514 = vsyncadd %s508, %s513
          %s515 = smul.addr %s41, 128
          %s516 = scalar_lea.hbm %s1, %s515
          %s518 = sshll.u32 %s511, 4
          %s519 = int_to_ptr.vmem [resolvable:$true] %s518
          %521 = dma.hbm_to_vmem [thread:$0]  %s516, 128, %s519, %s508
        $region64: #{tpu_custom_call.1} parent=55 // pred_fallthru
          _
        // Predicated region
        $region65: #{tpu_custom_call.1} parent=55 // pred_check
          %p522 = pneg %p120
        $region66: #{tpu_custom_call.1} parent=55 // pred_check_branch
          %524 = sbr.rel (%p522) target = $region68
        $region67: #{tpu_custom_call.1} parent=55 // pred_region
          %s525 = sand.u32 %s34, 1
          %s526 = scalar_lea.sflag [#allocation8], %s525
          %s527 = sand.u32 %s110, 1
          %s528 = smul.addr %s527, 8
          %s529 = scalar_lea.vmem [#allocation9], %s528
          %s531 = ssub.s32 128, 128
          %532 = vsyncadd %s526, %s531
          %s533 = smul.addr %s41, 128
          %s534 = scalar_lea.hbm %s2, %s533
          %s536 = sshll.u32 %s529, 4
          %s537 = int_to_ptr.vmem [resolvable:$true] %s536
          %539 = dma.hbm_to_vmem [thread:$0]  %s534, 128, %s537, %s526
        $region68: #{tpu_custom_call.1} parent=55 // pred_fallthru
          _
        // Predicated region
        $region69: #{tpu_custom_call.1} parent=55 // pred_check
          %p540 = pneg %p148
        $region70: #{tpu_custom_call.1} parent=55 // pred_check_branch
          %542 = sbr.rel (%p540) target = $region72
        $region71: #{tpu_custom_call.1} parent=55 // pred_region
          %s543 = sand.u32 %s34, 1
          %s544 = scalar_lea.sflag [#allocation11], %s543
          %s545 = sand.u32 %s138, 1
          %s546 = smul.addr %s545, 64
          %s547 = scalar_lea.vmem [#allocation10], %s546
          %s548 = smul.u32 8, %s42
          %s550 = ssub.s32 1024, 1024
          %551 = vsyncadd %s544, %s550
          %s552 = smul.addr %s41, 8
          %s553 = sadd.s32 %s548, %s552
          %s554 = smul.addr %s553, 128
          %s555 = scalar_lea.hbm %s3, %s554
          %s556 = sshll.u32 %s547, 4
          %s557 = int_to_ptr.vmem [resolvable:$true] %s556
          %562 = dma.hbm_to_vmem [thread:$0]  %s555, 1024, %s557, %s544, 128, 128, 8
        $region72: #{tpu_custom_call.1} parent=55 // pred_fallthru
          _
      $region56: #{tpu_custom_call.1} parent=5 // pred_fallthru
        _
      %p563 = scmp.le.s32.totalorder 1, %s34
      %p564 = scmp.lt.s32.totalorder %s34, 3
      %p565 = pnand %p563, %p564
      %p566 = pneg %p565
      // Predicated region
      $region73: #{tpu_custom_call.1} parent=5 // pred_check
        _
      $region74: #{tpu_custom_call.1} parent=5 // pred_check_branch
        %568 = sbr.rel (%p565) target = $region76
      $region75: #{tpu_custom_call.1} parent=5 // pred_region
        %s569 = ssub.s32 %s34, 1
        %s570 = sand.u32 %s61, 1
        %s571 = scalar_lea.sflag [#allocation5], %s570
        %s572 = sand.u32 %s61, 1
        %s573 = smul.addr %s572, 8
        %s574 = scalar_lea.vmem [#allocation4], %s573
        // Predicated region
        $region77: #{tpu_custom_call.1} parent=75 // pred_check
          %p575 = pneg %p74
        $region78: #{tpu_custom_call.1} parent=75 // pred_check_branch
          %577 = sbr.rel (%p575) target = $region80
        $region79: #{tpu_custom_call.1} parent=75 // pred_region
          %578 = dma.done %s571, 128
        $region80: #{tpu_custom_call.1} parent=75 // pred_fallthru
          _
        %s579 = sand.u32 %s39, 1
        %s580 = scalar_lea.sflag [#allocation8], %s579
        %s581 = sand.u32 %s87, 1
        %s582 = smul.addr %s581, 8
        %s583 = scalar_lea.vmem [#allocation7], %s582
        // Predicated region
        $region81: #{tpu_custom_call.1} parent=75 // pred_check
          %p584 = pneg %p100
        $region82: #{tpu_custom_call.1} parent=75 // pred_check_branch
          %586 = sbr.rel (%p584) target = $region84
        $region83: #{tpu_custom_call.1} parent=75 // pred_region
          %587 = dma.done %s580, 128
        $region84: #{tpu_custom_call.1} parent=75 // pred_fallthru
          _
        %s588 = sand.u32 %s39, 1
        %s589 = scalar_lea.sflag [#allocation8], %s588
        %s590 = sand.u32 %s113, 1
        %s591 = smul.addr %s590, 8
        %s592 = scalar_lea.vmem [#allocation9], %s591
        // Predicated region
        $region85: #{tpu_custom_call.1} parent=75 // pred_check
          %p593 = pneg %p126
        $region86: #{tpu_custom_call.1} parent=75 // pred_check_branch
          %595 = sbr.rel (%p593) target = $region88
        $region87: #{tpu_custom_call.1} parent=75 // pred_region
          %596 = dma.done %s589, 128
        $region88: #{tpu_custom_call.1} parent=75 // pred_fallthru
          _
        %s597 = sand.u32 %s39, 1
        %s598 = scalar_lea.sflag [#allocation11], %s597
        %s599 = sand.u32 %s141, 1
        %s600 = smul.addr %s599, 64
        %s601 = scalar_lea.vmem [#allocation10], %s600
        // Predicated region
        $region89: #{tpu_custom_call.1} parent=75 // pred_check
          %p602 = pneg %p154
        $region90: #{tpu_custom_call.1} parent=75 // pred_check_branch
          %604 = sbr.rel (%p602) target = $region92
        $region91: #{tpu_custom_call.1} parent=75 // pred_region
          %605 = dma.done %s598, 1024
        $region92: #{tpu_custom_call.1} parent=75 // pred_fallthru
          _
        // Predicated region
        $region93: #{tpu_custom_call.1} parent=75 // pred_check
          %p606 = pneg %p238
        $region94: #{tpu_custom_call.1} parent=75 // pred_check_branch
          %608 = sbr.rel (%p606) target = $region96
        $region95: #{tpu_custom_call.1} parent=75 // pred_region
          %609 = dma.done [#allocation11], 512
        $region96: #{tpu_custom_call.1} parent=75 // pred_fallthru
          _
        // Predicated region
        $region97: #{tpu_custom_call.1} parent=75 // pred_check
          %p610 = pneg %p259
        $region98: #{tpu_custom_call.1} parent=75 // pred_check_branch
          %612 = sbr.rel (%p610) target = $region100
        $region99: #{tpu_custom_call.1} parent=75 // pred_region
          %613 = dma.done [#allocation14], 512
        $region100: #{tpu_custom_call.1} parent=75 // pred_fallthru
          _
        // Predicated region
        $region101: #{tpu_custom_call.1} parent=75 // pred_check
          %p614 = pneg %p280
        $region102: #{tpu_custom_call.1} parent=75 // pred_check_branch
          %616 = sbr.rel (%p614) target = $region104
        $region103: #{tpu_custom_call.1} parent=75 // pred_region
          %617 = dma.done [#allocation14], 16
        $region104: #{tpu_custom_call.1} parent=75 // pred_fallthru
          _
        // Predicated region
        $region105: #{tpu_custom_call.1} parent=75 // pred_check
          %p618 = pneg %p301
        $region106: #{tpu_custom_call.1} parent=75 // pred_check_branch
          %620 = sbr.rel (%p618) target = $region108
        $region107: #{tpu_custom_call.1} parent=75 // pred_region
          %621 = dma.done [#allocation17], 16
        $region108: #{tpu_custom_call.1} parent=75 // pred_fallthru
          _
        // Predicated region
        $region109: #{tpu_custom_call.1} parent=75 // pred_check
          %p622 = pneg %p322
        $region110: #{tpu_custom_call.1} parent=75 // pred_check_branch
          %624 = sbr.rel (%p622) target = $region112
        $region111: #{tpu_custom_call.1} parent=75 // pred_region
          %625 = dma.done [#allocation17], 16
        $region112: #{tpu_custom_call.1} parent=75 // pred_fallthru
          _
        %s626 = sand.u32 %s61, 1
        %s627 = scalar_lea.sflag [#allocation5], %s626
        %s628 = sand.u32 %s61, 1
        %s629 = smul.addr %s628, 8
        %s630 = scalar_lea.vmem [#allocation4], %s629
        %p631 = pneg %p74
        %p632 = pneg %p71
        %s633 = sand.u32 %s39, 1
        %s634 = scalar_lea.sflag [#allocation8], %s633
        %s635 = sand.u32 %s87, 1
        %s636 = smul.addr %s635, 8
        %s637 = scalar_lea.vmem [#allocation7], %s636
        %p638 = pneg %p100
        %p639 = pneg %p97
        %s640 = sand.u32 %s39, 1
        %s641 = scalar_lea.sflag [#allocation8], %s640
        %s642 = sand.u32 %s113, 1
        %s643 = smul.addr %s642, 8
        %s644 = scalar_lea.vmem [#allocation9], %s643
        %p645 = pneg %p126
        %p646 = pneg %p123
        %s647 = sand.u32 %s39, 1
        %s648 = scalar_lea.sflag [#allocation11], %s647
        %s649 = sand.u32 %s141, 1
        %s650 = smul.addr %s649, 64
        %s651 = scalar_lea.vmem [#allocation10], %s650
        %p652 = pneg %p154
        %p653 = pneg %p151
        %p654 = pneg %p175
        %p655 = pneg %p172
        %p656 = pneg %p196
        %p657 = pneg %p193
        %p658 = pneg %p217
        %p659 = pneg %p214
        %p660 = pneg %p238
        %p661 = pneg %p235
        %p662 = pneg %p259
        %p663 = pneg %p256
        %p664 = pneg %p280
        %p665 = pneg %p277
        %p666 = pneg %p301
        %p667 = pneg %p298
        %p668 = pneg %p322
        %p669 = pneg %p319
        %p670 = pneg %p343
        %p671 = pneg %p340
        %p672 = pneg %p364
        %p673 = pneg %p361
        %p674 = pneg %p392
        %p675 = pneg %p389
        %s676 = sand.u32 %s379, 1
        %s677 = scalar_lea.sflag [#allocation6], %s676
        %s678 = sand.u32 %s379, 1
        %s679 = smul.addr %s678, 8
        %s680 = scalar_lea.vmem [#allocation19], %s679
        %s681 = smul.u32 8, %s44
        %p682 = scmp.eq.s32.totalorder %s44, 0
        // Predicated region
        $region113: #{tpu_custom_call.1} parent=75 // pred_check
          %p683 = pneg %p682
        $region114: #{tpu_custom_call.1} parent=75 // pred_check_branch
          %685 = sbr.rel (%p683) target = $region116
        $region115: #{tpu_custom_call.1} parent=75 // pred_region
          %v686 = vld [vmem:[%s583] sm:$0xff]
          %v687 = vld [vmem:[%s592] sm:$0xff]
          %v688 = vld [vmem:[#allocation12] sm:$0xff]
          %v689 = vld [vmem:[#allocation12 + $0x8] sm:$0xff]
          %v690 = vld [vmem:[#allocation12 + $0x10] sm:$0xff]
          %v691 = vld [vmem:[#allocation12 + $0x18] sm:$0xff]
          %v692 = vld [vmem:[#allocation16] sm:$0x1]
          %v694 = vlaneseq
          %v695 = vshrl.u32 %v694, 7
          %v696 = vsub.s32 0, %v695
          %v697 = vrot.slane %v692, %v696
          %vm699 = vcmask 261120
          %v701 = vsel %vm699, %v686, 0
          %703 = vmatprep.subr.mxu0 0.0
          %v704 = vand.u32 %v688, 4294901760
          %705 = vmatpush1.msra.mxu0 %v704
          %706 = vmatprep.subr.mxu0 0.0
          %v707 = vand.u32 %v689, 4294901760
          %708 = vmatpush1.msra.mxu0 %v707
          %709 = vmatprep.subr.mxu0 0.0
          %v710 = vand.u32 %v690, 4294901760
          %711 = vmatpush1.msra.mxu0 %v710
          %712 = vmatprep.subr.mxu0 0.0
          %v713 = vand.u32 %v691, 4294901760
          %714 = vmatpush1.msra.mxu0 %v713
          %715 = vmatprep.subr.mxu0 0.0
          %716 = vmatpush1.msra.mxu0 0.0
          %717 = vmatprep.subr.mxu0 0.0
          %718 = vmatpush1.msra.mxu0 0.0
          %719 = vmatprep.subr.mxu0 0.0
          %720 = vmatpush1.msra.mxu0 0.0
          %721 = vmatprep.subr.mxu0 0.0
          %722 = vmatpush1.msra.mxu0 0.0
          %723 = vmatprep.subr.mxu0 0.0
          %724 = vmatpush1.msra.mxu0 0.0
          %725 = vmatprep.subr.mxu0 0.0
          %726 = vmatpush1.msra.mxu0 0.0
          %727 = vmatprep.subr.mxu0 0.0
          %728 = vmatpush1.msra.mxu0 0.0
          %729 = vmatprep.subr.mxu0 0.0
          %730 = vmatpush1.msra.mxu0 0.0
          %731 = vmatprep.subr.mxu0 0.0
          %732 = vmatpush1.msra.mxu0 0.0
          %733 = vmatprep.subr.mxu0 0.0
          %734 = vmatpush1.msra.mxu0 0.0
          %735 = vmatprep.subr.mxu0 0.0
          %736 = vmatpush1.msra.mxu0 0.0
          %737 = vmatprep.subr.mxu0 0.0
          %738 = vmatpush1.msra.mxu0 0.0
          %739 = vmatprep.subr.mxu0 0.0
          %740 = vmatpush1.msra.mxu0 0.0
          %741 = vmatprep.subr.mxu0 0.0
          %742 = vmatpush1.msra.mxu0 0.0
          %743 = vmatprep.subr.mxu0 0.0
          %744 = vmatpush1.msra.mxu0 0.0
          %745 = vmatprep.subr.mxu0 0.0
          %746 = vmatpush1.msra.mxu0 0.0
          %747 = vmatprep.subr.mxu0 0.0
          %748 = vmatpush1.msra.mxu0 0.0
          %749 = vmatprep.subr.mxu0 0.0
          %750 = vmatpush1.msra.mxu0 0.0
          %751 = vmatprep.subr.mxu0 0.0
          %752 = vmatpush1.msra.mxu0 0.0
          %753 = vmatprep.subr.mxu0 0.0
          %754 = vmatpush1.msra.mxu0 0.0
          %755 = vmatprep.subr.mxu0 0.0
          %756 = vmatpush1.msra.mxu0 0.0
          %757 = vmatprep.subr.mxu0 0.0
          %758 = vmatpush1.msra.mxu0 0.0
          %759 = vmatprep.subr.mxu0 0.0
          %760 = vmatpush1.msra.mxu0 0.0
          %761 = vmatprep.subr.mxu0 0.0
          %762 = vmatpush1.msra.mxu0 0.0
          %763 = vmatprep.subr.mxu0 0.0
          %764 = vmatpush1.msra.mxu0 0.0
          %765 = vmatprep.subr.mxu0 0.0
          %766 = vmatpush1.msra.mxu0 0.0
          %767 = vmatprep.subr.mxu0 0.0
          %768 = vmatpush1.msra.mxu0 0.0
          %769 = vmatprep.subr.mxu0 0.0
          %770 = vmatpush1.msra.mxu0 0.0
          %771 = vmatprep.mubr.f32.mxu0 0.0
          %v772 = vand.u32 %v701, 4294901760
          %v773 = vsub.f32 %v701, %v772
          %v774 = vand.u32 %v773, 4294901760
          %v775 = vsub.f32 %v773, %v774
          %v776 = vand.u32 %v775, 4294901760
          %777 = vmatmul.mubr.f32.gmra.mrb[0].mxu0 %v776
          %v778 = vpop.f32.mrb[0].mxu0
          %v779 = vadd.f32 %v697, %v778
          %v780 = vpop.f32.mrb[0].mxu0
          %781 = vdwg.mxu0
          %782 = vmatprep.subr.mxu0 0.0
          %v783 = vand.u32 %v688, 4294901760
          %v784 = vsub.f32 %v688, %v783
          %v785 = vand.u32 %v784, 4294901760
          %v786 = vsub.f32 %v784, %v785
          %v787 = vand.u32 %v786, 4294901760
          %788 = vmatpush1.msra.mxu0 %v787
          %789 = vmatprep.subr.mxu0 0.0
          %v790 = vand.u32 %v689, 4294901760
          %v791 = vsub.f32 %v689, %v790
          %v792 = vand.u32 %v791, 4294901760
          %v793 = vsub.f32 %v791, %v792
          %v794 = vand.u32 %v793, 4294901760
          %795 = vmatpush1.msra.mxu0 %v794
          %796 = vmatprep.subr.mxu0 0.0
          %v797 = vand.u32 %v690, 4294901760
          %v798 = vsub.f32 %v690, %v797
          %v799 = vand.u32 %v798, 4294901760
          %v800 = vsub.f32 %v798, %v799
          %v801 = vand.u32 %v800, 4294901760
          %802 = vmatpush1.msra.mxu0 %v801
          %803 = vmatprep.subr.mxu0 0.0
          %v804 = vand.u32 %v691, 4294901760
          %v805 = vsub.f32 %v691, %v804
          %v806 = vand.u32 %v805, 4294901760
          %v807 = vsub.f32 %v805, %v806
          %v808 = vand.u32 %v807, 4294901760
          %809 = vmatpush1.msra.mxu0 %v808
          %810 = vmatprep.subr.mxu0 0.0
          %811 = vmatpush1.msra.mxu0 0.0
          %812 = vmatprep.subr.mxu0 0.0
          %813 = vmatpush1.msra.mxu0 0.0
          %814 = vmatprep.subr.mxu0 0.0
          %815 = vmatpush1.msra.mxu0 0.0
          %816 = vmatprep.subr.mxu0 0.0
          %817 = vmatpush1.msra.mxu0 0.0
          %818 = vmatprep.subr.mxu0 0.0
          %819 = vmatpush1.msra.mxu0 0.0
          %820 = vmatprep.subr.mxu0 0.0
          %821 = vmatpush1.msra.mxu0 0.0
          %822 = vmatprep.subr.mxu0 0.0
          %823 = vmatpush1.msra.mxu0 0.0
          %824 = vmatprep.subr.mxu0 0.0
          %825 = vmatpush1.msra.mxu0 0.0
          %826 = vmatprep.subr.mxu0 0.0
          %827 = vmatpush1.msra.mxu0 0.0
          %828 = vmatprep.subr.mxu0 0.0
          %829 = vmatpush1.msra.mxu0 0.0
          %830 = vmatprep.subr.mxu0 0.0
          %831 = vmatpush1.msra.mxu0 0.0
          %832 = vmatprep.subr.mxu0 0.0
          %833 = vmatpush1.msra.mxu0 0.0
          %834 = vmatprep.subr.mxu0 0.0
          %835 = vmatpush1.msra.mxu0 0.0
          %836 = vmatprep.subr.mxu0 0.0
          %837 = vmatpush1.msra.mxu0 0.0
          %838 = vmatprep.subr.mxu0 0.0
          %839 = vmatpush1.msra.mxu0 0.0
          %840 = vmatprep.subr.mxu0 0.0
          %841 = vmatpush1.msra.mxu0 0.0
          %842 = vmatprep.subr.mxu0 0.0
          %843 = vmatpush1.msra.mxu0 0.0
          %844 = vmatprep.subr.mxu0 0.0
          %845 = vmatpush1.msra.mxu0 0.0
          %846 = vmatprep.subr.mxu0 0.0
          %847 = vmatpush1.msra.mxu0 0.0
          %848 = vmatprep.subr.mxu0 0.0
          %849 = vmatpush1.msra.mxu0 0.0
          %850 = vmatprep.subr.mxu0 0.0
          %851 = vmatpush1.msra.mxu0 0.0
          %852 = vmatprep.subr.mxu0 0.0
          %853 = vmatpush1.msra.mxu0 0.0
          %854 = vmatprep.subr.mxu0 0.0
          %855 = vmatpush1.msra.mxu0 0.0
          %856 = vmatprep.subr.mxu0 0.0
          %857 = vmatpush1.msra.mxu0 0.0
          %858 = vmatprep.subr.mxu0 0.0
          %859 = vmatpush1.msra.mxu0 0.0
          %860 = vmatprep.subr.mxu0 0.0
          %861 = vmatpush1.msra.mxu0 0.0
          %862 = vmatprep.subr.mxu0 0.0
          %863 = vmatpush1.msra.mxu0 0.0
          %864 = vmatprep.subr.mxu0 0.0
          %865 = vmatpush1.msra.mxu0 0.0
          %866 = vmatprep.mubr.f32.mxu0 0.0
          %v867 = vand.u32 %v701, 4294901760
          %868 = vmatmul.mubr.f32.gmra.mrb[0].mxu0 %v867
          %v869 = vpop.f32.mrb[0].mxu0
          %v870 = vadd.f32 %v779, %v869
          %v871 = vpop.f32.mrb[0].mxu0
          %872 = vdwg.mxu0
          %873 = vmatprep.subr.mxu0 0.0
          %v874 = vand.u32 %v688, 4294901760
          %v875 = vsub.f32 %v688, %v874
          %876 = vmatpush1.msra.mxu0 %v875
          %877 = vmatprep.subr.mxu0 0.0
          %v878 = vand.u32 %v689, 4294901760
          %v879 = vsub.f32 %v689, %v878
          %880 = vmatpush1.msra.mxu0 %v879
          %881 = vmatprep.subr.mxu0 0.0
          %v882 = vand.u32 %v690, 4294901760
          %v883 = vsub.f32 %v690, %v882
          %884 = vmatpush1.msra.mxu0 %v883
          %885 = vmatprep.subr.mxu0 0.0
          %v886 = vand.u32 %v691, 4294901760
          %v887 = vsub.f32 %v691, %v886
          %888 = vmatpush1.msra.mxu0 %v887
          %889 = vmatprep.subr.mxu0 0.0
          %890 = vmatpush1.msra.mxu0 0.0
          %891 = vmatprep.subr.mxu0 0.0
          %892 = vmatpush1.msra.mxu0 0.0
          %893 = vmatprep.subr.mxu0 0.0
          %894 = vmatpush1.msra.mxu0 0.0
          %895 = vmatprep.subr.mxu0 0.0
          %896 = vmatpush1.msra.mxu0 0.0
          %897 = vmatprep.subr.mxu0 0.0
          %898 = vmatpush1.msra.mxu0 0.0
          %899 = vmatprep.subr.mxu0 0.0
          %900 = vmatpush1.msra.mxu0 0.0
          %901 = vmatprep.subr.mxu0 0.0
          %902 = vmatpush1.msra.mxu0 0.0
          %903 = vmatprep.subr.mxu0 0.0
          %904 = vmatpush1.msra.mxu0 0.0
          %905 = vmatprep.subr.mxu0 0.0
          %906 = vmatpush1.msra.mxu0 0.0
          %907 = vmatprep.subr.mxu0 0.0
          %908 = vmatpush1.msra.mxu0 0.0
          %909 = vmatprep.subr.mxu0 0.0
          %910 = vmatpush1.msra.mxu0 0.0
          %911 = vmatprep.subr.mxu0 0.0
          %912 = vmatpush1.msra.mxu0 0.0
          %913 = vmatprep.subr.mxu0 0.0
          %914 = vmatpush1.msra.mxu0 0.0
          %915 = vmatprep.subr.mxu0 0.0
          %916 = vmatpush1.msra.mxu0 0.0
          %917 = vmatprep.subr.mxu0 0.0
          %918 = vmatpush1.msra.mxu0 0.0
          %919 = vmatprep.subr.mxu0 0.0
          %920 = vmatpush1.msra.mxu0 0.0
          %921 = vmatprep.subr.mxu0 0.0
          %922 = vmatpush1.msra.mxu0 0.0
          %923 = vmatprep.subr.mxu0 0.0
          %924 = vmatpush1.msra.mxu0 0.0
          %925 = vmatprep.subr.mxu0 0.0
          %926 = vmatpush1.msra.mxu0 0.0
          %927 = vmatprep.subr.mxu0 0.0
          %928 = vmatpush1.msra.mxu0 0.0
          %929 = vmatprep.subr.mxu0 0.0
          %930 = vmatpush1.msra.mxu0 0.0
          %931 = vmatprep.subr.mxu0 0.0
          %932 = vmatpush1.msra.mxu0 0.0
          %933 = vmatprep.subr.mxu0 0.0
          %934 = vmatpush1.msra.mxu0 0.0
          %935 = vmatprep.subr.mxu0 0.0
          %936 = vmatpush1.msra.mxu0 0.0
          %937 = vmatprep.subr.mxu0 0.0
          %938 = vmatpush1.msra.mxu0 0.0
          %939 = vmatprep.subr.mxu0 0.0
          %940 = vmatpush1.msra.mxu0 0.0
          %941 = vmatprep.subr.mxu0 0.0
          %942 = vmatpush1.msra.mxu0 0.0
          %943 = vmatprep.subr.mxu0 0.0
          %944 = vmatpush1.msra.mxu0 0.0
          %945 = vmatprep.mubr.f32.mxu0 0.0
          %v946 = vand.u32 %v701, 4294901760
          %v947 = vsub.f32 %v701, %v946
          %948 = vmatmul.mubr.f32.gmra.mrb[0].mxu0 %v947
          %v949 = vpop.f32.mrb[0].mxu0
          %v950 = vadd.f32 %v870, %v949
          %v951 = vpop.f32.mrb[0].mxu0
          %952 = vdwg.mxu0
          %953 = vmatprep.subr.mxu0 0.0
          %v954 = vand.u32 %v688, 4294901760
          %955 = vmatpush1.msra.mxu0 %v954
          %956 = vmatprep.subr.mxu0 0.0
          %v957 = vand.u32 %v689, 4294901760
          %958 = vmatpush1.msra.mxu0 %v957
          %959 = vmatprep.subr.mxu0 0.0
          %v960 = vand.u32 %v690, 4294901760
          %961 = vmatpush1.msra.mxu0 %v960
          %962 = vmatprep.subr.mxu0 0.0
          %v963 = vand.u32 %v691, 4294901760
          %964 = vmatpush1.msra.mxu0 %v963
          %965 = vmatprep.subr.mxu0 0.0
          %966 = vmatpush1.msra.mxu0 0.0
          %967 = vmatprep.subr.mxu0 0.0
          %968 = vmatpush1.msra.mxu0 0.0
          %969 = vmatprep.subr.mxu0 0.0
          %970 = vmatpush1.msra.mxu0 0.0
          %971 = vmatprep.subr.mxu0 0.0
          %972 = vmatpush1.msra.mxu0 0.0
          %973 = vmatprep.subr.mxu0 0.0
          %974 = vmatpush1.msra.mxu0 0.0
          %975 = vmatprep.subr.mxu0 0.0
          %976 = vmatpush1.msra.mxu0 0.0
          %977 = vmatprep.subr.mxu0 0.0
          %978 = vmatpush1.msra.mxu0 0.0
          %979 = vmatprep.subr.mxu0 0.0
          %980 = vmatpush1.msra.mxu0 0.0
          %981 = vmatprep.subr.mxu0 0.0
          %982 = vmatpush1.msra.mxu0 0.0
          %983 = vmatprep.subr.mxu0 0.0
          %984 = vmatpush1.msra.mxu0 0.0
          %985 = vmatprep.subr.mxu0 0.0
          %986 = vmatpush1.msra.mxu0 0.0
          %987 = vmatprep.subr.mxu0 0.0
          %988 = vmatpush1.msra.mxu0 0.0
          %989 = vmatprep.subr.mxu0 0.0
          %990 = vmatpush1.msra.mxu0 0.0
          %991 = vmatprep.subr.mxu0 0.0
          %992 = vmatpush1.msra.mxu0 0.0
          %993 = vmatprep.subr.mxu0 0.0
          %994 = vmatpush1.msra.mxu0 0.0
          %995 = vmatprep.subr.mxu0 0.0
          %996 = vmatpush1.msra.mxu0 0.0
          %997 = vmatprep.subr.mxu0 0.0
          %998 = vmatpush1.msra.mxu0 0.0
          %999 = vmatprep.subr.mxu0 0.0
          %1000 = vmatpush1.msra.mxu0 0.0
          %1001 = vmatprep.subr.mxu0 0.0
          %1002 = vmatpush1.msra.mxu0 0.0
          %1003 = vmatprep.subr.mxu0 0.0
          %1004 = vmatpush1.msra.mxu0 0.0
          %1005 = vmatprep.subr.mxu0 0.0
          %1006 = vmatpush1.msra.mxu0 0.0
          %1007 = vmatprep.subr.mxu0 0.0
          %1008 = vmatpush1.msra.mxu0 0.0
          %1009 = vmatprep.subr.mxu0 0.0
          %1010 = vmatpush1.msra.mxu0 0.0
          %1011 = vmatprep.subr.mxu0 0.0
          %1012 = vmatpush1.msra.mxu0 0.0
          %1013 = vmatprep.subr.mxu0 0.0
          %1014 = vmatpush1.msra.mxu0 0.0
          %1015 = vmatprep.subr.mxu0 0.0
          %1016 = vmatpush1.msra.mxu0 0.0
          %1017 = vmatprep.subr.mxu0 0.0
          %1018 = vmatpush1.msra.mxu0 0.0
          %1019 = vmatprep.subr.mxu0 0.0
          %1020 = vmatpush1.msra.mxu0 0.0
          %1021 = vmatprep.mubr.f32.mxu0 0.0
          %v1022 = vand.u32 %v701, 4294901760
          %v1023 = vsub.f32 %v701, %v1022
          %v1024 = vand.u32 %v1023, 4294901760
          %1025 = vmatmul.mubr.f32.gmra.mrb[0].mxu0 %v1024
          %v1026 = vpop.f32.mrb[0].mxu0
          %v1027 = vadd.f32 %v950, %v1026
          %v1028 = vpop.f32.mrb[0].mxu0
          %1029 = vdwg.mxu0
          %1030 = vmatprep.subr.mxu0 0.0
          %v1031 = vand.u32 %v688, 4294901760
          %v1032 = vsub.f32 %v688, %v1031
          %v1033 = vand.u32 %v1032, 4294901760
          %1034 = vmatpush1.msra.mxu0 %v1033
          %1035 = vmatprep.subr.mxu0 0.0
          %v1036 = vand.u32 %v689, 4294901760
          %v1037 = vsub.f32 %v689, %v1036
          %v1038 = vand.u32 %v1037, 4294901760
          %1039 = vmatpush1.msra.mxu0 %v1038
          %1040 = vmatprep.subr.mxu0 0.0
          %v1041 = vand.u32 %v690, 4294901760
          %v1042 = vsub.f32 %v690, %v1041
          %v1043 = vand.u32 %v1042, 4294901760
          %1044 = vmatpush1.msra.mxu0 %v1043
          %1045 = vmatprep.subr.mxu0 0.0
          %v1046 = vand.u32 %v691, 4294901760
          %v1047 = vsub.f32 %v691, %v1046
          %v1048 = vand.u32 %v1047, 4294901760
          %1049 = vmatpush1.msra.mxu0 %v1048
          %1050 = vmatprep.subr.mxu0 0.0
          %1051 = vmatpush1.msra.mxu0 0.0
          %1052 = vmatprep.subr.mxu0 0.0
          %1053 = vmatpush1.msra.mxu0 0.0
          %1054 = vmatprep.subr.mxu0 0.0
          %1055 = vmatpush1.msra.mxu0 0.0
          %1056 = vmatprep.subr.mxu0 0.0
          %1057 = vmatpush1.msra.mxu0 0.0
          %1058 = vmatprep.subr.mxu0 0.0
          %1059 = vmatpush1.msra.mxu0 0.0
          %1060 = vmatprep.subr.mxu0 0.0
          %1061 = vmatpush1.msra.mxu0 0.0
          %1062 = vmatprep.subr.mxu0 0.0
          %1063 = vmatpush1.msra.mxu0 0.0
          %1064 = vmatprep.subr.mxu0 0.0
          %1065 = vmatpush1.msra.mxu0 0.0
          %1066 = vmatprep.subr.mxu0 0.0
          %1067 = vmatpush1.msra.mxu0 0.0
          %1068 = vmatprep.subr.mxu0 0.0
          %1069 = vmatpush1.msra.mxu0 0.0
          %1070 = vmatprep.subr.mxu0 0.0
          %1071 = vmatpush1.msra.mxu0 0.0
          %1072 = vmatprep.subr.mxu0 0.0
          %1073 = vmatpush1.msra.mxu0 0.0
          %1074 = vmatprep.subr.mxu0 0.0
          %1075 = vmatpush1.msra.mxu0 0.0
          %1076 = vmatprep.subr.mxu0 0.0
          %1077 = vmatpush1.msra.mxu0 0.0
          %1078 = vmatprep.subr.mxu0 0.0
          %1079 = vmatpush1.msra.mxu0 0.0
          %1080 = vmatprep.subr.mxu0 0.0
          %1081 = vmatpush1.msra.mxu0 0.0
          %1082 = vmatprep.subr.mxu0 0.0
          %1083 = vmatpush1.msra.mxu0 0.0
          %1084 = vmatprep.subr.mxu0 0.0
          %1085 = vmatpush1.msra.mxu0 0.0
          %1086 = vmatprep.subr.mxu0 0.0
          %1087 = vmatpush1.msra.mxu0 0.0
          %1088 = vmatprep.subr.mxu0 0.0
          %1089 = vmatpush1.msra.mxu0 0.0
          %1090 = vmatprep.subr.mxu0 0.0
          %1091 = vmatpush1.msra.mxu0 0.0
          %1092 = vmatprep.subr.mxu0 0.0
          %1093 = vmatpush1.msra.mxu0 0.0
          %1094 = vmatprep.subr.mxu0 0.0
          %1095 = vmatpush1.msra.mxu0 0.0
          %1096 = vmatprep.subr.mxu0 0.0
          %1097 = vmatpush1.msra.mxu0 0.0
          %1098 = vmatprep.subr.mxu0 0.0
          %1099 = vmatpush1.msra.mxu0 0.0
          %1100 = vmatprep.subr.mxu0 0.0
          %1101 = vmatpush1.msra.mxu0 0.0
          %1102 = vmatprep.subr.mxu0 0.0
          %1103 = vmatpush1.msra.mxu0 0.0
          %1104 = vmatprep.subr.mxu0 0.0
          %1105 = vmatpush1.msra.mxu0 0.0
          %1106 = vmatprep.mubr.f32.mxu0 0.0
          %v1107 = vand.u32 %v701, 4294901760
          %1108 = vmatmul.mubr.f32.gmra.mrb[0].mxu0 %v1107
          %v1109 = vpop.f32.mrb[0].mxu0
          %v1110 = vadd.f32 %v1027, %v1109
          %v1111 = vpop.f32.mrb[0].mxu0
          %1112 = vdwg.mxu0
          %1113 = vmatprep.subr.mxu0 0.0
          %v1114 = vand.u32 %v688, 4294901760
          %1115 = vmatpush1.msra.mxu0 %v1114
          %1116 = vmatprep.subr.mxu0 0.0
          %v1117 = vand.u32 %v689, 4294901760
          %1118 = vmatpush1.msra.mxu0 %v1117
          %1119 = vmatprep.subr.mxu0 0.0
          %v1120 = vand.u32 %v690, 4294901760
          %1121 = vmatpush1.msra.mxu0 %v1120
          %1122 = vmatprep.subr.mxu0 0.0
          %v1123 = vand.u32 %v691, 4294901760
          %1124 = vmatpush1.msra.mxu0 %v1123
          %1125 = vmatprep.subr.mxu0 0.0
          %1126 = vmatpush1.msra.mxu0 0.0
          %1127 = vmatprep.subr.mxu0 0.0
          %1128 = vmatpush1.msra.mxu0 0.0
          %1129 = vmatprep.subr.mxu0 0.0
          %1130 = vmatpush1.msra.mxu0 0.0
          %1131 = vmatprep.subr.mxu0 0.0
          %1132 = vmatpush1.msra.mxu0 0.0
          %1133 = vmatprep.subr.mxu0 0.0
          %1134 = vmatpush1.msra.mxu0 0.0
          %1135 = vmatprep.subr.mxu0 0.0
          %1136 = vmatpush1.msra.mxu0 0.0
          %1137 = vmatprep.subr.mxu0 0.0
          %1138 = vmatpush1.msra.mxu0 0.0
          %1139 = vmatprep.subr.mxu0 0.0
          %1140 = vmatpush1.msra.mxu0 0.0
          %1141 = vmatprep.subr.mxu0 0.0
          %1142 = vmatpush1.msra.mxu0 0.0
          %1143 = vmatprep.subr.mxu0 0.0
          %1144 = vmatpush1.msra.mxu0 0.0
          %1145 = vmatprep.subr.mxu0 0.0
          %1146 = vmatpush1.msra.mxu0 0.0
          %1147 = vmatprep.subr.mxu0 0.0
          %1148 = vmatpush1.msra.mxu0 0.0
          %1149 = vmatprep.subr.mxu0 0.0
          %1150 = vmatpush1.msra.mxu0 0.0
          %1151 = vmatprep.subr.mxu0 0.0
          %1152 = vmatpush1.msra.mxu0 0.0
          %1153 = vmatprep.subr.mxu0 0.0
          %1154 = vmatpush1.msra.mxu0 0.0
          %1155 = vmatprep.subr.mxu0 0.0
          %1156 = vmatpush1.msra.mxu0 0.0
          %1157 = vmatprep.subr.mxu0 0.0
          %1158 = vmatpush1.msra.mxu0 0.0
          %1159 = vmatprep.subr.mxu0 0.0
          %1160 = vmatpush1.msra.mxu0 0.0
          %1161 = vmatprep.subr.mxu0 0.0
          %1162 = vmatpush1.msra.mxu0 0.0
          %1163 = vmatprep.subr.mxu0 0.0
          %1164 = vmatpush1.msra.mxu0 0.0
          %1165 = vmatprep.subr.mxu0 0.0
          %1166 = vmatpush1.msra.mxu0 0.0
          %1167 = vmatprep.subr.mxu0 0.0
          %1168 = vmatpush1.msra.mxu0 0.0
          %1169 = vmatprep.subr.mxu0 0.0
          %1170 = vmatpush1.msra.mxu0 0.0
          %1171 = vmatprep.subr.mxu0 0.0
          %1172 = vmatpush1.msra.mxu0 0.0
          %1173 = vmatprep.subr.mxu0 0.0
          %1174 = vmatpush1.msra.mxu0 0.0
          %1175 = vmatprep.subr.mxu0 0.0
          %1176 = vmatpush1.msra.mxu0 0.0
          %1177 = vmatprep.subr.mxu0 0.0
          %1178 = vmatpush1.msra.mxu0 0.0
          %1179 = vmatprep.subr.mxu0 0.0
          %1180 = vmatpush1.msra.mxu0 0.0
          %1181 = vmatprep.mubr.f32.mxu0 0.0
          %v1182 = vand.u32 %v701, 4294901760
          %1183 = vmatmul.mubr.f32.gmra.mrb[0].mxu0 %v1182
          %v1184 = vpop.f32.mrb[0].mxu0
          %v1185 = vadd.f32 %v1110, %v1184
          %v1186 = vpop.f32.mrb[0].mxu0
          %1187 = vdwg.mxu0
          %1188 = vst.msk [vmem:[#allocation2] sm:$0xff] %vm699, %v1185
          %v1189 = vld [vmem:[#allocation13] sm:$0xff]
          %v1190 = vld [vmem:[#allocation13 + $0x8] sm:$0xff]
          %v1191 = vld [vmem:[#allocation13 + $0x10] sm:$0xff]
          %v1192 = vld [vmem:[#allocation13 + $0x18] sm:$0xff]
          %v1193 = vld [vmem:[#allocation18] sm:$0x1]
          %v1195 = vlaneseq
          %v1196 = vshrl.u32 %v1195, 7
          %v1197 = vsub.s32 0, %v1196
          %v1198 = vrot.slane %v1193, %v1197
          %v1201 = vsel %vm699, %v687, 0
          %1203 = vmatprep.subr.mxu0 0.0
          %v1204 = vand.u32 %v1189, 4294901760
          %1205 = vmatpush1.msra.mxu0 %v1204
          %1206 = vmatprep.subr.mxu0 0.0
          %v1207 = vand.u32 %v1190, 4294901760
          %1208 = vmatpush1.msra.mxu0 %v1207
          %1209 = vmatprep.subr.mxu0 0.0
          %v1210 = vand.u32 %v1191, 4294901760
          %1211 = vmatpush1.msra.mxu0 %v1210
          %1212 = vmatprep.subr.mxu0 0.0
          %v1213 = vand.u32 %v1192, 4294901760
          %1214 = vmatpush1.msra.mxu0 %v1213
          %1215 = vmatprep.subr.mxu0 0.0
          %1216 = vmatpush1.msra.mxu0 0.0
          %1217 = vmatprep.subr.mxu0 0.0
          %1218 = vmatpush1.msra.mxu0 0.0
          %1219 = vmatprep.subr.mxu0 0.0
          %1220 = vmatpush1.msra.mxu0 0.0
          %1221 = vmatprep.subr.mxu0 0.0
          %1222 = vmatpush1.msra.mxu0 0.0
          %1223 = vmatprep.subr.mxu0 0.0
          %1224 = vmatpush1.msra.mxu0 0.0
          %1225 = vmatprep.subr.mxu0 0.0
          %1226 = vmatpush1.msra.mxu0 0.0
          %1227 = vmatprep.subr.mxu0 0.0
          %1228 = vmatpush1.msra.mxu0 0.0
          %1229 = vmatprep.subr.mxu0 0.0
          %1230 = vmatpush1.msra.mxu0 0.0
          %1231 = vmatprep.subr.mxu0 0.0
          %1232 = vmatpush1.msra.mxu0 0.0
          %1233 = vmatprep.subr.mxu0 0.0
          %1234 = vmatpush1.msra.mxu0 0.0
          %1235 = vmatprep.subr.mxu0 0.0
          %1236 = vmatpush1.msra.mxu0 0.0
          %1237 = vmatprep.subr.mxu0 0.0
          %1238 = vmatpush1.msra.mxu0 0.0
          %1239 = vmatprep.subr.mxu0 0.0
          %1240 = vmatpush1.msra.mxu0 0.0
          %1241 = vmatprep.subr.mxu0 0.0
          %1242 = vmatpush1.msra.mxu0 0.0
          %1243 = vmatprep.subr.mxu0 0.0
          %1244 = vmatpush1.msra.mxu0 0.0
          %1245 = vmatprep.subr.mxu0 0.0
          %1246 = vmatpush1.msra.mxu0 0.0
          %1247 = vmatprep.subr.mxu0 0.0
          %1248 = vmatpush1.msra.mxu0 0.0
          %1249 = vmatprep.subr.mxu0 0.0
          %1250 = vmatpush1.msra.mxu0 0.0
          %1251 = vmatprep.subr.mxu0 0.0
          %1252 = vmatpush1.msra.mxu0 0.0
          %1253 = vmatprep.subr.mxu0 0.0
          %1254 = vmatpush1.msra.mxu0 0.0
          %1255 = vmatprep.subr.mxu0 0.0
          %1256 = vmatpush1.msra.mxu0 0.0
          %1257 = vmatprep.subr.mxu0 0.0
          %1258 = vmatpush1.msra.mxu0 0.0
          %1259 = vmatprep.subr.mxu0 0.0
          %1260 = vmatpush1.msra.mxu0 0.0
          %1261 = vmatprep.subr.mxu0 0.0
          %1262 = vmatpush1.msra.mxu0 0.0
          %1263 = vmatprep.subr.mxu0 0.0
          %1264 = vmatpush1.msra.mxu0 0.0
          %1265 = vmatprep.subr.mxu0 0.0
          %1266 = vmatpush1.msra.mxu0 0.0
          %1267 = vmatprep.subr.mxu0 0.0
          %1268 = vmatpush1.msra.mxu0 0.0
          %1269 = vmatprep.subr.mxu0 0.0
          %1270 = vmatpush1.msra.mxu0 0.0
          %1271 = vmatprep.mubr.f32.mxu0 0.0
          %v1272 = vand.u32 %v1201, 4294901760
          %v1273 = vsub.f32 %v1201, %v1272
          %v1274 = vand.u32 %v1273, 4294901760
          %v1275 = vsub.f32 %v1273, %v1274
          %v1276 = vand.u32 %v1275, 4294901760
          %1277 = vmatmul.mubr.f32.gmra.mrb[0].mxu0 %v1276
          %v1278 = vpop.f32.mrb[0].mxu0
          %v1279 = vadd.f32 %v1198, %v1278
          %v1280 = vpop.f32.mrb[0].mxu0
          %1281 = vdwg.mxu0
          %1282 = vmatprep.subr.mxu0 0.0
          %v1283 = vand.u32 %v1189, 4294901760
          %v1284 = vsub.f32 %v1189, %v1283
          %v1285 = vand.u32 %v1284, 4294901760
          %v1286 = vsub.f32 %v1284, %v1285
          %v1287 = vand.u32 %v1286, 4294901760
          %1288 = vmatpush1.msra.mxu0 %v1287
          %1289 = vmatprep.subr.mxu0 0.0
          %v1290 = vand.u32 %v1190, 4294901760
          %v1291 = vsub.f32 %v1190, %v1290
          %v1292 = vand.u32 %v1291, 4294901760
          %v1293 = vsub.f32 %v1291, %v1292
          %v1294 = vand.u32 %v1293, 4294901760
          %1295 = vmatpush1.msra.mxu0 %v1294
          %1296 = vmatprep.subr.mxu0 0.0
          %v1297 = vand.u32 %v1191, 4294901760
          %v1298 = vsub.f32 %v1191, %v1297
          %v1299 = vand.u32 %v1298, 4294901760
          %v1300 = vsub.f32 %v1298, %v1299
          %v1301 = vand.u32 %v1300, 4294901760
          %1302 = vmatpush1.msra.mxu0 %v1301
          %1303 = vmatprep.subr.mxu0 0.0
          %v1304 = vand.u32 %v1192, 4294901760
          %v1305 = vsub.f32 %v1192, %v1304
          %v1306 = vand.u32 %v1305, 4294901760
          %v1307 = vsub.f32 %v1305, %v1306
          %v1308 = vand.u32 %v1307, 4294901760
          %1309 = vmatpush1.msra.mxu0 %v1308
          %1310 = vmatprep.subr.mxu0 0.0
          %1311 = vmatpush1.msra.mxu0 0.0
          %1312 = vmatprep.subr.mxu0 0.0
          %1313 = vmatpush1.msra.mxu0 0.0
          %1314 = vmatprep.subr.mxu0 0.0
          %1315 = vmatpush1.msra.mxu0 0.0
          %1316 = vmatprep.subr.mxu0 0.0
          %1317 = vmatpush1.msra.mxu0 0.0
          %1318 = vmatprep.subr.mxu0 0.0
          %1319 = vmatpush1.msra.mxu0 0.0
          %1320 = vmatprep.subr.mxu0 0.0
          %1321 = vmatpush1.msra.mxu0 0.0
          %1322 = vmatprep.subr.mxu0 0.0
          %1323 = vmatpush1.msra.mxu0 0.0
          %1324 = vmatprep.subr.mxu0 0.0
          %1325 = vmatpush1.msra.mxu0 0.0
          %1326 = vmatprep.subr.mxu0 0.0
          %1327 = vmatpush1.msra.mxu0 0.0
          %1328 = vmatprep.subr.mxu0 0.0
          %1329 = vmatpush1.msra.mxu0 0.0
          %1330 = vmatprep.subr.mxu0 0.0
          %1331 = vmatpush1.msra.mxu0 0.0
          %1332 = vmatprep.subr.mxu0 0.0
          %1333 = vmatpush1.msra.mxu0 0.0
          %1334 = vmatprep.subr.mxu0 0.0
          %1335 = vmatpush1.msra.mxu0 0.0
          %1336 = vmatprep.subr.mxu0 0.0
          %1337 = vmatpush1.msra.mxu0 0.0
          %1338 = vmatprep.subr.mxu0 0.0
          %1339 = vmatpush1.msra.mxu0 0.0
          %1340 = vmatprep.subr.mxu0 0.0
          %1341 = vmatpush1.msra.mxu0 0.0
          %1342 = vmatprep.subr.mxu0 0.0
          %1343 = vmatpush1.msra.mxu0 0.0
          %1344 = vmatprep.subr.mxu0 0.0
          %1345 = vmatpush1.msra.mxu0 0.0
          %1346 = vmatprep.subr.mxu0 0.0
          %1347 = vmatpush1.msra.mxu0 0.0
          %1348 = vmatprep.subr.mxu0 0.0
          %1349 = vmatpush1.msra.mxu0 0.0
          %1350 = vmatprep.subr.mxu0 0.0
          %1351 = vmatpush1.msra.mxu0 0.0
          %1352 = vmatprep.subr.mxu0 0.0
          %1353 = vmatpush1.msra.mxu0 0.0
          %1354 = vmatprep.subr.mxu0 0.0
          %1355 = vmatpush1.msra.mxu0 0.0
          %1356 = vmatprep.subr.mxu0 0.0
          %1357 = vmatpush1.msra.mxu0 0.0
          %1358 = vmatprep.subr.mxu0 0.0
          %1359 = vmatpush1.msra.mxu0 0.0
          %1360 = vmatprep.subr.mxu0 0.0
          %1361 = vmatpush1.msra.mxu0 0.0
          %1362 = vmatprep.subr.mxu0 0.0
          %1363 = vmatpush1.msra.mxu0 0.0
          %1364 = vmatprep.subr.mxu0 0.0
          %1365 = vmatpush1.msra.mxu0 0.0
          %1366 = vmatprep.mubr.f32.mxu0 0.0
          %v1367 = vand.u32 %v1201, 4294901760
          %1368 = vmatmul.mubr.f32.gmra.mrb[0].mxu0 %v1367
          %v1369 = vpop.f32.mrb[0].mxu0
          %v1370 = vadd.f32 %v1279, %v1369
          %v1371 = vpop.f32.mrb[0].mxu0
          %1372 = vdwg.mxu0
          %1373 = vmatprep.subr.mxu0 0.0
          %v1374 = vand.u32 %v1189, 4294901760
          %v1375 = vsub.f32 %v1189, %v1374
          %1376 = vmatpush1.msra.mxu0 %v1375
          %1377 = vmatprep.subr.mxu0 0.0
          %v1378 = vand.u32 %v1190, 4294901760
          %v1379 = vsub.f32 %v1190, %v1378
          %1380 = vmatpush1.msra.mxu0 %v1379
          %1381 = vmatprep.subr.mxu0 0.0
          %v1382 = vand.u32 %v1191, 4294901760
          %v1383 = vsub.f32 %v1191, %v1382
          %1384 = vmatpush1.msra.mxu0 %v1383
          %1385 = vmatprep.subr.mxu0 0.0
          %v1386 = vand.u32 %v1192, 4294901760
          %v1387 = vsub.f32 %v1192, %v1386
          %1388 = vmatpush1.msra.mxu0 %v1387
          %1389 = vmatprep.subr.mxu0 0.0
          %1390 = vmatpush1.msra.mxu0 0.0
          %1391 = vmatprep.subr.mxu0 0.0
          %1392 = vmatpush1.msra.mxu0 0.0
          %1393 = vmatprep.subr.mxu0 0.0
          %1394 = vmatpush1.msra.mxu0 0.0
          %1395 = vmatprep.subr.mxu0 0.0
          %1396 = vmatpush1.msra.mxu0 0.0
          %1397 = vmatprep.subr.mxu0 0.0
          %1398 = vmatpush1.msra.mxu0 0.0
          %1399 = vmatprep.subr.mxu0 0.0
          %1400 = vmatpush1.msra.mxu0 0.0
          %1401 = vmatprep.subr.mxu0 0.0
          %1402 = vmatpush1.msra.mxu0 0.0
          %1403 = vmatprep.subr.mxu0 0.0
          %1404 = vmatpush1.msra.mxu0 0.0
          %1405 = vmatprep.subr.mxu0 0.0
          %1406 = vmatpush1.msra.mxu0 0.0
          %1407 = vmatprep.subr.mxu0 0.0
          %1408 = vmatpush1.msra.mxu0 0.0
          %1409 = vmatprep.subr.mxu0 0.0
          %1410 = vmatpush1.msra.mxu0 0.0
          %1411 = vmatprep.subr.mxu0 0.0
          %1412 = vmatpush1.msra.mxu0 0.0
          %1413 = vmatprep.subr.mxu0 0.0
          %1414 = vmatpush1.msra.mxu0 0.0
          %1415 = vmatprep.subr.mxu0 0.0
          %1416 = vmatpush1.msra.mxu0 0.0
          %1417 = vmatprep.subr.mxu0 0.0
          %1418 = vmatpush1.msra.mxu0 0.0
          %1419 = vmatprep.subr.mxu0 0.0
          %1420 = vmatpush1.msra.mxu0 0.0
          %1421 = vmatprep.subr.mxu0 0.0
          %1422 = vmatpush1.msra.mxu0 0.0
          %1423 = vmatprep.subr.mxu0 0.0
          %1424 = vmatpush1.msra.mxu0 0.0
          %1425 = vmatprep.subr.mxu0 0.0
          %1426 = vmatpush1.msra.mxu0 0.0
          %1427 = vmatprep.subr.mxu0 0.0
          %1428 = vmatpush1.msra.mxu0 0.0
          %1429 = vmatprep.subr.mxu0 0.0
          %1430 = vmatpush1.msra.mxu0 0.0
          %1431 = vmatprep.subr.mxu0 0.0
          %1432 = vmatpush1.msra.mxu0 0.0
          %1433 = vmatprep.subr.mxu0 0.0
          %1434 = vmatpush1.msra.mxu0 0.0
          %1435 = vmatprep.subr.mxu0 0.0
          %1436 = vmatpush1.msra.mxu0 0.0
          %1437 = vmatprep.subr.mxu0 0.0
          %1438 = vmatpush1.msra.mxu0 0.0
          %1439 = vmatprep.subr.mxu0 0.0
          %1440 = vmatpush1.msra.mxu0 0.0
          %1441 = vmatprep.subr.mxu0 0.0
          %1442 = vmatpush1.msra.mxu0 0.0
          %1443 = vmatprep.subr.mxu0 0.0
          %1444 = vmatpush1.msra.mxu0 0.0
          %1445 = vmatprep.mubr.f32.mxu0 0.0
          %v1446 = vand.u32 %v1201, 4294901760
          %v1447 = vsub.f32 %v1201, %v1446
          %1448 = vmatmul.mubr.f32.gmra.mrb[0].mxu0 %v1447
          %v1449 = vpop.f32.mrb[0].mxu0
          %v1450 = vadd.f32 %v1370, %v1449
          %v1451 = vpop.f32.mrb[0].mxu0
          %1452 = vdwg.mxu0
          %1453 = vmatprep.subr.mxu0 0.0
          %v1454 = vand.u32 %v1189, 4294901760
          %1455 = vmatpush1.msra.mxu0 %v1454
          %1456 = vmatprep.subr.mxu0 0.0
          %v1457 = vand.u32 %v1190, 4294901760
          %1458 = vmatpush1.msra.mxu0 %v1457
          %1459 = vmatprep.subr.mxu0 0.0
          %v1460 = vand.u32 %v1191, 4294901760
          %1461 = vmatpush1.msra.mxu0 %v1460
          %1462 = vmatprep.subr.mxu0 0.0
          %v1463 = vand.u32 %v1192, 4294901760
          %1464 = vmatpush1.msra.mxu0 %v1463
          %1465 = vmatprep.subr.mxu0 0.0
          %1466 = vmatpush1.msra.mxu0 0.0
          %1467 = vmatprep.subr.mxu0 0.0
          %1468 = vmatpush1.msra.mxu0 0.0
          %1469 = vmatprep.subr.mxu0 0.0
          %1470 = vmatpush1.msra.mxu0 0.0
          %1471 = vmatprep.subr.mxu0 0.0
          %1472 = vmatpush1.msra.mxu0 0.0
          %1473 = vmatprep.subr.mxu0 0.0
          %1474 = vmatpush1.msra.mxu0 0.0
          %1475 = vmatprep.subr.mxu0 0.0
          %1476 = vmatpush1.msra.mxu0 0.0
          %1477 = vmatprep.subr.mxu0 0.0
          %1478 = vmatpush1.msra.mxu0 0.0
          %1479 = vmatprep.subr.mxu0 0.0
          %1480 = vmatpush1.msra.mxu0 0.0
          %1481 = vmatprep.subr.mxu0 0.0
          %1482 = vmatpush1.msra.mxu0 0.0
          %1483 = vmatprep.subr.mxu0 0.0
          %1484 = vmatpush1.msra.mxu0 0.0
          %1485 = vmatprep.subr.mxu0 0.0
          %1486 = vmatpush1.msra.mxu0 0.0
          %1487 = vmatprep.subr.mxu0 0.0
          %1488 = vmatpush1.msra.mxu0 0.0
          %1489 = vmatprep.subr.mxu0 0.0
          %1490 = vmatpush1.msra.mxu0 0.0
          %1491 = vmatprep.subr.mxu0 0.0
          %1492 = vmatpush1.msra.mxu0 0.0
          %1493 = vmatprep.subr.mxu0 0.0
          %1494 = vmatpush1.msra.mxu0 0.0
          %1495 = vmatprep.subr.mxu0 0.0
          %1496 = vmatpush1.msra.mxu0 0.0
          %1497 = vmatprep.subr.mxu0 0.0
          %1498 = vmatpush1.msra.mxu0 0.0
          %1499 = vmatprep.subr.mxu0 0.0
          %1500 = vmatpush1.msra.mxu0 0.0
          %1501 = vmatprep.subr.mxu0 0.0
          %1502 = vmatpush1.msra.mxu0 0.0
          %1503 = vmatprep.subr.mxu0 0.0
          %1504 = vmatpush1.msra.mxu0 0.0
          %1505 = vmatprep.subr.mxu0 0.0
          %1506 = vmatpush1.msra.mxu0 0.0
          %1507 = vmatprep.subr.mxu0 0.0
          %1508 = vmatpush1.msra.mxu0 0.0
          %1509 = vmatprep.subr.mxu0 0.0
          %1510 = vmatpush1.msra.mxu0 0.0
          %1511 = vmatprep.subr.mxu0 0.0
          %1512 = vmatpush1.msra.mxu0 0.0
          %1513 = vmatprep.subr.mxu0 0.0
          %1514 = vmatpush1.msra.mxu0 0.0
          %1515 = vmatprep.subr.mxu0 0.0
          %1516 = vmatpush1.msra.mxu0 0.0
          %1517 = vmatprep.subr.mxu0 0.0
          %1518 = vmatpush1.msra.mxu0 0.0
          %1519 = vmatprep.subr.mxu0 0.0
          %1520 = vmatpush1.msra.mxu0 0.0
          %1521 = vmatprep.mubr.f32.mxu0 0.0
          %v1522 = vand.u32 %v1201, 4294901760
          %v1523 = vsub.f32 %v1201, %v1522
          %v1524 = vand.u32 %v1523, 4294901760
          %1525 = vmatmul.mubr.f32.gmra.mrb[0].mxu0 %v1524
          %v1526 = vpop.f32.mrb[0].mxu0
          %v1527 = vadd.f32 %v1450, %v1526
          %v1528 = vpop.f32.mrb[0].mxu0
          %1529 = vdwg.mxu0
          %1530 = vmatprep.subr.mxu0 0.0
          %v1531 = vand.u32 %v1189, 4294901760
          %v1532 = vsub.f32 %v1189, %v1531
          %v1533 = vand.u32 %v1532, 4294901760
          %1534 = vmatpush1.msra.mxu0 %v1533
          %1535 = vmatprep.subr.mxu0 0.0
          %v1536 = vand.u32 %v1190, 4294901760
          %v1537 = vsub.f32 %v1190, %v1536
          %v1538 = vand.u32 %v1537, 4294901760
          %1539 = vmatpush1.msra.mxu0 %v1538
          %1540 = vmatprep.subr.mxu0 0.0
          %v1541 = vand.u32 %v1191, 4294901760
          %v1542 = vsub.f32 %v1191, %v1541
          %v1543 = vand.u32 %v1542, 4294901760
          %1544 = vmatpush1.msra.mxu0 %v1543
          %1545 = vmatprep.subr.mxu0 0.0
          %v1546 = vand.u32 %v1192, 4294901760
          %v1547 = vsub.f32 %v1192, %v1546
          %v1548 = vand.u32 %v1547, 4294901760
          %1549 = vmatpush1.msra.mxu0 %v1548
          %1550 = vmatprep.subr.mxu0 0.0
          %1551 = vmatpush1.msra.mxu0 0.0
          %1552 = vmatprep.subr.mxu0 0.0
          %1553 = vmatpush1.msra.mxu0 0.0
          %1554 = vmatprep.subr.mxu0 0.0
          %1555 = vmatpush1.msra.mxu0 0.0
          %1556 = vmatprep.subr.mxu0 0.0
          %1557 = vmatpush1.msra.mxu0 0.0
          %1558 = vmatprep.subr.mxu0 0.0
          %1559 = vmatpush1.msra.mxu0 0.0
          %1560 = vmatprep.subr.mxu0 0.0
          %1561 = vmatpush1.msra.mxu0 0.0
          %1562 = vmatprep.subr.mxu0 0.0
          %1563 = vmatpush1.msra.mxu0 0.0
          %1564 = vmatprep.subr.mxu0 0.0
          %1565 = vmatpush1.msra.mxu0 0.0
          %1566 = vmatprep.subr.mxu0 0.0
          %1567 = vmatpush1.msra.mxu0 0.0
          %1568 = vmatprep.subr.mxu0 0.0
          %1569 = vmatpush1.msra.mxu0 0.0
          %1570 = vmatprep.subr.mxu0 0.0
          %1571 = vmatpush1.msra.mxu0 0.0
          %1572 = vmatprep.subr.mxu0 0.0
          %1573 = vmatpush1.msra.mxu0 0.0
          %1574 = vmatprep.subr.mxu0 0.0
          %1575 = vmatpush1.msra.mxu0 0.0
          %1576 = vmatprep.subr.mxu0 0.0
          %1577 = vmatpush1.msra.mxu0 0.0
          %1578 = vmatprep.subr.mxu0 0.0
          %1579 = vmatpush1.msra.mxu0 0.0
          %1580 = vmatprep.subr.mxu0 0.0
          %1581 = vmatpush1.msra.mxu0 0.0
          %1582 = vmatprep.subr.mxu0 0.0
          %1583 = vmatpush1.msra.mxu0 0.0
          %1584 = vmatprep.subr.mxu0 0.0
          %1585 = vmatpush1.msra.mxu0 0.0
          %1586 = vmatprep.subr.mxu0 0.0
          %1587 = vmatpush1.msra.mxu0 0.0
          %1588 = vmatprep.subr.mxu0 0.0
          %1589 = vmatpush1.msra.mxu0 0.0
          %1590 = vmatprep.subr.mxu0 0.0
          %1591 = vmatpush1.msra.mxu0 0.0
          %1592 = vmatprep.subr.mxu0 0.0
          %1593 = vmatpush1.msra.mxu0 0.0
          %1594 = vmatprep.subr.mxu0 0.0
          %1595 = vmatpush1.msra.mxu0 0.0
          %1596 = vmatprep.subr.mxu0 0.0
          %1597 = vmatpush1.msra.mxu0 0.0
          %1598 = vmatprep.subr.mxu0 0.0
          %1599 = vmatpush1.msra.mxu0 0.0
          %1600 = vmatprep.subr.mxu0 0.0
          %1601 = vmatpush1.msra.mxu0 0.0
          %1602 = vmatprep.subr.mxu0 0.0
          %1603 = vmatpush1.msra.mxu0 0.0
          %1604 = vmatprep.subr.mxu0 0.0
          %1605 = vmatpush1.msra.mxu0 0.0
          %1606 = vmatprep.mubr.f32.mxu0 0.0
          %v1607 = vand.u32 %v1201, 4294901760
          %1608 = vmatmul.mubr.f32.gmra.mrb[0].mxu0 %v1607
          %v1609 = vpop.f32.mrb[0].mxu0
          %v1610 = vadd.f32 %v1527, %v1609
          %v1611 = vpop.f32.mrb[0].mxu0
          %1612 = vdwg.mxu0
          %1613 = vmatprep.subr.mxu0 0.0
          %v1614 = vand.u32 %v1189, 4294901760
          %1615 = vmatpush1.msra.mxu0 %v1614
          %1616 = vmatprep.subr.mxu0 0.0
          %v1617 = vand.u32 %v1190, 4294901760
          %1618 = vmatpush1.msra.mxu0 %v1617
          %1619 = vmatprep.subr.mxu0 0.0
          %v1620 = vand.u32 %v1191, 4294901760
          %1621 = vmatpush1.msra.mxu0 %v1620
          %1622 = vmatprep.subr.mxu0 0.0
          %v1623 = vand.u32 %v1192, 4294901760
          %1624 = vmatpush1.msra.mxu0 %v1623
          %1625 = vmatprep.subr.mxu0 0.0
          %1626 = vmatpush1.msra.mxu0 0.0
          %1627 = vmatprep.subr.mxu0 0.0
          %1628 = vmatpush1.msra.mxu0 0.0
          %1629 = vmatprep.subr.mxu0 0.0
          %1630 = vmatpush1.msra.mxu0 0.0
          %1631 = vmatprep.subr.mxu0 0.0
          %1632 = vmatpush1.msra.mxu0 0.0
          %1633 = vmatprep.subr.mxu0 0.0
          %1634 = vmatpush1.msra.mxu0 0.0
          %1635 = vmatprep.subr.mxu0 0.0
          %1636 = vmatpush1.msra.mxu0 0.0
          %1637 = vmatprep.subr.mxu0 0.0
          %1638 = vmatpush1.msra.mxu0 0.0
          %1639 = vmatprep.subr.mxu0 0.0
          %1640 = vmatpush1.msra.mxu0 0.0
          %1641 = vmatprep.subr.mxu0 0.0
          %1642 = vmatpush1.msra.mxu0 0.0
          %1643 = vmatprep.subr.mxu0 0.0
          %1644 = vmatpush1.msra.mxu0 0.0
          %1645 = vmatprep.subr.mxu0 0.0
          %1646 = vmatpush1.msra.mxu0 0.0
          %1647 = vmatprep.subr.mxu0 0.0
          %1648 = vmatpush1.msra.mxu0 0.0
          %1649 = vmatprep.subr.mxu0 0.0
          %1650 = vmatpush1.msra.mxu0 0.0
          %1651 = vmatprep.subr.mxu0 0.0
          %1652 = vmatpush1.msra.mxu0 0.0
          %1653 = vmatprep.subr.mxu0 0.0
          %1654 = vmatpush1.msra.mxu0 0.0
          %1655 = vmatprep.subr.mxu0 0.0
          %1656 = vmatpush1.msra.mxu0 0.0
          %1657 = vmatprep.subr.mxu0 0.0
          %1658 = vmatpush1.msra.mxu0 0.0
          %1659 = vmatprep.subr.mxu0 0.0
          %1660 = vmatpush1.msra.mxu0 0.0
          %1661 = vmatprep.subr.mxu0 0.0
          %1662 = vmatpush1.msra.mxu0 0.0
          %1663 = vmatprep.subr.mxu0 0.0
          %1664 = vmatpush1.msra.mxu0 0.0
          %1665 = vmatprep.subr.mxu0 0.0
          %1666 = vmatpush1.msra.mxu0 0.0
          %1667 = vmatprep.subr.mxu0 0.0
          %1668 = vmatpush1.msra.mxu0 0.0
          %1669 = vmatprep.subr.mxu0 0.0
          %1670 = vmatpush1.msra.mxu0 0.0
          %1671 = vmatprep.subr.mxu0 0.0
          %1672 = vmatpush1.msra.mxu0 0.0
          %1673 = vmatprep.subr.mxu0 0.0
          %1674 = vmatpush1.msra.mxu0 0.0
          %1675 = vmatprep.subr.mxu0 0.0
          %1676 = vmatpush1.msra.mxu0 0.0
          %1677 = vmatprep.subr.mxu0 0.0
          %1678 = vmatpush1.msra.mxu0 0.0
          %1679 = vmatprep.subr.mxu0 0.0
          %1680 = vmatpush1.msra.mxu0 0.0
          %1681 = vmatprep.mubr.f32.mxu0 0.0
          %v1682 = vand.u32 %v1201, 4294901760
          %1683 = vmatmul.mubr.f32.gmra.mrb[0].mxu0 %v1682
          %v1684 = vpop.f32.mrb[0].mxu0
          %v1685 = vadd.f32 %v1610, %v1684
          %v1686 = vpop.f32.mrb[0].mxu0
          %1687 = vdwg.mxu0
          %1688 = vst.msk [vmem:[#allocation3] sm:$0xff] %vm699, %v1685
        $region116: #{tpu_custom_call.1} parent=75 // pred_fallthru
          _
        %v1689 = vld [vmem:[%s574] sm:$0xff]
        %v1690 = vld [vmem:[%s6] sm:$0xff]
        %v1691 = vld [vmem:[%s6 + $0x8] sm:$0xff]
        %v1692 = vld [vmem:[%s6 + $0x10] sm:$0xff]
        %v1693 = vld [vmem:[%s6 + $0x18] sm:$0xff]
        %v1694 = vld [vmem:[#allocation15] sm:$0x1]
        %v1696 = vlaneseq
        %v1697 = vshrl.u32 %v1696, 7
        %v1698 = vsub.s32 0, %v1697
        %v1699 = vrot.slane %v1694, %v1698
        %vm1701 = vcmask 261120
        %v1703 = vsel %vm1701, %v1689, 0
        %1705 = vmatprep.subr.mxu0 0.0
        %v1706 = vand.u32 %v1690, 4294901760
        %1707 = vmatpush1.msra.mxu0 %v1706
        %1708 = vmatprep.subr.mxu0 0.0
        %v1709 = vand.u32 %v1691, 4294901760
        %1710 = vmatpush1.msra.mxu0 %v1709
        %1711 = vmatprep.subr.mxu0 0.0
        %v1712 = vand.u32 %v1692, 4294901760
        %1713 = vmatpush1.msra.mxu0 %v1712
        %1714 = vmatprep.subr.mxu0 0.0
        %v1715 = vand.u32 %v1693, 4294901760
        %1716 = vmatpush1.msra.mxu0 %v1715
        %1717 = vmatprep.subr.mxu0 0.0
        %1718 = vmatpush1.msra.mxu0 0.0
        %1719 = vmatprep.subr.mxu0 0.0
        %1720 = vmatpush1.msra.mxu0 0.0
        %1721 = vmatprep.subr.mxu0 0.0
        %1722 = vmatpush1.msra.mxu0 0.0
        %1723 = vmatprep.subr.mxu0 0.0
        %1724 = vmatpush1.msra.mxu0 0.0
        %1725 = vmatprep.subr.mxu0 0.0
        %1726 = vmatpush1.msra.mxu0 0.0
        %1727 = vmatprep.subr.mxu0 0.0
        %1728 = vmatpush1.msra.mxu0 0.0
        %1729 = vmatprep.subr.mxu0 0.0
        %1730 = vmatpush1.msra.mxu0 0.0
        %1731 = vmatprep.subr.mxu0 0.0
        %1732 = vmatpush1.msra.mxu0 0.0
        %1733 = vmatprep.subr.mxu0 0.0
        %1734 = vmatpush1.msra.mxu0 0.0
        %1735 = vmatprep.subr.mxu0 0.0
        %1736 = vmatpush1.msra.mxu0 0.0
        %1737 = vmatprep.subr.mxu0 0.0
        %1738 = vmatpush1.msra.mxu0 0.0
        %1739 = vmatprep.subr.mxu0 0.0
        %1740 = vmatpush1.msra.mxu0 0.0
        %1741 = vmatprep.subr.mxu0 0.0
        %1742 = vmatpush1.msra.mxu0 0.0
        %1743 = vmatprep.subr.mxu0 0.0
        %1744 = vmatpush1.msra.mxu0 0.0
        %1745 = vmatprep.subr.mxu0 0.0
        %1746 = vmatpush1.msra.mxu0 0.0
        %1747 = vmatprep.subr.mxu0 0.0
        %1748 = vmatpush1.msra.mxu0 0.0
        %1749 = vmatprep.subr.mxu0 0.0
        %1750 = vmatpush1.msra.mxu0 0.0
        %1751 = vmatprep.subr.mxu0 0.0
        %1752 = vmatpush1.msra.mxu0 0.0
        %1753 = vmatprep.subr.mxu0 0.0
        %1754 = vmatpush1.msra.mxu0 0.0
        %1755 = vmatprep.subr.mxu0 0.0
        %1756 = vmatpush1.msra.mxu0 0.0
        %1757 = vmatprep.subr.mxu0 0.0
        %1758 = vmatpush1.msra.mxu0 0.0
        %1759 = vmatprep.subr.mxu0 0.0
        %1760 = vmatpush1.msra.mxu0 0.0
        %1761 = vmatprep.subr.mxu0 0.0
        %1762 = vmatpush1.msra.mxu0 0.0
        %1763 = vmatprep.subr.mxu0 0.0
        %1764 = vmatpush1.msra.mxu0 0.0
        %1765 = vmatprep.subr.mxu0 0.0
        %1766 = vmatpush1.msra.mxu0 0.0
        %1767 = vmatprep.subr.mxu0 0.0
        %1768 = vmatpush1.msra.mxu0 0.0
        %1769 = vmatprep.subr.mxu0 0.0
        %1770 = vmatpush1.msra.mxu0 0.0
        %1771 = vmatprep.subr.mxu0 0.0
        %1772 = vmatpush1.msra.mxu0 0.0
        %1773 = vmatprep.mubr.f32.mxu0 0.0
        %v1774 = vand.u32 %v1703, 4294901760
        %v1775 = vsub.f32 %v1703, %v1774
        %v1776 = vand.u32 %v1775, 4294901760
        %v1777 = vsub.f32 %v1775, %v1776
        %v1778 = vand.u32 %v1777, 4294901760
        %1779 = vmatmul.mubr.f32.gmra.mrb[0].mxu0 %v1778
        %v1780 = vpop.f32.mrb[0].mxu0
        %v1781 = vadd.f32 %v1699, %v1780
        %v1782 = vpop.f32.mrb[0].mxu0
        %1783 = vdwg.mxu0
        %1784 = vmatprep.subr.mxu0 0.0
        %v1785 = vand.u32 %v1690, 4294901760
        %v1786 = vsub.f32 %v1690, %v1785
        %v1787 = vand.u32 %v1786, 4294901760
        %v1788 = vsub.f32 %v1786, %v1787
        %v1789 = vand.u32 %v1788, 4294901760
        %1790 = vmatpush1.msra.mxu0 %v1789
        %1791 = vmatprep.subr.mxu0 0.0
        %v1792 = vand.u32 %v1691, 4294901760
        %v1793 = vsub.f32 %v1691, %v1792
        %v1794 = vand.u32 %v1793, 4294901760
        %v1795 = vsub.f32 %v1793, %v1794
        %v1796 = vand.u32 %v1795, 4294901760
        %1797 = vmatpush1.msra.mxu0 %v1796
        %1798 = vmatprep.subr.mxu0 0.0
        %v1799 = vand.u32 %v1692, 4294901760
        %v1800 = vsub.f32 %v1692, %v1799
        %v1801 = vand.u32 %v1800, 4294901760
        %v1802 = vsub.f32 %v1800, %v1801
        %v1803 = vand.u32 %v1802, 4294901760
        %1804 = vmatpush1.msra.mxu0 %v1803
        %1805 = vmatprep.subr.mxu0 0.0
        %v1806 = vand.u32 %v1693, 4294901760
        %v1807 = vsub.f32 %v1693, %v1806
        %v1808 = vand.u32 %v1807, 4294901760
        %v1809 = vsub.f32 %v1807, %v1808
        %v1810 = vand.u32 %v1809, 4294901760
        %1811 = vmatpush1.msra.mxu0 %v1810
        %1812 = vmatprep.subr.mxu0 0.0
        %1813 = vmatpush1.msra.mxu0 0.0
        %1814 = vmatprep.subr.mxu0 0.0
        %1815 = vmatpush1.msra.mxu0 0.0
        %1816 = vmatprep.subr.mxu0 0.0
        %1817 = vmatpush1.msra.mxu0 0.0
        %1818 = vmatprep.subr.mxu0 0.0
        %1819 = vmatpush1.msra.mxu0 0.0
        %1820 = vmatprep.subr.mxu0 0.0
        %1821 = vmatpush1.msra.mxu0 0.0
        %1822 = vmatprep.subr.mxu0 0.0
        %1823 = vmatpush1.msra.mxu0 0.0
        %1824 = vmatprep.subr.mxu0 0.0
        %1825 = vmatpush1.msra.mxu0 0.0
        %1826 = vmatprep.subr.mxu0 0.0
        %1827 = vmatpush1.msra.mxu0 0.0
        %1828 = vmatprep.subr.mxu0 0.0
        %1829 = vmatpush1.msra.mxu0 0.0
        %1830 = vmatprep.subr.mxu0 0.0
        %1831 = vmatpush1.msra.mxu0 0.0
        %1832 = vmatprep.subr.mxu0 0.0
        %1833 = vmatpush1.msra.mxu0 0.0
        %1834 = vmatprep.subr.mxu0 0.0
        %1835 = vmatpush1.msra.mxu0 0.0
        %1836 = vmatprep.subr.mxu0 0.0
        %1837 = vmatpush1.msra.mxu0 0.0
        %1838 = vmatprep.subr.mxu0 0.0
        %1839 = vmatpush1.msra.mxu0 0.0
        %1840 = vmatprep.subr.mxu0 0.0
        %1841 = vmatpush1.msra.mxu0 0.0
        %1842 = vmatprep.subr.mxu0 0.0
        %1843 = vmatpush1.msra.mxu0 0.0
        %1844 = vmatprep.subr.mxu0 0.0
        %1845 = vmatpush1.msra.mxu0 0.0
        %1846 = vmatprep.subr.mxu0 0.0
        %1847 = vmatpush1.msra.mxu0 0.0
        %1848 = vmatprep.subr.mxu0 0.0
        %1849 = vmatpush1.msra.mxu0 0.0
        %1850 = vmatprep.subr.mxu0 0.0
        %1851 = vmatpush1.msra.mxu0 0.0
        %1852 = vmatprep.subr.mxu0 0.0
        %1853 = vmatpush1.msra.mxu0 0.0
        %1854 = vmatprep.subr.mxu0 0.0
        %1855 = vmatpush1.msra.mxu0 0.0
        %1856 = vmatprep.subr.mxu0 0.0
        %1857 = vmatpush1.msra.mxu0 0.0
        %1858 = vmatprep.subr.mxu0 0.0
        %1859 = vmatpush1.msra.mxu0 0.0
        %1860 = vmatprep.subr.mxu0 0.0
        %1861 = vmatpush1.msra.mxu0 0.0
        %1862 = vmatprep.subr.mxu0 0.0
        %1863 = vmatpush1.msra.mxu0 0.0
        %1864 = vmatprep.subr.mxu0 0.0
        %1865 = vmatpush1.msra.mxu0 0.0
        %1866 = vmatprep.subr.mxu0 0.0
        %1867 = vmatpush1.msra.mxu0 0.0
        %1868 = vmatprep.mubr.f32.mxu0 0.0
        %v1869 = vand.u32 %v1703, 4294901760
        %1870 = vmatmul.mubr.f32.gmra.mrb[0].mxu0 %v1869
        %v1871 = vpop.f32.mrb[0].mxu0
        %v1872 = vadd.f32 %v1781, %v1871
        %v1873 = vpop.f32.mrb[0].mxu0
        %1874 = vdwg.mxu0
        %1875 = vmatprep.subr.mxu0 0.0
        %v1876 = vand.u32 %v1690, 4294901760
        %v1877 = vsub.f32 %v1690, %v1876
        %1878 = vmatpush1.msra.mxu0 %v1877
        %1879 = vmatprep.subr.mxu0 0.0
        %v1880 = vand.u32 %v1691, 4294901760
        %v1881 = vsub.f32 %v1691, %v1880
        %1882 = vmatpush1.msra.mxu0 %v1881
        %1883 = vmatprep.subr.mxu0 0.0
        %v1884 = vand.u32 %v1692, 4294901760
        %v1885 = vsub.f32 %v1692, %v1884
        %1886 = vmatpush1.msra.mxu0 %v1885
        %1887 = vmatprep.subr.mxu0 0.0
        %v1888 = vand.u32 %v1693, 4294901760
        %v1889 = vsub.f32 %v1693, %v1888
        %1890 = vmatpush1.msra.mxu0 %v1889
        %1891 = vmatprep.subr.mxu0 0.0
        %1892 = vmatpush1.msra.mxu0 0.0
        %1893 = vmatprep.subr.mxu0 0.0
        %1894 = vmatpush1.msra.mxu0 0.0
        %1895 = vmatprep.subr.mxu0 0.0
        %1896 = vmatpush1.msra.mxu0 0.0
        %1897 = vmatprep.subr.mxu0 0.0
        %1898 = vmatpush1.msra.mxu0 0.0
        %1899 = vmatprep.subr.mxu0 0.0
        %1900 = vmatpush1.msra.mxu0 0.0
        %1901 = vmatprep.subr.mxu0 0.0
        %1902 = vmatpush1.msra.mxu0 0.0
        %1903 = vmatprep.subr.mxu0 0.0
        %1904 = vmatpush1.msra.mxu0 0.0
        %1905 = vmatprep.subr.mxu0 0.0
        %1906 = vmatpush1.msra.mxu0 0.0
        %1907 = vmatprep.subr.mxu0 0.0
        %1908 = vmatpush1.msra.mxu0 0.0
        %1909 = vmatprep.subr.mxu0 0.0
        %1910 = vmatpush1.msra.mxu0 0.0
        %1911 = vmatprep.subr.mxu0 0.0
        %1912 = vmatpush1.msra.mxu0 0.0
        %1913 = vmatprep.subr.mxu0 0.0
        %1914 = vmatpush1.msra.mxu0 0.0
        %1915 = vmatprep.subr.mxu0 0.0
        %1916 = vmatpush1.msra.mxu0 0.0
        %1917 = vmatprep.subr.mxu0 0.0
        %1918 = vmatpush1.msra.mxu0 0.0
        %1919 = vmatprep.subr.mxu0 0.0
        %1920 = vmatpush1.msra.mxu0 0.0
        %1921 = vmatprep.subr.mxu0 0.0
        %1922 = vmatpush1.msra.mxu0 0.0
        %1923 = vmatprep.subr.mxu0 0.0
        %1924 = vmatpush1.msra.mxu0 0.0
        %1925 = vmatprep.subr.mxu0 0.0
        %1926 = vmatpush1.msra.mxu0 0.0
        %1927 = vmatprep.subr.mxu0 0.0
        %1928 = vmatpush1.msra.mxu0 0.0
        %1929 = vmatprep.subr.mxu0 0.0
        %1930 = vmatpush1.msra.mxu0 0.0
        %1931 = vmatprep.subr.mxu0 0.0
        %1932 = vmatpush1.msra.mxu0 0.0
        %1933 = vmatprep.subr.mxu0 0.0
        %1934 = vmatpush1.msra.mxu0 0.0
        %1935 = vmatprep.subr.mxu0 0.0
        %1936 = vmatpush1.msra.mxu0 0.0
        %1937 = vmatprep.subr.mxu0 0.0
        %1938 = vmatpush1.msra.mxu0 0.0
        %1939 = vmatprep.subr.mxu0 0.0
        %1940 = vmatpush1.msra.mxu0 0.0
        %1941 = vmatprep.subr.mxu0 0.0
        %1942 = vmatpush1.msra.mxu0 0.0
        %1943 = vmatprep.subr.mxu0 0.0
        %1944 = vmatpush1.msra.mxu0 0.0
        %1945 = vmatprep.subr.mxu0 0.0
        %1946 = vmatpush1.msra.mxu0 0.0
        %1947 = vmatprep.mubr.f32.mxu0 0.0
        %v1948 = vand.u32 %v1703, 4294901760
        %v1949 = vsub.f32 %v1703, %v1948
        %1950 = vmatmul.mubr.f32.gmra.mrb[0].mxu0 %v1949
        %v1951 = vpop.f32.mrb[0].mxu0
        %v1952 = vadd.f32 %v1872, %v1951
        %v1953 = vpop.f32.mrb[0].mxu0
        %1954 = vdwg.mxu0
        %1955 = vmatprep.subr.mxu0 0.0
        %v1956 = vand.u32 %v1690, 4294901760
        %1957 = vmatpush1.msra.mxu0 %v1956
        %1958 = vmatprep.subr.mxu0 0.0
        %v1959 = vand.u32 %v1691, 4294901760
        %1960 = vmatpush1.msra.mxu0 %v1959
        %1961 = vmatprep.subr.mxu0 0.0
        %v1962 = vand.u32 %v1692, 4294901760
        %1963 = vmatpush1.msra.mxu0 %v1962
        %1964 = vmatprep.subr.mxu0 0.0
        %v1965 = vand.u32 %v1693, 4294901760
        %1966 = vmatpush1.msra.mxu0 %v1965
        %1967 = vmatprep.subr.mxu0 0.0
        %1968 = vmatpush1.msra.mxu0 0.0
        %1969 = vmatprep.subr.mxu0 0.0
        %1970 = vmatpush1.msra.mxu0 0.0
        %1971 = vmatprep.subr.mxu0 0.0
        %1972 = vmatpush1.msra.mxu0 0.0
        %1973 = vmatprep.subr.mxu0 0.0
        %1974 = vmatpush1.msra.mxu0 0.0
        %1975 = vmatprep.subr.mxu0 0.0
        %1976 = vmatpush1.msra.mxu0 0.0
        %1977 = vmatprep.subr.mxu0 0.0
        %1978 = vmatpush1.msra.mxu0 0.0
        %1979 = vmatprep.subr.mxu0 0.0
        %1980 = vmatpush1.msra.mxu0 0.0
        %1981 = vmatprep.subr.mxu0 0.0
        %1982 = vmatpush1.msra.mxu0 0.0
        %1983 = vmatprep.subr.mxu0 0.0
        %1984 = vmatpush1.msra.mxu0 0.0
        %1985 = vmatprep.subr.mxu0 0.0
        %1986 = vmatpush1.msra.mxu0 0.0
        %1987 = vmatprep.subr.mxu0 0.0
        %1988 = vmatpush1.msra.mxu0 0.0
        %1989 = vmatprep.subr.mxu0 0.0
        %1990 = vmatpush1.msra.mxu0 0.0
        %1991 = vmatprep.subr.mxu0 0.0
        %1992 = vmatpush1.msra.mxu0 0.0
        %1993 = vmatprep.subr.mxu0 0.0
        %1994 = vmatpush1.msra.mxu0 0.0
        %1995 = vmatprep.subr.mxu0 0.0
        %1996 = vmatpush1.msra.mxu0 0.0
        %1997 = vmatprep.subr.mxu0 0.0
        %1998 = vmatpush1.msra.mxu0 0.0
        %1999 = vmatprep.subr.mxu0 0.0
        %2000 = vmatpush1.msra.mxu0 0.0
        %2001 = vmatprep.subr.mxu0 0.0
        %2002 = vmatpush1.msra.mxu0 0.0
        %2003 = vmatprep.subr.mxu0 0.0
        %2004 = vmatpush1.msra.mxu0 0.0
        %2005 = vmatprep.subr.mxu0 0.0
        %2006 = vmatpush1.msra.mxu0 0.0
        %2007 = vmatprep.subr.mxu0 0.0
        %2008 = vmatpush1.msra.mxu0 0.0
        %2009 = vmatprep.subr.mxu0 0.0
        %2010 = vmatpush1.msra.mxu0 0.0
        %2011 = vmatprep.subr.mxu0 0.0
        %2012 = vmatpush1.msra.mxu0 0.0
        %2013 = vmatprep.subr.mxu0 0.0
        %2014 = vmatpush1.msra.mxu0 0.0
        %2015 = vmatprep.subr.mxu0 0.0
        %2016 = vmatpush1.msra.mxu0 0.0
        %2017 = vmatprep.subr.mxu0 0.0
        %2018 = vmatpush1.msra.mxu0 0.0
        %2019 = vmatprep.subr.mxu0 0.0
        %2020 = vmatpush1.msra.mxu0 0.0
        %2021 = vmatprep.subr.mxu0 0.0
        %2022 = vmatpush1.msra.mxu0 0.0
        %2023 = vmatprep.mubr.f32.mxu0 0.0
        %v2024 = vand.u32 %v1703, 4294901760
        %v2025 = vsub.f32 %v1703, %v2024
        %v2026 = vand.u32 %v2025, 4294901760
        %2027 = vmatmul.mubr.f32.gmra.mrb[0].mxu0 %v2026
        %v2028 = vpop.f32.mrb[0].mxu0
        %v2029 = vadd.f32 %v1952, %v2028
        %v2030 = vpop.f32.mrb[0].mxu0
        %2031 = vdwg.mxu0
        %2032 = vmatprep.subr.mxu0 0.0
        %v2033 = vand.u32 %v1690, 4294901760
        %v2034 = vsub.f32 %v1690, %v2033
        %v2035 = vand.u32 %v2034, 4294901760
        %2036 = vmatpush1.msra.mxu0 %v2035
        %2037 = vmatprep.subr.mxu0 0.0
        %v2038 = vand.u32 %v1691, 4294901760
        %v2039 = vsub.f32 %v1691, %v2038
        %v2040 = vand.u32 %v2039, 4294901760
        %2041 = vmatpush1.msra.mxu0 %v2040
        %2042 = vmatprep.subr.mxu0 0.0
        %v2043 = vand.u32 %v1692, 4294901760
        %v2044 = vsub.f32 %v1692, %v2043
        %v2045 = vand.u32 %v2044, 4294901760
        %2046 = vmatpush1.msra.mxu0 %v2045
        %2047 = vmatprep.subr.mxu0 0.0
        %v2048 = vand.u32 %v1693, 4294901760
        %v2049 = vsub.f32 %v1693, %v2048
        %v2050 = vand.u32 %v2049, 4294901760
        %2051 = vmatpush1.msra.mxu0 %v2050
        %2052 = vmatprep.subr.mxu0 0.0
        %2053 = vmatpush1.msra.mxu0 0.0
        %2054 = vmatprep.subr.mxu0 0.0
        %2055 = vmatpush1.msra.mxu0 0.0
        %2056 = vmatprep.subr.mxu0 0.0
        %2057 = vmatpush1.msra.mxu0 0.0
        %2058 = vmatprep.subr.mxu0 0.0
        %2059 = vmatpush1.msra.mxu0 0.0
        %2060 = vmatprep.subr.mxu0 0.0
        %2061 = vmatpush1.msra.mxu0 0.0
        %2062 = vmatprep.subr.mxu0 0.0
        %2063 = vmatpush1.msra.mxu0 0.0
        %2064 = vmatprep.subr.mxu0 0.0
        %2065 = vmatpush1.msra.mxu0 0.0
        %2066 = vmatprep.subr.mxu0 0.0
        %2067 = vmatpush1.msra.mxu0 0.0
        %2068 = vmatprep.subr.mxu0 0.0
        %2069 = vmatpush1.msra.mxu0 0.0
        %2070 = vmatprep.subr.mxu0 0.0
        %2071 = vmatpush1.msra.mxu0 0.0
        %2072 = vmatprep.subr.mxu0 0.0
        %2073 = vmatpush1.msra.mxu0 0.0
        %2074 = vmatprep.subr.mxu0 0.0
        %2075 = vmatpush1.msra.mxu0 0.0
        %2076 = vmatprep.subr.mxu0 0.0
        %2077 = vmatpush1.msra.mxu0 0.0
        %2078 = vmatprep.subr.mxu0 0.0
        %2079 = vmatpush1.msra.mxu0 0.0
        %2080 = vmatprep.subr.mxu0 0.0
        %2081 = vmatpush1.msra.mxu0 0.0
        %2082 = vmatprep.subr.mxu0 0.0
        %2083 = vmatpush1.msra.mxu0 0.0
        %2084 = vmatprep.subr.mxu0 0.0
        %2085 = vmatpush1.msra.mxu0 0.0
        %2086 = vmatprep.subr.mxu0 0.0
        %2087 = vmatpush1.msra.mxu0 0.0
        %2088 = vmatprep.subr.mxu0 0.0
        %2089 = vmatpush1.msra.mxu0 0.0
        %2090 = vmatprep.subr.mxu0 0.0
        %2091 = vmatpush1.msra.mxu0 0.0
        %2092 = vmatprep.subr.mxu0 0.0
        %2093 = vmatpush1.msra.mxu0 0.0
        %2094 = vmatprep.subr.mxu0 0.0
        %2095 = vmatpush1.msra.mxu0 0.0
        %2096 = vmatprep.subr.mxu0 0.0
        %2097 = vmatpush1.msra.mxu0 0.0
        %2098 = vmatprep.subr.mxu0 0.0
        %2099 = vmatpush1.msra.mxu0 0.0
        %2100 = vmatprep.subr.mxu0 0.0
        %2101 = vmatpush1.msra.mxu0 0.0
        %2102 = vmatprep.subr.mxu0 0.0
        %2103 = vmatpush1.msra.mxu0 0.0
        %2104 = vmatprep.subr.mxu0 0.0
        %2105 = vmatpush1.msra.mxu0 0.0
        %2106 = vmatprep.subr.mxu0 0.0
        %2107 = vmatpush1.msra.mxu0 0.0
        %2108 = vmatprep.mubr.f32.mxu0 0.0
        %v2109 = vand.u32 %v1703, 4294901760
        %2110 = vmatmul.mubr.f32.gmra.mrb[0].mxu0 %v2109
        %v2111 = vpop.f32.mrb[0].mxu0
        %v2112 = vadd.f32 %v2029, %v2111
        %v2113 = vpop.f32.mrb[0].mxu0
        %2114 = vdwg.mxu0
        %2115 = vmatprep.subr.mxu0 0.0
        %v2116 = vand.u32 %v1690, 4294901760
        %2117 = vmatpush1.msra.mxu0 %v2116
        %2118 = vmatprep.subr.mxu0 0.0
        %v2119 = vand.u32 %v1691, 4294901760
        %2120 = vmatpush1.msra.mxu0 %v2119
        %2121 = vmatprep.subr.mxu0 0.0
        %v2122 = vand.u32 %v1692, 4294901760
        %2123 = vmatpush1.msra.mxu0 %v2122
        %2124 = vmatprep.subr.mxu0 0.0
        %v2125 = vand.u32 %v1693, 4294901760
        %2126 = vmatpush1.msra.mxu0 %v2125
        %2127 = vmatprep.subr.mxu0 0.0
        %2128 = vmatpush1.msra.mxu0 0.0
        %2129 = vmatprep.subr.mxu0 0.0
        %2130 = vmatpush1.msra.mxu0 0.0
        %2131 = vmatprep.subr.mxu0 0.0
        %2132 = vmatpush1.msra.mxu0 0.0
        %2133 = vmatprep.subr.mxu0 0.0
        %2134 = vmatpush1.msra.mxu0 0.0
        %2135 = vmatprep.subr.mxu0 0.0
        %2136 = vmatpush1.msra.mxu0 0.0
        %2137 = vmatprep.subr.mxu0 0.0
        %2138 = vmatpush1.msra.mxu0 0.0
        %2139 = vmatprep.subr.mxu0 0.0
        %2140 = vmatpush1.msra.mxu0 0.0
        %2141 = vmatprep.subr.mxu0 0.0
        %2142 = vmatpush1.msra.mxu0 0.0
        %2143 = vmatprep.subr.mxu0 0.0
        %2144 = vmatpush1.msra.mxu0 0.0
        %2145 = vmatprep.subr.mxu0 0.0
        %2146 = vmatpush1.msra.mxu0 0.0
        %2147 = vmatprep.subr.mxu0 0.0
        %2148 = vmatpush1.msra.mxu0 0.0
        %2149 = vmatprep.subr.mxu0 0.0
        %2150 = vmatpush1.msra.mxu0 0.0
        %2151 = vmatprep.subr.mxu0 0.0
        %2152 = vmatpush1.msra.mxu0 0.0
        %2153 = vmatprep.subr.mxu0 0.0
        %2154 = vmatpush1.msra.mxu0 0.0
        %2155 = vmatprep.subr.mxu0 0.0
        %2156 = vmatpush1.msra.mxu0 0.0
        %2157 = vmatprep.subr.mxu0 0.0
        %2158 = vmatpush1.msra.mxu0 0.0
        %2159 = vmatprep.subr.mxu0 0.0
        %2160 = vmatpush1.msra.mxu0 0.0
        %2161 = vmatprep.subr.mxu0 0.0
        %2162 = vmatpush1.msra.mxu0 0.0
        %2163 = vmatprep.subr.mxu0 0.0
        %2164 = vmatpush1.msra.mxu0 0.0
        %2165 = vmatprep.subr.mxu0 0.0
        %2166 = vmatpush1.msra.mxu0 0.0
        %2167 = vmatprep.subr.mxu0 0.0
        %2168 = vmatpush1.msra.mxu0 0.0
        %2169 = vmatprep.subr.mxu0 0.0
        %2170 = vmatpush1.msra.mxu0 0.0
        %2171 = vmatprep.subr.mxu0 0.0
        %2172 = vmatpush1.msra.mxu0 0.0
        %2173 = vmatprep.subr.mxu0 0.0
        %2174 = vmatpush1.msra.mxu0 0.0
        %2175 = vmatprep.subr.mxu0 0.0
        %2176 = vmatpush1.msra.mxu0 0.0
        %2177 = vmatprep.subr.mxu0 0.0
        %2178 = vmatpush1.msra.mxu0 0.0
        %2179 = vmatprep.subr.mxu0 0.0
        %2180 = vmatpush1.msra.mxu0 0.0
        %2181 = vmatprep.subr.mxu0 0.0
        %2182 = vmatpush1.msra.mxu0 0.0
        %2183 = vmatprep.mubr.f32.mxu0 0.0
        %v2184 = vand.u32 %v1703, 4294901760
        %2185 = vmatmul.mubr.f32.gmra.mrb[0].mxu0 %v2184
        %v2186 = vpop.f32.mrb[0].mxu0
        %v2187 = vadd.f32 %v2112, %v2186
        %v2188 = vpop.f32.mrb[0].mxu0
        %2189 = vdwg.mxu0
        %v2190 = vmul.f32 %v2187, 0.35355338
        %v2191 = vld [vmem:[%s601] sm:$0xff]
        %v2192 = vld [vmem:[%s601 + $0x8] sm:$0xff]
        %v2193 = vld [vmem:[%s601 + $0x10] sm:$0xff]
        %v2194 = vld [vmem:[%s601 + $0x18] sm:$0xff]
        %v2195 = vld [vmem:[%s601 + $0x20] sm:$0xff]
        %v2196 = vld [vmem:[%s601 + $0x28] sm:$0xff]
        %v2197 = vld [vmem:[%s601 + $0x30] sm:$0xff]
        %v2198 = vld [vmem:[%s601 + $0x38] sm:$0xff]
        %v2199 = vld [vmem:[%s4] sm:$0xff]
        %v2200 = vld [vmem:[%s4 + $0x8] sm:$0xff]
        %v2201 = vld [vmem:[%s5] sm:$0x1]
        %v2203 = vlaneseq
        %v2204 = vshrl.u32 %v2203, 7
        %v2205 = vsub.s32 0, %v2204
        %v2206 = vrot.slane %v2201, %v2205
        %vm2208 = vcmask 130048
        %v2210 = vsel %vm2208, %v2191, 0
        %v2213 = vsel %vm2208, %v2192, 0
        %v2216 = vsel %vm2208, %v2193, 0
        %v2219 = vsel %vm2208, %v2194, 0
        %v2222 = vsel %vm2208, %v2195, 0
        %v2225 = vsel %vm2208, %v2196, 0
        %v2228 = vsel %vm2208, %v2197, 0
        %v2231 = vsel %vm2208, %v2198, 0
        %2233 = vmatprep.subr.mxu0 0.0
        %v2234 = vand.u32 %v2199, 4294901760
        %2235 = vmatpush1.msra.mxu0 %v2234
        %2236 = vmatprep.subr.mxu0 0.0
        %v2237 = vand.u32 %v2200, 4294901760
        %2238 = vmatpush1.msra.mxu0 %v2237
        %2239 = vmatprep.subr.mxu0 0.0
        %2240 = vmatpush1.msra.mxu0 0.0
        %2241 = vmatprep.subr.mxu0 0.0
        %2242 = vmatpush1.msra.mxu0 0.0
        %2243 = vmatprep.subr.mxu0 0.0
        %2244 = vmatpush1.msra.mxu0 0.0
        %2245 = vmatprep.subr.mxu0 0.0
        %2246 = vmatpush1.msra.mxu0 0.0
        %2247 = vmatprep.subr.mxu0 0.0
        %2248 = vmatpush1.msra.mxu0 0.0
        %2249 = vmatprep.subr.mxu0 0.0
        %2250 = vmatpush1.msra.mxu0 0.0
        %2251 = vmatprep.subr.mxu0 0.0
        %2252 = vmatpush1.msra.mxu0 0.0
        %2253 = vmatprep.subr.mxu0 0.0
        %2254 = vmatpush1.msra.mxu0 0.0
        %2255 = vmatprep.subr.mxu0 0.0
        %2256 = vmatpush1.msra.mxu0 0.0
        %2257 = vmatprep.subr.mxu0 0.0
        %2258 = vmatpush1.msra.mxu0 0.0
        %2259 = vmatprep.subr.mxu0 0.0
        %2260 = vmatpush1.msra.mxu0 0.0
        %2261 = vmatprep.subr.mxu0 0.0
        %2262 = vmatpush1.msra.mxu0 0.0
        %2263 = vmatprep.subr.mxu0 0.0
        %2264 = vmatpush1.msra.mxu0 0.0
        %2265 = vmatprep.subr.mxu0 0.0
        %2266 = vmatpush1.msra.mxu0 0.0
        %2267 = vmatprep.subr.mxu0 0.0
        %2268 = vmatpush1.msra.mxu0 0.0
        %2269 = vmatprep.subr.mxu0 0.0
        %2270 = vmatpush1.msra.mxu0 0.0
        %2271 = vmatprep.subr.mxu0 0.0
        %2272 = vmatpush1.msra.mxu0 0.0
        %2273 = vmatprep.subr.mxu0 0.0
        %2274 = vmatpush1.msra.mxu0 0.0
        %2275 = vmatprep.subr.mxu0 0.0
        %2276 = vmatpush1.msra.mxu0 0.0
        %2277 = vmatprep.subr.mxu0 0.0
        %2278 = vmatpush1.msra.mxu0 0.0
        %2279 = vmatprep.subr.mxu0 0.0
        %2280 = vmatpush1.msra.mxu0 0.0
        %2281 = vmatprep.subr.mxu0 0.0
        %2282 = vmatpush1.msra.mxu0 0.0
        %2283 = vmatprep.subr.mxu0 0.0
        %2284 = vmatpush1.msra.mxu0 0.0
        %2285 = vmatprep.subr.mxu0 0.0
        %2286 = vmatpush1.msra.mxu0 0.0
        %2287 = vmatprep.subr.mxu0 0.0
        %2288 = vmatpush1.msra.mxu0 0.0
        %2289 = vmatprep.subr.mxu0 0.0
        %2290 = vmatpush1.msra.mxu0 0.0
        %2291 = vmatprep.subr.mxu0 0.0
        %2292 = vmatpush1.msra.mxu0 0.0
        %2293 = vmatprep.subr.mxu0 0.0
        %2294 = vmatpush1.msra.mxu0 0.0
        %2295 = vmatprep.subr.mxu0 0.0
        %2296 = vmatpush1.msra.mxu0 0.0
        %2297 = vmatprep.subr.mxu0 0.0
        %2298 = vmatpush1.msra.mxu0 0.0
        %2299 = vmatprep.mubr.f32.mxu0 0.0
        %v2300 = vand.u32 %v2210, 4294901760
        %v2301 = vsub.f32 %v2210, %v2300
        %v2302 = vand.u32 %v2301, 4294901760
        %v2303 = vsub.f32 %v2301, %v2302
        %v2304 = vand.u32 %v2303, 4294901760
        %2305 = vmatmul.mubr.f32.gmra.mrb[0].mxu0 %v2304
        %v2306 = vpop.f32.mrb[0].mxu0
        %v2307 = vadd.f32 %v2206, %v2306
        %v2308 = vpop.f32.mrb[0].mxu0
        %2309 = vmatprep.mubr.f32.mxu0 0.0
        %v2310 = vand.u32 %v2213, 4294901760
        %v2311 = vsub.f32 %v2213, %v2310
        %v2312 = vand.u32 %v2311, 4294901760
        %v2313 = vsub.f32 %v2311, %v2312
        %v2314 = vand.u32 %v2313, 4294901760
        %2315 = vmatmul.mubr.f32.gmra.mrb[0].mxu0 %v2314
        %v2316 = vpop.f32.mrb[0].mxu0
        %v2317 = vadd.f32 %v2206, %v2316
        %v2318 = vpop.f32.mrb[0].mxu0
        %2319 = vmatprep.mubr.f32.mxu0 0.0
        %v2320 = vand.u32 %v2216, 4294901760
        %v2321 = vsub.f32 %v2216, %v2320
        %v2322 = vand.u32 %v2321, 4294901760
        %v2323 = vsub.f32 %v2321, %v2322
        %v2324 = vand.u32 %v2323, 4294901760
        %2325 = vmatmul.mubr.f32.gmra.mrb[0].mxu0 %v2324
        %v2326 = vpop.f32.mrb[0].mxu0
        %v2327 = vadd.f32 %v2206, %v2326
        %v2328 = vpop.f32.mrb[0].mxu0
        %2329 = vmatprep.mubr.f32.mxu0 0.0
        %v2330 = vand.u32 %v2219, 4294901760
        %v2331 = vsub.f32 %v2219, %v2330
        %v2332 = vand.u32 %v2331, 4294901760
        %v2333 = vsub.f32 %v2331, %v2332
        %v2334 = vand.u32 %v2333, 4294901760
        %2335 = vmatmul.mubr.f32.gmra.mrb[0].mxu0 %v2334
        %v2336 = vpop.f32.mrb[0].mxu0
        %v2337 = vadd.f32 %v2206, %v2336
        %v2338 = vpop.f32.mrb[0].mxu0
        %2339 = vmatprep.mubr.f32.mxu0 0.0
        %v2340 = vand.u32 %v2222, 4294901760
        %v2341 = vsub.f32 %v2222, %v2340
        %v2342 = vand.u32 %v2341, 4294901760
        %v2343 = vsub.f32 %v2341, %v2342
        %v2344 = vand.u32 %v2343, 4294901760
        %2345 = vmatmul.mubr.f32.gmra.mrb[0].mxu0 %v2344
        %v2346 = vpop.f32.mrb[0].mxu0
        %v2347 = vadd.f32 %v2206, %v2346
        %v2348 = vpop.f32.mrb[0].mxu0
        %2349 = vmatprep.mubr.f32.mxu0 0.0
        %v2350 = vand.u32 %v2225, 4294901760
        %v2351 = vsub.f32 %v2225, %v2350
        %v2352 = vand.u32 %v2351, 4294901760
        %v2353 = vsub.f32 %v2351, %v2352
        %v2354 = vand.u32 %v2353, 4294901760
        %2355 = vmatmul.mubr.f32.gmra.mrb[0].mxu0 %v2354
        %v2356 = vpop.f32.mrb[0].mxu0
        %v2357 = vadd.f32 %v2206, %v2356
        %v2358 = vpop.f32.mrb[0].mxu0
        %2359 = vmatprep.mubr.f32.mxu0 0.0
        %v2360 = vand.u32 %v2228, 4294901760
        %v2361 = vsub.f32 %v2228, %v2360
        %v2362 = vand.u32 %v2361, 4294901760
        %v2363 = vsub.f32 %v2361, %v2362
        %v2364 = vand.u32 %v2363, 4294901760
        %2365 = vmatmul.mubr.f32.gmra.mrb[0].mxu0 %v2364
        %v2366 = vpop.f32.mrb[0].mxu0
        %v2367 = vadd.f32 %v2206, %v2366
        %v2368 = vpop.f32.mrb[0].mxu0
        %2369 = vmatprep.mubr.f32.mxu0 0.0
        %v2370 = vand.u32 %v2231, 4294901760
        %v2371 = vsub.f32 %v2231, %v2370
        %v2372 = vand.u32 %v2371, 4294901760
        %v2373 = vsub.f32 %v2371, %v2372
        %v2374 = vand.u32 %v2373, 4294901760
        %2375 = vmatmul.mubr.f32.gmra.mrb[0].mxu0 %v2374
        %v2376 = vpop.f32.mrb[0].mxu0
        %v2377 = vadd.f32 %v2206, %v2376
        %v2378 = vpop.f32.mrb[0].mxu0
        %2379 = vdwg.mxu0
        %2380 = vmatprep.subr.mxu0 0.0
        %v2381 = vand.u32 %v2199, 4294901760
        %v2382 = vsub.f32 %v2199, %v2381
        %v2383 = vand.u32 %v2382, 4294901760
        %v2384 = vsub.f32 %v2382, %v2383
        %v2385 = vand.u32 %v2384, 4294901760
        %2386 = vmatpush1.msra.mxu0 %v2385
        %2387 = vmatprep.subr.mxu0 0.0
        %v2388 = vand.u32 %v2200, 4294901760
        %v2389 = vsub.f32 %v2200, %v2388
        %v2390 = vand.u32 %v2389, 4294901760
        %v2391 = vsub.f32 %v2389, %v2390
        %v2392 = vand.u32 %v2391, 4294901760
        %2393 = vmatpush1.msra.mxu0 %v2392
        %2394 = vmatprep.subr.mxu0 0.0
        %2395 = vmatpush1.msra.mxu0 0.0
        %2396 = vmatprep.subr.mxu0 0.0
        %2397 = vmatpush1.msra.mxu0 0.0
        %2398 = vmatprep.subr.mxu0 0.0
        %2399 = vmatpush1.msra.mxu0 0.0
        %2400 = vmatprep.subr.mxu0 0.0
        %2401 = vmatpush1.msra.mxu0 0.0
        %2402 = vmatprep.subr.mxu0 0.0
        %2403 = vmatpush1.msra.mxu0 0.0
        %2404 = vmatprep.subr.mxu0 0.0
        %2405 = vmatpush1.msra.mxu0 0.0
        %2406 = vmatprep.subr.mxu0 0.0
        %2407 = vmatpush1.msra.mxu0 0.0
        %2408 = vmatprep.subr.mxu0 0.0
        %2409 = vmatpush1.msra.mxu0 0.0
        %2410 = vmatprep.subr.mxu0 0.0
        %2411 = vmatpush1.msra.mxu0 0.0
        %2412 = vmatprep.subr.mxu0 0.0
        %2413 = vmatpush1.msra.mxu0 0.0
        %2414 = vmatprep.subr.mxu0 0.0
        %2415 = vmatpush1.msra.mxu0 0.0
        %2416 = vmatprep.subr.mxu0 0.0
        %2417 = vmatpush1.msra.mxu0 0.0
        %2418 = vmatprep.subr.mxu0 0.0
        %2419 = vmatpush1.msra.mxu0 0.0
        %2420 = vmatprep.subr.mxu0 0.0
        %2421 = vmatpush1.msra.mxu0 0.0
        %2422 = vmatprep.subr.mxu0 0.0
        %2423 = vmatpush1.msra.mxu0 0.0
        %2424 = vmatprep.subr.mxu0 0.0
        %2425 = vmatpush1.msra.mxu0 0.0
        %2426 = vmatprep.subr.mxu0 0.0
        %2427 = vmatpush1.msra.mxu0 0.0
        %2428 = vmatprep.subr.mxu0 0.0
        %2429 = vmatpush1.msra.mxu0 0.0
        %2430 = vmatprep.subr.mxu0 0.0
        %2431 = vmatpush1.msra.mxu0 0.0
        %2432 = vmatprep.subr.mxu0 0.0
        %2433 = vmatpush1.msra.mxu0 0.0
        %2434 = vmatprep.subr.mxu0 0.0
        %2435 = vmatpush1.msra.mxu0 0.0
        %2436 = vmatprep.subr.mxu0 0.0
        %2437 = vmatpush1.msra.mxu0 0.0
        %2438 = vmatprep.subr.mxu0 0.0
        %2439 = vmatpush1.msra.mxu0 0.0
        %2440 = vmatprep.subr.mxu0 0.0
        %2441 = vmatpush1.msra.mxu0 0.0
        %2442 = vmatprep.subr.mxu0 0.0
        %2443 = vmatpush1.msra.mxu0 0.0
        %2444 = vmatprep.subr.mxu0 0.0
        %2445 = vmatpush1.msra.mxu0 0.0
        %2446 = vmatprep.subr.mxu0 0.0
        %2447 = vmatpush1.msra.mxu0 0.0
        %2448 = vmatprep.subr.mxu0 0.0
        %2449 = vmatpush1.msra.mxu0 0.0
        %2450 = vmatprep.subr.mxu0 0.0
        %2451 = vmatpush1.msra.mxu0 0.0
        %2452 = vmatprep.subr.mxu0 0.0
        %2453 = vmatpush1.msra.mxu0 0.0
        %2454 = vmatprep.mubr.f32.mxu0 0.0
        %v2455 = vand.u32 %v2210, 4294901760
        %2456 = vmatmul.mubr.f32.gmra.mrb[0].mxu0 %v2455
        %v2457 = vpop.f32.mrb[0].mxu0
        %v2458 = vadd.f32 %v2307, %v2457
        %v2459 = vpop.f32.mrb[0].mxu0
        %2460 = vmatprep.mubr.f32.mxu0 0.0
        %v2461 = vand.u32 %v2213, 4294901760
        %2462 = vmatmul.mubr.f32.gmra.mrb[0].mxu0 %v2461
        %v2463 = vpop.f32.mrb[0].mxu0
        %v2464 = vadd.f32 %v2317, %v2463
        %v2465 = vpop.f32.mrb[0].mxu0
        %2466 = vmatprep.mubr.f32.mxu0 0.0
        %v2467 = vand.u32 %v2216, 4294901760
        %2468 = vmatmul.mubr.f32.gmra.mrb[0].mxu0 %v2467
        %v2469 = vpop.f32.mrb[0].mxu0
        %v2470 = vadd.f32 %v2327, %v2469
        %v2471 = vpop.f32.mrb[0].mxu0
        %2472 = vmatprep.mubr.f32.mxu0 0.0
        %v2473 = vand.u32 %v2219, 4294901760
        %2474 = vmatmul.mubr.f32.gmra.mrb[0].mxu0 %v2473
        %v2475 = vpop.f32.mrb[0].mxu0
        %v2476 = vadd.f32 %v2337, %v2475
        %v2477 = vpop.f32.mrb[0].mxu0
        %2478 = vmatprep.mubr.f32.mxu0 0.0
        %v2479 = vand.u32 %v2222, 4294901760
        %2480 = vmatmul.mubr.f32.gmra.mrb[0].mxu0 %v2479
        %v2481 = vpop.f32.mrb[0].mxu0
        %v2482 = vadd.f32 %v2347, %v2481
        %v2483 = vpop.f32.mrb[0].mxu0
        %2484 = vmatprep.mubr.f32.mxu0 0.0
        %v2485 = vand.u32 %v2225, 4294901760
        %2486 = vmatmul.mubr.f32.gmra.mrb[0].mxu0 %v2485
        %v2487 = vpop.f32.mrb[0].mxu0
        %v2488 = vadd.f32 %v2357, %v2487
        %v2489 = vpop.f32.mrb[0].mxu0
        %2490 = vmatprep.mubr.f32.mxu0 0.0
        %v2491 = vand.u32 %v2228, 4294901760
        %2492 = vmatmul.mubr.f32.gmra.mrb[0].mxu0 %v2491
        %v2493 = vpop.f32.mrb[0].mxu0
        %v2494 = vadd.f32 %v2367, %v2493
        %v2495 = vpop.f32.mrb[0].mxu0
        %2496 = vmatprep.mubr.f32.mxu0 0.0
        %v2497 = vand.u32 %v2231, 4294901760
        %2498 = vmatmul.mubr.f32.gmra.mrb[0].mxu0 %v2497
        %v2499 = vpop.f32.mrb[0].mxu0
        %v2500 = vadd.f32 %v2377, %v2499
        %v2501 = vpop.f32.mrb[0].mxu0
        %2502 = vdwg.mxu0
        %2503 = vmatprep.subr.mxu0 0.0
        %v2504 = vand.u32 %v2199, 4294901760
        %v2505 = vsub.f32 %v2199, %v2504
        %2506 = vmatpush1.msra.mxu0 %v2505
        %2507 = vmatprep.subr.mxu0 0.0
        %v2508 = vand.u32 %v2200, 4294901760
        %v2509 = vsub.f32 %v2200, %v2508
        %2510 = vmatpush1.msra.mxu0 %v2509
        %2511 = vmatprep.subr.mxu0 0.0
        %2512 = vmatpush1.msra.mxu0 0.0
        %2513 = vmatprep.subr.mxu0 0.0
        %2514 = vmatpush1.msra.mxu0 0.0
        %2515 = vmatprep.subr.mxu0 0.0
        %2516 = vmatpush1.msra.mxu0 0.0
        %2517 = vmatprep.subr.mxu0 0.0
        %2518 = vmatpush1.msra.mxu0 0.0
        %2519 = vmatprep.subr.mxu0 0.0
        %2520 = vmatpush1.msra.mxu0 0.0
        %2521 = vmatprep.subr.mxu0 0.0
        %2522 = vmatpush1.msra.mxu0 0.0
        %2523 = vmatprep.subr.mxu0 0.0
        %2524 = vmatpush1.msra.mxu0 0.0
        %2525 = vmatprep.subr.mxu0 0.0
        %2526 = vmatpush1.msra.mxu0 0.0
        %2527 = vmatprep.subr.mxu0 0.0
        %2528 = vmatpush1.msra.mxu0 0.0
        %2529 = vmatprep.subr.mxu0 0.0
        %2530 = vmatpush1.msra.mxu0 0.0
        %2531 = vmatprep.subr.mxu0 0.0
        %2532 = vmatpush1.msra.mxu0 0.0
        %2533 = vmatprep.subr.mxu0 0.0
        %2534 = vmatpush1.msra.mxu0 0.0
        %2535 = vmatprep.subr.mxu0 0.0
        %2536 = vmatpush1.msra.mxu0 0.0
        %2537 = vmatprep.subr.mxu0 0.0
        %2538 = vmatpush1.msra.mxu0 0.0
        %2539 = vmatprep.subr.mxu0 0.0
        %2540 = vmatpush1.msra.mxu0 0.0
        %2541 = vmatprep.subr.mxu0 0.0
        %2542 = vmatpush1.msra.mxu0 0.0
        %2543 = vmatprep.subr.mxu0 0.0
        %2544 = vmatpush1.msra.mxu0 0.0
        %2545 = vmatprep.subr.mxu0 0.0
        %2546 = vmatpush1.msra.mxu0 0.0
        %2547 = vmatprep.subr.mxu0 0.0
        %2548 = vmatpush1.msra.mxu0 0.0
        %2549 = vmatprep.subr.mxu0 0.0
        %2550 = vmatpush1.msra.mxu0 0.0
        %2551 = vmatprep.subr.mxu0 0.0
        %2552 = vmatpush1.msra.mxu0 0.0
        %2553 = vmatprep.subr.mxu0 0.0
        %2554 = vmatpush1.msra.mxu0 0.0
        %2555 = vmatprep.subr.mxu0 0.0
        %2556 = vmatpush1.msra.mxu0 0.0
        %2557 = vmatprep.subr.mxu0 0.0
        %2558 = vmatpush1.msra.mxu0 0.0
        %2559 = vmatprep.subr.mxu0 0.0
        %2560 = vmatpush1.msra.mxu0 0.0
        %2561 = vmatprep.subr.mxu0 0.0
        %2562 = vmatpush1.msra.mxu0 0.0
        %2563 = vmatprep.subr.mxu0 0.0
        %2564 = vmatpush1.msra.mxu0 0.0
        %2565 = vmatprep.subr.mxu0 0.0
        %2566 = vmatpush1.msra.mxu0 0.0
        %2567 = vmatprep.subr.mxu0 0.0
        %2568 = vmatpush1.msra.mxu0 0.0
        %2569 = vmatprep.subr.mxu0 0.0
        %2570 = vmatpush1.msra.mxu0 0.0
        %2571 = vmatprep.mubr.f32.mxu0 0.0
        %v2572 = vand.u32 %v2210, 4294901760
        %v2573 = vsub.f32 %v2210, %v2572
        %2574 = vmatmul.mubr.f32.gmra.mrb[0].mxu0 %v2573
        %v2575 = vpop.f32.mrb[0].mxu0
        %v2576 = vadd.f32 %v2458, %v2575
        %v2577 = vpop.f32.mrb[0].mxu0
        %2578 = vmatprep.mubr.f32.mxu0 0.0
        %v2579 = vand.u32 %v2213, 4294901760
        %v2580 = vsub.f32 %v2213, %v2579
        %2581 = vmatmul.mubr.f32.gmra.mrb[0].mxu0 %v2580
        %v2582 = vpop.f32.mrb[0].mxu0
        %v2583 = vadd.f32 %v2464, %v2582
        %v2584 = vpop.f32.mrb[0].mxu0
        %2585 = vmatprep.mubr.f32.mxu0 0.0
        %v2586 = vand.u32 %v2216, 4294901760
        %v2587 = vsub.f32 %v2216, %v2586
        %2588 = vmatmul.mubr.f32.gmra.mrb[0].mxu0 %v2587
        %v2589 = vpop.f32.mrb[0].mxu0
        %v2590 = vadd.f32 %v2470, %v2589
        %v2591 = vpop.f32.mrb[0].mxu0
        %2592 = vmatprep.mubr.f32.mxu0 0.0
        %v2593 = vand.u32 %v2219, 4294901760
        %v2594 = vsub.f32 %v2219, %v2593
        %2595 = vmatmul.mubr.f32.gmra.mrb[0].mxu0 %v2594
        %v2596 = vpop.f32.mrb[0].mxu0
        %v2597 = vadd.f32 %v2476, %v2596
        %v2598 = vpop.f32.mrb[0].mxu0
        %2599 = vmatprep.mubr.f32.mxu0 0.0
        %v2600 = vand.u32 %v2222, 4294901760
        %v2601 = vsub.f32 %v2222, %v2600
        %2602 = vmatmul.mubr.f32.gmra.mrb[0].mxu0 %v2601
        %v2603 = vpop.f32.mrb[0].mxu0
        %v2604 = vadd.f32 %v2482, %v2603
        %v2605 = vpop.f32.mrb[0].mxu0
        %2606 = vmatprep.mubr.f32.mxu0 0.0
        %v2607 = vand.u32 %v2225, 4294901760
        %v2608 = vsub.f32 %v2225, %v2607
        %2609 = vmatmul.mubr.f32.gmra.mrb[0].mxu0 %v2608
        %v2610 = vpop.f32.mrb[0].mxu0
        %v2611 = vadd.f32 %v2488, %v2610
        %v2612 = vpop.f32.mrb[0].mxu0
        %2613 = vmatprep.mubr.f32.mxu0 0.0
        %v2614 = vand.u32 %v2228, 4294901760
        %v2615 = vsub.f32 %v2228, %v2614
        %2616 = vmatmul.mubr.f32.gmra.mrb[0].mxu0 %v2615
        %v2617 = vpop.f32.mrb[0].mxu0
        %v2618 = vadd.f32 %v2494, %v2617
        %v2619 = vpop.f32.mrb[0].mxu0
        %2620 = vmatprep.mubr.f32.mxu0 0.0
        %v2621 = vand.u32 %v2231, 4294901760
        %v2622 = vsub.f32 %v2231, %v2621
        %2623 = vmatmul.mubr.f32.gmra.mrb[0].mxu0 %v2622
        %v2624 = vpop.f32.mrb[0].mxu0
        %v2625 = vadd.f32 %v2500, %v2624
        %v2626 = vpop.f32.mrb[0].mxu0
        %2627 = vdwg.mxu0
        %2628 = vmatprep.subr.mxu0 0.0
        %v2629 = vand.u32 %v2199, 4294901760
        %2630 = vmatpush1.msra.mxu0 %v2629
        %2631 = vmatprep.subr.mxu0 0.0
        %v2632 = vand.u32 %v2200, 4294901760
        %2633 = vmatpush1.msra.mxu0 %v2632
        %2634 = vmatprep.subr.mxu0 0.0
        %2635 = vmatpush1.msra.mxu0 0.0
        %2636 = vmatprep.subr.mxu0 0.0
        %2637 = vmatpush1.msra.mxu0 0.0
        %2638 = vmatprep.subr.mxu0 0.0
        %2639 = vmatpush1.msra.mxu0 0.0
        %2640 = vmatprep.subr.mxu0 0.0
        %2641 = vmatpush1.msra.mxu0 0.0
        %2642 = vmatprep.subr.mxu0 0.0
        %2643 = vmatpush1.msra.mxu0 0.0
        %2644 = vmatprep.subr.mxu0 0.0
        %2645 = vmatpush1.msra.mxu0 0.0
        %2646 = vmatprep.subr.mxu0 0.0
        %2647 = vmatpush1.msra.mxu0 0.0
        %2648 = vmatprep.subr.mxu0 0.0
        %2649 = vmatpush1.msra.mxu0 0.0
        %2650 = vmatprep.subr.mxu0 0.0
        %2651 = vmatpush1.msra.mxu0 0.0
        %2652 = vmatprep.subr.mxu0 0.0
        %2653 = vmatpush1.msra.mxu0 0.0
        %2654 = vmatprep.subr.mxu0 0.0
        %2655 = vmatpush1.msra.mxu0 0.0
        %2656 = vmatprep.subr.mxu0 0.0
        %2657 = vmatpush1.msra.mxu0 0.0
        %2658 = vmatprep.subr.mxu0 0.0
        %2659 = vmatpush1.msra.mxu0 0.0
        %2660 = vmatprep.subr.mxu0 0.0
        %2661 = vmatpush1.msra.mxu0 0.0
        %2662 = vmatprep.subr.mxu0 0.0
        %2663 = vmatpush1.msra.mxu0 0.0
        %2664 = vmatprep.subr.mxu0 0.0
        %2665 = vmatpush1.msra.mxu0 0.0
        %2666 = vmatprep.subr.mxu0 0.0
        %2667 = vmatpush1.msra.mxu0 0.0
        %2668 = vmatprep.subr.mxu0 0.0
        %2669 = vmatpush1.msra.mxu0 0.0
        %2670 = vmatprep.subr.mxu0 0.0
        %2671 = vmatpush1.msra.mxu0 0.0
        %2672 = vmatprep.subr.mxu0 0.0
        %2673 = vmatpush1.msra.mxu0 0.0
        %2674 = vmatprep.subr.mxu0 0.0
        %2675 = vmatpush1.msra.mxu0 0.0
        %2676 = vmatprep.subr.mxu0 0.0
        %2677 = vmatpush1.msra.mxu0 0.0
        %2678 = vmatprep.subr.mxu0 0.0
        %2679 = vmatpush1.msra.mxu0 0.0
        %2680 = vmatprep.subr.mxu0 0.0
        %2681 = vmatpush1.msra.mxu0 0.0
        %2682 = vmatprep.subr.mxu0 0.0
        %2683 = vmatpush1.msra.mxu0 0.0
        %2684 = vmatprep.subr.mxu0 0.0
        %2685 = vmatpush1.msra.mxu0 0.0
        %2686 = vmatprep.subr.mxu0 0.0
        %2687 = vmatpush1.msra.mxu0 0.0
        %2688 = vmatprep.subr.mxu0 0.0
        %2689 = vmatpush1.msra.mxu0 0.0
        %2690 = vmatprep.subr.mxu0 0.0
        %2691 = vmatpush1.msra.mxu0 0.0
        %2692 = vmatprep.subr.mxu0 0.0
        %2693 = vmatpush1.msra.mxu0 0.0
        %2694 = vmatprep.mubr.f32.mxu0 0.0
        %v2695 = vand.u32 %v2210, 4294901760
        %v2696 = vsub.f32 %v2210, %v2695
        %v2697 = vand.u32 %v2696, 4294901760
        %2698 = vmatmul.mubr.f32.gmra.mrb[0].mxu0 %v2697
        %v2699 = vpop.f32.mrb[0].mxu0
        %v2700 = vadd.f32 %v2576, %v2699
        %v2701 = vpop.f32.mrb[0].mxu0
        %2702 = vmatprep.mubr.f32.mxu0 0.0
        %v2703 = vand.u32 %v2213, 4294901760
        %v2704 = vsub.f32 %v2213, %v2703
        %v2705 = vand.u32 %v2704, 4294901760
        %2706 = vmatmul.mubr.f32.gmra.mrb[0].mxu0 %v2705
        %v2707 = vpop.f32.mrb[0].mxu0
        %v2708 = vadd.f32 %v2583, %v2707
        %v2709 = vpop.f32.mrb[0].mxu0
        %2710 = vmatprep.mubr.f32.mxu0 0.0
        %v2711 = vand.u32 %v2216, 4294901760
        %v2712 = vsub.f32 %v2216, %v2711
        %v2713 = vand.u32 %v2712, 4294901760
        %2714 = vmatmul.mubr.f32.gmra.mrb[0].mxu0 %v2713
        %v2715 = vpop.f32.mrb[0].mxu0
        %v2716 = vadd.f32 %v2590, %v2715
        %v2717 = vpop.f32.mrb[0].mxu0
        %2718 = vmatprep.mubr.f32.mxu0 0.0
        %v2719 = vand.u32 %v2219, 4294901760
        %v2720 = vsub.f32 %v2219, %v2719
        %v2721 = vand.u32 %v2720, 4294901760
        %2722 = vmatmul.mubr.f32.gmra.mrb[0].mxu0 %v2721
        %v2723 = vpop.f32.mrb[0].mxu0
        %v2724 = vadd.f32 %v2597, %v2723
        %v2725 = vpop.f32.mrb[0].mxu0
        %2726 = vmatprep.mubr.f32.mxu0 0.0
        %v2727 = vand.u32 %v2222, 4294901760
        %v2728 = vsub.f32 %v2222, %v2727
        %v2729 = vand.u32 %v2728, 4294901760
        %2730 = vmatmul.mubr.f32.gmra.mrb[0].mxu0 %v2729
        %v2731 = vpop.f32.mrb[0].mxu0
        %v2732 = vadd.f32 %v2604, %v2731
        %v2733 = vpop.f32.mrb[0].mxu0
        %2734 = vmatprep.mubr.f32.mxu0 0.0
        %v2735 = vand.u32 %v2225, 4294901760
        %v2736 = vsub.f32 %v2225, %v2735
        %v2737 = vand.u32 %v2736, 4294901760
        %2738 = vmatmul.mubr.f32.gmra.mrb[0].mxu0 %v2737
        %v2739 = vpop.f32.mrb[0].mxu0
        %v2740 = vadd.f32 %v2611, %v2739
        %v2741 = vpop.f32.mrb[0].mxu0
        %2742 = vmatprep.mubr.f32.mxu0 0.0
        %v2743 = vand.u32 %v2228, 4294901760
        %v2744 = vsub.f32 %v2228, %v2743
        %v2745 = vand.u32 %v2744, 4294901760
        %2746 = vmatmul.mubr.f32.gmra.mrb[0].mxu0 %v2745
        %v2747 = vpop.f32.mrb[0].mxu0
        %v2748 = vadd.f32 %v2618, %v2747
        %v2749 = vpop.f32.mrb[0].mxu0
        %2750 = vmatprep.mubr.f32.mxu0 0.0
        %v2751 = vand.u32 %v2231, 4294901760
        %v2752 = vsub.f32 %v2231, %v2751
        %v2753 = vand.u32 %v2752, 4294901760
        %2754 = vmatmul.mubr.f32.gmra.mrb[0].mxu0 %v2753
        %v2755 = vpop.f32.mrb[0].mxu0
        %v2756 = vadd.f32 %v2625, %v2755
        %v2757 = vpop.f32.mrb[0].mxu0
        %2758 = vdwg.mxu0
        %2759 = vmatprep.subr.mxu0 0.0
        %v2760 = vand.u32 %v2199, 4294901760
        %v2761 = vsub.f32 %v2199, %v2760
        %v2762 = vand.u32 %v2761, 4294901760
        %2763 = vmatpush1.msra.mxu0 %v2762
        %2764 = vmatprep.subr.mxu0 0.0
        %v2765 = vand.u32 %v2200, 4294901760
        %v2766 = vsub.f32 %v2200, %v2765
        %v2767 = vand.u32 %v2766, 4294901760
        %2768 = vmatpush1.msra.mxu0 %v2767
        %2769 = vmatprep.subr.mxu0 0.0
        %2770 = vmatpush1.msra.mxu0 0.0
        %2771 = vmatprep.subr.mxu0 0.0
        %2772 = vmatpush1.msra.mxu0 0.0
        %2773 = vmatprep.subr.mxu0 0.0
        %2774 = vmatpush1.msra.mxu0 0.0
        %2775 = vmatprep.subr.mxu0 0.0
        %2776 = vmatpush1.msra.mxu0 0.0
        %2777 = vmatprep.subr.mxu0 0.0
        %2778 = vmatpush1.msra.mxu0 0.0
        %2779 = vmatprep.subr.mxu0 0.0
        %2780 = vmatpush1.msra.mxu0 0.0
        %2781 = vmatprep.subr.mxu0 0.0
        %2782 = vmatpush1.msra.mxu0 0.0
        %2783 = vmatprep.subr.mxu0 0.0
        %2784 = vmatpush1.msra.mxu0 0.0
        %2785 = vmatprep.subr.mxu0 0.0
        %2786 = vmatpush1.msra.mxu0 0.0
        %2787 = vmatprep.subr.mxu0 0.0
        %2788 = vmatpush1.msra.mxu0 0.0
        %2789 = vmatprep.subr.mxu0 0.0
        %2790 = vmatpush1.msra.mxu0 0.0
        %2791 = vmatprep.subr.mxu0 0.0
        %2792 = vmatpush1.msra.mxu0 0.0
        %2793 = vmatprep.subr.mxu0 0.0
        %2794 = vmatpush1.msra.mxu0 0.0
        %2795 = vmatprep.subr.mxu0 0.0
        %2796 = vmatpush1.msra.mxu0 0.0
        %2797 = vmatprep.subr.mxu0 0.0
        %2798 = vmatpush1.msra.mxu0 0.0
        %2799 = vmatprep.subr.mxu0 0.0
        %2800 = vmatpush1.msra.mxu0 0.0
        %2801 = vmatprep.subr.mxu0 0.0
        %2802 = vmatpush1.msra.mxu0 0.0
        %2803 = vmatprep.subr.mxu0 0.0
        %2804 = vmatpush1.msra.mxu0 0.0
        %2805 = vmatprep.subr.mxu0 0.0
        %2806 = vmatpush1.msra.mxu0 0.0
        %2807 = vmatprep.subr.mxu0 0.0
        %2808 = vmatpush1.msra.mxu0 0.0
        %2809 = vmatprep.subr.mxu0 0.0
        %2810 = vmatpush1.msra.mxu0 0.0
        %2811 = vmatprep.subr.mxu0 0.0
        %2812 = vmatpush1.msra.mxu0 0.0
        %2813 = vmatprep.subr.mxu0 0.0
        %2814 = vmatpush1.msra.mxu0 0.0
        %2815 = vmatprep.subr.mxu0 0.0
        %2816 = vmatpush1.msra.mxu0 0.0
        %2817 = vmatprep.subr.mxu0 0.0
        %2818 = vmatpush1.msra.mxu0 0.0
        %2819 = vmatprep.subr.mxu0 0.0
        %2820 = vmatpush1.msra.mxu0 0.0
        %2821 = vmatprep.subr.mxu0 0.0
        %2822 = vmatpush1.msra.mxu0 0.0
        %2823 = vmatprep.subr.mxu0 0.0
        %2824 = vmatpush1.msra.mxu0 0.0
        %2825 = vmatprep.subr.mxu0 0.0
        %2826 = vmatpush1.msra.mxu0 0.0
        %2827 = vmatprep.subr.mxu0 0.0
        %2828 = vmatpush1.msra.mxu0 0.0
        %2829 = vmatprep.mubr.f32.mxu0 0.0
        %v2830 = vand.u32 %v2210, 4294901760
        %2831 = vmatmul.mubr.f32.gmra.mrb[0].mxu0 %v2830
        %v2832 = vpop.f32.mrb[0].mxu0
        %v2833 = vadd.f32 %v2700, %v2832
        %v2834 = vpop.f32.mrb[0].mxu0
        %2835 = vmatprep.mubr.f32.mxu0 0.0
        %v2836 = vand.u32 %v2213, 4294901760
        %2837 = vmatmul.mubr.f32.gmra.mrb[0].mxu0 %v2836
        %v2838 = vpop.f32.mrb[0].mxu0
        %v2839 = vadd.f32 %v2708, %v2838
        %v2840 = vpop.f32.mrb[0].mxu0
        %2841 = vmatprep.mubr.f32.mxu0 0.0
        %v2842 = vand.u32 %v2216, 4294901760
        %2843 = vmatmul.mubr.f32.gmra.mrb[0].mxu0 %v2842
        %v2844 = vpop.f32.mrb[0].mxu0
        %v2845 = vadd.f32 %v2716, %v2844
        %v2846 = vpop.f32.mrb[0].mxu0
        %2847 = vmatprep.mubr.f32.mxu0 0.0
        %v2848 = vand.u32 %v2219, 4294901760
        %2849 = vmatmul.mubr.f32.gmra.mrb[0].mxu0 %v2848
        %v2850 = vpop.f32.mrb[0].mxu0
        %v2851 = vadd.f32 %v2724, %v2850
        %v2852 = vpop.f32.mrb[0].mxu0
        %2853 = vmatprep.mubr.f32.mxu0 0.0
        %v2854 = vand.u32 %v2222, 4294901760
        %2855 = vmatmul.mubr.f32.gmra.mrb[0].mxu0 %v2854
        %v2856 = vpop.f32.mrb[0].mxu0
        %v2857 = vadd.f32 %v2732, %v2856
        %v2858 = vpop.f32.mrb[0].mxu0
        %2859 = vmatprep.mubr.f32.mxu0 0.0
        %v2860 = vand.u32 %v2225, 4294901760
        %2861 = vmatmul.mubr.f32.gmra.mrb[0].mxu0 %v2860
        %v2862 = vpop.f32.mrb[0].mxu0
        %v2863 = vadd.f32 %v2740, %v2862
        %v2864 = vpop.f32.mrb[0].mxu0
        %2865 = vmatprep.mubr.f32.mxu0 0.0
        %v2866 = vand.u32 %v2228, 4294901760
        %2867 = vmatmul.mubr.f32.gmra.mrb[0].mxu0 %v2866
        %v2868 = vpop.f32.mrb[0].mxu0
        %v2869 = vadd.f32 %v2748, %v2868
        %v2870 = vpop.f32.mrb[0].mxu0
        %2871 = vmatprep.mubr.f32.mxu0 0.0
        %v2872 = vand.u32 %v2231, 4294901760
        %2873 = vmatmul.mubr.f32.gmra.mrb[0].mxu0 %v2872
        %v2874 = vpop.f32.mrb[0].mxu0
        %v2875 = vadd.f32 %v2756, %v2874
        %v2876 = vpop.f32.mrb[0].mxu0
        %2877 = vdwg.mxu0
        %2878 = vmatprep.subr.mxu0 0.0
        %v2879 = vand.u32 %v2199, 4294901760
        %2880 = vmatpush1.msra.mxu0 %v2879
        %2881 = vmatprep.subr.mxu0 0.0
        %v2882 = vand.u32 %v2200, 4294901760
        %2883 = vmatpush1.msra.mxu0 %v2882
        %2884 = vmatprep.subr.mxu0 0.0
        %2885 = vmatpush1.msra.mxu0 0.0
        %2886 = vmatprep.subr.mxu0 0.0
        %2887 = vmatpush1.msra.mxu0 0.0
        %2888 = vmatprep.subr.mxu0 0.0
        %2889 = vmatpush1.msra.mxu0 0.0
        %2890 = vmatprep.subr.mxu0 0.0
        %2891 = vmatpush1.msra.mxu0 0.0
        %2892 = vmatprep.subr.mxu0 0.0
        %2893 = vmatpush1.msra.mxu0 0.0
        %2894 = vmatprep.subr.mxu0 0.0
        %2895 = vmatpush1.msra.mxu0 0.0
        %2896 = vmatprep.subr.mxu0 0.0
        %2897 = vmatpush1.msra.mxu0 0.0
        %2898 = vmatprep.subr.mxu0 0.0
        %2899 = vmatpush1.msra.mxu0 0.0
        %2900 = vmatprep.subr.mxu0 0.0
        %2901 = vmatpush1.msra.mxu0 0.0
        %2902 = vmatprep.subr.mxu0 0.0
        %2903 = vmatpush1.msra.mxu0 0.0
        %2904 = vmatprep.subr.mxu0 0.0
        %2905 = vmatpush1.msra.mxu0 0.0
        %2906 = vmatprep.subr.mxu0 0.0
        %2907 = vmatpush1.msra.mxu0 0.0
        %2908 = vmatprep.subr.mxu0 0.0
        %2909 = vmatpush1.msra.mxu0 0.0
        %2910 = vmatprep.subr.mxu0 0.0
        %2911 = vmatpush1.msra.mxu0 0.0
        %2912 = vmatprep.subr.mxu0 0.0
        %2913 = vmatpush1.msra.mxu0 0.0
        %2914 = vmatprep.subr.mxu0 0.0
        %2915 = vmatpush1.msra.mxu0 0.0
        %2916 = vmatprep.subr.mxu0 0.0
        %2917 = vmatpush1.msra.mxu0 0.0
        %2918 = vmatprep.subr.mxu0 0.0
        %2919 = vmatpush1.msra.mxu0 0.0
        %2920 = vmatprep.subr.mxu0 0.0
        %2921 = vmatpush1.msra.mxu0 0.0
        %2922 = vmatprep.subr.mxu0 0.0
        %2923 = vmatpush1.msra.mxu0 0.0
        %2924 = vmatprep.subr.mxu0 0.0
        %2925 = vmatpush1.msra.mxu0 0.0
        %2926 = vmatprep.subr.mxu0 0.0
        %2927 = vmatpush1.msra.mxu0 0.0
        %2928 = vmatprep.subr.mxu0 0.0
        %2929 = vmatpush1.msra.mxu0 0.0
        %2930 = vmatprep.subr.mxu0 0.0
        %2931 = vmatpush1.msra.mxu0 0.0
        %2932 = vmatprep.subr.mxu0 0.0
        %2933 = vmatpush1.msra.mxu0 0.0
        %2934 = vmatprep.subr.mxu0 0.0
        %2935 = vmatpush1.msra.mxu0 0.0
        %2936 = vmatprep.subr.mxu0 0.0
        %2937 = vmatpush1.msra.mxu0 0.0
        %2938 = vmatprep.subr.mxu0 0.0
        %2939 = vmatpush1.msra.mxu0 0.0
        %2940 = vmatprep.subr.mxu0 0.0
        %2941 = vmatpush1.msra.mxu0 0.0
        %2942 = vmatprep.subr.mxu0 0.0
        %2943 = vmatpush1.msra.mxu0 0.0
        %2944 = vmatprep.mubr.f32.mxu0 0.0
        %v2945 = vand.u32 %v2210, 4294901760
        %2946 = vmatmul.mubr.f32.gmra.mrb[0].mxu0 %v2945
        %v2947 = vpop.f32.mrb[0].mxu0
        %v2948 = vadd.f32 %v2833, %v2947
        %v2949 = vpop.f32.mrb[0].mxu0
        %2950 = vmatprep.mubr.f32.mxu0 0.0
        %v2951 = vand.u32 %v2213, 4294901760
        %2952 = vmatmul.mubr.f32.gmra.mrb[0].mxu0 %v2951
        %v2953 = vpop.f32.mrb[0].mxu0
        %v2954 = vadd.f32 %v2839, %v2953
        %v2955 = vpop.f32.mrb[0].mxu0
        %2956 = vmatprep.mubr.f32.mxu0 0.0
        %v2957 = vand.u32 %v2216, 4294901760
        %2958 = vmatmul.mubr.f32.gmra.mrb[0].mxu0 %v2957
        %v2959 = vpop.f32.mrb[0].mxu0
        %v2960 = vadd.f32 %v2845, %v2959
        %v2961 = vpop.f32.mrb[0].mxu0
        %2962 = vmatprep.mubr.f32.mxu0 0.0
        %v2963 = vand.u32 %v2219, 4294901760
        %2964 = vmatmul.mubr.f32.gmra.mrb[0].mxu0 %v2963
        %v2965 = vpop.f32.mrb[0].mxu0
        %v2966 = vadd.f32 %v2851, %v2965
        %v2967 = vpop.f32.mrb[0].mxu0
        %2968 = vmatprep.mubr.f32.mxu0 0.0
        %v2969 = vand.u32 %v2222, 4294901760
        %2970 = vmatmul.mubr.f32.gmra.mrb[0].mxu0 %v2969
        %v2971 = vpop.f32.mrb[0].mxu0
        %v2972 = vadd.f32 %v2857, %v2971
        %v2973 = vpop.f32.mrb[0].mxu0
        %2974 = vmatprep.mubr.f32.mxu0 0.0
        %v2975 = vand.u32 %v2225, 4294901760
        %2976 = vmatmul.mubr.f32.gmra.mrb[0].mxu0 %v2975
        %v2977 = vpop.f32.mrb[0].mxu0
        %v2978 = vadd.f32 %v2863, %v2977
        %v2979 = vpop.f32.mrb[0].mxu0
        %2980 = vmatprep.mubr.f32.mxu0 0.0
        %v2981 = vand.u32 %v2228, 4294901760
        %2982 = vmatmul.mubr.f32.gmra.mrb[0].mxu0 %v2981
        %v2983 = vpop.f32.mrb[0].mxu0
        %v2984 = vadd.f32 %v2869, %v2983
        %v2985 = vpop.f32.mrb[0].mxu0
        %2986 = vmatprep.mubr.f32.mxu0 0.0
        %v2987 = vand.u32 %v2231, 4294901760
        %2988 = vmatmul.mubr.f32.gmra.mrb[0].mxu0 %v2987
        %v2989 = vpop.f32.mrb[0].mxu0
        %v2990 = vadd.f32 %v2875, %v2989
        %v2991 = vpop.f32.mrb[0].mxu0
        %2992 = vdwg.mxu0
        %v2993 = vld [vmem:[#allocation2] sm:$0xff]
        %v2994 = vld [vmem:[#allocation3] sm:$0xff]
        %v2995 = vld [vmem:[%s12] sm:$0xff]
        %v2996 = vld [vmem:[%s12 + $0x8] sm:$0xff]
        %v2997 = vld [vmem:[%s12 + $0x10] sm:$0xff]
        %v2998 = vld [vmem:[%s12 + $0x18] sm:$0xff]
        %3007 = vset.pattern.permute.xlu0 0
        %3008 = vperm.xlu0 %3007, %v2948
        %v3009 = vpop.permute.xlu0 %3008
        %3010 = vset.pattern.permute.xlu0 0
        %3011 = vperm.xlu0 %3010, %v2954
        %v3012 = vpop.permute.xlu0 %3011
        %3013 = vset.pattern.permute.xlu0 0
        %3014 = vperm.xlu0 %3013, %v2960
        %v3015 = vpop.permute.xlu0 %3014
        %3016 = vset.pattern.permute.xlu0 0
        %3017 = vperm.xlu0 %3016, %v2966
        %v3018 = vpop.permute.xlu0 %3017
        %3019 = vset.pattern.permute.xlu0 0
        %3020 = vperm.xlu0 %3019, %v2972
        %v3021 = vpop.permute.xlu0 %3020
        %3022 = vset.pattern.permute.xlu0 0
        %3023 = vperm.xlu0 %3022, %v2978
        %v3024 = vpop.permute.xlu0 %3023
        %3025 = vset.pattern.permute.xlu0 0
        %3026 = vperm.xlu0 %3025, %v2984
        %v3027 = vpop.permute.xlu0 %3026
        %3028 = vset.pattern.permute.xlu0 0
        %3029 = vperm.xlu0 %3028, %v2990
        %v3030 = vpop.permute.xlu0 %3029
        %v3031 = vlaneseq
        %v3032 = vand.u32 %v3031, 127
        %v3033 = vlaneseq
        %v3034 = vshrl.u32 %v3033, 7
        %v3035 = vsub.s32 %v3032, %v3034
        %v3036 = vrot.slane %v3009, %v3035
        %v3037 = vlaneseq
        %v3038 = vshrl.u32 %v3037, 7
        %v3039 = vsub.s32 %v3032, %v3038
        %v3040 = vrot.slane %v3012, %v3039
        %v3041 = vlaneseq
        %v3042 = vshrl.u32 %v3041, 7
        %v3043 = vsub.s32 %v3032, %v3042
        %v3044 = vrot.slane %v3015, %v3043
        %v3045 = vlaneseq
        %v3046 = vshrl.u32 %v3045, 7
        %v3047 = vsub.s32 %v3032, %v3046
        %v3048 = vrot.slane %v3018, %v3047
        %v3049 = vlaneseq
        %v3050 = vshrl.u32 %v3049, 7
        %v3051 = vsub.s32 %v3032, %v3050
        %v3052 = vrot.slane %v3021, %v3051
        %v3053 = vlaneseq
        %v3054 = vshrl.u32 %v3053, 7
        %v3055 = vsub.s32 %v3032, %v3054
        %v3056 = vrot.slane %v3024, %v3055
        %v3057 = vlaneseq
        %v3058 = vshrl.u32 %v3057, 7
        %v3059 = vsub.s32 %v3032, %v3058
        %v3060 = vrot.slane %v3027, %v3059
        %v3061 = vlaneseq
        %v3062 = vshrl.u32 %v3061, 7
        %v3063 = vsub.s32 %v3032, %v3062
        %v3064 = vrot.slane %v3030, %v3063
        %vm3065 = vcmask 1041409
        %v3066 = vsel %vm3065, %v3040, %v3036
        %vm3067 = vcmask 1042434
        %v3068 = vsel %vm3067, %v3044, %v3066
        %vm3069 = vcmask 1043459
        %v3070 = vsel %vm3069, %v3048, %v3068
        %vm3071 = vcmask 1044484
        %v3072 = vsel %vm3071, %v3052, %v3070
        %vm3073 = vcmask 1045509
        %v3074 = vsel %vm3073, %v3056, %v3072
        %vm3075 = vcmask 1046534
        %v3076 = vsel %vm3075, %v3060, %v3074
        %vm3077 = vcmask 1047559
        %v3078 = vsel %vm3077, %v3064, %v3076
        %vm3080 = vcmask 64512
        %v3082 = vsel %vm3080, %v2190, 0
        %v3085 = vsel %vm3080, %v2993, 0
        %3087 = vmatprep.subr.mxu0 0.0
        %v3088 = vand.u32 %v3085, 4294901760
        %3089 = vmatpush1.xpose.msra.mxu0 %v3088
        %3090 = vmatprep.subr.mxu0 0.0
        %3091 = vmatpush1.xpose.msra.mxu0 0.0
        %3092 = vmatprep.subr.mxu0 0.0
        %3093 = vmatpush1.xpose.msra.mxu0 0.0
        %3094 = vmatprep.subr.mxu0 0.0
        %3095 = vmatpush1.xpose.msra.mxu0 0.0
        %3096 = vmatprep.subr.mxu0 0.0
        %3097 = vmatpush1.xpose.msra.mxu0 0.0
        %3098 = vmatprep.subr.mxu0 0.0
        %3099 = vmatpush1.xpose.msra.mxu0 0.0
        %3100 = vmatprep.subr.mxu0 0.0
        %3101 = vmatpush1.xpose.msra.mxu0 0.0
        %3102 = vmatprep.subr.mxu0 0.0
        %3103 = vmatpush1.xpose.msra.mxu0 0.0
        %3104 = vmatprep.subr.mxu0 0.0
        %3105 = vmatpush1.xpose.msra.mxu0 0.0
        %3106 = vmatprep.subr.mxu0 0.0
        %3107 = vmatpush1.xpose.msra.mxu0 0.0
        %3108 = vmatprep.subr.mxu0 0.0
        %3109 = vmatpush1.xpose.msra.mxu0 0.0
        %3110 = vmatprep.subr.mxu0 0.0
        %3111 = vmatpush1.xpose.msra.mxu0 0.0
        %3112 = vmatprep.subr.mxu0 0.0
        %3113 = vmatpush1.xpose.msra.mxu0 0.0
        %3114 = vmatprep.subr.mxu0 0.0
        %3115 = vmatpush1.xpose.msra.mxu0 0.0
        %3116 = vmatprep.subr.mxu0 0.0
        %3117 = vmatpush1.xpose.msra.mxu0 0.0
        %3118 = vmatprep.subr.mxu0 0.0
        %3119 = vmatpush1.xpose.msra.mxu0 0.0
        %3120 = vmatprep.subr.mxu0 0.0
        %3121 = vmatpush1.xpose.msra.mxu0 0.0
        %3122 = vmatprep.subr.mxu0 0.0
        %3123 = vmatpush1.xpose.msra.mxu0 0.0
        %3124 = vmatprep.subr.mxu0 0.0
        %3125 = vmatpush1.xpose.msra.mxu0 0.0
        %3126 = vmatprep.subr.mxu0 0.0
        %3127 = vmatpush1.xpose.msra.mxu0 0.0
        %3128 = vmatprep.subr.mxu0 0.0
        %3129 = vmatpush1.xpose.msra.mxu0 0.0
        %3130 = vmatprep.subr.mxu0 0.0
        %3131 = vmatpush1.xpose.msra.mxu0 0.0
        %3132 = vmatprep.subr.mxu0 0.0
        %3133 = vmatpush1.xpose.msra.mxu0 0.0
        %3134 = vmatprep.subr.mxu0 0.0
        %3135 = vmatpush1.xpose.msra.mxu0 0.0
        %3136 = vmatprep.subr.mxu0 0.0
        %3137 = vmatpush1.xpose.msra.mxu0 0.0
        %3138 = vmatprep.subr.mxu0 0.0
        %3139 = vmatpush1.xpose.msra.mxu0 0.0
        %3140 = vmatprep.subr.mxu0 0.0
        %3141 = vmatpush1.xpose.msra.mxu0 0.0
        %3142 = vmatprep.subr.mxu0 0.0
        %3143 = vmatpush1.xpose.msra.mxu0 0.0
        %3144 = vmatprep.subr.mxu0 0.0
        %3145 = vmatpush1.xpose.msra.mxu0 0.0
        %3146 = vmatprep.subr.mxu0 0.0
        %3147 = vmatpush1.xpose.msra.mxu0 0.0
        %3148 = vmatprep.subr.mxu0 0.0
        %3149 = vmatpush1.xpose.msra.mxu0 0.0
        %3150 = vmatprep.subr.mxu0 0.0
        %3151 = vmatpush1.xpose.msra.mxu0 0.0
        %3152 = vmatprep.mubr.f32.mxu0 0.0
        %v3153 = vand.u32 %v3082, 4294901760
        %v3154 = vsub.f32 %v3082, %v3153
        %v3155 = vand.u32 %v3154, 4294901760
        %v3156 = vsub.f32 %v3154, %v3155
        %v3157 = vand.u32 %v3156, 4294901760
        %3158 = vmatmul.mubr.f32.gmra.mrb[0].mxu0 %v3157
        %v3159 = vpop.f32.mrb[0].mxu0
        %v3160 = vadd.f32 %v3078, %v3159
        %v3161 = vpop.f32.mrb[0].mxu0
        %3162 = vdwg.mxu0
        %3163 = vmatprep.subr.mxu0 0.0
        %v3164 = vand.u32 %v3085, 4294901760
        %v3165 = vsub.f32 %v3085, %v3164
        %v3166 = vand.u32 %v3165, 4294901760
        %v3167 = vsub.f32 %v3165, %v3166
        %v3168 = vand.u32 %v3167, 4294901760
        %3169 = vmatpush1.xpose.msra.mxu0 %v3168
        %3170 = vmatprep.subr.mxu0 0.0
        %3171 = vmatpush1.xpose.msra.mxu0 0.0
        %3172 = vmatprep.subr.mxu0 0.0
        %3173 = vmatpush1.xpose.msra.mxu0 0.0
        %3174 = vmatprep.subr.mxu0 0.0
        %3175 = vmatpush1.xpose.msra.mxu0 0.0
        %3176 = vmatprep.subr.mxu0 0.0
        %3177 = vmatpush1.xpose.msra.mxu0 0.0
        %3178 = vmatprep.subr.mxu0 0.0
        %3179 = vmatpush1.xpose.msra.mxu0 0.0
        %3180 = vmatprep.subr.mxu0 0.0
        %3181 = vmatpush1.xpose.msra.mxu0 0.0
        %3182 = vmatprep.subr.mxu0 0.0
        %3183 = vmatpush1.xpose.msra.mxu0 0.0
        %3184 = vmatprep.subr.mxu0 0.0
        %3185 = vmatpush1.xpose.msra.mxu0 0.0
        %3186 = vmatprep.subr.mxu0 0.0
        %3187 = vmatpush1.xpose.msra.mxu0 0.0
        %3188 = vmatprep.subr.mxu0 0.0
        %3189 = vmatpush1.xpose.msra.mxu0 0.0
        %3190 = vmatprep.subr.mxu0 0.0
        %3191 = vmatpush1.xpose.msra.mxu0 0.0
        %3192 = vmatprep.subr.mxu0 0.0
        %3193 = vmatpush1.xpose.msra.mxu0 0.0
        %3194 = vmatprep.subr.mxu0 0.0
        %3195 = vmatpush1.xpose.msra.mxu0 0.0
        %3196 = vmatprep.subr.mxu0 0.0
        %3197 = vmatpush1.xpose.msra.mxu0 0.0
        %3198 = vmatprep.subr.mxu0 0.0
        %3199 = vmatpush1.xpose.msra.mxu0 0.0
        %3200 = vmatprep.subr.mxu0 0.0
        %3201 = vmatpush1.xpose.msra.mxu0 0.0
        %3202 = vmatprep.subr.mxu0 0.0
        %3203 = vmatpush1.xpose.msra.mxu0 0.0
        %3204 = vmatprep.subr.mxu0 0.0
        %3205 = vmatpush1.xpose.msra.mxu0 0.0
        %3206 = vmatprep.subr.mxu0 0.0
        %3207 = vmatpush1.xpose.msra.mxu0 0.0
        %3208 = vmatprep.subr.mxu0 0.0
        %3209 = vmatpush1.xpose.msra.mxu0 0.0
        %3210 = vmatprep.subr.mxu0 0.0
        %3211 = vmatpush1.xpose.msra.mxu0 0.0
        %3212 = vmatprep.subr.mxu0 0.0
        %3213 = vmatpush1.xpose.msra.mxu0 0.0
        %3214 = vmatprep.subr.mxu0 0.0
        %3215 = vmatpush1.xpose.msra.mxu0 0.0
        %3216 = vmatprep.subr.mxu0 0.0
        %3217 = vmatpush1.xpose.msra.mxu0 0.0
        %3218 = vmatprep.subr.mxu0 0.0
        %3219 = vmatpush1.xpose.msra.mxu0 0.0
        %3220 = vmatprep.subr.mxu0 0.0
        %3221 = vmatpush1.xpose.msra.mxu0 0.0
        %3222 = vmatprep.subr.mxu0 0.0
        %3223 = vmatpush1.xpose.msra.mxu0 0.0
        %3224 = vmatprep.subr.mxu0 0.0
        %3225 = vmatpush1.xpose.msra.mxu0 0.0
        %3226 = vmatprep.subr.mxu0 0.0
        %3227 = vmatpush1.xpose.msra.mxu0 0.0
        %3228 = vmatprep.subr.mxu0 0.0
        %3229 = vmatpush1.xpose.msra.mxu0 0.0
        %3230 = vmatprep.subr.mxu0 0.0
        %3231 = vmatpush1.xpose.msra.mxu0 0.0
        %3232 = vmatprep.mubr.f32.mxu0 0.0
        %v3233 = vand.u32 %v3082, 4294901760
        %3234 = vmatmul.mubr.f32.gmra.mrb[0].mxu0 %v3233
        %v3235 = vpop.f32.mrb[0].mxu0
        %v3236 = vadd.f32 %v3160, %v3235
        %v3237 = vpop.f32.mrb[0].mxu0
        %3238 = vdwg.mxu0
        %3239 = vmatprep.subr.mxu0 0.0
        %v3240 = vand.u32 %v3085, 4294901760
        %v3241 = vsub.f32 %v3085, %v3240
        %3242 = vmatpush1.xpose.msra.mxu0 %v3241
        %3243 = vmatprep.subr.mxu0 0.0
        %3244 = vmatpush1.xpose.msra.mxu0 0.0
        %3245 = vmatprep.subr.mxu0 0.0
        %3246 = vmatpush1.xpose.msra.mxu0 0.0
        %3247 = vmatprep.subr.mxu0 0.0
        %3248 = vmatpush1.xpose.msra.mxu0 0.0
        %3249 = vmatprep.subr.mxu0 0.0
        %3250 = vmatpush1.xpose.msra.mxu0 0.0
        %3251 = vmatprep.subr.mxu0 0.0
        %3252 = vmatpush1.xpose.msra.mxu0 0.0
        %3253 = vmatprep.subr.mxu0 0.0
        %3254 = vmatpush1.xpose.msra.mxu0 0.0
        %3255 = vmatprep.subr.mxu0 0.0
        %3256 = vmatpush1.xpose.msra.mxu0 0.0
        %3257 = vmatprep.subr.mxu0 0.0
        %3258 = vmatpush1.xpose.msra.mxu0 0.0
        %3259 = vmatprep.subr.mxu0 0.0
        %3260 = vmatpush1.xpose.msra.mxu0 0.0
        %3261 = vmatprep.subr.mxu0 0.0
        %3262 = vmatpush1.xpose.msra.mxu0 0.0
        %3263 = vmatprep.subr.mxu0 0.0
        %3264 = vmatpush1.xpose.msra.mxu0 0.0
        %3265 = vmatprep.subr.mxu0 0.0
        %3266 = vmatpush1.xpose.msra.mxu0 0.0
        %3267 = vmatprep.subr.mxu0 0.0
        %3268 = vmatpush1.xpose.msra.mxu0 0.0
        %3269 = vmatprep.subr.mxu0 0.0
        %3270 = vmatpush1.xpose.msra.mxu0 0.0
        %3271 = vmatprep.subr.mxu0 0.0
        %3272 = vmatpush1.xpose.msra.mxu0 0.0
        %3273 = vmatprep.subr.mxu0 0.0
        %3274 = vmatpush1.xpose.msra.mxu0 0.0
        %3275 = vmatprep.subr.mxu0 0.0
        %3276 = vmatpush1.xpose.msra.mxu0 0.0
        %3277 = vmatprep.subr.mxu0 0.0
        %3278 = vmatpush1.xpose.msra.mxu0 0.0
        %3279 = vmatprep.subr.mxu0 0.0
        %3280 = vmatpush1.xpose.msra.mxu0 0.0
        %3281 = vmatprep.subr.mxu0 0.0
        %3282 = vmatpush1.xpose.msra.mxu0 0.0
        %3283 = vmatprep.subr.mxu0 0.0
        %3284 = vmatpush1.xpose.msra.mxu0 0.0
        %3285 = vmatprep.subr.mxu0 0.0
        %3286 = vmatpush1.xpose.msra.mxu0 0.0
        %3287 = vmatprep.subr.mxu0 0.0
        %3288 = vmatpush1.xpose.msra.mxu0 0.0
        %3289 = vmatprep.subr.mxu0 0.0
        %3290 = vmatpush1.xpose.msra.mxu0 0.0
        %3291 = vmatprep.subr.mxu0 0.0
        %3292 = vmatpush1.xpose.msra.mxu0 0.0
        %3293 = vmatprep.subr.mxu0 0.0
        %3294 = vmatpush1.xpose.msra.mxu0 0.0
        %3295 = vmatprep.subr.mxu0 0.0
        %3296 = vmatpush1.xpose.msra.mxu0 0.0
        %3297 = vmatprep.subr.mxu0 0.0
        %3298 = vmatpush1.xpose.msra.mxu0 0.0
        %3299 = vmatprep.subr.mxu0 0.0
        %3300 = vmatpush1.xpose.msra.mxu0 0.0
        %3301 = vmatprep.subr.mxu0 0.0
        %3302 = vmatpush1.xpose.msra.mxu0 0.0
        %3303 = vmatprep.subr.mxu0 0.0
        %3304 = vmatpush1.xpose.msra.mxu0 0.0
        %3305 = vmatprep.mubr.f32.mxu0 0.0
        %v3306 = vand.u32 %v3082, 4294901760
        %v3307 = vsub.f32 %v3082, %v3306
        %3308 = vmatmul.mubr.f32.gmra.mrb[0].mxu0 %v3307
        %v3309 = vpop.f32.mrb[0].mxu0
        %v3310 = vadd.f32 %v3236, %v3309
        %v3311 = vpop.f32.mrb[0].mxu0
        %3312 = vdwg.mxu0
        %3313 = vmatprep.subr.mxu0 0.0
        %v3314 = vand.u32 %v3085, 4294901760
        %3315 = vmatpush1.xpose.msra.mxu0 %v3314
        %3316 = vmatprep.subr.mxu0 0.0
        %3317 = vmatpush1.xpose.msra.mxu0 0.0
        %3318 = vmatprep.subr.mxu0 0.0
        %3319 = vmatpush1.xpose.msra.mxu0 0.0
        %3320 = vmatprep.subr.mxu0 0.0
        %3321 = vmatpush1.xpose.msra.mxu0 0.0
        %3322 = vmatprep.subr.mxu0 0.0
        %3323 = vmatpush1.xpose.msra.mxu0 0.0
        %3324 = vmatprep.subr.mxu0 0.0
        %3325 = vmatpush1.xpose.msra.mxu0 0.0
        %3326 = vmatprep.subr.mxu0 0.0
        %3327 = vmatpush1.xpose.msra.mxu0 0.0
        %3328 = vmatprep.subr.mxu0 0.0
        %3329 = vmatpush1.xpose.msra.mxu0 0.0
        %3330 = vmatprep.subr.mxu0 0.0
        %3331 = vmatpush1.xpose.msra.mxu0 0.0
        %3332 = vmatprep.subr.mxu0 0.0
        %3333 = vmatpush1.xpose.msra.mxu0 0.0
        %3334 = vmatprep.subr.mxu0 0.0
        %3335 = vmatpush1.xpose.msra.mxu0 0.0
        %3336 = vmatprep.subr.mxu0 0.0
        %3337 = vmatpush1.xpose.msra.mxu0 0.0
        %3338 = vmatprep.subr.mxu0 0.0
        %3339 = vmatpush1.xpose.msra.mxu0 0.0
        %3340 = vmatprep.subr.mxu0 0.0
        %3341 = vmatpush1.xpose.msra.mxu0 0.0
        %3342 = vmatprep.subr.mxu0 0.0
        %3343 = vmatpush1.xpose.msra.mxu0 0.0
        %3344 = vmatprep.subr.mxu0 0.0
        %3345 = vmatpush1.xpose.msra.mxu0 0.0
        %3346 = vmatprep.subr.mxu0 0.0
        %3347 = vmatpush1.xpose.msra.mxu0 0.0
        %3348 = vmatprep.subr.mxu0 0.0
        %3349 = vmatpush1.xpose.msra.mxu0 0.0
        %3350 = vmatprep.subr.mxu0 0.0
        %3351 = vmatpush1.xpose.msra.mxu0 0.0
        %3352 = vmatprep.subr.mxu0 0.0
        %3353 = vmatpush1.xpose.msra.mxu0 0.0
        %3354 = vmatprep.subr.mxu0 0.0
        %3355 = vmatpush1.xpose.msra.mxu0 0.0
        %3356 = vmatprep.subr.mxu0 0.0
        %3357 = vmatpush1.xpose.msra.mxu0 0.0
        %3358 = vmatprep.subr.mxu0 0.0
        %3359 = vmatpush1.xpose.msra.mxu0 0.0
        %3360 = vmatprep.subr.mxu0 0.0
        %3361 = vmatpush1.xpose.msra.mxu0 0.0
        %3362 = vmatprep.subr.mxu0 0.0
        %3363 = vmatpush1.xpose.msra.mxu0 0.0
        %3364 = vmatprep.subr.mxu0 0.0
        %3365 = vmatpush1.xpose.msra.mxu0 0.0
        %3366 = vmatprep.subr.mxu0 0.0
        %3367 = vmatpush1.xpose.msra.mxu0 0.0
        %3368 = vmatprep.subr.mxu0 0.0
        %3369 = vmatpush1.xpose.msra.mxu0 0.0
        %3370 = vmatprep.subr.mxu0 0.0
        %3371 = vmatpush1.xpose.msra.mxu0 0.0
        %3372 = vmatprep.subr.mxu0 0.0
        %3373 = vmatpush1.xpose.msra.mxu0 0.0
        %3374 = vmatprep.subr.mxu0 0.0
        %3375 = vmatpush1.xpose.msra.mxu0 0.0
        %3376 = vmatprep.subr.mxu0 0.0
        %3377 = vmatpush1.xpose.msra.mxu0 0.0
        %3378 = vmatprep.mubr.f32.mxu0 0.0
        %v3379 = vand.u32 %v3082, 4294901760
        %v3380 = vsub.f32 %v3082, %v3379
        %v3381 = vand.u32 %v3380, 4294901760
        %3382 = vmatmul.mubr.f32.gmra.mrb[0].mxu0 %v3381
        %v3383 = vpop.f32.mrb[0].mxu0
        %v3384 = vadd.f32 %v3310, %v3383
        %v3385 = vpop.f32.mrb[0].mxu0
        %3386 = vdwg.mxu0
        %3387 = vmatprep.subr.mxu0 0.0
        %v3388 = vand.u32 %v3085, 4294901760
        %v3389 = vsub.f32 %v3085, %v3388
        %v3390 = vand.u32 %v3389, 4294901760
        %3391 = vmatpush1.xpose.msra.mxu0 %v3390
        %3392 = vmatprep.subr.mxu0 0.0
        %3393 = vmatpush1.xpose.msra.mxu0 0.0
        %3394 = vmatprep.subr.mxu0 0.0
        %3395 = vmatpush1.xpose.msra.mxu0 0.0
        %3396 = vmatprep.subr.mxu0 0.0
        %3397 = vmatpush1.xpose.msra.mxu0 0.0
        %3398 = vmatprep.subr.mxu0 0.0
        %3399 = vmatpush1.xpose.msra.mxu0 0.0
        %3400 = vmatprep.subr.mxu0 0.0
        %3401 = vmatpush1.xpose.msra.mxu0 0.0
        %3402 = vmatprep.subr.mxu0 0.0
        %3403 = vmatpush1.xpose.msra.mxu0 0.0
        %3404 = vmatprep.subr.mxu0 0.0
        %3405 = vmatpush1.xpose.msra.mxu0 0.0
        %3406 = vmatprep.subr.mxu0 0.0
        %3407 = vmatpush1.xpose.msra.mxu0 0.0
        %3408 = vmatprep.subr.mxu0 0.0
        %3409 = vmatpush1.xpose.msra.mxu0 0.0
        %3410 = vmatprep.subr.mxu0 0.0
        %3411 = vmatpush1.xpose.msra.mxu0 0.0
        %3412 = vmatprep.subr.mxu0 0.0
        %3413 = vmatpush1.xpose.msra.mxu0 0.0
        %3414 = vmatprep.subr.mxu0 0.0
        %3415 = vmatpush1.xpose.msra.mxu0 0.0
        %3416 = vmatprep.subr.mxu0 0.0
        %3417 = vmatpush1.xpose.msra.mxu0 0.0
        %3418 = vmatprep.subr.mxu0 0.0
        %3419 = vmatpush1.xpose.msra.mxu0 0.0
        %3420 = vmatprep.subr.mxu0 0.0
        %3421 = vmatpush1.xpose.msra.mxu0 0.0
        %3422 = vmatprep.subr.mxu0 0.0
        %3423 = vmatpush1.xpose.msra.mxu0 0.0
        %3424 = vmatprep.subr.mxu0 0.0
        %3425 = vmatpush1.xpose.msra.mxu0 0.0
        %3426 = vmatprep.subr.mxu0 0.0
        %3427 = vmatpush1.xpose.msra.mxu0 0.0
        %3428 = vmatprep.subr.mxu0 0.0
        %3429 = vmatpush1.xpose.msra.mxu0 0.0
        %3430 = vmatprep.subr.mxu0 0.0
        %3431 = vmatpush1.xpose.msra.mxu0 0.0
        %3432 = vmatprep.subr.mxu0 0.0
        %3433 = vmatpush1.xpose.msra.mxu0 0.0
        %3434 = vmatprep.subr.mxu0 0.0
        %3435 = vmatpush1.xpose.msra.mxu0 0.0
        %3436 = vmatprep.subr.mxu0 0.0
        %3437 = vmatpush1.xpose.msra.mxu0 0.0
        %3438 = vmatprep.subr.mxu0 0.0
        %3439 = vmatpush1.xpose.msra.mxu0 0.0
        %3440 = vmatprep.subr.mxu0 0.0
        %3441 = vmatpush1.xpose.msra.mxu0 0.0
        %3442 = vmatprep.subr.mxu0 0.0
        %3443 = vmatpush1.xpose.msra.mxu0 0.0
        %3444 = vmatprep.subr.mxu0 0.0
        %3445 = vmatpush1.xpose.msra.mxu0 0.0
        %3446 = vmatprep.subr.mxu0 0.0
        %3447 = vmatpush1.xpose.msra.mxu0 0.0
        %3448 = vmatprep.subr.mxu0 0.0
        %3449 = vmatpush1.xpose.msra.mxu0 0.0
        %3450 = vmatprep.subr.mxu0 0.0
        %3451 = vmatpush1.xpose.msra.mxu0 0.0
        %3452 = vmatprep.subr.mxu0 0.0
        %3453 = vmatpush1.xpose.msra.mxu0 0.0
        %3454 = vmatprep.mubr.f32.mxu0 0.0
        %v3455 = vand.u32 %v3082, 4294901760
        %3456 = vmatmul.mubr.f32.gmra.mrb[0].mxu0 %v3455
        %v3457 = vpop.f32.mrb[0].mxu0
        %v3458 = vadd.f32 %v3384, %v3457
        %v3459 = vpop.f32.mrb[0].mxu0
        %3460 = vdwg.mxu0
        %3461 = vmatprep.subr.mxu0 0.0
        %v3462 = vand.u32 %v3085, 4294901760
        %3463 = vmatpush1.xpose.msra.mxu0 %v3462
        %3464 = vmatprep.subr.mxu0 0.0
        %3465 = vmatpush1.xpose.msra.mxu0 0.0
        %3466 = vmatprep.subr.mxu0 0.0
        %3467 = vmatpush1.xpose.msra.mxu0 0.0
        %3468 = vmatprep.subr.mxu0 0.0
        %3469 = vmatpush1.xpose.msra.mxu0 0.0
        %3470 = vmatprep.subr.mxu0 0.0
        %3471 = vmatpush1.xpose.msra.mxu0 0.0
        %3472 = vmatprep.subr.mxu0 0.0
        %3473 = vmatpush1.xpose.msra.mxu0 0.0
        %3474 = vmatprep.subr.mxu0 0.0
        %3475 = vmatpush1.xpose.msra.mxu0 0.0
        %3476 = vmatprep.subr.mxu0 0.0
        %3477 = vmatpush1.xpose.msra.mxu0 0.0
        %3478 = vmatprep.subr.mxu0 0.0
        %3479 = vmatpush1.xpose.msra.mxu0 0.0
        %3480 = vmatprep.subr.mxu0 0.0
        %3481 = vmatpush1.xpose.msra.mxu0 0.0
        %3482 = vmatprep.subr.mxu0 0.0
        %3483 = vmatpush1.xpose.msra.mxu0 0.0
        %3484 = vmatprep.subr.mxu0 0.0
        %3485 = vmatpush1.xpose.msra.mxu0 0.0
        %3486 = vmatprep.subr.mxu0 0.0
        %3487 = vmatpush1.xpose.msra.mxu0 0.0
        %3488 = vmatprep.subr.mxu0 0.0
        %3489 = vmatpush1.xpose.msra.mxu0 0.0
        %3490 = vmatprep.subr.mxu0 0.0
        %3491 = vmatpush1.xpose.msra.mxu0 0.0
        %3492 = vmatprep.subr.mxu0 0.0
        %3493 = vmatpush1.xpose.msra.mxu0 0.0
        %3494 = vmatprep.subr.mxu0 0.0
        %3495 = vmatpush1.xpose.msra.mxu0 0.0
        %3496 = vmatprep.subr.mxu0 0.0
        %3497 = vmatpush1.xpose.msra.mxu0 0.0
        %3498 = vmatprep.subr.mxu0 0.0
        %3499 = vmatpush1.xpose.msra.mxu0 0.0
        %3500 = vmatprep.subr.mxu0 0.0
        %3501 = vmatpush1.xpose.msra.mxu0 0.0
        %3502 = vmatprep.subr.mxu0 0.0
        %3503 = vmatpush1.xpose.msra.mxu0 0.0
        %3504 = vmatprep.subr.mxu0 0.0
        %3505 = vmatpush1.xpose.msra.mxu0 0.0
        %3506 = vmatprep.subr.mxu0 0.0
        %3507 = vmatpush1.xpose.msra.mxu0 0.0
        %3508 = vmatprep.subr.mxu0 0.0
        %3509 = vmatpush1.xpose.msra.mxu0 0.0
        %3510 = vmatprep.subr.mxu0 0.0
        %3511 = vmatpush1.xpose.msra.mxu0 0.0
        %3512 = vmatprep.subr.mxu0 0.0
        %3513 = vmatpush1.xpose.msra.mxu0 0.0
        %3514 = vmatprep.subr.mxu0 0.0
        %3515 = vmatpush1.xpose.msra.mxu0 0.0
        %3516 = vmatprep.subr.mxu0 0.0
        %3517 = vmatpush1.xpose.msra.mxu0 0.0
        %3518 = vmatprep.subr.mxu0 0.0
        %3519 = vmatpush1.xpose.msra.mxu0 0.0
        %3520 = vmatprep.subr.mxu0 0.0
        %3521 = vmatpush1.xpose.msra.mxu0 0.0
        %3522 = vmatprep.subr.mxu0 0.0
        %3523 = vmatpush1.xpose.msra.mxu0 0.0
        %3524 = vmatprep.subr.mxu0 0.0
        %3525 = vmatpush1.xpose.msra.mxu0 0.0
        %3526 = vmatprep.mubr.f32.mxu0 0.0
        %v3527 = vand.u32 %v3082, 4294901760
        %3528 = vmatmul.mubr.f32.gmra.mrb[0].mxu0 %v3527
        %v3529 = vpop.f32.mrb[0].mxu0
        %v3530 = vadd.f32 %v3458, %v3529
        %v3531 = vpop.f32.mrb[0].mxu0
        %3532 = vdwg.mxu0
        %v3533 = vsel %vm3080, %v3530, -inf
        %3534 = vmax.xlane.f32.xlu0 %v3533
        %v3535 = vpop.xlane.xlu0 %3534
        %v3536 = vsub.f32 %v3530, %v3535
        %v3537 = vmul.f32 %v3536, 1.442695
        %v3538 = vpow.pop %v3537
        %v3539 = vsel %vm3080, %v3538, 0.0
        %3540 = vadd.xlane.f32.xlu0 %v3539
        %v3541 = vpop.xlane.xlu0 %3540
        %v3543 = vsel %vm3080, %v3538, 0
        %3545 = vmatprep.subr.mxu0 0.0
        %v3546 = vand.u32 %v2994, 4294901760
        %3547 = vmatpush1.msra.mxu0 %v3546
        %3548 = vmatprep.subr.mxu0 0.0
        %3549 = vmatpush1.msra.mxu0 0.0
        %3550 = vmatprep.subr.mxu0 0.0
        %3551 = vmatpush1.msra.mxu0 0.0
        %3552 = vmatprep.subr.mxu0 0.0
        %3553 = vmatpush1.msra.mxu0 0.0
        %3554 = vmatprep.subr.mxu0 0.0
        %3555 = vmatpush1.msra.mxu0 0.0
        %3556 = vmatprep.subr.mxu0 0.0
        %3557 = vmatpush1.msra.mxu0 0.0
        %3558 = vmatprep.subr.mxu0 0.0
        %3559 = vmatpush1.msra.mxu0 0.0
        %3560 = vmatprep.subr.mxu0 0.0
        %3561 = vmatpush1.msra.mxu0 0.0
        %3562 = vmatprep.subr.mxu0 0.0
        %3563 = vmatpush1.msra.mxu0 0.0
        %3564 = vmatprep.subr.mxu0 0.0
        %3565 = vmatpush1.msra.mxu0 0.0
        %3566 = vmatprep.subr.mxu0 0.0
        %3567 = vmatpush1.msra.mxu0 0.0
        %3568 = vmatprep.subr.mxu0 0.0
        %3569 = vmatpush1.msra.mxu0 0.0
        %3570 = vmatprep.subr.mxu0 0.0
        %3571 = vmatpush1.msra.mxu0 0.0
        %3572 = vmatprep.subr.mxu0 0.0
        %3573 = vmatpush1.msra.mxu0 0.0
        %3574 = vmatprep.subr.mxu0 0.0
        %3575 = vmatpush1.msra.mxu0 0.0
        %3576 = vmatprep.subr.mxu0 0.0
        %3577 = vmatpush1.msra.mxu0 0.0
        %3578 = vmatprep.subr.mxu0 0.0
        %3579 = vmatpush1.msra.mxu0 0.0
        %3580 = vmatprep.subr.mxu0 0.0
        %3581 = vmatpush1.msra.mxu0 0.0
        %3582 = vmatprep.subr.mxu0 0.0
        %3583 = vmatpush1.msra.mxu0 0.0
        %3584 = vmatprep.subr.mxu0 0.0
        %3585 = vmatpush1.msra.mxu0 0.0
        %3586 = vmatprep.subr.mxu0 0.0
        %3587 = vmatpush1.msra.mxu0 0.0
        %3588 = vmatprep.subr.mxu0 0.0
        %3589 = vmatpush1.msra.mxu0 0.0
        %3590 = vmatprep.subr.mxu0 0.0
        %3591 = vmatpush1.msra.mxu0 0.0
        %3592 = vmatprep.subr.mxu0 0.0
        %3593 = vmatpush1.msra.mxu0 0.0
        %3594 = vmatprep.subr.mxu0 0.0
        %3595 = vmatpush1.msra.mxu0 0.0
        %3596 = vmatprep.subr.mxu0 0.0
        %3597 = vmatpush1.msra.mxu0 0.0
        %3598 = vmatprep.subr.mxu0 0.0
        %3599 = vmatpush1.msra.mxu0 0.0
        %3600 = vmatprep.subr.mxu0 0.0
        %3601 = vmatpush1.msra.mxu0 0.0
        %3602 = vmatprep.subr.mxu0 0.0
        %3603 = vmatpush1.msra.mxu0 0.0
        %3604 = vmatprep.subr.mxu0 0.0
        %3605 = vmatpush1.msra.mxu0 0.0
        %3606 = vmatprep.subr.mxu0 0.0
        %3607 = vmatpush1.msra.mxu0 0.0
        %3608 = vmatprep.subr.mxu0 0.0
        %3609 = vmatpush1.msra.mxu0 0.0
        %3610 = vmatprep.mubr.f32.mxu0 0.0
        %v3611 = vand.u32 %v3543, 4294901760
        %v3612 = vsub.f32 %v3543, %v3611
        %v3613 = vand.u32 %v3612, 4294901760
        %v3614 = vsub.f32 %v3612, %v3613
        %v3615 = vand.u32 %v3614, 4294901760
        %3616 = vmatmul.mubr.f32.gmra.mrb[0].mxu0 %v3615
        %v3617 = vpop.f32.mrb[0].mxu0
        %v3618 = vadd.f32 0.0, %v3617
        %v3619 = vpop.f32.mrb[0].mxu0
        %3620 = vdwg.mxu0
        %3621 = vmatprep.subr.mxu0 0.0
        %v3622 = vand.u32 %v2994, 4294901760
        %v3623 = vsub.f32 %v2994, %v3622
        %v3624 = vand.u32 %v3623, 4294901760
        %v3625 = vsub.f32 %v3623, %v3624
        %v3626 = vand.u32 %v3625, 4294901760
        %3627 = vmatpush1.msra.mxu0 %v3626
        %3628 = vmatprep.subr.mxu0 0.0
        %3629 = vmatpush1.msra.mxu0 0.0
        %3630 = vmatprep.subr.mxu0 0.0
        %3631 = vmatpush1.msra.mxu0 0.0
        %3632 = vmatprep.subr.mxu0 0.0
        %3633 = vmatpush1.msra.mxu0 0.0
        %3634 = vmatprep.subr.mxu0 0.0
        %3635 = vmatpush1.msra.mxu0 0.0
        %3636 = vmatprep.subr.mxu0 0.0
        %3637 = vmatpush1.msra.mxu0 0.0
        %3638 = vmatprep.subr.mxu0 0.0
        %3639 = vmatpush1.msra.mxu0 0.0
        %3640 = vmatprep.subr.mxu0 0.0
        %3641 = vmatpush1.msra.mxu0 0.0
        %3642 = vmatprep.subr.mxu0 0.0
        %3643 = vmatpush1.msra.mxu0 0.0
        %3644 = vmatprep.subr.mxu0 0.0
        %3645 = vmatpush1.msra.mxu0 0.0
        %3646 = vmatprep.subr.mxu0 0.0
        %3647 = vmatpush1.msra.mxu0 0.0
        %3648 = vmatprep.subr.mxu0 0.0
        %3649 = vmatpush1.msra.mxu0 0.0
        %3650 = vmatprep.subr.mxu0 0.0
        %3651 = vmatpush1.msra.mxu0 0.0
        %3652 = vmatprep.subr.mxu0 0.0
        %3653 = vmatpush1.msra.mxu0 0.0
        %3654 = vmatprep.subr.mxu0 0.0
        %3655 = vmatpush1.msra.mxu0 0.0
        %3656 = vmatprep.subr.mxu0 0.0
        %3657 = vmatpush1.msra.mxu0 0.0
        %3658 = vmatprep.subr.mxu0 0.0
        %3659 = vmatpush1.msra.mxu0 0.0
        %3660 = vmatprep.subr.mxu0 0.0
        %3661 = vmatpush1.msra.mxu0 0.0
        %3662 = vmatprep.subr.mxu0 0.0
        %3663 = vmatpush1.msra.mxu0 0.0
        %3664 = vmatprep.subr.mxu0 0.0
        %3665 = vmatpush1.msra.mxu0 0.0
        %3666 = vmatprep.subr.mxu0 0.0
        %3667 = vmatpush1.msra.mxu0 0.0
        %3668 = vmatprep.subr.mxu0 0.0
        %3669 = vmatpush1.msra.mxu0 0.0
        %3670 = vmatprep.subr.mxu0 0.0
        %3671 = vmatpush1.msra.mxu0 0.0
        %3672 = vmatprep.subr.mxu0 0.0
        %3673 = vmatpush1.msra.mxu0 0.0
        %3674 = vmatprep.subr.mxu0 0.0
        %3675 = vmatpush1.msra.mxu0 0.0
        %3676 = vmatprep.subr.mxu0 0.0
        %3677 = vmatpush1.msra.mxu0 0.0
        %3678 = vmatprep.subr.mxu0 0.0
        %3679 = vmatpush1.msra.mxu0 0.0
        %3680 = vmatprep.subr.mxu0 0.0
        %3681 = vmatpush1.msra.mxu0 0.0
        %3682 = vmatprep.subr.mxu0 0.0
        %3683 = vmatpush1.msra.mxu0 0.0
        %3684 = vmatprep.subr.mxu0 0.0
        %3685 = vmatpush1.msra.mxu0 0.0
        %3686 = vmatprep.subr.mxu0 0.0
        %3687 = vmatpush1.msra.mxu0 0.0
        %3688 = vmatprep.subr.mxu0 0.0
        %3689 = vmatpush1.msra.mxu0 0.0
        %3690 = vmatprep.mubr.f32.mxu0 0.0
        %v3691 = vand.u32 %v3543, 4294901760
        %3692 = vmatmul.mubr.f32.gmra.mrb[0].mxu0 %v3691
        %v3693 = vpop.f32.mrb[0].mxu0
        %v3694 = vadd.f32 %v3618, %v3693
        %v3695 = vpop.f32.mrb[0].mxu0
        %3696 = vdwg.mxu0
        %3697 = vmatprep.subr.mxu0 0.0
        %v3698 = vand.u32 %v2994, 4294901760
        %v3699 = vsub.f32 %v2994, %v3698
        %3700 = vmatpush1.msra.mxu0 %v3699
        %3701 = vmatprep.subr.mxu0 0.0
        %3702 = vmatpush1.msra.mxu0 0.0
        %3703 = vmatprep.subr.mxu0 0.0
        %3704 = vmatpush1.msra.mxu0 0.0
        %3705 = vmatprep.subr.mxu0 0.0
        %3706 = vmatpush1.msra.mxu0 0.0
        %3707 = vmatprep.subr.mxu0 0.0
        %3708 = vmatpush1.msra.mxu0 0.0
        %3709 = vmatprep.subr.mxu0 0.0
        %3710 = vmatpush1.msra.mxu0 0.0
        %3711 = vmatprep.subr.mxu0 0.0
        %3712 = vmatpush1.msra.mxu0 0.0
        %3713 = vmatprep.subr.mxu0 0.0
        %3714 = vmatpush1.msra.mxu0 0.0
        %3715 = vmatprep.subr.mxu0 0.0
        %3716 = vmatpush1.msra.mxu0 0.0
        %3717 = vmatprep.subr.mxu0 0.0
        %3718 = vmatpush1.msra.mxu0 0.0
        %3719 = vmatprep.subr.mxu0 0.0
        %3720 = vmatpush1.msra.mxu0 0.0
        %3721 = vmatprep.subr.mxu0 0.0
        %3722 = vmatpush1.msra.mxu0 0.0
        %3723 = vmatprep.subr.mxu0 0.0
        %3724 = vmatpush1.msra.mxu0 0.0
        %3725 = vmatprep.subr.mxu0 0.0
        %3726 = vmatpush1.msra.mxu0 0.0
        %3727 = vmatprep.subr.mxu0 0.0
        %3728 = vmatpush1.msra.mxu0 0.0
        %3729 = vmatprep.subr.mxu0 0.0
        %3730 = vmatpush1.msra.mxu0 0.0
        %3731 = vmatprep.subr.mxu0 0.0
        %3732 = vmatpush1.msra.mxu0 0.0
        %3733 = vmatprep.subr.mxu0 0.0
        %3734 = vmatpush1.msra.mxu0 0.0
        %3735 = vmatprep.subr.mxu0 0.0
        %3736 = vmatpush1.msra.mxu0 0.0
        %3737 = vmatprep.subr.mxu0 0.0
        %3738 = vmatpush1.msra.mxu0 0.0
        %3739 = vmatprep.subr.mxu0 0.0
        %3740 = vmatpush1.msra.mxu0 0.0
        %3741 = vmatprep.subr.mxu0 0.0
        %3742 = vmatpush1.msra.mxu0 0.0
        %3743 = vmatprep.subr.mxu0 0.0
        %3744 = vmatpush1.msra.mxu0 0.0
        %3745 = vmatprep.subr.mxu0 0.0
        %3746 = vmatpush1.msra.mxu0 0.0
        %3747 = vmatprep.subr.mxu0 0.0
        %3748 = vmatpush1.msra.mxu0 0.0
        %3749 = vmatprep.subr.mxu0 0.0
        %3750 = vmatpush1.msra.mxu0 0.0
        %3751 = vmatprep.subr.mxu0 0.0
        %3752 = vmatpush1.msra.mxu0 0.0
        %3753 = vmatprep.subr.mxu0 0.0
        %3754 = vmatpush1.msra.mxu0 0.0
        %3755 = vmatprep.subr.mxu0 0.0
        %3756 = vmatpush1.msra.mxu0 0.0
        %3757 = vmatprep.subr.mxu0 0.0
        %3758 = vmatpush1.msra.mxu0 0.0
        %3759 = vmatprep.subr.mxu0 0.0
        %3760 = vmatpush1.msra.mxu0 0.0
        %3761 = vmatprep.subr.mxu0 0.0
        %3762 = vmatpush1.msra.mxu0 0.0
        %3763 = vmatprep.mubr.f32.mxu0 0.0
        %v3764 = vand.u32 %v3543, 4294901760
        %v3765 = vsub.f32 %v3543, %v3764
        %3766 = vmatmul.mubr.f32.gmra.mrb[0].mxu0 %v3765
        %v3767 = vpop.f32.mrb[0].mxu0
        %v3768 = vadd.f32 %v3694, %v3767
        %v3769 = vpop.f32.mrb[0].mxu0
        %3770 = vdwg.mxu0
        %3771 = vmatprep.subr.mxu0 0.0
        %v3772 = vand.u32 %v2994, 4294901760
        %3773 = vmatpush1.msra.mxu0 %v3772
        %3774 = vmatprep.subr.mxu0 0.0
        %3775 = vmatpush1.msra.mxu0 0.0
        %3776 = vmatprep.subr.mxu0 0.0
        %3777 = vmatpush1.msra.mxu0 0.0
        %3778 = vmatprep.subr.mxu0 0.0
        %3779 = vmatpush1.msra.mxu0 0.0
        %3780 = vmatprep.subr.mxu0 0.0
        %3781 = vmatpush1.msra.mxu0 0.0
        %3782 = vmatprep.subr.mxu0 0.0
        %3783 = vmatpush1.msra.mxu0 0.0
        %3784 = vmatprep.subr.mxu0 0.0
        %3785 = vmatpush1.msra.mxu0 0.0
        %3786 = vmatprep.subr.mxu0 0.0
        %3787 = vmatpush1.msra.mxu0 0.0
        %3788 = vmatprep.subr.mxu0 0.0
        %3789 = vmatpush1.msra.mxu0 0.0
        %3790 = vmatprep.subr.mxu0 0.0
        %3791 = vmatpush1.msra.mxu0 0.0
        %3792 = vmatprep.subr.mxu0 0.0
        %3793 = vmatpush1.msra.mxu0 0.0
        %3794 = vmatprep.subr.mxu0 0.0
        %3795 = vmatpush1.msra.mxu0 0.0
        %3796 = vmatprep.subr.mxu0 0.0
        %3797 = vmatpush1.msra.mxu0 0.0
        %3798 = vmatprep.subr.mxu0 0.0
        %3799 = vmatpush1.msra.mxu0 0.0
        %3800 = vmatprep.subr.mxu0 0.0
        %3801 = vmatpush1.msra.mxu0 0.0
        %3802 = vmatprep.subr.mxu0 0.0
        %3803 = vmatpush1.msra.mxu0 0.0
        %3804 = vmatprep.subr.mxu0 0.0
        %3805 = vmatpush1.msra.mxu0 0.0
        %3806 = vmatprep.subr.mxu0 0.0
        %3807 = vmatpush1.msra.mxu0 0.0
        %3808 = vmatprep.subr.mxu0 0.0
        %3809 = vmatpush1.msra.mxu0 0.0
        %3810 = vmatprep.subr.mxu0 0.0
        %3811 = vmatpush1.msra.mxu0 0.0
        %3812 = vmatprep.subr.mxu0 0.0
        %3813 = vmatpush1.msra.mxu0 0.0
        %3814 = vmatprep.subr.mxu0 0.0
        %3815 = vmatpush1.msra.mxu0 0.0
        %3816 = vmatprep.subr.mxu0 0.0
        %3817 = vmatpush1.msra.mxu0 0.0
        %3818 = vmatprep.subr.mxu0 0.0
        %3819 = vmatpush1.msra.mxu0 0.0
        %3820 = vmatprep.subr.mxu0 0.0
        %3821 = vmatpush1.msra.mxu0 0.0
        %3822 = vmatprep.subr.mxu0 0.0
        %3823 = vmatpush1.msra.mxu0 0.0
        %3824 = vmatprep.subr.mxu0 0.0
        %3825 = vmatpush1.msra.mxu0 0.0
        %3826 = vmatprep.subr.mxu0 0.0
        %3827 = vmatpush1.msra.mxu0 0.0
        %3828 = vmatprep.subr.mxu0 0.0
        %3829 = vmatpush1.msra.mxu0 0.0
        %3830 = vmatprep.subr.mxu0 0.0
        %3831 = vmatpush1.msra.mxu0 0.0
        %3832 = vmatprep.subr.mxu0 0.0
        %3833 = vmatpush1.msra.mxu0 0.0
        %3834 = vmatprep.subr.mxu0 0.0
        %3835 = vmatpush1.msra.mxu0 0.0
        %3836 = vmatprep.mubr.f32.mxu0 0.0
        %v3837 = vand.u32 %v3543, 4294901760
        %v3838 = vsub.f32 %v3543, %v3837
        %v3839 = vand.u32 %v3838, 4294901760
        %3840 = vmatmul.mubr.f32.gmra.mrb[0].mxu0 %v3839
        %v3841 = vpop.f32.mrb[0].mxu0
        %v3842 = vadd.f32 %v3768, %v3841
        %v3843 = vpop.f32.mrb[0].mxu0
        %3844 = vdwg.mxu0
        %3845 = vmatprep.subr.mxu0 0.0
        %v3846 = vand.u32 %v2994, 4294901760
        %v3847 = vsub.f32 %v2994, %v3846
        %v3848 = vand.u32 %v3847, 4294901760
        %3849 = vmatpush1.msra.mxu0 %v3848
        %3850 = vmatprep.subr.mxu0 0.0
        %3851 = vmatpush1.msra.mxu0 0.0
        %3852 = vmatprep.subr.mxu0 0.0
        %3853 = vmatpush1.msra.mxu0 0.0
        %3854 = vmatprep.subr.mxu0 0.0
        %3855 = vmatpush1.msra.mxu0 0.0
        %3856 = vmatprep.subr.mxu0 0.0
        %3857 = vmatpush1.msra.mxu0 0.0
        %3858 = vmatprep.subr.mxu0 0.0
        %3859 = vmatpush1.msra.mxu0 0.0
        %3860 = vmatprep.subr.mxu0 0.0
        %3861 = vmatpush1.msra.mxu0 0.0
        %3862 = vmatprep.subr.mxu0 0.0
        %3863 = vmatpush1.msra.mxu0 0.0
        %3864 = vmatprep.subr.mxu0 0.0
        %3865 = vmatpush1.msra.mxu0 0.0
        %3866 = vmatprep.subr.mxu0 0.0
        %3867 = vmatpush1.msra.mxu0 0.0
        %3868 = vmatprep.subr.mxu0 0.0
        %3869 = vmatpush1.msra.mxu0 0.0
        %3870 = vmatprep.subr.mxu0 0.0
        %3871 = vmatpush1.msra.mxu0 0.0
        %3872 = vmatprep.subr.mxu0 0.0
        %3873 = vmatpush1.msra.mxu0 0.0
        %3874 = vmatprep.subr.mxu0 0.0
        %3875 = vmatpush1.msra.mxu0 0.0
        %3876 = vmatprep.subr.mxu0 0.0
        %3877 = vmatpush1.msra.mxu0 0.0
        %3878 = vmatprep.subr.mxu0 0.0
        %3879 = vmatpush1.msra.mxu0 0.0
        %3880 = vmatprep.subr.mxu0 0.0
        %3881 = vmatpush1.msra.mxu0 0.0
        %3882 = vmatprep.subr.mxu0 0.0
        %3883 = vmatpush1.msra.mxu0 0.0
        %3884 = vmatprep.subr.mxu0 0.0
        %3885 = vmatpush1.msra.mxu0 0.0
        %3886 = vmatprep.subr.mxu0 0.0
        %3887 = vmatpush1.msra.mxu0 0.0
        %3888 = vmatprep.subr.mxu0 0.0
        %3889 = vmatpush1.msra.mxu0 0.0
        %3890 = vmatprep.subr.mxu0 0.0
        %3891 = vmatpush1.msra.mxu0 0.0
        %3892 = vmatprep.subr.mxu0 0.0
        %3893 = vmatpush1.msra.mxu0 0.0
        %3894 = vmatprep.subr.mxu0 0.0
        %3895 = vmatpush1.msra.mxu0 0.0
        %3896 = vmatprep.subr.mxu0 0.0
        %3897 = vmatpush1.msra.mxu0 0.0
        %3898 = vmatprep.subr.mxu0 0.0
        %3899 = vmatpush1.msra.mxu0 0.0
        %3900 = vmatprep.subr.mxu0 0.0
        %3901 = vmatpush1.msra.mxu0 0.0
        %3902 = vmatprep.subr.mxu0 0.0
        %3903 = vmatpush1.msra.mxu0 0.0
        %3904 = vmatprep.subr.mxu0 0.0
        %3905 = vmatpush1.msra.mxu0 0.0
        %3906 = vmatprep.subr.mxu0 0.0
        %3907 = vmatpush1.msra.mxu0 0.0
        %3908 = vmatprep.subr.mxu0 0.0
        %3909 = vmatpush1.msra.mxu0 0.0
        %3910 = vmatprep.subr.mxu0 0.0
        %3911 = vmatpush1.msra.mxu0 0.0
        %3912 = vmatprep.mubr.f32.mxu0 0.0
        %v3913 = vand.u32 %v3543, 4294901760
        %3914 = vmatmul.mubr.f32.gmra.mrb[0].mxu0 %v3913
        %v3915 = vpop.f32.mrb[0].mxu0
        %v3916 = vadd.f32 %v3842, %v3915
        %v3917 = vpop.f32.mrb[0].mxu0
        %3918 = vdwg.mxu0
        %3919 = vmatprep.subr.mxu0 0.0
        %v3920 = vand.u32 %v2994, 4294901760
        %3921 = vmatpush1.msra.mxu0 %v3920
        %3922 = vmatprep.subr.mxu0 0.0
        %3923 = vmatpush1.msra.mxu0 0.0
        %3924 = vmatprep.subr.mxu0 0.0
        %3925 = vmatpush1.msra.mxu0 0.0
        %3926 = vmatprep.subr.mxu0 0.0
        %3927 = vmatpush1.msra.mxu0 0.0
        %3928 = vmatprep.subr.mxu0 0.0
        %3929 = vmatpush1.msra.mxu0 0.0
        %3930 = vmatprep.subr.mxu0 0.0
        %3931 = vmatpush1.msra.mxu0 0.0
        %3932 = vmatprep.subr.mxu0 0.0
        %3933 = vmatpush1.msra.mxu0 0.0
        %3934 = vmatprep.subr.mxu0 0.0
        %3935 = vmatpush1.msra.mxu0 0.0
        %3936 = vmatprep.subr.mxu0 0.0
        %3937 = vmatpush1.msra.mxu0 0.0
        %3938 = vmatprep.subr.mxu0 0.0
        %3939 = vmatpush1.msra.mxu0 0.0
        %3940 = vmatprep.subr.mxu0 0.0
        %3941 = vmatpush1.msra.mxu0 0.0
        %3942 = vmatprep.subr.mxu0 0.0
        %3943 = vmatpush1.msra.mxu0 0.0
        %3944 = vmatprep.subr.mxu0 0.0
        %3945 = vmatpush1.msra.mxu0 0.0
        %3946 = vmatprep.subr.mxu0 0.0
        %3947 = vmatpush1.msra.mxu0 0.0
        %3948 = vmatprep.subr.mxu0 0.0
        %3949 = vmatpush1.msra.mxu0 0.0
        %3950 = vmatprep.subr.mxu0 0.0
        %3951 = vmatpush1.msra.mxu0 0.0
        %3952 = vmatprep.subr.mxu0 0.0
        %3953 = vmatpush1.msra.mxu0 0.0
        %3954 = vmatprep.subr.mxu0 0.0
        %3955 = vmatpush1.msra.mxu0 0.0
        %3956 = vmatprep.subr.mxu0 0.0
        %3957 = vmatpush1.msra.mxu0 0.0
        %3958 = vmatprep.subr.mxu0 0.0
        %3959 = vmatpush1.msra.mxu0 0.0
        %3960 = vmatprep.subr.mxu0 0.0
        %3961 = vmatpush1.msra.mxu0 0.0
        %3962 = vmatprep.subr.mxu0 0.0
        %3963 = vmatpush1.msra.mxu0 0.0
        %3964 = vmatprep.subr.mxu0 0.0
        %3965 = vmatpush1.msra.mxu0 0.0
        %3966 = vmatprep.subr.mxu0 0.0
        %3967 = vmatpush1.msra.mxu0 0.0
        %3968 = vmatprep.subr.mxu0 0.0
        %3969 = vmatpush1.msra.mxu0 0.0
        %3970 = vmatprep.subr.mxu0 0.0
        %3971 = vmatpush1.msra.mxu0 0.0
        %3972 = vmatprep.subr.mxu0 0.0
        %3973 = vmatpush1.msra.mxu0 0.0
        %3974 = vmatprep.subr.mxu0 0.0
        %3975 = vmatpush1.msra.mxu0 0.0
        %3976 = vmatprep.subr.mxu0 0.0
        %3977 = vmatpush1.msra.mxu0 0.0
        %3978 = vmatprep.subr.mxu0 0.0
        %3979 = vmatpush1.msra.mxu0 0.0
        %3980 = vmatprep.subr.mxu0 0.0
        %3981 = vmatpush1.msra.mxu0 0.0
        %3982 = vmatprep.subr.mxu0 0.0
        %3983 = vmatpush1.msra.mxu0 0.0
        %3984 = vmatprep.mubr.f32.mxu0 0.0
        %v3985 = vand.u32 %v3543, 4294901760
        %3986 = vmatmul.mubr.f32.gmra.mrb[0].mxu0 %v3985
        %v3987 = vpop.f32.mrb[0].mxu0
        %v3988 = vadd.f32 %v3916, %v3987
        %v3989 = vpop.f32.mrb[0].mxu0
        %3990 = vdwg.mxu0
        %v3991 = vrcp.pop %v3541
        %v3992 = vmul.f32 %v3988, %v3991
        %3993 = vrot.lane.b32.xlu0 %v2190, 120
        %v3994 = vpop.permute.xlu0 %3993
        %3995 = vrot.lane.b32.xlu0 %v2993, 120
        %v3996 = vpop.permute.xlu0 %3995
        %3997 = vset.pattern.permute.xlu0 1
        %3998 = vperm.xlu0 %3997, %v2948
        %v3999 = vpop.permute.xlu0 %3998
        %4000 = vset.pattern.permute.xlu0 1
        %4001 = vperm.xlu0 %4000, %v2954
        %v4002 = vpop.permute.xlu0 %4001
        %4003 = vset.pattern.permute.xlu0 1
        %4004 = vperm.xlu0 %4003, %v2960
        %v4005 = vpop.permute.xlu0 %4004
        %4006 = vset.pattern.permute.xlu0 1
        %4007 = vperm.xlu0 %4006, %v2966
        %v4008 = vpop.permute.xlu0 %4007
        %4009 = vset.pattern.permute.xlu0 1
        %4010 = vperm.xlu0 %4009, %v2972
        %v4011 = vpop.permute.xlu0 %4010
        %4012 = vset.pattern.permute.xlu0 1
        %4013 = vperm.xlu0 %4012, %v2978
        %v4014 = vpop.permute.xlu0 %4013
        %4015 = vset.pattern.permute.xlu0 1
        %4016 = vperm.xlu0 %4015, %v2984
        %v4017 = vpop.permute.xlu0 %4016
        %4018 = vset.pattern.permute.xlu0 1
        %4019 = vperm.xlu0 %4018, %v2990
        %v4020 = vpop.permute.xlu0 %4019
        %v4021 = vlaneseq
        %v4022 = vshrl.u32 %v4021, 7
        %v4023 = vsub.s32 %v3032, %v4022
        %v4024 = vrot.slane %v3999, %v4023
        %v4025 = vlaneseq
        %v4026 = vshrl.u32 %v4025, 7
        %v4027 = vsub.s32 %v3032, %v4026
        %v4028 = vrot.slane %v4002, %v4027
        %v4029 = vlaneseq
        %v4030 = vshrl.u32 %v4029, 7
        %v4031 = vsub.s32 %v3032, %v4030
        %v4032 = vrot.slane %v4005, %v4031
        %v4033 = vlaneseq
        %v4034 = vshrl.u32 %v4033, 7
        %v4035 = vsub.s32 %v3032, %v4034
        %v4036 = vrot.slane %v4008, %v4035
        %v4037 = vlaneseq
        %v4038 = vshrl.u32 %v4037, 7
        %v4039 = vsub.s32 %v3032, %v4038
        %v4040 = vrot.slane %v4011, %v4039
        %v4041 = vlaneseq
        %v4042 = vshrl.u32 %v4041, 7
        %v4043 = vsub.s32 %v3032, %v4042
        %v4044 = vrot.slane %v4014, %v4043
        %v4045 = vlaneseq
        %v4046 = vshrl.u32 %v4045, 7
        %v4047 = vsub.s32 %v3032, %v4046
        %v4048 = vrot.slane %v4017, %v4047
        %v4049 = vlaneseq
        %v4050 = vshrl.u32 %v4049, 7
        %v4051 = vsub.s32 %v3032, %v4050
        %v4052 = vrot.slane %v4020, %v4051
        %v4053 = vsel %vm3065, %v4028, %v4024
        %v4054 = vsel %vm3067, %v4032, %v4053
        %v4055 = vsel %vm3069, %v4036, %v4054
        %v4056 = vsel %vm3071, %v4040, %v4055
        %v4057 = vsel %vm3073, %v4044, %v4056
        %v4058 = vsel %vm3075, %v4048, %v4057
        %v4059 = vsel %vm3077, %v4052, %v4058
        %v4061 = vsel %vm3080, %v3994, 0
        %v4063 = vsel %vm3080, %v3996, 0
        %4065 = vmatprep.subr.mxu0 0.0
        %v4066 = vand.u32 %v4063, 4294901760
        %4067 = vmatpush1.xpose.msra.mxu0 %v4066
        %4068 = vmatprep.subr.mxu0 0.0
        %4069 = vmatpush1.xpose.msra.mxu0 0.0
        %4070 = vmatprep.subr.mxu0 0.0
        %4071 = vmatpush1.xpose.msra.mxu0 0.0
        %4072 = vmatprep.subr.mxu0 0.0
        %4073 = vmatpush1.xpose.msra.mxu0 0.0
        %4074 = vmatprep.subr.mxu0 0.0
        %4075 = vmatpush1.xpose.msra.mxu0 0.0
        %4076 = vmatprep.subr.mxu0 0.0
        %4077 = vmatpush1.xpose.msra.mxu0 0.0
        %4078 = vmatprep.subr.mxu0 0.0
        %4079 = vmatpush1.xpose.msra.mxu0 0.0
        %4080 = vmatprep.subr.mxu0 0.0
        %4081 = vmatpush1.xpose.msra.mxu0 0.0
        %4082 = vmatprep.subr.mxu0 0.0
        %4083 = vmatpush1.xpose.msra.mxu0 0.0
        %4084 = vmatprep.subr.mxu0 0.0
        %4085 = vmatpush1.xpose.msra.mxu0 0.0
        %4086 = vmatprep.subr.mxu0 0.0
        %4087 = vmatpush1.xpose.msra.mxu0 0.0
        %4088 = vmatprep.subr.mxu0 0.0
        %4089 = vmatpush1.xpose.msra.mxu0 0.0
        %4090 = vmatprep.subr.mxu0 0.0
        %4091 = vmatpush1.xpose.msra.mxu0 0.0
        %4092 = vmatprep.subr.mxu0 0.0
        %4093 = vmatpush1.xpose.msra.mxu0 0.0
        %4094 = vmatprep.subr.mxu0 0.0
        %4095 = vmatpush1.xpose.msra.mxu0 0.0
        %4096 = vmatprep.subr.mxu0 0.0
        %4097 = vmatpush1.xpose.msra.mxu0 0.0
        %4098 = vmatprep.subr.mxu0 0.0
        %4099 = vmatpush1.xpose.msra.mxu0 0.0
        %4100 = vmatprep.subr.mxu0 0.0
        %4101 = vmatpush1.xpose.msra.mxu0 0.0
        %4102 = vmatprep.subr.mxu0 0.0
        %4103 = vmatpush1.xpose.msra.mxu0 0.0
        %4104 = vmatprep.subr.mxu0 0.0
        %4105 = vmatpush1.xpose.msra.mxu0 0.0
        %4106 = vmatprep.subr.mxu0 0.0
        %4107 = vmatpush1.xpose.msra.mxu0 0.0
        %4108 = vmatprep.subr.mxu0 0.0
        %4109 = vmatpush1.xpose.msra.mxu0 0.0
        %4110 = vmatprep.subr.mxu0 0.0
        %4111 = vmatpush1.xpose.msra.mxu0 0.0
        %4112 = vmatprep.subr.mxu0 0.0
        %4113 = vmatpush1.xpose.msra.mxu0 0.0
        %4114 = vmatprep.subr.mxu0 0.0
        %4115 = vmatpush1.xpose.msra.mxu0 0.0
        %4116 = vmatprep.subr.mxu0 0.0
        %4117 = vmatpush1.xpose.msra.mxu0 0.0
        %4118 = vmatprep.subr.mxu0 0.0
        %4119 = vmatpush1.xpose.msra.mxu0 0.0
        %4120 = vmatprep.subr.mxu0 0.0
        %4121 = vmatpush1.xpose.msra.mxu0 0.0
        %4122 = vmatprep.subr.mxu0 0.0
        %4123 = vmatpush1.xpose.msra.mxu0 0.0
        %4124 = vmatprep.subr.mxu0 0.0
        %4125 = vmatpush1.xpose.msra.mxu0 0.0
        %4126 = vmatprep.subr.mxu0 0.0
        %4127 = vmatpush1.xpose.msra.mxu0 0.0
        %4128 = vmatprep.subr.mxu0 0.0
        %4129 = vmatpush1.xpose.msra.mxu0 0.0
        %4130 = vmatprep.mubr.f32.mxu0 0.0
        %v4131 = vand.u32 %v4061, 4294901760
        %v4132 = vsub.f32 %v4061, %v4131
        %v4133 = vand.u32 %v4132, 4294901760
        %v4134 = vsub.f32 %v4132, %v4133
        %v4135 = vand.u32 %v4134, 4294901760
        %4136 = vmatmul.mubr.f32.gmra.mrb[0].mxu0 %v4135
        %v4137 = vpop.f32.mrb[0].mxu0
        %v4138 = vadd.f32 %v4059, %v4137
        %v4139 = vpop.f32.mrb[0].mxu0
        %4140 = vdwg.mxu0
        %4141 = vmatprep.subr.mxu0 0.0
        %v4142 = vand.u32 %v4063, 4294901760
        %v4143 = vsub.f32 %v4063, %v4142
        %v4144 = vand.u32 %v4143, 4294901760
        %v4145 = vsub.f32 %v4143, %v4144
        %v4146 = vand.u32 %v4145, 4294901760
        %4147 = vmatpush1.xpose.msra.mxu0 %v4146
        %4148 = vmatprep.subr.mxu0 0.0
        %4149 = vmatpush1.xpose.msra.mxu0 0.0
        %4150 = vmatprep.subr.mxu0 0.0
        %4151 = vmatpush1.xpose.msra.mxu0 0.0
        %4152 = vmatprep.subr.mxu0 0.0
        %4153 = vmatpush1.xpose.msra.mxu0 0.0
        %4154 = vmatprep.subr.mxu0 0.0
        %4155 = vmatpush1.xpose.msra.mxu0 0.0
        %4156 = vmatprep.subr.mxu0 0.0
        %4157 = vmatpush1.xpose.msra.mxu0 0.0
        %4158 = vmatprep.subr.mxu0 0.0
        %4159 = vmatpush1.xpose.msra.mxu0 0.0
        %4160 = vmatprep.subr.mxu0 0.0
        %4161 = vmatpush1.xpose.msra.mxu0 0.0
        %4162 = vmatprep.subr.mxu0 0.0
        %4163 = vmatpush1.xpose.msra.mxu0 0.0
        %4164 = vmatprep.subr.mxu0 0.0
        %4165 = vmatpush1.xpose.msra.mxu0 0.0
        %4166 = vmatprep.subr.mxu0 0.0
        %4167 = vmatpush1.xpose.msra.mxu0 0.0
        %4168 = vmatprep.subr.mxu0 0.0
        %4169 = vmatpush1.xpose.msra.mxu0 0.0
        %4170 = vmatprep.subr.mxu0 0.0
        %4171 = vmatpush1.xpose.msra.mxu0 0.0
        %4172 = vmatprep.subr.mxu0 0.0
        %4173 = vmatpush1.xpose.msra.mxu0 0.0
        %4174 = vmatprep.subr.mxu0 0.0
        %4175 = vmatpush1.xpose.msra.mxu0 0.0
        %4176 = vmatprep.subr.mxu0 0.0
        %4177 = vmatpush1.xpose.msra.mxu0 0.0
        %4178 = vmatprep.subr.mxu0 0.0
        %4179 = vmatpush1.xpose.msra.mxu0 0.0
        %4180 = vmatprep.subr.mxu0 0.0
        %4181 = vmatpush1.xpose.msra.mxu0 0.0
        %4182 = vmatprep.subr.mxu0 0.0
        %4183 = vmatpush1.xpose.msra.mxu0 0.0
        %4184 = vmatprep.subr.mxu0 0.0
        %4185 = vmatpush1.xpose.msra.mxu0 0.0
        %4186 = vmatprep.subr.mxu0 0.0
        %4187 = vmatpush1.xpose.msra.mxu0 0.0
        %4188 = vmatprep.subr.mxu0 0.0
        %4189 = vmatpush1.xpose.msra.mxu0 0.0
        %4190 = vmatprep.subr.mxu0 0.0
        %4191 = vmatpush1.xpose.msra.mxu0 0.0
        %4192 = vmatprep.subr.mxu0 0.0
        %4193 = vmatpush1.xpose.msra.mxu0 0.0
        %4194 = vmatprep.subr.mxu0 0.0
        %4195 = vmatpush1.xpose.msra.mxu0 0.0
        %4196 = vmatprep.subr.mxu0 0.0
        %4197 = vmatpush1.xpose.msra.mxu0 0.0
        %4198 = vmatprep.subr.mxu0 0.0
        %4199 = vmatpush1.xpose.msra.mxu0 0.0
        %4200 = vmatprep.subr.mxu0 0.0
        %4201 = vmatpush1.xpose.msra.mxu0 0.0
        %4202 = vmatprep.subr.mxu0 0.0
        %4203 = vmatpush1.xpose.msra.mxu0 0.0
        %4204 = vmatprep.subr.mxu0 0.0
        %4205 = vmatpush1.xpose.msra.mxu0 0.0
        %4206 = vmatprep.subr.mxu0 0.0
        %4207 = vmatpush1.xpose.msra.mxu0 0.0
        %4208 = vmatprep.subr.mxu0 0.0
        %4209 = vmatpush1.xpose.msra.mxu0 0.0
        %4210 = vmatprep.mubr.f32.mxu0 0.0
        %v4211 = vand.u32 %v4061, 4294901760
        %4212 = vmatmul.mubr.f32.gmra.mrb[0].mxu0 %v4211
        %v4213 = vpop.f32.mrb[0].mxu0
        %v4214 = vadd.f32 %v4138, %v4213
        %v4215 = vpop.f32.mrb[0].mxu0
        %4216 = vdwg.mxu0
        %4217 = vmatprep.subr.mxu0 0.0
        %v4218 = vand.u32 %v4063, 4294901760
        %v4219 = vsub.f32 %v4063, %v4218
        %4220 = vmatpush1.xpose.msra.mxu0 %v4219
        %4221 = vmatprep.subr.mxu0 0.0
        %4222 = vmatpush1.xpose.msra.mxu0 0.0
        %4223 = vmatprep.subr.mxu0 0.0
        %4224 = vmatpush1.xpose.msra.mxu0 0.0
        %4225 = vmatprep.subr.mxu0 0.0
        %4226 = vmatpush1.xpose.msra.mxu0 0.0
        %4227 = vmatprep.subr.mxu0 0.0
        %4228 = vmatpush1.xpose.msra.mxu0 0.0
        %4229 = vmatprep.subr.mxu0 0.0
        %4230 = vmatpush1.xpose.msra.mxu0 0.0
        %4231 = vmatprep.subr.mxu0 0.0
        %4232 = vmatpush1.xpose.msra.mxu0 0.0
        %4233 = vmatprep.subr.mxu0 0.0
        %4234 = vmatpush1.xpose.msra.mxu0 0.0
        %4235 = vmatprep.subr.mxu0 0.0
        %4236 = vmatpush1.xpose.msra.mxu0 0.0
        %4237 = vmatprep.subr.mxu0 0.0
        %4238 = vmatpush1.xpose.msra.mxu0 0.0
        %4239 = vmatprep.subr.mxu0 0.0
        %4240 = vmatpush1.xpose.msra.mxu0 0.0
        %4241 = vmatprep.subr.mxu0 0.0
        %4242 = vmatpush1.xpose.msra.mxu0 0.0
        %4243 = vmatprep.subr.mxu0 0.0
        %4244 = vmatpush1.xpose.msra.mxu0 0.0
        %4245 = vmatprep.subr.mxu0 0.0
        %4246 = vmatpush1.xpose.msra.mxu0 0.0
        %4247 = vmatprep.subr.mxu0 0.0
        %4248 = vmatpush1.xpose.msra.mxu0 0.0
        %4249 = vmatprep.subr.mxu0 0.0
        %4250 = vmatpush1.xpose.msra.mxu0 0.0
        %4251 = vmatprep.subr.mxu0 0.0
        %4252 = vmatpush1.xpose.msra.mxu0 0.0
        %4253 = vmatprep.subr.mxu0 0.0
        %4254 = vmatpush1.xpose.msra.mxu0 0.0
        %4255 = vmatprep.subr.mxu0 0.0
        %4256 = vmatpush1.xpose.msra.mxu0 0.0
        %4257 = vmatprep.subr.mxu0 0.0
        %4258 = vmatpush1.xpose.msra.mxu0 0.0
        %4259 = vmatprep.subr.mxu0 0.0
        %4260 = vmatpush1.xpose.msra.mxu0 0.0
        %4261 = vmatprep.subr.mxu0 0.0
        %4262 = vmatpush1.xpose.msra.mxu0 0.0
        %4263 = vmatprep.subr.mxu0 0.0
        %4264 = vmatpush1.xpose.msra.mxu0 0.0
        %4265 = vmatprep.subr.mxu0 0.0
        %4266 = vmatpush1.xpose.msra.mxu0 0.0
        %4267 = vmatprep.subr.mxu0 0.0
        %4268 = vmatpush1.xpose.msra.mxu0 0.0
        %4269 = vmatprep.subr.mxu0 0.0
        %4270 = vmatpush1.xpose.msra.mxu0 0.0
        %4271 = vmatprep.subr.mxu0 0.0
        %4272 = vmatpush1.xpose.msra.mxu0 0.0
        %4273 = vmatprep.subr.mxu0 0.0
        %4274 = vmatpush1.xpose.msra.mxu0 0.0
        %4275 = vmatprep.subr.mxu0 0.0
        %4276 = vmatpush1.xpose.msra.mxu0 0.0
        %4277 = vmatprep.subr.mxu0 0.0
        %4278 = vmatpush1.xpose.msra.mxu0 0.0
        %4279 = vmatprep.subr.mxu0 0.0
        %4280 = vmatpush1.xpose.msra.mxu0 0.0
        %4281 = vmatprep.subr.mxu0 0.0
        %4282 = vmatpush1.xpose.msra.mxu0 0.0
        %4283 = vmatprep.mubr.f32.mxu0 0.0
        %v4284 = vand.u32 %v4061, 4294901760
        %v4285 = vsub.f32 %v4061, %v4284
        %4286 = vmatmul.mubr.f32.gmra.mrb[0].mxu0 %v4285
        %v4287 = vpop.f32.mrb[0].mxu0
        %v4288 = vadd.f32 %v4214, %v4287
        %v4289 = vpop.f32.mrb[0].mxu0
        %4290 = vdwg.mxu0
        %4291 = vmatprep.subr.mxu0 0.0
        %v4292 = vand.u32 %v4063, 4294901760
        %4293 = vmatpush1.xpose.msra.mxu0 %v4292
        %4294 = vmatprep.subr.mxu0 0.0
        %4295 = vmatpush1.xpose.msra.mxu0 0.0
        %4296 = vmatprep.subr.mxu0 0.0
        %4297 = vmatpush1.xpose.msra.mxu0 0.0
        %4298 = vmatprep.subr.mxu0 0.0
        %4299 = vmatpush1.xpose.msra.mxu0 0.0
        %4300 = vmatprep.subr.mxu0 0.0
        %4301 = vmatpush1.xpose.msra.mxu0 0.0
        %4302 = vmatprep.subr.mxu0 0.0
        %4303 = vmatpush1.xpose.msra.mxu0 0.0
        %4304 = vmatprep.subr.mxu0 0.0
        %4305 = vmatpush1.xpose.msra.mxu0 0.0
        %4306 = vmatprep.subr.mxu0 0.0
        %4307 = vmatpush1.xpose.msra.mxu0 0.0
        %4308 = vmatprep.subr.mxu0 0.0
        %4309 = vmatpush1.xpose.msra.mxu0 0.0
        %4310 = vmatprep.subr.mxu0 0.0
        %4311 = vmatpush1.xpose.msra.mxu0 0.0
        %4312 = vmatprep.subr.mxu0 0.0
        %4313 = vmatpush1.xpose.msra.mxu0 0.0
        %4314 = vmatprep.subr.mxu0 0.0
        %4315 = vmatpush1.xpose.msra.mxu0 0.0
        %4316 = vmatprep.subr.mxu0 0.0
        %4317 = vmatpush1.xpose.msra.mxu0 0.0
        %4318 = vmatprep.subr.mxu0 0.0
        %4319 = vmatpush1.xpose.msra.mxu0 0.0
        %4320 = vmatprep.subr.mxu0 0.0
        %4321 = vmatpush1.xpose.msra.mxu0 0.0
        %4322 = vmatprep.subr.mxu0 0.0
        %4323 = vmatpush1.xpose.msra.mxu0 0.0
        %4324 = vmatprep.subr.mxu0 0.0
        %4325 = vmatpush1.xpose.msra.mxu0 0.0
        %4326 = vmatprep.subr.mxu0 0.0
        %4327 = vmatpush1.xpose.msra.mxu0 0.0
        %4328 = vmatprep.subr.mxu0 0.0
        %4329 = vmatpush1.xpose.msra.mxu0 0.0
        %4330 = vmatprep.subr.mxu0 0.0
        %4331 = vmatpush1.xpose.msra.mxu0 0.0
        %4332 = vmatprep.subr.mxu0 0.0
        %4333 = vmatpush1.xpose.msra.mxu0 0.0
        %4334 = vmatprep.subr.mxu0 0.0
        %4335 = vmatpush1.xpose.msra.mxu0 0.0
        %4336 = vmatprep.subr.mxu0 0.0
        %4337 = vmatpush1.xpose.msra.mxu0 0.0
        %4338 = vmatprep.subr.mxu0 0.0
        %4339 = vmatpush1.xpose.msra.mxu0 0.0
        %4340 = vmatprep.subr.mxu0 0.0
        %4341 = vmatpush1.xpose.msra.mxu0 0.0
        %4342 = vmatprep.subr.mxu0 0.0
        %4343 = vmatpush1.xpose.msra.mxu0 0.0
        %4344 = vmatprep.subr.mxu0 0.0
        %4345 = vmatpush1.xpose.msra.mxu0 0.0
        %4346 = vmatprep.subr.mxu0 0.0
        %4347 = vmatpush1.xpose.msra.mxu0 0.0
        %4348 = vmatprep.subr.mxu0 0.0
        %4349 = vmatpush1.xpose.msra.mxu0 0.0
        %4350 = vmatprep.subr.mxu0 0.0
        %4351 = vmatpush1.xpose.msra.mxu0 0.0
        %4352 = vmatprep.subr.mxu0 0.0
        %4353 = vmatpush1.xpose.msra.mxu0 0.0
        %4354 = vmatprep.subr.mxu0 0.0
        %4355 = vmatpush1.xpose.msra.mxu0 0.0
        %4356 = vmatprep.mubr.f32.mxu0 0.0
        %v4357 = vand.u32 %v4061, 4294901760
        %v4358 = vsub.f32 %v4061, %v4357
        %v4359 = vand.u32 %v4358, 4294901760
        %4360 = vmatmul.mubr.f32.gmra.mrb[0].mxu0 %v4359
        %v4361 = vpop.f32.mrb[0].mxu0
        %v4362 = vadd.f32 %v4288, %v4361
        %v4363 = vpop.f32.mrb[0].mxu0
        %4364 = vdwg.mxu0
        %4365 = vmatprep.subr.mxu0 0.0
        %v4366 = vand.u32 %v4063, 4294901760
        %v4367 = vsub.f32 %v4063, %v4366
        %v4368 = vand.u32 %v4367, 4294901760
        %4369 = vmatpush1.xpose.msra.mxu0 %v4368
        %4370 = vmatprep.subr.mxu0 0.0
        %4371 = vmatpush1.xpose.msra.mxu0 0.0
        %4372 = vmatprep.subr.mxu0 0.0
        %4373 = vmatpush1.xpose.msra.mxu0 0.0
        %4374 = vmatprep.subr.mxu0 0.0
        %4375 = vmatpush1.xpose.msra.mxu0 0.0
        %4376 = vmatprep.subr.mxu0 0.0
        %4377 = vmatpush1.xpose.msra.mxu0 0.0
        %4378 = vmatprep.subr.mxu0 0.0
        %4379 = vmatpush1.xpose.msra.mxu0 0.0
        %4380 = vmatprep.subr.mxu0 0.0
        %4381 = vmatpush1.xpose.msra.mxu0 0.0
        %4382 = vmatprep.subr.mxu0 0.0
        %4383 = vmatpush1.xpose.msra.mxu0 0.0
        %4384 = vmatprep.subr.mxu0 0.0
        %4385 = vmatpush1.xpose.msra.mxu0 0.0
        %4386 = vmatprep.subr.mxu0 0.0
        %4387 = vmatpush1.xpose.msra.mxu0 0.0
        %4388 = vmatprep.subr.mxu0 0.0
        %4389 = vmatpush1.xpose.msra.mxu0 0.0
        %4390 = vmatprep.subr.mxu0 0.0
        %4391 = vmatpush1.xpose.msra.mxu0 0.0
        %4392 = vmatprep.subr.mxu0 0.0
        %4393 = vmatpush1.xpose.msra.mxu0 0.0
        %4394 = vmatprep.subr.mxu0 0.0
        %4395 = vmatpush1.xpose.msra.mxu0 0.0
        %4396 = vmatprep.subr.mxu0 0.0
        %4397 = vmatpush1.xpose.msra.mxu0 0.0
        %4398 = vmatprep.subr.mxu0 0.0
        %4399 = vmatpush1.xpose.msra.mxu0 0.0
        %4400 = vmatprep.subr.mxu0 0.0
        %4401 = vmatpush1.xpose.msra.mxu0 0.0
        %4402 = vmatprep.subr.mxu0 0.0
        %4403 = vmatpush1.xpose.msra.mxu0 0.0
        %4404 = vmatprep.subr.mxu0 0.0
        %4405 = vmatpush1.xpose.msra.mxu0 0.0
        %4406 = vmatprep.subr.mxu0 0.0
        %4407 = vmatpush1.xpose.msra.mxu0 0.0
        %4408 = vmatprep.subr.mxu0 0.0
        %4409 = vmatpush1.xpose.msra.mxu0 0.0
        %4410 = vmatprep.subr.mxu0 0.0
        %4411 = vmatpush1.xpose.msra.mxu0 0.0
        %4412 = vmatprep.subr.mxu0 0.0
        %4413 = vmatpush1.xpose.msra.mxu0 0.0
        %4414 = vmatprep.subr.mxu0 0.0
        %4415 = vmatpush1.xpose.msra.mxu0 0.0
        %4416 = vmatprep.subr.mxu0 0.0
        %4417 = vmatpush1.xpose.msra.mxu0 0.0
        %4418 = vmatprep.subr.mxu0 0.0
        %4419 = vmatpush1.xpose.msra.mxu0 0.0
        %4420 = vmatprep.subr.mxu0 0.0
        %4421 = vmatpush1.xpose.msra.mxu0 0.0
        %4422 = vmatprep.subr.mxu0 0.0
        %4423 = vmatpush1.xpose.msra.mxu0 0.0
        %4424 = vmatprep.subr.mxu0 0.0
        %4425 = vmatpush1.xpose.msra.mxu0 0.0
        %4426 = vmatprep.subr.mxu0 0.0
        %4427 = vmatpush1.xpose.msra.mxu0 0.0
        %4428 = vmatprep.subr.mxu0 0.0
        %4429 = vmatpush1.xpose.msra.mxu0 0.0
        %4430 = vmatprep.subr.mxu0 0.0
        %4431 = vmatpush1.xpose.msra.mxu0 0.0
        %4432 = vmatprep.mubr.f32.mxu0 0.0
        %v4433 = vand.u32 %v4061, 4294901760
        %4434 = vmatmul.mubr.f32.gmra.mrb[0].mxu0 %v4433
        %v4435 = vpop.f32.mrb[0].mxu0
        %v4436 = vadd.f32 %v4362, %v4435
        %v4437 = vpop.f32.mrb[0].mxu0
        %4438 = vdwg.mxu0
        %4439 = vmatprep.subr.mxu0 0.0
        %v4440 = vand.u32 %v4063, 4294901760
        %4441 = vmatpush1.xpose.msra.mxu0 %v4440
        %4442 = vmatprep.subr.mxu0 0.0
        %4443 = vmatpush1.xpose.msra.mxu0 0.0
        %4444 = vmatprep.subr.mxu0 0.0
        %4445 = vmatpush1.xpose.msra.mxu0 0.0
        %4446 = vmatprep.subr.mxu0 0.0
        %4447 = vmatpush1.xpose.msra.mxu0 0.0
        %4448 = vmatprep.subr.mxu0 0.0
        %4449 = vmatpush1.xpose.msra.mxu0 0.0
        %4450 = vmatprep.subr.mxu0 0.0
        %4451 = vmatpush1.xpose.msra.mxu0 0.0
        %4452 = vmatprep.subr.mxu0 0.0
        %4453 = vmatpush1.xpose.msra.mxu0 0.0
        %4454 = vmatprep.subr.mxu0 0.0
        %4455 = vmatpush1.xpose.msra.mxu0 0.0
        %4456 = vmatprep.subr.mxu0 0.0
        %4457 = vmatpush1.xpose.msra.mxu0 0.0
        %4458 = vmatprep.subr.mxu0 0.0
        %4459 = vmatpush1.xpose.msra.mxu0 0.0
        %4460 = vmatprep.subr.mxu0 0.0
        %4461 = vmatpush1.xpose.msra.mxu0 0.0
        %4462 = vmatprep.subr.mxu0 0.0
        %4463 = vmatpush1.xpose.msra.mxu0 0.0
        %4464 = vmatprep.subr.mxu0 0.0
        %4465 = vmatpush1.xpose.msra.mxu0 0.0
        %4466 = vmatprep.subr.mxu0 0.0
        %4467 = vmatpush1.xpose.msra.mxu0 0.0
        %4468 = vmatprep.subr.mxu0 0.0
        %4469 = vmatpush1.xpose.msra.mxu0 0.0
        %4470 = vmatprep.subr.mxu0 0.0
        %4471 = vmatpush1.xpose.msra.mxu0 0.0
        %4472 = vmatprep.subr.mxu0 0.0
        %4473 = vmatpush1.xpose.msra.mxu0 0.0
        %4474 = vmatprep.subr.mxu0 0.0
        %4475 = vmatpush1.xpose.msra.mxu0 0.0
        %4476 = vmatprep.subr.mxu0 0.0
        %4477 = vmatpush1.xpose.msra.mxu0 0.0
        %4478 = vmatprep.subr.mxu0 0.0
        %4479 = vmatpush1.xpose.msra.mxu0 0.0
        %4480 = vmatprep.subr.mxu0 0.0
        %4481 = vmatpush1.xpose.msra.mxu0 0.0
        %4482 = vmatprep.subr.mxu0 0.0
        %4483 = vmatpush1.xpose.msra.mxu0 0.0
        %4484 = vmatprep.subr.mxu0 0.0
        %4485 = vmatpush1.xpose.msra.mxu0 0.0
        %4486 = vmatprep.subr.mxu0 0.0
        %4487 = vmatpush1.xpose.msra.mxu0 0.0
        %4488 = vmatprep.subr.mxu0 0.0
        %4489 = vmatpush1.xpose.msra.mxu0 0.0
        %4490 = vmatprep.subr.mxu0 0.0
        %4491 = vmatpush1.xpose.msra.mxu0 0.0
        %4492 = vmatprep.subr.mxu0 0.0
        %4493 = vmatpush1.xpose.msra.mxu0 0.0
        %4494 = vmatprep.subr.mxu0 0.0
        %4495 = vmatpush1.xpose.msra.mxu0 0.0
        %4496 = vmatprep.subr.mxu0 0.0
        %4497 = vmatpush1.xpose.msra.mxu0 0.0
        %4498 = vmatprep.subr.mxu0 0.0
        %4499 = vmatpush1.xpose.msra.mxu0 0.0
        %4500 = vmatprep.subr.mxu0 0.0
        %4501 = vmatpush1.xpose.msra.mxu0 0.0
        %4502 = vmatprep.subr.mxu0 0.0
        %4503 = vmatpush1.xpose.msra.mxu0 0.0
        %4504 = vmatprep.mubr.f32.mxu0 0.0
        %v4505 = vand.u32 %v4061, 4294901760
        %4506 = vmatmul.mubr.f32.gmra.mrb[0].mxu0 %v4505
        %v4507 = vpop.f32.mrb[0].mxu0
        %v4508 = vadd.f32 %v4436, %v4507
        %v4509 = vpop.f32.mrb[0].mxu0
        %4510 = vdwg.mxu0
        %v4511 = vsel %vm3080, %v4508, -inf
        %4512 = vmax.xlane.f32.xlu0 %v4511
        %v4513 = vpop.xlane.xlu0 %4512
        %v4514 = vsub.f32 %v4508, %v4513
        %v4515 = vmul.f32 %v4514, 1.442695
        %v4516 = vpow.pop %v4515
        %v4517 = vsel %vm3080, %v4516, 0.0
        %4518 = vadd.xlane.f32.xlu0 %v4517
        %v4519 = vpop.xlane.xlu0 %4518
        %4521 = vrot.lane.b32.xlu0 %v2994, 120
        %v4522 = vpop.permute.xlu0 %4521
        %v4525 = vsel %vm3080, %v4516, 0
        %4527 = vmatprep.subr.mxu0 0.0
        %v4528 = vand.u32 %v4522, 4294901760
        %4529 = vmatpush1.msra.mxu0 %v4528
        %4530 = vmatprep.subr.mxu0 0.0
        %4531 = vmatpush1.msra.mxu0 0.0
        %4532 = vmatprep.subr.mxu0 0.0
        %4533 = vmatpush1.msra.mxu0 0.0
        %4534 = vmatprep.subr.mxu0 0.0
        %4535 = vmatpush1.msra.mxu0 0.0
        %4536 = vmatprep.subr.mxu0 0.0
        %4537 = vmatpush1.msra.mxu0 0.0
        %4538 = vmatprep.subr.mxu0 0.0
        %4539 = vmatpush1.msra.mxu0 0.0
        %4540 = vmatprep.subr.mxu0 0.0
        %4541 = vmatpush1.msra.mxu0 0.0
        %4542 = vmatprep.subr.mxu0 0.0
        %4543 = vmatpush1.msra.mxu0 0.0
        %4544 = vmatprep.subr.mxu0 0.0
        %4545 = vmatpush1.msra.mxu0 0.0
        %4546 = vmatprep.subr.mxu0 0.0
        %4547 = vmatpush1.msra.mxu0 0.0
        %4548 = vmatprep.subr.mxu0 0.0
        %4549 = vmatpush1.msra.mxu0 0.0
        %4550 = vmatprep.subr.mxu0 0.0
        %4551 = vmatpush1.msra.mxu0 0.0
        %4552 = vmatprep.subr.mxu0 0.0
        %4553 = vmatpush1.msra.mxu0 0.0
        %4554 = vmatprep.subr.mxu0 0.0
        %4555 = vmatpush1.msra.mxu0 0.0
        %4556 = vmatprep.subr.mxu0 0.0
        %4557 = vmatpush1.msra.mxu0 0.0
        %4558 = vmatprep.subr.mxu0 0.0
        %4559 = vmatpush1.msra.mxu0 0.0
        %4560 = vmatprep.subr.mxu0 0.0
        %4561 = vmatpush1.msra.mxu0 0.0
        %4562 = vmatprep.subr.mxu0 0.0
        %4563 = vmatpush1.msra.mxu0 0.0
        %4564 = vmatprep.subr.mxu0 0.0
        %4565 = vmatpush1.msra.mxu0 0.0
        %4566 = vmatprep.subr.mxu0 0.0
        %4567 = vmatpush1.msra.mxu0 0.0
        %4568 = vmatprep.subr.mxu0 0.0
        %4569 = vmatpush1.msra.mxu0 0.0
        %4570 = vmatprep.subr.mxu0 0.0
        %4571 = vmatpush1.msra.mxu0 0.0
        %4572 = vmatprep.subr.mxu0 0.0
        %4573 = vmatpush1.msra.mxu0 0.0
        %4574 = vmatprep.subr.mxu0 0.0
        %4575 = vmatpush1.msra.mxu0 0.0
        %4576 = vmatprep.subr.mxu0 0.0
        %4577 = vmatpush1.msra.mxu0 0.0
        %4578 = vmatprep.subr.mxu0 0.0
        %4579 = vmatpush1.msra.mxu0 0.0
        %4580 = vmatprep.subr.mxu0 0.0
        %4581 = vmatpush1.msra.mxu0 0.0
        %4582 = vmatprep.subr.mxu0 0.0
        %4583 = vmatpush1.msra.mxu0 0.0
        %4584 = vmatprep.subr.mxu0 0.0
        %4585 = vmatpush1.msra.mxu0 0.0
        %4586 = vmatprep.subr.mxu0 0.0
        %4587 = vmatpush1.msra.mxu0 0.0
        %4588 = vmatprep.subr.mxu0 0.0
        %4589 = vmatpush1.msra.mxu0 0.0
        %4590 = vmatprep.subr.mxu0 0.0
        %4591 = vmatpush1.msra.mxu0 0.0
        %4592 = vmatprep.mubr.f32.mxu0 0.0
        %v4593 = vand.u32 %v4525, 4294901760
        %v4594 = vsub.f32 %v4525, %v4593
        %v4595 = vand.u32 %v4594, 4294901760
        %v4596 = vsub.f32 %v4594, %v4595
        %v4597 = vand.u32 %v4596, 4294901760
        %4598 = vmatmul.mubr.f32.gmra.mrb[0].mxu0 %v4597
        %v4599 = vpop.f32.mrb[0].mxu0
        %v4600 = vadd.f32 0.0, %v4599
        %v4601 = vpop.f32.mrb[0].mxu0
        %4602 = vdwg.mxu0
        %4603 = vmatprep.subr.mxu0 0.0
        %v4604 = vand.u32 %v4522, 4294901760
        %v4605 = vsub.f32 %v4522, %v4604
        %v4606 = vand.u32 %v4605, 4294901760
        %v4607 = vsub.f32 %v4605, %v4606
        %v4608 = vand.u32 %v4607, 4294901760
        %4609 = vmatpush1.msra.mxu0 %v4608
        %4610 = vmatprep.subr.mxu0 0.0
        %4611 = vmatpush1.msra.mxu0 0.0
        %4612 = vmatprep.subr.mxu0 0.0
        %4613 = vmatpush1.msra.mxu0 0.0
        %4614 = vmatprep.subr.mxu0 0.0
        %4615 = vmatpush1.msra.mxu0 0.0
        %4616 = vmatprep.subr.mxu0 0.0
        %4617 = vmatpush1.msra.mxu0 0.0
        %4618 = vmatprep.subr.mxu0 0.0
        %4619 = vmatpush1.msra.mxu0 0.0
        %4620 = vmatprep.subr.mxu0 0.0
        %4621 = vmatpush1.msra.mxu0 0.0
        %4622 = vmatprep.subr.mxu0 0.0
        %4623 = vmatpush1.msra.mxu0 0.0
        %4624 = vmatprep.subr.mxu0 0.0
        %4625 = vmatpush1.msra.mxu0 0.0
        %4626 = vmatprep.subr.mxu0 0.0
        %4627 = vmatpush1.msra.mxu0 0.0
        %4628 = vmatprep.subr.mxu0 0.0
        %4629 = vmatpush1.msra.mxu0 0.0
        %4630 = vmatprep.subr.mxu0 0.0
        %4631 = vmatpush1.msra.mxu0 0.0
        %4632 = vmatprep.subr.mxu0 0.0
        %4633 = vmatpush1.msra.mxu0 0.0
        %4634 = vmatprep.subr.mxu0 0.0
        %4635 = vmatpush1.msra.mxu0 0.0
        %4636 = vmatprep.subr.mxu0 0.0
        %4637 = vmatpush1.msra.mxu0 0.0
        %4638 = vmatprep.subr.mxu0 0.0
        %4639 = vmatpush1.msra.mxu0 0.0
        %4640 = vmatprep.subr.mxu0 0.0
        %4641 = vmatpush1.msra.mxu0 0.0
        %4642 = vmatprep.subr.mxu0 0.0
        %4643 = vmatpush1.msra.mxu0 0.0
        %4644 = vmatprep.subr.mxu0 0.0
        %4645 = vmatpush1.msra.mxu0 0.0
        %4646 = vmatprep.subr.mxu0 0.0
        %4647 = vmatpush1.msra.mxu0 0.0
        %4648 = vmatprep.subr.mxu0 0.0
        %4649 = vmatpush1.msra.mxu0 0.0
        %4650 = vmatprep.subr.mxu0 0.0
        %4651 = vmatpush1.msra.mxu0 0.0
        %4652 = vmatprep.subr.mxu0 0.0
        %4653 = vmatpush1.msra.mxu0 0.0
        %4654 = vmatprep.subr.mxu0 0.0
        %4655 = vmatpush1.msra.mxu0 0.0
        %4656 = vmatprep.subr.mxu0 0.0
        %4657 = vmatpush1.msra.mxu0 0.0
        %4658 = vmatprep.subr.mxu0 0.0
        %4659 = vmatpush1.msra.mxu0 0.0
        %4660 = vmatprep.subr.mxu0 0.0
        %4661 = vmatpush1.msra.mxu0 0.0
        %4662 = vmatprep.subr.mxu0 0.0
        %4663 = vmatpush1.msra.mxu0 0.0
        %4664 = vmatprep.subr.mxu0 0.0
        %4665 = vmatpush1.msra.mxu0 0.0
        %4666 = vmatprep.subr.mxu0 0.0
        %4667 = vmatpush1.msra.mxu0 0.0
        %4668 = vmatprep.subr.mxu0 0.0
        %4669 = vmatpush1.msra.mxu0 0.0
        %4670 = vmatprep.subr.mxu0 0.0
        %4671 = vmatpush1.msra.mxu0 0.0
        %4672 = vmatprep.mubr.f32.mxu0 0.0
        %v4673 = vand.u32 %v4525, 4294901760
        %4674 = vmatmul.mubr.f32.gmra.mrb[0].mxu0 %v4673
        %v4675 = vpop.f32.mrb[0].mxu0
        %v4676 = vadd.f32 %v4600, %v4675
        %v4677 = vpop.f32.mrb[0].mxu0
        %4678 = vdwg.mxu0
        %4679 = vmatprep.subr.mxu0 0.0
        %v4680 = vand.u32 %v4522, 4294901760
        %v4681 = vsub.f32 %v4522, %v4680
        %4682 = vmatpush1.msra.mxu0 %v4681
        %4683 = vmatprep.subr.mxu0 0.0
        %4684 = vmatpush1.msra.mxu0 0.0
        %4685 = vmatprep.subr.mxu0 0.0
        %4686 = vmatpush1.msra.mxu0 0.0
        %4687 = vmatprep.subr.mxu0 0.0
        %4688 = vmatpush1.msra.mxu0 0.0
        %4689 = vmatprep.subr.mxu0 0.0
        %4690 = vmatpush1.msra.mxu0 0.0
        %4691 = vmatprep.subr.mxu0 0.0
        %4692 = vmatpush1.msra.mxu0 0.0
        %4693 = vmatprep.subr.mxu0 0.0
        %4694 = vmatpush1.msra.mxu0 0.0
        %4695 = vmatprep.subr.mxu0 0.0
        %4696 = vmatpush1.msra.mxu0 0.0
        %4697 = vmatprep.subr.mxu0 0.0
        %4698 = vmatpush1.msra.mxu0 0.0
        %4699 = vmatprep.subr.mxu0 0.0
        %4700 = vmatpush1.msra.mxu0 0.0
        %4701 = vmatprep.subr.mxu0 0.0
        %4702 = vmatpush1.msra.mxu0 0.0
        %4703 = vmatprep.subr.mxu0 0.0
        %4704 = vmatpush1.msra.mxu0 0.0
        %4705 = vmatprep.subr.mxu0 0.0
        %4706 = vmatpush1.msra.mxu0 0.0
        %4707 = vmatprep.subr.mxu0 0.0
        %4708 = vmatpush1.msra.mxu0 0.0
        %4709 = vmatprep.subr.mxu0 0.0
        %4710 = vmatpush1.msra.mxu0 0.0
        %4711 = vmatprep.subr.mxu0 0.0
        %4712 = vmatpush1.msra.mxu0 0.0
        %4713 = vmatprep.subr.mxu0 0.0
        %4714 = vmatpush1.msra.mxu0 0.0
        %4715 = vmatprep.subr.mxu0 0.0
        %4716 = vmatpush1.msra.mxu0 0.0
        %4717 = vmatprep.subr.mxu0 0.0
        %4718 = vmatpush1.msra.mxu0 0.0
        %4719 = vmatprep.subr.mxu0 0.0
        %4720 = vmatpush1.msra.mxu0 0.0
        %4721 = vmatprep.subr.mxu0 0.0
        %4722 = vmatpush1.msra.mxu0 0.0
        %4723 = vmatprep.subr.mxu0 0.0
        %4724 = vmatpush1.msra.mxu0 0.0
        %4725 = vmatprep.subr.mxu0 0.0
        %4726 = vmatpush1.msra.mxu0 0.0
        %4727 = vmatprep.subr.mxu0 0.0
        %4728 = vmatpush1.msra.mxu0 0.0
        %4729 = vmatprep.subr.mxu0 0.0
        %4730 = vmatpush1.msra.mxu0 0.0
        %4731 = vmatprep.subr.mxu0 0.0
        %4732 = vmatpush1.msra.mxu0 0.0
        %4733 = vmatprep.subr.mxu0 0.0
        %4734 = vmatpush1.msra.mxu0 0.0
        %4735 = vmatprep.subr.mxu0 0.0
        %4736 = vmatpush1.msra.mxu0 0.0
        %4737 = vmatprep.subr.mxu0 0.0
        %4738 = vmatpush1.msra.mxu0 0.0
        %4739 = vmatprep.subr.mxu0 0.0
        %4740 = vmatpush1.msra.mxu0 0.0
        %4741 = vmatprep.subr.mxu0 0.0
        %4742 = vmatpush1.msra.mxu0 0.0
        %4743 = vmatprep.subr.mxu0 0.0
        %4744 = vmatpush1.msra.mxu0 0.0
        %4745 = vmatprep.mubr.f32.mxu0 0.0
        %v4746 = vand.u32 %v4525, 4294901760
        %v4747 = vsub.f32 %v4525, %v4746
        %4748 = vmatmul.mubr.f32.gmra.mrb[0].mxu0 %v4747
        %v4749 = vpop.f32.mrb[0].mxu0
        %v4750 = vadd.f32 %v4676, %v4749
        %v4751 = vpop.f32.mrb[0].mxu0
        %4752 = vdwg.mxu0
        %4753 = vmatprep.subr.mxu0 0.0
        %v4754 = vand.u32 %v4522, 4294901760
        %4755 = vmatpush1.msra.mxu0 %v4754
        %4756 = vmatprep.subr.mxu0 0.0
        %4757 = vmatpush1.msra.mxu0 0.0
        %4758 = vmatprep.subr.mxu0 0.0
        %4759 = vmatpush1.msra.mxu0 0.0
        %4760 = vmatprep.subr.mxu0 0.0
        %4761 = vmatpush1.msra.mxu0 0.0
        %4762 = vmatprep.subr.mxu0 0.0
        %4763 = vmatpush1.msra.mxu0 0.0
        %4764 = vmatprep.subr.mxu0 0.0
        %4765 = vmatpush1.msra.mxu0 0.0
        %4766 = vmatprep.subr.mxu0 0.0
        %4767 = vmatpush1.msra.mxu0 0.0
        %4768 = vmatprep.subr.mxu0 0.0
        %4769 = vmatpush1.msra.mxu0 0.0
        %4770 = vmatprep.subr.mxu0 0.0
        %4771 = vmatpush1.msra.mxu0 0.0
        %4772 = vmatprep.subr.mxu0 0.0
        %4773 = vmatpush1.msra.mxu0 0.0
        %4774 = vmatprep.subr.mxu0 0.0
        %4775 = vmatpush1.msra.mxu0 0.0
        %4776 = vmatprep.subr.mxu0 0.0
        %4777 = vmatpush1.msra.mxu0 0.0
        %4778 = vmatprep.subr.mxu0 0.0
        %4779 = vmatpush1.msra.mxu0 0.0
        %4780 = vmatprep.subr.mxu0 0.0
        %4781 = vmatpush1.msra.mxu0 0.0
        %4782 = vmatprep.subr.mxu0 0.0
        %4783 = vmatpush1.msra.mxu0 0.0
        %4784 = vmatprep.subr.mxu0 0.0
        %4785 = vmatpush1.msra.mxu0 0.0
        %4786 = vmatprep.subr.mxu0 0.0
        %4787 = vmatpush1.msra.mxu0 0.0
        %4788 = vmatprep.subr.mxu0 0.0
        %4789 = vmatpush1.msra.mxu0 0.0
        %4790 = vmatprep.subr.mxu0 0.0
        %4791 = vmatpush1.msra.mxu0 0.0
        %4792 = vmatprep.subr.mxu0 0.0
        %4793 = vmatpush1.msra.mxu0 0.0
        %4794 = vmatprep.subr.mxu0 0.0
        %4795 = vmatpush1.msra.mxu0 0.0
        %4796 = vmatprep.subr.mxu0 0.0
        %4797 = vmatpush1.msra.mxu0 0.0
        %4798 = vmatprep.subr.mxu0 0.0
        %4799 = vmatpush1.msra.mxu0 0.0
        %4800 = vmatprep.subr.mxu0 0.0
        %4801 = vmatpush1.msra.mxu0 0.0
        %4802 = vmatprep.subr.mxu0 0.0
        %4803 = vmatpush1.msra.mxu0 0.0
        %4804 = vmatprep.subr.mxu0 0.0
        %4805 = vmatpush1.msra.mxu0 0.0
        %4806 = vmatprep.subr.mxu0 0.0
        %4807 = vmatpush1.msra.mxu0 0.0
        %4808 = vmatprep.subr.mxu0 0.0
        %4809 = vmatpush1.msra.mxu0 0.0
        %4810 = vmatprep.subr.mxu0 0.0
        %4811 = vmatpush1.msra.mxu0 0.0
        %4812 = vmatprep.subr.mxu0 0.0
        %4813 = vmatpush1.msra.mxu0 0.0
        %4814 = vmatprep.subr.mxu0 0.0
        %4815 = vmatpush1.msra.mxu0 0.0
        %4816 = vmatprep.subr.mxu0 0.0
        %4817 = vmatpush1.msra.mxu0 0.0
        %4818 = vmatprep.mubr.f32.mxu0 0.0
        %v4819 = vand.u32 %v4525, 4294901760
        %v4820 = vsub.f32 %v4525, %v4819
        %v4821 = vand.u32 %v4820, 4294901760
        %4822 = vmatmul.mubr.f32.gmra.mrb[0].mxu0 %v4821
        %v4823 = vpop.f32.mrb[0].mxu0
        %v4824 = vadd.f32 %v4750, %v4823
        %v4825 = vpop.f32.mrb[0].mxu0
        %4826 = vdwg.mxu0
        %4827 = vmatprep.subr.mxu0 0.0
        %v4828 = vand.u32 %v4522, 4294901760
        %v4829 = vsub.f32 %v4522, %v4828
        %v4830 = vand.u32 %v4829, 4294901760
        %4831 = vmatpush1.msra.mxu0 %v4830
        %4832 = vmatprep.subr.mxu0 0.0
        %4833 = vmatpush1.msra.mxu0 0.0
        %4834 = vmatprep.subr.mxu0 0.0
        %4835 = vmatpush1.msra.mxu0 0.0
        %4836 = vmatprep.subr.mxu0 0.0
        %4837 = vmatpush1.msra.mxu0 0.0
        %4838 = vmatprep.subr.mxu0 0.0
        %4839 = vmatpush1.msra.mxu0 0.0
        %4840 = vmatprep.subr.mxu0 0.0
        %4841 = vmatpush1.msra.mxu0 0.0
        %4842 = vmatprep.subr.mxu0 0.0
        %4843 = vmatpush1.msra.mxu0 0.0
        %4844 = vmatprep.subr.mxu0 0.0
        %4845 = vmatpush1.msra.mxu0 0.0
        %4846 = vmatprep.subr.mxu0 0.0
        %4847 = vmatpush1.msra.mxu0 0.0
        %4848 = vmatprep.subr.mxu0 0.0
        %4849 = vmatpush1.msra.mxu0 0.0
        %4850 = vmatprep.subr.mxu0 0.0
        %4851 = vmatpush1.msra.mxu0 0.0
        %4852 = vmatprep.subr.mxu0 0.0
        %4853 = vmatpush1.msra.mxu0 0.0
        %4854 = vmatprep.subr.mxu0 0.0
        %4855 = vmatpush1.msra.mxu0 0.0
        %4856 = vmatprep.subr.mxu0 0.0
        %4857 = vmatpush1.msra.mxu0 0.0
        %4858 = vmatprep.subr.mxu0 0.0
        %4859 = vmatpush1.msra.mxu0 0.0
        %4860 = vmatprep.subr.mxu0 0.0
        %4861 = vmatpush1.msra.mxu0 0.0
        %4862 = vmatprep.subr.mxu0 0.0
        %4863 = vmatpush1.msra.mxu0 0.0
        %4864 = vmatprep.subr.mxu0 0.0
        %4865 = vmatpush1.msra.mxu0 0.0
        %4866 = vmatprep.subr.mxu0 0.0
        %4867 = vmatpush1.msra.mxu0 0.0
        %4868 = vmatprep.subr.mxu0 0.0
        %4869 = vmatpush1.msra.mxu0 0.0
        %4870 = vmatprep.subr.mxu0 0.0
        %4871 = vmatpush1.msra.mxu0 0.0
        %4872 = vmatprep.subr.mxu0 0.0
        %4873 = vmatpush1.msra.mxu0 0.0
        %4874 = vmatprep.subr.mxu0 0.0
        %4875 = vmatpush1.msra.mxu0 0.0
        %4876 = vmatprep.subr.mxu0 0.0
        %4877 = vmatpush1.msra.mxu0 0.0
        %4878 = vmatprep.subr.mxu0 0.0
        %4879 = vmatpush1.msra.mxu0 0.0
        %4880 = vmatprep.subr.mxu0 0.0
        %4881 = vmatpush1.msra.mxu0 0.0
        %4882 = vmatprep.subr.mxu0 0.0
        %4883 = vmatpush1.msra.mxu0 0.0
        %4884 = vmatprep.subr.mxu0 0.0
        %4885 = vmatpush1.msra.mxu0 0.0
        %4886 = vmatprep.subr.mxu0 0.0
        %4887 = vmatpush1.msra.mxu0 0.0
        %4888 = vmatprep.subr.mxu0 0.0
        %4889 = vmatpush1.msra.mxu0 0.0
        %4890 = vmatprep.subr.mxu0 0.0
        %4891 = vmatpush1.msra.mxu0 0.0
        %4892 = vmatprep.subr.mxu0 0.0
        %4893 = vmatpush1.msra.mxu0 0.0
        %4894 = vmatprep.mubr.f32.mxu0 0.0
        %v4895 = vand.u32 %v4525, 4294901760
        %4896 = vmatmul.mubr.f32.gmra.mrb[0].mxu0 %v4895
        %v4897 = vpop.f32.mrb[0].mxu0
        %v4898 = vadd.f32 %v4824, %v4897
        %v4899 = vpop.f32.mrb[0].mxu0
        %4900 = vdwg.mxu0
        %4901 = vmatprep.subr.mxu0 0.0
        %v4902 = vand.u32 %v4522, 4294901760
        %4903 = vmatpush1.msra.mxu0 %v4902
        %4904 = vmatprep.subr.mxu0 0.0
        %4905 = vmatpush1.msra.mxu0 0.0
        %4906 = vmatprep.subr.mxu0 0.0
        %4907 = vmatpush1.msra.mxu0 0.0
        %4908 = vmatprep.subr.mxu0 0.0
        %4909 = vmatpush1.msra.mxu0 0.0
        %4910 = vmatprep.subr.mxu0 0.0
        %4911 = vmatpush1.msra.mxu0 0.0
        %4912 = vmatprep.subr.mxu0 0.0
        %4913 = vmatpush1.msra.mxu0 0.0
        %4914 = vmatprep.subr.mxu0 0.0
        %4915 = vmatpush1.msra.mxu0 0.0
        %4916 = vmatprep.subr.mxu0 0.0
        %4917 = vmatpush1.msra.mxu0 0.0
        %4918 = vmatprep.subr.mxu0 0.0
        %4919 = vmatpush1.msra.mxu0 0.0
        %4920 = vmatprep.subr.mxu0 0.0
        %4921 = vmatpush1.msra.mxu0 0.0
        %4922 = vmatprep.subr.mxu0 0.0
        %4923 = vmatpush1.msra.mxu0 0.0
        %4924 = vmatprep.subr.mxu0 0.0
        %4925 = vmatpush1.msra.mxu0 0.0
        %4926 = vmatprep.subr.mxu0 0.0
        %4927 = vmatpush1.msra.mxu0 0.0
        %4928 = vmatprep.subr.mxu0 0.0
        %4929 = vmatpush1.msra.mxu0 0.0
        %4930 = vmatprep.subr.mxu0 0.0
        %4931 = vmatpush1.msra.mxu0 0.0
        %4932 = vmatprep.subr.mxu0 0.0
        %4933 = vmatpush1.msra.mxu0 0.0
        %4934 = vmatprep.subr.mxu0 0.0
        %4935 = vmatpush1.msra.mxu0 0.0
        %4936 = vmatprep.subr.mxu0 0.0
        %4937 = vmatpush1.msra.mxu0 0.0
        %4938 = vmatprep.subr.mxu0 0.0
        %4939 = vmatpush1.msra.mxu0 0.0
        %4940 = vmatprep.subr.mxu0 0.0
        %4941 = vmatpush1.msra.mxu0 0.0
        %4942 = vmatprep.subr.mxu0 0.0
        %4943 = vmatpush1.msra.mxu0 0.0
        %4944 = vmatprep.subr.mxu0 0.0
        %4945 = vmatpush1.msra.mxu0 0.0
        %4946 = vmatprep.subr.mxu0 0.0
        %4947 = vmatpush1.msra.mxu0 0.0
        %4948 = vmatprep.subr.mxu0 0.0
        %4949 = vmatpush1.msra.mxu0 0.0
        %4950 = vmatprep.subr.mxu0 0.0
        %4951 = vmatpush1.msra.mxu0 0.0
        %4952 = vmatprep.subr.mxu0 0.0
        %4953 = vmatpush1.msra.mxu0 0.0
        %4954 = vmatprep.subr.mxu0 0.0
        %4955 = vmatpush1.msra.mxu0 0.0
        %4956 = vmatprep.subr.mxu0 0.0
        %4957 = vmatpush1.msra.mxu0 0.0
        %4958 = vmatprep.subr.mxu0 0.0
        %4959 = vmatpush1.msra.mxu0 0.0
        %4960 = vmatprep.subr.mxu0 0.0
        %4961 = vmatpush1.msra.mxu0 0.0
        %4962 = vmatprep.subr.mxu0 0.0
        %4963 = vmatpush1.msra.mxu0 0.0
        %4964 = vmatprep.subr.mxu0 0.0
        %4965 = vmatpush1.msra.mxu0 0.0
        %4966 = vmatprep.mubr.f32.mxu0 0.0
        %v4967 = vand.u32 %v4525, 4294901760
        %4968 = vmatmul.mubr.f32.gmra.mrb[0].mxu0 %v4967
        %v4969 = vpop.f32.mrb[0].mxu0
        %v4970 = vadd.f32 %v4898, %v4969
        %v4971 = vpop.f32.mrb[0].mxu0
        %4972 = vdwg.mxu0
        %v4973 = vrcp.pop %v4519
        %v4974 = vmul.f32 %v4970, %v4973
        %v4976 = vsel %vm3080, %v4974, 0
        %4978 = vmatprep.subr.mxu0 0.0
        %v4979 = vand.u32 %v2996, 4294901760
        %4980 = vmatpush1.msra.mxu0 %v4979
        %4981 = vmatprep.subr.mxu0 0.0
        %4982 = vmatpush1.msra.mxu0 0.0
        %4983 = vmatprep.subr.mxu0 0.0
        %4984 = vmatpush1.msra.mxu0 0.0
        %4985 = vmatprep.subr.mxu0 0.0
        %4986 = vmatpush1.msra.mxu0 0.0
        %4987 = vmatprep.subr.mxu0 0.0
        %4988 = vmatpush1.msra.mxu0 0.0
        %4989 = vmatprep.subr.mxu0 0.0
        %4990 = vmatpush1.msra.mxu0 0.0
        %4991 = vmatprep.subr.mxu0 0.0
        %4992 = vmatpush1.msra.mxu0 0.0
        %4993 = vmatprep.subr.mxu0 0.0
        %4994 = vmatpush1.msra.mxu0 0.0
        %4995 = vmatprep.subr.mxu0 0.0
        %4996 = vmatpush1.msra.mxu0 0.0
        %4997 = vmatprep.subr.mxu0 0.0
        %4998 = vmatpush1.msra.mxu0 0.0
        %4999 = vmatprep.subr.mxu0 0.0
        %5000 = vmatpush1.msra.mxu0 0.0
        %5001 = vmatprep.subr.mxu0 0.0
        %5002 = vmatpush1.msra.mxu0 0.0
        %5003 = vmatprep.subr.mxu0 0.0
        %5004 = vmatpush1.msra.mxu0 0.0
        %5005 = vmatprep.subr.mxu0 0.0
        %5006 = vmatpush1.msra.mxu0 0.0
        %5007 = vmatprep.subr.mxu0 0.0
        %5008 = vmatpush1.msra.mxu0 0.0
        %5009 = vmatprep.subr.mxu0 0.0
        %5010 = vmatpush1.msra.mxu0 0.0
        %5011 = vmatprep.subr.mxu0 0.0
        %5012 = vmatpush1.msra.mxu0 0.0
        %5013 = vmatprep.subr.mxu0 0.0
        %5014 = vmatpush1.msra.mxu0 0.0
        %5015 = vmatprep.subr.mxu0 0.0
        %5016 = vmatpush1.msra.mxu0 0.0
        %5017 = vmatprep.subr.mxu0 0.0
        %5018 = vmatpush1.msra.mxu0 0.0
        %5019 = vmatprep.subr.mxu0 0.0
        %5020 = vmatpush1.msra.mxu0 0.0
        %5021 = vmatprep.subr.mxu0 0.0
        %5022 = vmatpush1.msra.mxu0 0.0
        %5023 = vmatprep.subr.mxu0 0.0
        %5024 = vmatpush1.msra.mxu0 0.0
        %5025 = vmatprep.subr.mxu0 0.0
        %5026 = vmatpush1.msra.mxu0 0.0
        %5027 = vmatprep.subr.mxu0 0.0
        %5028 = vmatpush1.msra.mxu0 0.0
        %5029 = vmatprep.subr.mxu0 0.0
        %5030 = vmatpush1.msra.mxu0 0.0
        %5031 = vmatprep.subr.mxu0 0.0
        %5032 = vmatpush1.msra.mxu0 0.0
        %5033 = vmatprep.subr.mxu0 0.0
        %5034 = vmatpush1.msra.mxu0 0.0
        %5035 = vmatprep.subr.mxu0 0.0
        %5036 = vmatpush1.msra.mxu0 0.0
        %5037 = vmatprep.subr.mxu0 0.0
        %5038 = vmatpush1.msra.mxu0 0.0
        %5039 = vmatprep.subr.mxu0 0.0
        %5040 = vmatpush1.msra.mxu0 0.0
        %5041 = vmatprep.subr.mxu0 0.0
        %5042 = vmatpush1.msra.mxu0 0.0
        %5043 = vmatprep.mubr.f32.mxu0 0.0
        %v5044 = vand.u32 %v4976, 4294901760
        %v5045 = vsub.f32 %v4976, %v5044
        %v5046 = vand.u32 %v5045, 4294901760
        %v5047 = vsub.f32 %v5045, %v5046
        %v5048 = vand.u32 %v5047, 4294901760
        %5049 = vmatmul.mubr.f32.gmra.mrb[0].mxu0 %v5048
        %v5050 = vpop.f32.mrb[0].mxu0
        %v5051 = vadd.f32 0.0, %v5050
        %v5052 = vpop.f32.mrb[0].mxu0
        %5053 = vdwg.mxu0
        %5054 = vmatprep.subr.mxu0 0.0
        %v5055 = vand.u32 %v2996, 4294901760
        %v5056 = vsub.f32 %v2996, %v5055
        %v5057 = vand.u32 %v5056, 4294901760
        %v5058 = vsub.f32 %v5056, %v5057
        %v5059 = vand.u32 %v5058, 4294901760
        %5060 = vmatpush1.msra.mxu0 %v5059
        %5061 = vmatprep.subr.mxu0 0.0
        %5062 = vmatpush1.msra.mxu0 0.0
        %5063 = vmatprep.subr.mxu0 0.0
        %5064 = vmatpush1.msra.mxu0 0.0
        %5065 = vmatprep.subr.mxu0 0.0
        %5066 = vmatpush1.msra.mxu0 0.0
        %5067 = vmatprep.subr.mxu0 0.0
        %5068 = vmatpush1.msra.mxu0 0.0
        %5069 = vmatprep.subr.mxu0 0.0
        %5070 = vmatpush1.msra.mxu0 0.0
        %5071 = vmatprep.subr.mxu0 0.0
        %5072 = vmatpush1.msra.mxu0 0.0
        %5073 = vmatprep.subr.mxu0 0.0
        %5074 = vmatpush1.msra.mxu0 0.0
        %5075 = vmatprep.subr.mxu0 0.0
        %5076 = vmatpush1.msra.mxu0 0.0
        %5077 = vmatprep.subr.mxu0 0.0
        %5078 = vmatpush1.msra.mxu0 0.0
        %5079 = vmatprep.subr.mxu0 0.0
        %5080 = vmatpush1.msra.mxu0 0.0
        %5081 = vmatprep.subr.mxu0 0.0
        %5082 = vmatpush1.msra.mxu0 0.0
        %5083 = vmatprep.subr.mxu0 0.0
        %5084 = vmatpush1.msra.mxu0 0.0
        %5085 = vmatprep.subr.mxu0 0.0
        %5086 = vmatpush1.msra.mxu0 0.0
        %5087 = vmatprep.subr.mxu0 0.0
        %5088 = vmatpush1.msra.mxu0 0.0
        %5089 = vmatprep.subr.mxu0 0.0
        %5090 = vmatpush1.msra.mxu0 0.0
        %5091 = vmatprep.subr.mxu0 0.0
        %5092 = vmatpush1.msra.mxu0 0.0
        %5093 = vmatprep.subr.mxu0 0.0
        %5094 = vmatpush1.msra.mxu0 0.0
        %5095 = vmatprep.subr.mxu0 0.0
        %5096 = vmatpush1.msra.mxu0 0.0
        %5097 = vmatprep.subr.mxu0 0.0
        %5098 = vmatpush1.msra.mxu0 0.0
        %5099 = vmatprep.subr.mxu0 0.0
        %5100 = vmatpush1.msra.mxu0 0.0
        %5101 = vmatprep.subr.mxu0 0.0
        %5102 = vmatpush1.msra.mxu0 0.0
        %5103 = vmatprep.subr.mxu0 0.0
        %5104 = vmatpush1.msra.mxu0 0.0
        %5105 = vmatprep.subr.mxu0 0.0
        %5106 = vmatpush1.msra.mxu0 0.0
        %5107 = vmatprep.subr.mxu0 0.0
        %5108 = vmatpush1.msra.mxu0 0.0
        %5109 = vmatprep.subr.mxu0 0.0
        %5110 = vmatpush1.msra.mxu0 0.0
        %5111 = vmatprep.subr.mxu0 0.0
        %5112 = vmatpush1.msra.mxu0 0.0
        %5113 = vmatprep.subr.mxu0 0.0
        %5114 = vmatpush1.msra.mxu0 0.0
        %5115 = vmatprep.subr.mxu0 0.0
        %5116 = vmatpush1.msra.mxu0 0.0
        %5117 = vmatprep.subr.mxu0 0.0
        %5118 = vmatpush1.msra.mxu0 0.0
        %5119 = vmatprep.subr.mxu0 0.0
        %5120 = vmatpush1.msra.mxu0 0.0
        %5121 = vmatprep.subr.mxu0 0.0
        %5122 = vmatpush1.msra.mxu0 0.0
        %5123 = vmatprep.mubr.f32.mxu0 0.0
        %v5124 = vand.u32 %v4976, 4294901760
        %5125 = vmatmul.mubr.f32.gmra.mrb[0].mxu0 %v5124
        %v5126 = vpop.f32.mrb[0].mxu0
        %v5127 = vadd.f32 %v5051, %v5126
        %v5128 = vpop.f32.mrb[0].mxu0
        %5129 = vdwg.mxu0
        %5130 = vmatprep.subr.mxu0 0.0
        %v5131 = vand.u32 %v2996, 4294901760
        %v5132 = vsub.f32 %v2996, %v5131
        %5133 = vmatpush1.msra.mxu0 %v5132
        %5134 = vmatprep.subr.mxu0 0.0
        %5135 = vmatpush1.msra.mxu0 0.0
        %5136 = vmatprep.subr.mxu0 0.0
        %5137 = vmatpush1.msra.mxu0 0.0
        %5138 = vmatprep.subr.mxu0 0.0
        %5139 = vmatpush1.msra.mxu0 0.0
        %5140 = vmatprep.subr.mxu0 0.0
        %5141 = vmatpush1.msra.mxu0 0.0
        %5142 = vmatprep.subr.mxu0 0.0
        %5143 = vmatpush1.msra.mxu0 0.0
        %5144 = vmatprep.subr.mxu0 0.0
        %5145 = vmatpush1.msra.mxu0 0.0
        %5146 = vmatprep.subr.mxu0 0.0
        %5147 = vmatpush1.msra.mxu0 0.0
        %5148 = vmatprep.subr.mxu0 0.0
        %5149 = vmatpush1.msra.mxu0 0.0
        %5150 = vmatprep.subr.mxu0 0.0
        %5151 = vmatpush1.msra.mxu0 0.0
        %5152 = vmatprep.subr.mxu0 0.0
        %5153 = vmatpush1.msra.mxu0 0.0
        %5154 = vmatprep.subr.mxu0 0.0
        %5155 = vmatpush1.msra.mxu0 0.0
        %5156 = vmatprep.subr.mxu0 0.0
        %5157 = vmatpush1.msra.mxu0 0.0
        %5158 = vmatprep.subr.mxu0 0.0
        %5159 = vmatpush1.msra.mxu0 0.0
        %5160 = vmatprep.subr.mxu0 0.0
        %5161 = vmatpush1.msra.mxu0 0.0
        %5162 = vmatprep.subr.mxu0 0.0
        %5163 = vmatpush1.msra.mxu0 0.0
        %5164 = vmatprep.subr.mxu0 0.0
        %5165 = vmatpush1.msra.mxu0 0.0
        %5166 = vmatprep.subr.mxu0 0.0
        %5167 = vmatpush1.msra.mxu0 0.0
        %5168 = vmatprep.subr.mxu0 0.0
        %5169 = vmatpush1.msra.mxu0 0.0
        %5170 = vmatprep.subr.mxu0 0.0
        %5171 = vmatpush1.msra.mxu0 0.0
        %5172 = vmatprep.subr.mxu0 0.0
        %5173 = vmatpush1.msra.mxu0 0.0
        %5174 = vmatprep.subr.mxu0 0.0
        %5175 = vmatpush1.msra.mxu0 0.0
        %5176 = vmatprep.subr.mxu0 0.0
        %5177 = vmatpush1.msra.mxu0 0.0
        %5178 = vmatprep.subr.mxu0 0.0
        %5179 = vmatpush1.msra.mxu0 0.0
        %5180 = vmatprep.subr.mxu0 0.0
        %5181 = vmatpush1.msra.mxu0 0.0
        %5182 = vmatprep.subr.mxu0 0.0
        %5183 = vmatpush1.msra.mxu0 0.0
        %5184 = vmatprep.subr.mxu0 0.0
        %5185 = vmatpush1.msra.mxu0 0.0
        %5186 = vmatprep.subr.mxu0 0.0
        %5187 = vmatpush1.msra.mxu0 0.0
        %5188 = vmatprep.subr.mxu0 0.0
        %5189 = vmatpush1.msra.mxu0 0.0
        %5190 = vmatprep.subr.mxu0 0.0
        %5191 = vmatpush1.msra.mxu0 0.0
        %5192 = vmatprep.subr.mxu0 0.0
        %5193 = vmatpush1.msra.mxu0 0.0
        %5194 = vmatprep.subr.mxu0 0.0
        %5195 = vmatpush1.msra.mxu0 0.0
        %5196 = vmatprep.mubr.f32.mxu0 0.0
        %v5197 = vand.u32 %v4976, 4294901760
        %v5198 = vsub.f32 %v4976, %v5197
        %5199 = vmatmul.mubr.f32.gmra.mrb[0].mxu0 %v5198
        %v5200 = vpop.f32.mrb[0].mxu0
        %v5201 = vadd.f32 %v5127, %v5200
        %v5202 = vpop.f32.mrb[0].mxu0
        %5203 = vdwg.mxu0
        %5204 = vmatprep.subr.mxu0 0.0
        %v5205 = vand.u32 %v2996, 4294901760
        %5206 = vmatpush1.msra.mxu0 %v5205
        %5207 = vmatprep.subr.mxu0 0.0
        %5208 = vmatpush1.msra.mxu0 0.0
        %5209 = vmatprep.subr.mxu0 0.0
        %5210 = vmatpush1.msra.mxu0 0.0
        %5211 = vmatprep.subr.mxu0 0.0
        %5212 = vmatpush1.msra.mxu0 0.0
        %5213 = vmatprep.subr.mxu0 0.0
        %5214 = vmatpush1.msra.mxu0 0.0
        %5215 = vmatprep.subr.mxu0 0.0
        %5216 = vmatpush1.msra.mxu0 0.0
        %5217 = vmatprep.subr.mxu0 0.0
        %5218 = vmatpush1.msra.mxu0 0.0
        %5219 = vmatprep.subr.mxu0 0.0
        %5220 = vmatpush1.msra.mxu0 0.0
        %5221 = vmatprep.subr.mxu0 0.0
        %5222 = vmatpush1.msra.mxu0 0.0
        %5223 = vmatprep.subr.mxu0 0.0
        %5224 = vmatpush1.msra.mxu0 0.0
        %5225 = vmatprep.subr.mxu0 0.0
        %5226 = vmatpush1.msra.mxu0 0.0
        %5227 = vmatprep.subr.mxu0 0.0
        %5228 = vmatpush1.msra.mxu0 0.0
        %5229 = vmatprep.subr.mxu0 0.0
        %5230 = vmatpush1.msra.mxu0 0.0
        %5231 = vmatprep.subr.mxu0 0.0
        %5232 = vmatpush1.msra.mxu0 0.0
        %5233 = vmatprep.subr.mxu0 0.0
        %5234 = vmatpush1.msra.mxu0 0.0
        %5235 = vmatprep.subr.mxu0 0.0
        %5236 = vmatpush1.msra.mxu0 0.0
        %5237 = vmatprep.subr.mxu0 0.0
        %5238 = vmatpush1.msra.mxu0 0.0
        %5239 = vmatprep.subr.mxu0 0.0
        %5240 = vmatpush1.msra.mxu0 0.0
        %5241 = vmatprep.subr.mxu0 0.0
        %5242 = vmatpush1.msra.mxu0 0.0
        %5243 = vmatprep.subr.mxu0 0.0
        %5244 = vmatpush1.msra.mxu0 0.0
        %5245 = vmatprep.subr.mxu0 0.0
        %5246 = vmatpush1.msra.mxu0 0.0
        %5247 = vmatprep.subr.mxu0 0.0
        %5248 = vmatpush1.msra.mxu0 0.0
        %5249 = vmatprep.subr.mxu0 0.0
        %5250 = vmatpush1.msra.mxu0 0.0
        %5251 = vmatprep.subr.mxu0 0.0
        %5252 = vmatpush1.msra.mxu0 0.0
        %5253 = vmatprep.subr.mxu0 0.0
        %5254 = vmatpush1.msra.mxu0 0.0
        %5255 = vmatprep.subr.mxu0 0.0
        %5256 = vmatpush1.msra.mxu0 0.0
        %5257 = vmatprep.subr.mxu0 0.0
        %5258 = vmatpush1.msra.mxu0 0.0
        %5259 = vmatprep.subr.mxu0 0.0
        %5260 = vmatpush1.msra.mxu0 0.0
        %5261 = vmatprep.subr.mxu0 0.0
        %5262 = vmatpush1.msra.mxu0 0.0
        %5263 = vmatprep.subr.mxu0 0.0
        %5264 = vmatpush1.msra.mxu0 0.0
        %5265 = vmatprep.subr.mxu0 0.0
        %5266 = vmatpush1.msra.mxu0 0.0
        %5267 = vmatprep.subr.mxu0 0.0
        %5268 = vmatpush1.msra.mxu0 0.0
        %5269 = vmatprep.mubr.f32.mxu0 0.0
        %v5270 = vand.u32 %v4976, 4294901760
        %v5271 = vsub.f32 %v4976, %v5270
        %v5272 = vand.u32 %v5271, 4294901760
        %5273 = vmatmul.mubr.f32.gmra.mrb[0].mxu0 %v5272
        %v5274 = vpop.f32.mrb[0].mxu0
        %v5275 = vadd.f32 %v5201, %v5274
        %v5276 = vpop.f32.mrb[0].mxu0
        %5277 = vdwg.mxu0
        %5278 = vmatprep.subr.mxu0 0.0
        %v5279 = vand.u32 %v2996, 4294901760
        %v5280 = vsub.f32 %v2996, %v5279
        %v5281 = vand.u32 %v5280, 4294901760
        %5282 = vmatpush1.msra.mxu0 %v5281
        %5283 = vmatprep.subr.mxu0 0.0
        %5284 = vmatpush1.msra.mxu0 0.0
        %5285 = vmatprep.subr.mxu0 0.0
        %5286 = vmatpush1.msra.mxu0 0.0
        %5287 = vmatprep.subr.mxu0 0.0
        %5288 = vmatpush1.msra.mxu0 0.0
        %5289 = vmatprep.subr.mxu0 0.0
        %5290 = vmatpush1.msra.mxu0 0.0
        %5291 = vmatprep.subr.mxu0 0.0
        %5292 = vmatpush1.msra.mxu0 0.0
        %5293 = vmatprep.subr.mxu0 0.0
        %5294 = vmatpush1.msra.mxu0 0.0
        %5295 = vmatprep.subr.mxu0 0.0
        %5296 = vmatpush1.msra.mxu0 0.0
        %5297 = vmatprep.subr.mxu0 0.0
        %5298 = vmatpush1.msra.mxu0 0.0
        %5299 = vmatprep.subr.mxu0 0.0
        %5300 = vmatpush1.msra.mxu0 0.0
        %5301 = vmatprep.subr.mxu0 0.0
        %5302 = vmatpush1.msra.mxu0 0.0
        %5303 = vmatprep.subr.mxu0 0.0
        %5304 = vmatpush1.msra.mxu0 0.0
        %5305 = vmatprep.subr.mxu0 0.0
        %5306 = vmatpush1.msra.mxu0 0.0
        %5307 = vmatprep.subr.mxu0 0.0
        %5308 = vmatpush1.msra.mxu0 0.0
        %5309 = vmatprep.subr.mxu0 0.0
        %5310 = vmatpush1.msra.mxu0 0.0
        %5311 = vmatprep.subr.mxu0 0.0
        %5312 = vmatpush1.msra.mxu0 0.0
        %5313 = vmatprep.subr.mxu0 0.0
        %5314 = vmatpush1.msra.mxu0 0.0
        %5315 = vmatprep.subr.mxu0 0.0
        %5316 = vmatpush1.msra.mxu0 0.0
        %5317 = vmatprep.subr.mxu0 0.0
        %5318 = vmatpush1.msra.mxu0 0.0
        %5319 = vmatprep.subr.mxu0 0.0
        %5320 = vmatpush1.msra.mxu0 0.0
        %5321 = vmatprep.subr.mxu0 0.0
        %5322 = vmatpush1.msra.mxu0 0.0
        %5323 = vmatprep.subr.mxu0 0.0
        %5324 = vmatpush1.msra.mxu0 0.0
        %5325 = vmatprep.subr.mxu0 0.0
        %5326 = vmatpush1.msra.mxu0 0.0
        %5327 = vmatprep.subr.mxu0 0.0
        %5328 = vmatpush1.msra.mxu0 0.0
        %5329 = vmatprep.subr.mxu0 0.0
        %5330 = vmatpush1.msra.mxu0 0.0
        %5331 = vmatprep.subr.mxu0 0.0
        %5332 = vmatpush1.msra.mxu0 0.0
        %5333 = vmatprep.subr.mxu0 0.0
        %5334 = vmatpush1.msra.mxu0 0.0
        %5335 = vmatprep.subr.mxu0 0.0
        %5336 = vmatpush1.msra.mxu0 0.0
        %5337 = vmatprep.subr.mxu0 0.0
        %5338 = vmatpush1.msra.mxu0 0.0
        %5339 = vmatprep.subr.mxu0 0.0
        %5340 = vmatpush1.msra.mxu0 0.0
        %5341 = vmatprep.subr.mxu0 0.0
        %5342 = vmatpush1.msra.mxu0 0.0
        %5343 = vmatprep.subr.mxu0 0.0
        %5344 = vmatpush1.msra.mxu0 0.0
        %5345 = vmatprep.mubr.f32.mxu0 0.0
        %v5346 = vand.u32 %v4976, 4294901760
        %5347 = vmatmul.mubr.f32.gmra.mrb[0].mxu0 %v5346
        %v5348 = vpop.f32.mrb[0].mxu0
        %v5349 = vadd.f32 %v5275, %v5348
        %v5350 = vpop.f32.mrb[0].mxu0
        %5351 = vdwg.mxu0
        %5352 = vmatprep.subr.mxu0 0.0
        %v5353 = vand.u32 %v2996, 4294901760
        %5354 = vmatpush1.msra.mxu0 %v5353
        %5355 = vmatprep.subr.mxu0 0.0
        %5356 = vmatpush1.msra.mxu0 0.0
        %5357 = vmatprep.subr.mxu0 0.0
        %5358 = vmatpush1.msra.mxu0 0.0
        %5359 = vmatprep.subr.mxu0 0.0
        %5360 = vmatpush1.msra.mxu0 0.0
        %5361 = vmatprep.subr.mxu0 0.0
        %5362 = vmatpush1.msra.mxu0 0.0
        %5363 = vmatprep.subr.mxu0 0.0
        %5364 = vmatpush1.msra.mxu0 0.0
        %5365 = vmatprep.subr.mxu0 0.0
        %5366 = vmatpush1.msra.mxu0 0.0
        %5367 = vmatprep.subr.mxu0 0.0
        %5368 = vmatpush1.msra.mxu0 0.0
        %5369 = vmatprep.subr.mxu0 0.0
        %5370 = vmatpush1.msra.mxu0 0.0
        %5371 = vmatprep.subr.mxu0 0.0
        %5372 = vmatpush1.msra.mxu0 0.0
        %5373 = vmatprep.subr.mxu0 0.0
        %5374 = vmatpush1.msra.mxu0 0.0
        %5375 = vmatprep.subr.mxu0 0.0
        %5376 = vmatpush1.msra.mxu0 0.0
        %5377 = vmatprep.subr.mxu0 0.0
        %5378 = vmatpush1.msra.mxu0 0.0
        %5379 = vmatprep.subr.mxu0 0.0
        %5380 = vmatpush1.msra.mxu0 0.0
        %5381 = vmatprep.subr.mxu0 0.0
        %5382 = vmatpush1.msra.mxu0 0.0
        %5383 = vmatprep.subr.mxu0 0.0
        %5384 = vmatpush1.msra.mxu0 0.0
        %5385 = vmatprep.subr.mxu0 0.0
        %5386 = vmatpush1.msra.mxu0 0.0
        %5387 = vmatprep.subr.mxu0 0.0
        %5388 = vmatpush1.msra.mxu0 0.0
        %5389 = vmatprep.subr.mxu0 0.0
        %5390 = vmatpush1.msra.mxu0 0.0
        %5391 = vmatprep.subr.mxu0 0.0
        %5392 = vmatpush1.msra.mxu0 0.0
        %5393 = vmatprep.subr.mxu0 0.0
        %5394 = vmatpush1.msra.mxu0 0.0
        %5395 = vmatprep.subr.mxu0 0.0
        %5396 = vmatpush1.msra.mxu0 0.0
        %5397 = vmatprep.subr.mxu0 0.0
        %5398 = vmatpush1.msra.mxu0 0.0
        %5399 = vmatprep.subr.mxu0 0.0
        %5400 = vmatpush1.msra.mxu0 0.0
        %5401 = vmatprep.subr.mxu0 0.0
        %5402 = vmatpush1.msra.mxu0 0.0
        %5403 = vmatprep.subr.mxu0 0.0
        %5404 = vmatpush1.msra.mxu0 0.0
        %5405 = vmatprep.subr.mxu0 0.0
        %5406 = vmatpush1.msra.mxu0 0.0
        %5407 = vmatprep.subr.mxu0 0.0
        %5408 = vmatpush1.msra.mxu0 0.0
        %5409 = vmatprep.subr.mxu0 0.0
        %5410 = vmatpush1.msra.mxu0 0.0
        %5411 = vmatprep.subr.mxu0 0.0
        %5412 = vmatpush1.msra.mxu0 0.0
        %5413 = vmatprep.subr.mxu0 0.0
        %5414 = vmatpush1.msra.mxu0 0.0
        %5415 = vmatprep.subr.mxu0 0.0
        %5416 = vmatpush1.msra.mxu0 0.0
        %5417 = vmatprep.mubr.f32.mxu0 0.0
        %v5418 = vand.u32 %v4976, 4294901760
        %5419 = vmatmul.mubr.f32.gmra.mrb[0].mxu0 %v5418
        %v5420 = vpop.f32.mrb[0].mxu0
        %v5421 = vadd.f32 %v5349, %v5420
        %v5422 = vpop.f32.mrb[0].mxu0
        %5423 = vdwg.mxu0
        %v5425 = vsel %vm3080, %v3992, 0
        %5427 = vmatprep.subr.mxu0 0.0
        %v5428 = vand.u32 %v2995, 4294901760
        %5429 = vmatpush1.msra.mxu0 %v5428
        %5430 = vmatprep.subr.mxu0 0.0
        %5431 = vmatpush1.msra.mxu0 0.0
        %5432 = vmatprep.subr.mxu0 0.0
        %5433 = vmatpush1.msra.mxu0 0.0
        %5434 = vmatprep.subr.mxu0 0.0
        %5435 = vmatpush1.msra.mxu0 0.0
        %5436 = vmatprep.subr.mxu0 0.0
        %5437 = vmatpush1.msra.mxu0 0.0
        %5438 = vmatprep.subr.mxu0 0.0
        %5439 = vmatpush1.msra.mxu0 0.0
        %5440 = vmatprep.subr.mxu0 0.0
        %5441 = vmatpush1.msra.mxu0 0.0
        %5442 = vmatprep.subr.mxu0 0.0
        %5443 = vmatpush1.msra.mxu0 0.0
        %5444 = vmatprep.subr.mxu0 0.0
        %5445 = vmatpush1.msra.mxu0 0.0
        %5446 = vmatprep.subr.mxu0 0.0
        %5447 = vmatpush1.msra.mxu0 0.0
        %5448 = vmatprep.subr.mxu0 0.0
        %5449 = vmatpush1.msra.mxu0 0.0
        %5450 = vmatprep.subr.mxu0 0.0
        %5451 = vmatpush1.msra.mxu0 0.0
        %5452 = vmatprep.subr.mxu0 0.0
        %5453 = vmatpush1.msra.mxu0 0.0
        %5454 = vmatprep.subr.mxu0 0.0
        %5455 = vmatpush1.msra.mxu0 0.0
        %5456 = vmatprep.subr.mxu0 0.0
        %5457 = vmatpush1.msra.mxu0 0.0
        %5458 = vmatprep.subr.mxu0 0.0
        %5459 = vmatpush1.msra.mxu0 0.0
        %5460 = vmatprep.subr.mxu0 0.0
        %5461 = vmatpush1.msra.mxu0 0.0
        %5462 = vmatprep.subr.mxu0 0.0
        %5463 = vmatpush1.msra.mxu0 0.0
        %5464 = vmatprep.subr.mxu0 0.0
        %5465 = vmatpush1.msra.mxu0 0.0
        %5466 = vmatprep.subr.mxu0 0.0
        %5467 = vmatpush1.msra.mxu0 0.0
        %5468 = vmatprep.subr.mxu0 0.0
        %5469 = vmatpush1.msra.mxu0 0.0
        %5470 = vmatprep.subr.mxu0 0.0
        %5471 = vmatpush1.msra.mxu0 0.0
        %5472 = vmatprep.subr.mxu0 0.0
        %5473 = vmatpush1.msra.mxu0 0.0
        %5474 = vmatprep.subr.mxu0 0.0
        %5475 = vmatpush1.msra.mxu0 0.0
        %5476 = vmatprep.subr.mxu0 0.0
        %5477 = vmatpush1.msra.mxu0 0.0
        %5478 = vmatprep.subr.mxu0 0.0
        %5479 = vmatpush1.msra.mxu0 0.0
        %5480 = vmatprep.subr.mxu0 0.0
        %5481 = vmatpush1.msra.mxu0 0.0
        %5482 = vmatprep.subr.mxu0 0.0
        %5483 = vmatpush1.msra.mxu0 0.0
        %5484 = vmatprep.subr.mxu0 0.0
        %5485 = vmatpush1.msra.mxu0 0.0
        %5486 = vmatprep.subr.mxu0 0.0
        %5487 = vmatpush1.msra.mxu0 0.0
        %5488 = vmatprep.subr.mxu0 0.0
        %5489 = vmatpush1.msra.mxu0 0.0
        %5490 = vmatprep.subr.mxu0 0.0
        %5491 = vmatpush1.msra.mxu0 0.0
        %5492 = vmatprep.mubr.f32.mxu0 0.0
        %v5493 = vand.u32 %v5425, 4294901760
        %v5494 = vsub.f32 %v5425, %v5493
        %v5495 = vand.u32 %v5494, 4294901760
        %v5496 = vsub.f32 %v5494, %v5495
        %v5497 = vand.u32 %v5496, 4294901760
        %5498 = vmatmul.mubr.f32.gmra.mrb[0].mxu0 %v5497
        %v5499 = vpop.f32.mrb[0].mxu0
        %v5500 = vadd.f32 %v5421, %v5499
        %v5501 = vpop.f32.mrb[0].mxu0
        %5502 = vdwg.mxu0
        %5503 = vmatprep.subr.mxu0 0.0
        %v5504 = vand.u32 %v2995, 4294901760
        %v5505 = vsub.f32 %v2995, %v5504
        %v5506 = vand.u32 %v5505, 4294901760
        %v5507 = vsub.f32 %v5505, %v5506
        %v5508 = vand.u32 %v5507, 4294901760
        %5509 = vmatpush1.msra.mxu0 %v5508
        %5510 = vmatprep.subr.mxu0 0.0
        %5511 = vmatpush1.msra.mxu0 0.0
        %5512 = vmatprep.subr.mxu0 0.0
        %5513 = vmatpush1.msra.mxu0 0.0
        %5514 = vmatprep.subr.mxu0 0.0
        %5515 = vmatpush1.msra.mxu0 0.0
        %5516 = vmatprep.subr.mxu0 0.0
        %5517 = vmatpush1.msra.mxu0 0.0
        %5518 = vmatprep.subr.mxu0 0.0
        %5519 = vmatpush1.msra.mxu0 0.0
        %5520 = vmatprep.subr.mxu0 0.0
        %5521 = vmatpush1.msra.mxu0 0.0
        %5522 = vmatprep.subr.mxu0 0.0
        %5523 = vmatpush1.msra.mxu0 0.0
        %5524 = vmatprep.subr.mxu0 0.0
        %5525 = vmatpush1.msra.mxu0 0.0
        %5526 = vmatprep.subr.mxu0 0.0
        %5527 = vmatpush1.msra.mxu0 0.0
        %5528 = vmatprep.subr.mxu0 0.0
        %5529 = vmatpush1.msra.mxu0 0.0
        %5530 = vmatprep.subr.mxu0 0.0
        %5531 = vmatpush1.msra.mxu0 0.0
        %5532 = vmatprep.subr.mxu0 0.0
        %5533 = vmatpush1.msra.mxu0 0.0
        %5534 = vmatprep.subr.mxu0 0.0
        %5535 = vmatpush1.msra.mxu0 0.0
        %5536 = vmatprep.subr.mxu0 0.0
        %5537 = vmatpush1.msra.mxu0 0.0
        %5538 = vmatprep.subr.mxu0 0.0
        %5539 = vmatpush1.msra.mxu0 0.0
        %5540 = vmatprep.subr.mxu0 0.0
        %5541 = vmatpush1.msra.mxu0 0.0
        %5542 = vmatprep.subr.mxu0 0.0
        %5543 = vmatpush1.msra.mxu0 0.0
        %5544 = vmatprep.subr.mxu0 0.0
        %5545 = vmatpush1.msra.mxu0 0.0
        %5546 = vmatprep.subr.mxu0 0.0
        %5547 = vmatpush1.msra.mxu0 0.0
        %5548 = vmatprep.subr.mxu0 0.0
        %5549 = vmatpush1.msra.mxu0 0.0
        %5550 = vmatprep.subr.mxu0 0.0
        %5551 = vmatpush1.msra.mxu0 0.0
        %5552 = vmatprep.subr.mxu0 0.0
        %5553 = vmatpush1.msra.mxu0 0.0
        %5554 = vmatprep.subr.mxu0 0.0
        %5555 = vmatpush1.msra.mxu0 0.0
        %5556 = vmatprep.subr.mxu0 0.0
        %5557 = vmatpush1.msra.mxu0 0.0
        %5558 = vmatprep.subr.mxu0 0.0
        %5559 = vmatpush1.msra.mxu0 0.0
        %5560 = vmatprep.subr.mxu0 0.0
        %5561 = vmatpush1.msra.mxu0 0.0
        %5562 = vmatprep.subr.mxu0 0.0
        %5563 = vmatpush1.msra.mxu0 0.0
        %5564 = vmatprep.subr.mxu0 0.0
        %5565 = vmatpush1.msra.mxu0 0.0
        %5566 = vmatprep.subr.mxu0 0.0
        %5567 = vmatpush1.msra.mxu0 0.0
        %5568 = vmatprep.subr.mxu0 0.0
        %5569 = vmatpush1.msra.mxu0 0.0
        %5570 = vmatprep.subr.mxu0 0.0
        %5571 = vmatpush1.msra.mxu0 0.0
        %5572 = vmatprep.mubr.f32.mxu0 0.0
        %v5573 = vand.u32 %v5425, 4294901760
        %5574 = vmatmul.mubr.f32.gmra.mrb[0].mxu0 %v5573
        %v5575 = vpop.f32.mrb[0].mxu0
        %v5576 = vadd.f32 %v5500, %v5575
        %v5577 = vpop.f32.mrb[0].mxu0
        %5578 = vdwg.mxu0
        %5579 = vmatprep.subr.mxu0 0.0
        %v5580 = vand.u32 %v2995, 4294901760
        %v5581 = vsub.f32 %v2995, %v5580
        %5582 = vmatpush1.msra.mxu0 %v5581
        %5583 = vmatprep.subr.mxu0 0.0
        %5584 = vmatpush1.msra.mxu0 0.0
        %5585 = vmatprep.subr.mxu0 0.0
        %5586 = vmatpush1.msra.mxu0 0.0
        %5587 = vmatprep.subr.mxu0 0.0
        %5588 = vmatpush1.msra.mxu0 0.0
        %5589 = vmatprep.subr.mxu0 0.0
        %5590 = vmatpush1.msra.mxu0 0.0
        %5591 = vmatprep.subr.mxu0 0.0
        %5592 = vmatpush1.msra.mxu0 0.0
        %5593 = vmatprep.subr.mxu0 0.0
        %5594 = vmatpush1.msra.mxu0 0.0
        %5595 = vmatprep.subr.mxu0 0.0
        %5596 = vmatpush1.msra.mxu0 0.0
        %5597 = vmatprep.subr.mxu0 0.0
        %5598 = vmatpush1.msra.mxu0 0.0
        %5599 = vmatprep.subr.mxu0 0.0
        %5600 = vmatpush1.msra.mxu0 0.0
        %5601 = vmatprep.subr.mxu0 0.0
        %5602 = vmatpush1.msra.mxu0 0.0
        %5603 = vmatprep.subr.mxu0 0.0
        %5604 = vmatpush1.msra.mxu0 0.0
        %5605 = vmatprep.subr.mxu0 0.0
        %5606 = vmatpush1.msra.mxu0 0.0
        %5607 = vmatprep.subr.mxu0 0.0
        %5608 = vmatpush1.msra.mxu0 0.0
        %5609 = vmatprep.subr.mxu0 0.0
        %5610 = vmatpush1.msra.mxu0 0.0
        %5611 = vmatprep.subr.mxu0 0.0
        %5612 = vmatpush1.msra.mxu0 0.0
        %5613 = vmatprep.subr.mxu0 0.0
        %5614 = vmatpush1.msra.mxu0 0.0
        %5615 = vmatprep.subr.mxu0 0.0
        %5616 = vmatpush1.msra.mxu0 0.0
        %5617 = vmatprep.subr.mxu0 0.0
        %5618 = vmatpush1.msra.mxu0 0.0
        %5619 = vmatprep.subr.mxu0 0.0
        %5620 = vmatpush1.msra.mxu0 0.0
        %5621 = vmatprep.subr.mxu0 0.0
        %5622 = vmatpush1.msra.mxu0 0.0
        %5623 = vmatprep.subr.mxu0 0.0
        %5624 = vmatpush1.msra.mxu0 0.0
        %5625 = vmatprep.subr.mxu0 0.0
        %5626 = vmatpush1.msra.mxu0 0.0
        %5627 = vmatprep.subr.mxu0 0.0
        %5628 = vmatpush1.msra.mxu0 0.0
        %5629 = vmatprep.subr.mxu0 0.0
        %5630 = vmatpush1.msra.mxu0 0.0
        %5631 = vmatprep.subr.mxu0 0.0
        %5632 = vmatpush1.msra.mxu0 0.0
        %5633 = vmatprep.subr.mxu0 0.0
        %5634 = vmatpush1.msra.mxu0 0.0
        %5635 = vmatprep.subr.mxu0 0.0
        %5636 = vmatpush1.msra.mxu0 0.0
        %5637 = vmatprep.subr.mxu0 0.0
        %5638 = vmatpush1.msra.mxu0 0.0
        %5639 = vmatprep.subr.mxu0 0.0
        %5640 = vmatpush1.msra.mxu0 0.0
        %5641 = vmatprep.subr.mxu0 0.0
        %5642 = vmatpush1.msra.mxu0 0.0
        %5643 = vmatprep.subr.mxu0 0.0
        %5644 = vmatpush1.msra.mxu0 0.0
        %5645 = vmatprep.mubr.f32.mxu0 0.0
        %v5646 = vand.u32 %v5425, 4294901760
        %v5647 = vsub.f32 %v5425, %v5646
        %5648 = vmatmul.mubr.f32.gmra.mrb[0].mxu0 %v5647
        %v5649 = vpop.f32.mrb[0].mxu0
        %v5650 = vadd.f32 %v5576, %v5649
        %v5651 = vpop.f32.mrb[0].mxu0
        %5652 = vdwg.mxu0
        %5653 = vmatprep.subr.mxu0 0.0
        %v5654 = vand.u32 %v2995, 4294901760
        %5655 = vmatpush1.msra.mxu0 %v5654
        %5656 = vmatprep.subr.mxu0 0.0
        %5657 = vmatpush1.msra.mxu0 0.0
        %5658 = vmatprep.subr.mxu0 0.0
        %5659 = vmatpush1.msra.mxu0 0.0
        %5660 = vmatprep.subr.mxu0 0.0
        %5661 = vmatpush1.msra.mxu0 0.0
        %5662 = vmatprep.subr.mxu0 0.0
        %5663 = vmatpush1.msra.mxu0 0.0
        %5664 = vmatprep.subr.mxu0 0.0
        %5665 = vmatpush1.msra.mxu0 0.0
        %5666 = vmatprep.subr.mxu0 0.0
        %5667 = vmatpush1.msra.mxu0 0.0
        %5668 = vmatprep.subr.mxu0 0.0
        %5669 = vmatpush1.msra.mxu0 0.0
        %5670 = vmatprep.subr.mxu0 0.0
        %5671 = vmatpush1.msra.mxu0 0.0
        %5672 = vmatprep.subr.mxu0 0.0
        %5673 = vmatpush1.msra.mxu0 0.0
        %5674 = vmatprep.subr.mxu0 0.0
        %5675 = vmatpush1.msra.mxu0 0.0
        %5676 = vmatprep.subr.mxu0 0.0
        %5677 = vmatpush1.msra.mxu0 0.0
        %5678 = vmatprep.subr.mxu0 0.0
        %5679 = vmatpush1.msra.mxu0 0.0
        %5680 = vmatprep.subr.mxu0 0.0
        %5681 = vmatpush1.msra.mxu0 0.0
        %5682 = vmatprep.subr.mxu0 0.0
        %5683 = vmatpush1.msra.mxu0 0.0
        %5684 = vmatprep.subr.mxu0 0.0
        %5685 = vmatpush1.msra.mxu0 0.0
        %5686 = vmatprep.subr.mxu0 0.0
        %5687 = vmatpush1.msra.mxu0 0.0
        %5688 = vmatprep.subr.mxu0 0.0
        %5689 = vmatpush1.msra.mxu0 0.0
        %5690 = vmatprep.subr.mxu0 0.0
        %5691 = vmatpush1.msra.mxu0 0.0
        %5692 = vmatprep.subr.mxu0 0.0
        %5693 = vmatpush1.msra.mxu0 0.0
        %5694 = vmatprep.subr.mxu0 0.0
        %5695 = vmatpush1.msra.mxu0 0.0
        %5696 = vmatprep.subr.mxu0 0.0
        %5697 = vmatpush1.msra.mxu0 0.0
        %5698 = vmatprep.subr.mxu0 0.0
        %5699 = vmatpush1.msra.mxu0 0.0
        %5700 = vmatprep.subr.mxu0 0.0
        %5701 = vmatpush1.msra.mxu0 0.0
        %5702 = vmatprep.subr.mxu0 0.0
        %5703 = vmatpush1.msra.mxu0 0.0
        %5704 = vmatprep.subr.mxu0 0.0
        %5705 = vmatpush1.msra.mxu0 0.0
        %5706 = vmatprep.subr.mxu0 0.0
        %5707 = vmatpush1.msra.mxu0 0.0
        %5708 = vmatprep.subr.mxu0 0.0
        %5709 = vmatpush1.msra.mxu0 0.0
        %5710 = vmatprep.subr.mxu0 0.0
        %5711 = vmatpush1.msra.mxu0 0.0
        %5712 = vmatprep.subr.mxu0 0.0
        %5713 = vmatpush1.msra.mxu0 0.0
        %5714 = vmatprep.subr.mxu0 0.0
        %5715 = vmatpush1.msra.mxu0 0.0
        %5716 = vmatprep.subr.mxu0 0.0
        %5717 = vmatpush1.msra.mxu0 0.0
        %5718 = vmatprep.mubr.f32.mxu0 0.0
        %v5719 = vand.u32 %v5425, 4294901760
        %v5720 = vsub.f32 %v5425, %v5719
        %v5721 = vand.u32 %v5720, 4294901760
        %5722 = vmatmul.mubr.f32.gmra.mrb[0].mxu0 %v5721
        %v5723 = vpop.f32.mrb[0].mxu0
        %v5724 = vadd.f32 %v5650, %v5723
        %v5725 = vpop.f32.mrb[0].mxu0
        %5726 = vdwg.mxu0
        %5727 = vmatprep.subr.mxu0 0.0
        %v5728 = vand.u32 %v2995, 4294901760
        %v5729 = vsub.f32 %v2995, %v5728
        %v5730 = vand.u32 %v5729, 4294901760
        %5731 = vmatpush1.msra.mxu0 %v5730
        %5732 = vmatprep.subr.mxu0 0.0
        %5733 = vmatpush1.msra.mxu0 0.0
        %5734 = vmatprep.subr.mxu0 0.0
        %5735 = vmatpush1.msra.mxu0 0.0
        %5736 = vmatprep.subr.mxu0 0.0
        %5737 = vmatpush1.msra.mxu0 0.0
        %5738 = vmatprep.subr.mxu0 0.0
        %5739 = vmatpush1.msra.mxu0 0.0
        %5740 = vmatprep.subr.mxu0 0.0
        %5741 = vmatpush1.msra.mxu0 0.0
        %5742 = vmatprep.subr.mxu0 0.0
        %5743 = vmatpush1.msra.mxu0 0.0
        %5744 = vmatprep.subr.mxu0 0.0
        %5745 = vmatpush1.msra.mxu0 0.0
        %5746 = vmatprep.subr.mxu0 0.0
        %5747 = vmatpush1.msra.mxu0 0.0
        %5748 = vmatprep.subr.mxu0 0.0
        %5749 = vmatpush1.msra.mxu0 0.0
        %5750 = vmatprep.subr.mxu0 0.0
        %5751 = vmatpush1.msra.mxu0 0.0
        %5752 = vmatprep.subr.mxu0 0.0
        %5753 = vmatpush1.msra.mxu0 0.0
        %5754 = vmatprep.subr.mxu0 0.0
        %5755 = vmatpush1.msra.mxu0 0.0
        %5756 = vmatprep.subr.mxu0 0.0
        %5757 = vmatpush1.msra.mxu0 0.0
        %5758 = vmatprep.subr.mxu0 0.0
        %5759 = vmatpush1.msra.mxu0 0.0
        %5760 = vmatprep.subr.mxu0 0.0
        %5761 = vmatpush1.msra.mxu0 0.0
        %5762 = vmatprep.subr.mxu0 0.0
        %5763 = vmatpush1.msra.mxu0 0.0
        %5764 = vmatprep.subr.mxu0 0.0
        %5765 = vmatpush1.msra.mxu0 0.0
        %5766 = vmatprep.subr.mxu0 0.0
        %5767 = vmatpush1.msra.mxu0 0.0
        %5768 = vmatprep.subr.mxu0 0.0
        %5769 = vmatpush1.msra.mxu0 0.0
        %5770 = vmatprep.subr.mxu0 0.0
        %5771 = vmatpush1.msra.mxu0 0.0
        %5772 = vmatprep.subr.mxu0 0.0
        %5773 = vmatpush1.msra.mxu0 0.0
        %5774 = vmatprep.subr.mxu0 0.0
        %5775 = vmatpush1.msra.mxu0 0.0
        %5776 = vmatprep.subr.mxu0 0.0
        %5777 = vmatpush1.msra.mxu0 0.0
        %5778 = vmatprep.subr.mxu0 0.0
        %5779 = vmatpush1.msra.mxu0 0.0
        %5780 = vmatprep.subr.mxu0 0.0
        %5781 = vmatpush1.msra.mxu0 0.0
        %5782 = vmatprep.subr.mxu0 0.0
        %5783 = vmatpush1.msra.mxu0 0.0
        %5784 = vmatprep.subr.mxu0 0.0
        %5785 = vmatpush1.msra.mxu0 0.0
        %5786 = vmatprep.subr.mxu0 0.0
        %5787 = vmatpush1.msra.mxu0 0.0
        %5788 = vmatprep.subr.mxu0 0.0
        %5789 = vmatpush1.msra.mxu0 0.0
        %5790 = vmatprep.subr.mxu0 0.0
        %5791 = vmatpush1.msra.mxu0 0.0
        %5792 = vmatprep.subr.mxu0 0.0
        %5793 = vmatpush1.msra.mxu0 0.0
        %5794 = vmatprep.mubr.f32.mxu0 0.0
        %v5795 = vand.u32 %v5425, 4294901760
        %5796 = vmatmul.mubr.f32.gmra.mrb[0].mxu0 %v5795
        %v5797 = vpop.f32.mrb[0].mxu0
        %v5798 = vadd.f32 %v5724, %v5797
        %v5799 = vpop.f32.mrb[0].mxu0
        %5800 = vdwg.mxu0
        %5801 = vmatprep.subr.mxu0 0.0
        %v5802 = vand.u32 %v2995, 4294901760
        %5803 = vmatpush1.msra.mxu0 %v5802
        %5804 = vmatprep.subr.mxu0 0.0
        %5805 = vmatpush1.msra.mxu0 0.0
        %5806 = vmatprep.subr.mxu0 0.0
        %5807 = vmatpush1.msra.mxu0 0.0
        %5808 = vmatprep.subr.mxu0 0.0
        %5809 = vmatpush1.msra.mxu0 0.0
        %5810 = vmatprep.subr.mxu0 0.0
        %5811 = vmatpush1.msra.mxu0 0.0
        %5812 = vmatprep.subr.mxu0 0.0
        %5813 = vmatpush1.msra.mxu0 0.0
        %5814 = vmatprep.subr.mxu0 0.0
        %5815 = vmatpush1.msra.mxu0 0.0
        %5816 = vmatprep.subr.mxu0 0.0
        %5817 = vmatpush1.msra.mxu0 0.0
        %5818 = vmatprep.subr.mxu0 0.0
        %5819 = vmatpush1.msra.mxu0 0.0
        %5820 = vmatprep.subr.mxu0 0.0
        %5821 = vmatpush1.msra.mxu0 0.0
        %5822 = vmatprep.subr.mxu0 0.0
        %5823 = vmatpush1.msra.mxu0 0.0
        %5824 = vmatprep.subr.mxu0 0.0
        %5825 = vmatpush1.msra.mxu0 0.0
        %5826 = vmatprep.subr.mxu0 0.0
        %5827 = vmatpush1.msra.mxu0 0.0
        %5828 = vmatprep.subr.mxu0 0.0
        %5829 = vmatpush1.msra.mxu0 0.0
        %5830 = vmatprep.subr.mxu0 0.0
        %5831 = vmatpush1.msra.mxu0 0.0
        %5832 = vmatprep.subr.mxu0 0.0
        %5833 = vmatpush1.msra.mxu0 0.0
        %5834 = vmatprep.subr.mxu0 0.0
        %5835 = vmatpush1.msra.mxu0 0.0
        %5836 = vmatprep.subr.mxu0 0.0
        %5837 = vmatpush1.msra.mxu0 0.0
        %5838 = vmatprep.subr.mxu0 0.0
        %5839 = vmatpush1.msra.mxu0 0.0
        %5840 = vmatprep.subr.mxu0 0.0
        %5841 = vmatpush1.msra.mxu0 0.0
        %5842 = vmatprep.subr.mxu0 0.0
        %5843 = vmatpush1.msra.mxu0 0.0
        %5844 = vmatprep.subr.mxu0 0.0
        %5845 = vmatpush1.msra.mxu0 0.0
        %5846 = vmatprep.subr.mxu0 0.0
        %5847 = vmatpush1.msra.mxu0 0.0
        %5848 = vmatprep.subr.mxu0 0.0
        %5849 = vmatpush1.msra.mxu0 0.0
        %5850 = vmatprep.subr.mxu0 0.0
        %5851 = vmatpush1.msra.mxu0 0.0
        %5852 = vmatprep.subr.mxu0 0.0
        %5853 = vmatpush1.msra.mxu0 0.0
        %5854 = vmatprep.subr.mxu0 0.0
        %5855 = vmatpush1.msra.mxu0 0.0
        %5856 = vmatprep.subr.mxu0 0.0
        %5857 = vmatpush1.msra.mxu0 0.0
        %5858 = vmatprep.subr.mxu0 0.0
        %5859 = vmatpush1.msra.mxu0 0.0
        %5860 = vmatprep.subr.mxu0 0.0
        %5861 = vmatpush1.msra.mxu0 0.0
        %5862 = vmatprep.subr.mxu0 0.0
        %5863 = vmatpush1.msra.mxu0 0.0
        %5864 = vmatprep.subr.mxu0 0.0
        %5865 = vmatpush1.msra.mxu0 0.0
        %5866 = vmatprep.mubr.f32.mxu0 0.0
        %v5867 = vand.u32 %v5425, 4294901760
        %5868 = vmatmul.mubr.f32.gmra.mrb[0].mxu0 %v5867
        %v5869 = vpop.f32.mrb[0].mxu0
        %v5870 = vadd.f32 %v5798, %v5869
        %v5871 = vpop.f32.mrb[0].mxu0
        %5872 = vdwg.mxu0
        %5873 = vrot.lane.b32.xlu0 %v2190, 112
        %v5874 = vpop.permute.xlu0 %5873
        %5875 = vrot.lane.b32.xlu0 %v2993, 112
        %v5876 = vpop.permute.xlu0 %5875
        %5877 = vset.pattern.permute.xlu0 2
        %5878 = vperm.xlu0 %5877, %v2948
        %v5879 = vpop.permute.xlu0 %5878
        %5880 = vset.pattern.permute.xlu0 2
        %5881 = vperm.xlu0 %5880, %v2954
        %v5882 = vpop.permute.xlu0 %5881
        %5883 = vset.pattern.permute.xlu0 2
        %5884 = vperm.xlu0 %5883, %v2960
        %v5885 = vpop.permute.xlu0 %5884
        %5886 = vset.pattern.permute.xlu0 2
        %5887 = vperm.xlu0 %5886, %v2966
        %v5888 = vpop.permute.xlu0 %5887
        %5889 = vset.pattern.permute.xlu0 2
        %5890 = vperm.xlu0 %5889, %v2972
        %v5891 = vpop.permute.xlu0 %5890
        %5892 = vset.pattern.permute.xlu0 2
        %5893 = vperm.xlu0 %5892, %v2978
        %v5894 = vpop.permute.xlu0 %5893
        %5895 = vset.pattern.permute.xlu0 2
        %5896 = vperm.xlu0 %5895, %v2984
        %v5897 = vpop.permute.xlu0 %5896
        %5898 = vset.pattern.permute.xlu0 2
        %5899 = vperm.xlu0 %5898, %v2990
        %v5900 = vpop.permute.xlu0 %5899
        %v5901 = vlaneseq
        %v5902 = vshrl.u32 %v5901, 7
        %v5903 = vsub.s32 %v3032, %v5902
        %v5904 = vrot.slane %v5879, %v5903
        %v5905 = vlaneseq
        %v5906 = vshrl.u32 %v5905, 7
        %v5907 = vsub.s32 %v3032, %v5906
        %v5908 = vrot.slane %v5882, %v5907
        %v5909 = vlaneseq
        %v5910 = vshrl.u32 %v5909, 7
        %v5911 = vsub.s32 %v3032, %v5910
        %v5912 = vrot.slane %v5885, %v5911
        %v5913 = vlaneseq
        %v5914 = vshrl.u32 %v5913, 7
        %v5915 = vsub.s32 %v3032, %v5914
        %v5916 = vrot.slane %v5888, %v5915
        %v5917 = vlaneseq
        %v5918 = vshrl.u32 %v5917, 7
        %v5919 = vsub.s32 %v3032, %v5918
        %v5920 = vrot.slane %v5891, %v5919
        %v5921 = vlaneseq
        %v5922 = vshrl.u32 %v5921, 7
        %v5923 = vsub.s32 %v3032, %v5922
        %v5924 = vrot.slane %v5894, %v5923
        %v5925 = vlaneseq
        %v5926 = vshrl.u32 %v5925, 7
        %v5927 = vsub.s32 %v3032, %v5926
        %v5928 = vrot.slane %v5897, %v5927
        %v5929 = vlaneseq
        %v5930 = vshrl.u32 %v5929, 7
        %v5931 = vsub.s32 %v3032, %v5930
        %v5932 = vrot.slane %v5900, %v5931
        %v5933 = vsel %vm3065, %v5908, %v5904
        %v5934 = vsel %vm3067, %v5912, %v5933
        %v5935 = vsel %vm3069, %v5916, %v5934
        %v5936 = vsel %vm3071, %v5920, %v5935
        %v5937 = vsel %vm3073, %v5924, %v5936
        %v5938 = vsel %vm3075, %v5928, %v5937
        %v5939 = vsel %vm3077, %v5932, %v5938
        %v5941 = vsel %vm3080, %v5874, 0
        %v5943 = vsel %vm3080, %v5876, 0
        %5945 = vmatprep.subr.mxu0 0.0
        %v5946 = vand.u32 %v5943, 4294901760
        %5947 = vmatpush1.xpose.msra.mxu0 %v5946
        %5948 = vmatprep.subr.mxu0 0.0
        %5949 = vmatpush1.xpose.msra.mxu0 0.0
        %5950 = vmatprep.subr.mxu0 0.0
        %5951 = vmatpush1.xpose.msra.mxu0 0.0
        %5952 = vmatprep.subr.mxu0 0.0
        %5953 = vmatpush1.xpose.msra.mxu0 0.0
        %5954 = vmatprep.subr.mxu0 0.0
        %5955 = vmatpush1.xpose.msra.mxu0 0.0
        %5956 = vmatprep.subr.mxu0 0.0
        %5957 = vmatpush1.xpose.msra.mxu0 0.0
        %5958 = vmatprep.subr.mxu0 0.0
        %5959 = vmatpush1.xpose.msra.mxu0 0.0
        %5960 = vmatprep.subr.mxu0 0.0
        %5961 = vmatpush1.xpose.msra.mxu0 0.0
        %5962 = vmatprep.subr.mxu0 0.0
        %5963 = vmatpush1.xpose.msra.mxu0 0.0
        %5964 = vmatprep.subr.mxu0 0.0
        %5965 = vmatpush1.xpose.msra.mxu0 0.0
        %5966 = vmatprep.subr.mxu0 0.0
        %5967 = vmatpush1.xpose.msra.mxu0 0.0
        %5968 = vmatprep.subr.mxu0 0.0
        %5969 = vmatpush1.xpose.msra.mxu0 0.0
        %5970 = vmatprep.subr.mxu0 0.0
        %5971 = vmatpush1.xpose.msra.mxu0 0.0
        %5972 = vmatprep.subr.mxu0 0.0
        %5973 = vmatpush1.xpose.msra.mxu0 0.0
        %5974 = vmatprep.subr.mxu0 0.0
        %5975 = vmatpush1.xpose.msra.mxu0 0.0
        %5976 = vmatprep.subr.mxu0 0.0
        %5977 = vmatpush1.xpose.msra.mxu0 0.0
        %5978 = vmatprep.subr.mxu0 0.0
        %5979 = vmatpush1.xpose.msra.mxu0 0.0
        %5980 = vmatprep.subr.mxu0 0.0
        %5981 = vmatpush1.xpose.msra.mxu0 0.0
        %5982 = vmatprep.subr.mxu0 0.0
        %5983 = vmatpush1.xpose.msra.mxu0 0.0
        %5984 = vmatprep.subr.mxu0 0.0
        %5985 = vmatpush1.xpose.msra.mxu0 0.0
        %5986 = vmatprep.subr.mxu0 0.0
        %5987 = vmatpush1.xpose.msra.mxu0 0.0
        %5988 = vmatprep.subr.mxu0 0.0
        %5989 = vmatpush1.xpose.msra.mxu0 0.0
        %5990 = vmatprep.subr.mxu0 0.0
        %5991 = vmatpush1.xpose.msra.mxu0 0.0
        %5992 = vmatprep.subr.mxu0 0.0
        %5993 = vmatpush1.xpose.msra.mxu0 0.0
        %5994 = vmatprep.subr.mxu0 0.0
        %5995 = vmatpush1.xpose.msra.mxu0 0.0
        %5996 = vmatprep.subr.mxu0 0.0
        %5997 = vmatpush1.xpose.msra.mxu0 0.0
        %5998 = vmatprep.subr.mxu0 0.0
        %5999 = vmatpush1.xpose.msra.mxu0 0.0
        %6000 = vmatprep.subr.mxu0 0.0
        %6001 = vmatpush1.xpose.msra.mxu0 0.0
        %6002 = vmatprep.subr.mxu0 0.0
        %6003 = vmatpush1.xpose.msra.mxu0 0.0
        %6004 = vmatprep.subr.mxu0 0.0
        %6005 = vmatpush1.xpose.msra.mxu0 0.0
        %6006 = vmatprep.subr.mxu0 0.0
        %6007 = vmatpush1.xpose.msra.mxu0 0.0
        %6008 = vmatprep.subr.mxu0 0.0
        %6009 = vmatpush1.xpose.msra.mxu0 0.0
        %6010 = vmatprep.mubr.f32.mxu0 0.0
        %v6011 = vand.u32 %v5941, 4294901760
        %v6012 = vsub.f32 %v5941, %v6011
        %v6013 = vand.u32 %v6012, 4294901760
        %v6014 = vsub.f32 %v6012, %v6013
        %v6015 = vand.u32 %v6014, 4294901760
        %6016 = vmatmul.mubr.f32.gmra.mrb[0].mxu0 %v6015
        %v6017 = vpop.f32.mrb[0].mxu0
        %v6018 = vadd.f32 %v5939, %v6017
        %v6019 = vpop.f32.mrb[0].mxu0
        %6020 = vdwg.mxu0
        %6021 = vmatprep.subr.mxu0 0.0
        %v6022 = vand.u32 %v5943, 4294901760
        %v6023 = vsub.f32 %v5943, %v6022
        %v6024 = vand.u32 %v6023, 4294901760
        %v6025 = vsub.f32 %v6023, %v6024
        %v6026 = vand.u32 %v6025, 4294901760
        %6027 = vmatpush1.xpose.msra.mxu0 %v6026
        %6028 = vmatprep.subr.mxu0 0.0
        %6029 = vmatpush1.xpose.msra.mxu0 0.0
        %6030 = vmatprep.subr.mxu0 0.0
        %6031 = vmatpush1.xpose.msra.mxu0 0.0
        %6032 = vmatprep.subr.mxu0 0.0
        %6033 = vmatpush1.xpose.msra.mxu0 0.0
        %6034 = vmatprep.subr.mxu0 0.0
        %6035 = vmatpush1.xpose.msra.mxu0 0.0
        %6036 = vmatprep.subr.mxu0 0.0
        %6037 = vmatpush1.xpose.msra.mxu0 0.0
        %6038 = vmatprep.subr.mxu0 0.0
        %6039 = vmatpush1.xpose.msra.mxu0 0.0
        %6040 = vmatprep.subr.mxu0 0.0
        %6041 = vmatpush1.xpose.msra.mxu0 0.0
        %6042 = vmatprep.subr.mxu0 0.0
        %6043 = vmatpush1.xpose.msra.mxu0 0.0
        %6044 = vmatprep.subr.mxu0 0.0
        %6045 = vmatpush1.xpose.msra.mxu0 0.0
        %6046 = vmatprep.subr.mxu0 0.0
        %6047 = vmatpush1.xpose.msra.mxu0 0.0
        %6048 = vmatprep.subr.mxu0 0.0
        %6049 = vmatpush1.xpose.msra.mxu0 0.0
        %6050 = vmatprep.subr.mxu0 0.0
        %6051 = vmatpush1.xpose.msra.mxu0 0.0
        %6052 = vmatprep.subr.mxu0 0.0
        %6053 = vmatpush1.xpose.msra.mxu0 0.0
        %6054 = vmatprep.subr.mxu0 0.0
        %6055 = vmatpush1.xpose.msra.mxu0 0.0
        %6056 = vmatprep.subr.mxu0 0.0
        %6057 = vmatpush1.xpose.msra.mxu0 0.0
        %6058 = vmatprep.subr.mxu0 0.0
        %6059 = vmatpush1.xpose.msra.mxu0 0.0
        %6060 = vmatprep.subr.mxu0 0.0
        %6061 = vmatpush1.xpose.msra.mxu0 0.0
        %6062 = vmatprep.subr.mxu0 0.0
        %6063 = vmatpush1.xpose.msra.mxu0 0.0
        %6064 = vmatprep.subr.mxu0 0.0
        %6065 = vmatpush1.xpose.msra.mxu0 0.0
        %6066 = vmatprep.subr.mxu0 0.0
        %6067 = vmatpush1.xpose.msra.mxu0 0.0
        %6068 = vmatprep.subr.mxu0 0.0
        %6069 = vmatpush1.xpose.msra.mxu0 0.0
        %6070 = vmatprep.subr.mxu0 0.0
        %6071 = vmatpush1.xpose.msra.mxu0 0.0
        %6072 = vmatprep.subr.mxu0 0.0
        %6073 = vmatpush1.xpose.msra.mxu0 0.0
        %6074 = vmatprep.subr.mxu0 0.0
        %6075 = vmatpush1.xpose.msra.mxu0 0.0
        %6076 = vmatprep.subr.mxu0 0.0
        %6077 = vmatpush1.xpose.msra.mxu0 0.0
        %6078 = vmatprep.subr.mxu0 0.0
        %6079 = vmatpush1.xpose.msra.mxu0 0.0
        %6080 = vmatprep.subr.mxu0 0.0
        %6081 = vmatpush1.xpose.msra.mxu0 0.0
        %6082 = vmatprep.subr.mxu0 0.0
        %6083 = vmatpush1.xpose.msra.mxu0 0.0
        %6084 = vmatprep.subr.mxu0 0.0
        %6085 = vmatpush1.xpose.msra.mxu0 0.0
        %6086 = vmatprep.subr.mxu0 0.0
        %6087 = vmatpush1.xpose.msra.mxu0 0.0
        %6088 = vmatprep.subr.mxu0 0.0
        %6089 = vmatpush1.xpose.msra.mxu0 0.0
        %6090 = vmatprep.mubr.f32.mxu0 0.0
        %v6091 = vand.u32 %v5941, 4294901760
        %6092 = vmatmul.mubr.f32.gmra.mrb[0].mxu0 %v6091
        %v6093 = vpop.f32.mrb[0].mxu0
        %v6094 = vadd.f32 %v6018, %v6093
        %v6095 = vpop.f32.mrb[0].mxu0
        %6096 = vdwg.mxu0
        %6097 = vmatprep.subr.mxu0 0.0
        %v6098 = vand.u32 %v5943, 4294901760
        %v6099 = vsub.f32 %v5943, %v6098
        %6100 = vmatpush1.xpose.msra.mxu0 %v6099
        %6101 = vmatprep.subr.mxu0 0.0
        %6102 = vmatpush1.xpose.msra.mxu0 0.0
        %6103 = vmatprep.subr.mxu0 0.0
        %6104 = vmatpush1.xpose.msra.mxu0 0.0
        %6105 = vmatprep.subr.mxu0 0.0
        %6106 = vmatpush1.xpose.msra.mxu0 0.0
        %6107 = vmatprep.subr.mxu0 0.0
        %6108 = vmatpush1.xpose.msra.mxu0 0.0
        %6109 = vmatprep.subr.mxu0 0.0
        %6110 = vmatpush1.xpose.msra.mxu0 0.0
        %6111 = vmatprep.subr.mxu0 0.0
        %6112 = vmatpush1.xpose.msra.mxu0 0.0
        %6113 = vmatprep.subr.mxu0 0.0
        %6114 = vmatpush1.xpose.msra.mxu0 0.0
        %6115 = vmatprep.subr.mxu0 0.0
        %6116 = vmatpush1.xpose.msra.mxu0 0.0
        %6117 = vmatprep.subr.mxu0 0.0
        %6118 = vmatpush1.xpose.msra.mxu0 0.0
        %6119 = vmatprep.subr.mxu0 0.0
        %6120 = vmatpush1.xpose.msra.mxu0 0.0
        %6121 = vmatprep.subr.mxu0 0.0
        %6122 = vmatpush1.xpose.msra.mxu0 0.0
        %6123 = vmatprep.subr.mxu0 0.0
        %6124 = vmatpush1.xpose.msra.mxu0 0.0
        %6125 = vmatprep.subr.mxu0 0.0
        %6126 = vmatpush1.xpose.msra.mxu0 0.0
        %6127 = vmatprep.subr.mxu0 0.0
        %6128 = vmatpush1.xpose.msra.mxu0 0.0
        %6129 = vmatprep.subr.mxu0 0.0
        %6130 = vmatpush1.xpose.msra.mxu0 0.0
        %6131 = vmatprep.subr.mxu0 0.0
        %6132 = vmatpush1.xpose.msra.mxu0 0.0
        %6133 = vmatprep.subr.mxu0 0.0
        %6134 = vmatpush1.xpose.msra.mxu0 0.0
        %6135 = vmatprep.subr.mxu0 0.0
        %6136 = vmatpush1.xpose.msra.mxu0 0.0
        %6137 = vmatprep.subr.mxu0 0.0
        %6138 = vmatpush1.xpose.msra.mxu0 0.0
        %6139 = vmatprep.subr.mxu0 0.0
        %6140 = vmatpush1.xpose.msra.mxu0 0.0
        %6141 = vmatprep.subr.mxu0 0.0
        %6142 = vmatpush1.xpose.msra.mxu0 0.0
        %6143 = vmatprep.subr.mxu0 0.0
        %6144 = vmatpush1.xpose.msra.mxu0 0.0
        %6145 = vmatprep.subr.mxu0 0.0
        %6146 = vmatpush1.xpose.msra.mxu0 0.0
        %6147 = vmatprep.subr.mxu0 0.0
        %6148 = vmatpush1.xpose.msra.mxu0 0.0
        %6149 = vmatprep.subr.mxu0 0.0
        %6150 = vmatpush1.xpose.msra.mxu0 0.0
        %6151 = vmatprep.subr.mxu0 0.0
        %6152 = vmatpush1.xpose.msra.mxu0 0.0
        %6153 = vmatprep.subr.mxu0 0.0
        %6154 = vmatpush1.xpose.msra.mxu0 0.0
        %6155 = vmatprep.subr.mxu0 0.0
        %6156 = vmatpush1.xpose.msra.mxu0 0.0
        %6157 = vmatprep.subr.mxu0 0.0
        %6158 = vmatpush1.xpose.msra.mxu0 0.0
        %6159 = vmatprep.subr.mxu0 0.0
        %6160 = vmatpush1.xpose.msra.mxu0 0.0
        %6161 = vmatprep.subr.mxu0 0.0
        %6162 = vmatpush1.xpose.msra.mxu0 0.0
        %6163 = vmatprep.mubr.f32.mxu0 0.0
        %v6164 = vand.u32 %v5941, 4294901760
        %v6165 = vsub.f32 %v5941, %v6164
        %6166 = vmatmul.mubr.f32.gmra.mrb[0].mxu0 %v6165
        %v6167 = vpop.f32.mrb[0].mxu0
        %v6168 = vadd.f32 %v6094, %v6167
        %v6169 = vpop.f32.mrb[0].mxu0
        %6170 = vdwg.mxu0
        %6171 = vmatprep.subr.mxu0 0.0
        %v6172 = vand.u32 %v5943, 4294901760
        %6173 = vmatpush1.xpose.msra.mxu0 %v6172
        %6174 = vmatprep.subr.mxu0 0.0
        %6175 = vmatpush1.xpose.msra.mxu0 0.0
        %6176 = vmatprep.subr.mxu0 0.0
        %6177 = vmatpush1.xpose.msra.mxu0 0.0
        %6178 = vmatprep.subr.mxu0 0.0
        %6179 = vmatpush1.xpose.msra.mxu0 0.0
        %6180 = vmatprep.subr.mxu0 0.0
        %6181 = vmatpush1.xpose.msra.mxu0 0.0
        %6182 = vmatprep.subr.mxu0 0.0
        %6183 = vmatpush1.xpose.msra.mxu0 0.0
        %6184 = vmatprep.subr.mxu0 0.0
        %6185 = vmatpush1.xpose.msra.mxu0 0.0
        %6186 = vmatprep.subr.mxu0 0.0
        %6187 = vmatpush1.xpose.msra.mxu0 0.0
        %6188 = vmatprep.subr.mxu0 0.0
        %6189 = vmatpush1.xpose.msra.mxu0 0.0
        %6190 = vmatprep.subr.mxu0 0.0
        %6191 = vmatpush1.xpose.msra.mxu0 0.0
        %6192 = vmatprep.subr.mxu0 0.0
        %6193 = vmatpush1.xpose.msra.mxu0 0.0
        %6194 = vmatprep.subr.mxu0 0.0
        %6195 = vmatpush1.xpose.msra.mxu0 0.0
        %6196 = vmatprep.subr.mxu0 0.0
        %6197 = vmatpush1.xpose.msra.mxu0 0.0
        %6198 = vmatprep.subr.mxu0 0.0
        %6199 = vmatpush1.xpose.msra.mxu0 0.0
        %6200 = vmatprep.subr.mxu0 0.0
        %6201 = vmatpush1.xpose.msra.mxu0 0.0
        %6202 = vmatprep.subr.mxu0 0.0
        %6203 = vmatpush1.xpose.msra.mxu0 0.0
        %6204 = vmatprep.subr.mxu0 0.0
        %6205 = vmatpush1.xpose.msra.mxu0 0.0
        %6206 = vmatprep.subr.mxu0 0.0
        %6207 = vmatpush1.xpose.msra.mxu0 0.0
        %6208 = vmatprep.subr.mxu0 0.0
        %6209 = vmatpush1.xpose.msra.mxu0 0.0
        %6210 = vmatprep.subr.mxu0 0.0
        %6211 = vmatpush1.xpose.msra.mxu0 0.0
        %6212 = vmatprep.subr.mxu0 0.0
        %6213 = vmatpush1.xpose.msra.mxu0 0.0
        %6214 = vmatprep.subr.mxu0 0.0
        %6215 = vmatpush1.xpose.msra.mxu0 0.0
        %6216 = vmatprep.subr.mxu0 0.0
        %6217 = vmatpush1.xpose.msra.mxu0 0.0
        %6218 = vmatprep.subr.mxu0 0.0
        %6219 = vmatpush1.xpose.msra.mxu0 0.0
        %6220 = vmatprep.subr.mxu0 0.0
        %6221 = vmatpush1.xpose.msra.mxu0 0.0
        %6222 = vmatprep.subr.mxu0 0.0
        %6223 = vmatpush1.xpose.msra.mxu0 0.0
        %6224 = vmatprep.subr.mxu0 0.0
        %6225 = vmatpush1.xpose.msra.mxu0 0.0
        %6226 = vmatprep.subr.mxu0 0.0
        %6227 = vmatpush1.xpose.msra.mxu0 0.0
        %6228 = vmatprep.subr.mxu0 0.0
        %6229 = vmatpush1.xpose.msra.mxu0 0.0
        %6230 = vmatprep.subr.mxu0 0.0
        %6231 = vmatpush1.xpose.msra.mxu0 0.0
        %6232 = vmatprep.subr.mxu0 0.0
        %6233 = vmatpush1.xpose.msra.mxu0 0.0
        %6234 = vmatprep.subr.mxu0 0.0
        %6235 = vmatpush1.xpose.msra.mxu0 0.0
        %6236 = vmatprep.mubr.f32.mxu0 0.0
        %v6237 = vand.u32 %v5941, 4294901760
        %v6238 = vsub.f32 %v5941, %v6237
        %v6239 = vand.u32 %v6238, 4294901760
        %6240 = vmatmul.mubr.f32.gmra.mrb[0].mxu0 %v6239
        %v6241 = vpop.f32.mrb[0].mxu0
        %v6242 = vadd.f32 %v6168, %v6241
        %v6243 = vpop.f32.mrb[0].mxu0
        %6244 = vdwg.mxu0
        %6245 = vmatprep.subr.mxu0 0.0
        %v6246 = vand.u32 %v5943, 4294901760
        %v6247 = vsub.f32 %v5943, %v6246
        %v6248 = vand.u32 %v6247, 4294901760
        %6249 = vmatpush1.xpose.msra.mxu0 %v6248
        %6250 = vmatprep.subr.mxu0 0.0
        %6251 = vmatpush1.xpose.msra.mxu0 0.0
        %6252 = vmatprep.subr.mxu0 0.0
        %6253 = vmatpush1.xpose.msra.mxu0 0.0
        %6254 = vmatprep.subr.mxu0 0.0
        %6255 = vmatpush1.xpose.msra.mxu0 0.0
        %6256 = vmatprep.subr.mxu0 0.0
        %6257 = vmatpush1.xpose.msra.mxu0 0.0
        %6258 = vmatprep.subr.mxu0 0.0
        %6259 = vmatpush1.xpose.msra.mxu0 0.0
        %6260 = vmatprep.subr.mxu0 0.0
        %6261 = vmatpush1.xpose.msra.mxu0 0.0
        %6262 = vmatprep.subr.mxu0 0.0
        %6263 = vmatpush1.xpose.msra.mxu0 0.0
        %6264 = vmatprep.subr.mxu0 0.0
        %6265 = vmatpush1.xpose.msra.mxu0 0.0
        %6266 = vmatprep.subr.mxu0 0.0
        %6267 = vmatpush1.xpose.msra.mxu0 0.0
        %6268 = vmatprep.subr.mxu0 0.0
        %6269 = vmatpush1.xpose.msra.mxu0 0.0
        %6270 = vmatprep.subr.mxu0 0.0
        %6271 = vmatpush1.xpose.msra.mxu0 0.0
        %6272 = vmatprep.subr.mxu0 0.0
        %6273 = vmatpush1.xpose.msra.mxu0 0.0
        %6274 = vmatprep.subr.mxu0 0.0
        %6275 = vmatpush1.xpose.msra.mxu0 0.0
        %6276 = vmatprep.subr.mxu0 0.0
        %6277 = vmatpush1.xpose.msra.mxu0 0.0
        %6278 = vmatprep.subr.mxu0 0.0
        %6279 = vmatpush1.xpose.msra.mxu0 0.0
        %6280 = vmatprep.subr.mxu0 0.0
        %6281 = vmatpush1.xpose.msra.mxu0 0.0
        %6282 = vmatprep.subr.mxu0 0.0
        %6283 = vmatpush1.xpose.msra.mxu0 0.0
        %6284 = vmatprep.subr.mxu0 0.0
        %6285 = vmatpush1.xpose.msra.mxu0 0.0
        %6286 = vmatprep.subr.mxu0 0.0
        %6287 = vmatpush1.xpose.msra.mxu0 0.0
        %6288 = vmatprep.subr.mxu0 0.0
        %6289 = vmatpush1.xpose.msra.mxu0 0.0
        %6290 = vmatprep.subr.mxu0 0.0
        %6291 = vmatpush1.xpose.msra.mxu0 0.0
        %6292 = vmatprep.subr.mxu0 0.0
        %6293 = vmatpush1.xpose.msra.mxu0 0.0
        %6294 = vmatprep.subr.mxu0 0.0
        %6295 = vmatpush1.xpose.msra.mxu0 0.0
        %6296 = vmatprep.subr.mxu0 0.0
        %6297 = vmatpush1.xpose.msra.mxu0 0.0
        %6298 = vmatprep.subr.mxu0 0.0
        %6299 = vmatpush1.xpose.msra.mxu0 0.0
        %6300 = vmatprep.subr.mxu0 0.0
        %6301 = vmatpush1.xpose.msra.mxu0 0.0
        %6302 = vmatprep.subr.mxu0 0.0
        %6303 = vmatpush1.xpose.msra.mxu0 0.0
        %6304 = vmatprep.subr.mxu0 0.0
        %6305 = vmatpush1.xpose.msra.mxu0 0.0
        %6306 = vmatprep.subr.mxu0 0.0
        %6307 = vmatpush1.xpose.msra.mxu0 0.0
        %6308 = vmatprep.subr.mxu0 0.0
        %6309 = vmatpush1.xpose.msra.mxu0 0.0
        %6310 = vmatprep.subr.mxu0 0.0
        %6311 = vmatpush1.xpose.msra.mxu0 0.0
        %6312 = vmatprep.mubr.f32.mxu0 0.0
        %v6313 = vand.u32 %v5941, 4294901760
        %6314 = vmatmul.mubr.f32.gmra.mrb[0].mxu0 %v6313
        %v6315 = vpop.f32.mrb[0].mxu0
        %v6316 = vadd.f32 %v6242, %v6315
        %v6317 = vpop.f32.mrb[0].mxu0
        %6318 = vdwg.mxu0
        %6319 = vmatprep.subr.mxu0 0.0
        %v6320 = vand.u32 %v5943, 4294901760
        %6321 = vmatpush1.xpose.msra.mxu0 %v6320
        %6322 = vmatprep.subr.mxu0 0.0
        %6323 = vmatpush1.xpose.msra.mxu0 0.0
        %6324 = vmatprep.subr.mxu0 0.0
        %6325 = vmatpush1.xpose.msra.mxu0 0.0
        %6326 = vmatprep.subr.mxu0 0.0
        %6327 = vmatpush1.xpose.msra.mxu0 0.0
        %6328 = vmatprep.subr.mxu0 0.0
        %6329 = vmatpush1.xpose.msra.mxu0 0.0
        %6330 = vmatprep.subr.mxu0 0.0
        %6331 = vmatpush1.xpose.msra.mxu0 0.0
        %6332 = vmatprep.subr.mxu0 0.0
        %6333 = vmatpush1.xpose.msra.mxu0 0.0
        %6334 = vmatprep.subr.mxu0 0.0
        %6335 = vmatpush1.xpose.msra.mxu0 0.0
        %6336 = vmatprep.subr.mxu0 0.0
        %6337 = vmatpush1.xpose.msra.mxu0 0.0
        %6338 = vmatprep.subr.mxu0 0.0
        %6339 = vmatpush1.xpose.msra.mxu0 0.0
        %6340 = vmatprep.subr.mxu0 0.0
        %6341 = vmatpush1.xpose.msra.mxu0 0.0
        %6342 = vmatprep.subr.mxu0 0.0
        %6343 = vmatpush1.xpose.msra.mxu0 0.0
        %6344 = vmatprep.subr.mxu0 0.0
        %6345 = vmatpush1.xpose.msra.mxu0 0.0
        %6346 = vmatprep.subr.mxu0 0.0
        %6347 = vmatpush1.xpose.msra.mxu0 0.0
        %6348 = vmatprep.subr.mxu0 0.0
        %6349 = vmatpush1.xpose.msra.mxu0 0.0
        %6350 = vmatprep.subr.mxu0 0.0
        %6351 = vmatpush1.xpose.msra.mxu0 0.0
        %6352 = vmatprep.subr.mxu0 0.0
        %6353 = vmatpush1.xpose.msra.mxu0 0.0
        %6354 = vmatprep.subr.mxu0 0.0
        %6355 = vmatpush1.xpose.msra.mxu0 0.0
        %6356 = vmatprep.subr.mxu0 0.0
        %6357 = vmatpush1.xpose.msra.mxu0 0.0
        %6358 = vmatprep.subr.mxu0 0.0
        %6359 = vmatpush1.xpose.msra.mxu0 0.0
        %6360 = vmatprep.subr.mxu0 0.0
        %6361 = vmatpush1.xpose.msra.mxu0 0.0
        %6362 = vmatprep.subr.mxu0 0.0
        %6363 = vmatpush1.xpose.msra.mxu0 0.0
        %6364 = vmatprep.subr.mxu0 0.0
        %6365 = vmatpush1.xpose.msra.mxu0 0.0
        %6366 = vmatprep.subr.mxu0 0.0
        %6367 = vmatpush1.xpose.msra.mxu0 0.0
        %6368 = vmatprep.subr.mxu0 0.0
        %6369 = vmatpush1.xpose.msra.mxu0 0.0
        %6370 = vmatprep.subr.mxu0 0.0
        %6371 = vmatpush1.xpose.msra.mxu0 0.0
        %6372 = vmatprep.subr.mxu0 0.0
        %6373 = vmatpush1.xpose.msra.mxu0 0.0
        %6374 = vmatprep.subr.mxu0 0.0
        %6375 = vmatpush1.xpose.msra.mxu0 0.0
        %6376 = vmatprep.subr.mxu0 0.0
        %6377 = vmatpush1.xpose.msra.mxu0 0.0
        %6378 = vmatprep.subr.mxu0 0.0
        %6379 = vmatpush1.xpose.msra.mxu0 0.0
        %6380 = vmatprep.subr.mxu0 0.0
        %6381 = vmatpush1.xpose.msra.mxu0 0.0
        %6382 = vmatprep.subr.mxu0 0.0
        %6383 = vmatpush1.xpose.msra.mxu0 0.0
        %6384 = vmatprep.mubr.f32.mxu0 0.0
        %v6385 = vand.u32 %v5941, 4294901760
        %6386 = vmatmul.mubr.f32.gmra.mrb[0].mxu0 %v6385
        %v6387 = vpop.f32.mrb[0].mxu0
        %v6388 = vadd.f32 %v6316, %v6387
        %v6389 = vpop.f32.mrb[0].mxu0
        %6390 = vdwg.mxu0
        %v6391 = vsel %vm3080, %v6388, -inf
        %6392 = vmax.xlane.f32.xlu0 %v6391
        %v6393 = vpop.xlane.xlu0 %6392
        %v6394 = vsub.f32 %v6388, %v6393
        %v6395 = vmul.f32 %v6394, 1.442695
        %v6396 = vpow.pop %v6395
        %v6397 = vsel %vm3080, %v6396, 0.0
        %6398 = vadd.xlane.f32.xlu0 %v6397
        %v6399 = vpop.xlane.xlu0 %6398
        %6400 = vrot.lane.b32.xlu0 %v2994, 112
        %v6401 = vpop.permute.xlu0 %6400
        %v6404 = vsel %vm3080, %v6396, 0
        %6406 = vmatprep.subr.mxu0 0.0
        %v6407 = vand.u32 %v6401, 4294901760
        %6408 = vmatpush1.msra.mxu0 %v6407
        %6409 = vmatprep.subr.mxu0 0.0
        %6410 = vmatpush1.msra.mxu0 0.0
        %6411 = vmatprep.subr.mxu0 0.0
        %6412 = vmatpush1.msra.mxu0 0.0
        %6413 = vmatprep.subr.mxu0 0.0
        %6414 = vmatpush1.msra.mxu0 0.0
        %6415 = vmatprep.subr.mxu0 0.0
        %6416 = vmatpush1.msra.mxu0 0.0
        %6417 = vmatprep.subr.mxu0 0.0
        %6418 = vmatpush1.msra.mxu0 0.0
        %6419 = vmatprep.subr.mxu0 0.0
        %6420 = vmatpush1.msra.mxu0 0.0
        %6421 = vmatprep.subr.mxu0 0.0
        %6422 = vmatpush1.msra.mxu0 0.0
        %6423 = vmatprep.subr.mxu0 0.0
        %6424 = vmatpush1.msra.mxu0 0.0
        %6425 = vmatprep.subr.mxu0 0.0
        %6426 = vmatpush1.msra.mxu0 0.0
        %6427 = vmatprep.subr.mxu0 0.0
        %6428 = vmatpush1.msra.mxu0 0.0
        %6429 = vmatprep.subr.mxu0 0.0
        %6430 = vmatpush1.msra.mxu0 0.0
        %6431 = vmatprep.subr.mxu0 0.0
        %6432 = vmatpush1.msra.mxu0 0.0
        %6433 = vmatprep.subr.mxu0 0.0
        %6434 = vmatpush1.msra.mxu0 0.0
        %6435 = vmatprep.subr.mxu0 0.0
        %6436 = vmatpush1.msra.mxu0 0.0
        %6437 = vmatprep.subr.mxu0 0.0
        %6438 = vmatpush1.msra.mxu0 0.0
        %6439 = vmatprep.subr.mxu0 0.0
        %6440 = vmatpush1.msra.mxu0 0.0
        %6441 = vmatprep.subr.mxu0 0.0
        %6442 = vmatpush1.msra.mxu0 0.0
        %6443 = vmatprep.subr.mxu0 0.0
        %6444 = vmatpush1.msra.mxu0 0.0
        %6445 = vmatprep.subr.mxu0 0.0
        %6446 = vmatpush1.msra.mxu0 0.0
        %6447 = vmatprep.subr.mxu0 0.0
        %6448 = vmatpush1.msra.mxu0 0.0
        %6449 = vmatprep.subr.mxu0 0.0
        %6450 = vmatpush1.msra.mxu0 0.0
        %6451 = vmatprep.subr.mxu0 0.0
        %6452 = vmatpush1.msra.mxu0 0.0
        %6453 = vmatprep.subr.mxu0 0.0
        %6454 = vmatpush1.msra.mxu0 0.0
        %6455 = vmatprep.subr.mxu0 0.0
        %6456 = vmatpush1.msra.mxu0 0.0
        %6457 = vmatprep.subr.mxu0 0.0
        %6458 = vmatpush1.msra.mxu0 0.0
        %6459 = vmatprep.subr.mxu0 0.0
        %6460 = vmatpush1.msra.mxu0 0.0
        %6461 = vmatprep.subr.mxu0 0.0
        %6462 = vmatpush1.msra.mxu0 0.0
        %6463 = vmatprep.subr.mxu0 0.0
        %6464 = vmatpush1.msra.mxu0 0.0
        %6465 = vmatprep.subr.mxu0 0.0
        %6466 = vmatpush1.msra.mxu0 0.0
        %6467 = vmatprep.subr.mxu0 0.0
        %6468 = vmatpush1.msra.mxu0 0.0
        %6469 = vmatprep.subr.mxu0 0.0
        %6470 = vmatpush1.msra.mxu0 0.0
        %6471 = vmatprep.mubr.f32.mxu0 0.0
        %v6472 = vand.u32 %v6404, 4294901760
        %v6473 = vsub.f32 %v6404, %v6472
        %v6474 = vand.u32 %v6473, 4294901760
        %v6475 = vsub.f32 %v6473, %v6474
        %v6476 = vand.u32 %v6475, 4294901760
        %6477 = vmatmul.mubr.f32.gmra.mrb[0].mxu0 %v6476
        %v6478 = vpop.f32.mrb[0].mxu0
        %v6479 = vadd.f32 0.0, %v6478
        %v6480 = vpop.f32.mrb[0].mxu0
        %6481 = vdwg.mxu0
        %6482 = vmatprep.subr.mxu0 0.0
        %v6483 = vand.u32 %v6401, 4294901760
        %v6484 = vsub.f32 %v6401, %v6483
        %v6485 = vand.u32 %v6484, 4294901760
        %v6486 = vsub.f32 %v6484, %v6485
        %v6487 = vand.u32 %v6486, 4294901760
        %6488 = vmatpush1.msra.mxu0 %v6487
        %6489 = vmatprep.subr.mxu0 0.0
        %6490 = vmatpush1.msra.mxu0 0.0
        %6491 = vmatprep.subr.mxu0 0.0
        %6492 = vmatpush1.msra.mxu0 0.0
        %6493 = vmatprep.subr.mxu0 0.0
        %6494 = vmatpush1.msra.mxu0 0.0
        %6495 = vmatprep.subr.mxu0 0.0
        %6496 = vmatpush1.msra.mxu0 0.0
        %6497 = vmatprep.subr.mxu0 0.0
        %6498 = vmatpush1.msra.mxu0 0.0
        %6499 = vmatprep.subr.mxu0 0.0
        %6500 = vmatpush1.msra.mxu0 0.0
        %6501 = vmatprep.subr.mxu0 0.0
        %6502 = vmatpush1.msra.mxu0 0.0
        %6503 = vmatprep.subr.mxu0 0.0
        %6504 = vmatpush1.msra.mxu0 0.0
        %6505 = vmatprep.subr.mxu0 0.0
        %6506 = vmatpush1.msra.mxu0 0.0
        %6507 = vmatprep.subr.mxu0 0.0
        %6508 = vmatpush1.msra.mxu0 0.0
        %6509 = vmatprep.subr.mxu0 0.0
        %6510 = vmatpush1.msra.mxu0 0.0
        %6511 = vmatprep.subr.mxu0 0.0
        %6512 = vmatpush1.msra.mxu0 0.0
        %6513 = vmatprep.subr.mxu0 0.0
        %6514 = vmatpush1.msra.mxu0 0.0
        %6515 = vmatprep.subr.mxu0 0.0
        %6516 = vmatpush1.msra.mxu0 0.0
        %6517 = vmatprep.subr.mxu0 0.0
        %6518 = vmatpush1.msra.mxu0 0.0
        %6519 = vmatprep.subr.mxu0 0.0
        %6520 = vmatpush1.msra.mxu0 0.0
        %6521 = vmatprep.subr.mxu0 0.0
        %6522 = vmatpush1.msra.mxu0 0.0
        %6523 = vmatprep.subr.mxu0 0.0
        %6524 = vmatpush1.msra.mxu0 0.0
        %6525 = vmatprep.subr.mxu0 0.0
        %6526 = vmatpush1.msra.mxu0 0.0
        %6527 = vmatprep.subr.mxu0 0.0
        %6528 = vmatpush1.msra.mxu0 0.0
        %6529 = vmatprep.subr.mxu0 0.0
        %6530 = vmatpush1.msra.mxu0 0.0
        %6531 = vmatprep.subr.mxu0 0.0
        %6532 = vmatpush1.msra.mxu0 0.0
        %6533 = vmatprep.subr.mxu0 0.0
        %6534 = vmatpush1.msra.mxu0 0.0
        %6535 = vmatprep.subr.mxu0 0.0
        %6536 = vmatpush1.msra.mxu0 0.0
        %6537 = vmatprep.subr.mxu0 0.0
        %6538 = vmatpush1.msra.mxu0 0.0
        %6539 = vmatprep.subr.mxu0 0.0
        %6540 = vmatpush1.msra.mxu0 0.0
        %6541 = vmatprep.subr.mxu0 0.0
        %6542 = vmatpush1.msra.mxu0 0.0
        %6543 = vmatprep.subr.mxu0 0.0
        %6544 = vmatpush1.msra.mxu0 0.0
        %6545 = vmatprep.subr.mxu0 0.0
        %6546 = vmatpush1.msra.mxu0 0.0
        %6547 = vmatprep.subr.mxu0 0.0
        %6548 = vmatpush1.msra.mxu0 0.0
        %6549 = vmatprep.subr.mxu0 0.0
        %6550 = vmatpush1.msra.mxu0 0.0
        %6551 = vmatprep.mubr.f32.mxu0 0.0
        %v6552 = vand.u32 %v6404, 4294901760
        %6553 = vmatmul.mubr.f32.gmra.mrb[0].mxu0 %v6552
        %v6554 = vpop.f32.mrb[0].mxu0
        %v6555 = vadd.f32 %v6479, %v6554
        %v6556 = vpop.f32.mrb[0].mxu0
        %6557 = vdwg.mxu0
        %6558 = vmatprep.subr.mxu0 0.0
        %v6559 = vand.u32 %v6401, 4294901760
        %v6560 = vsub.f32 %v6401, %v6559
        %6561 = vmatpush1.msra.mxu0 %v6560
        %6562 = vmatprep.subr.mxu0 0.0
        %6563 = vmatpush1.msra.mxu0 0.0
        %6564 = vmatprep.subr.mxu0 0.0
        %6565 = vmatpush1.msra.mxu0 0.0
        %6566 = vmatprep.subr.mxu0 0.0
        %6567 = vmatpush1.msra.mxu0 0.0
        %6568 = vmatprep.subr.mxu0 0.0
        %6569 = vmatpush1.msra.mxu0 0.0
        %6570 = vmatprep.subr.mxu0 0.0
        %6571 = vmatpush1.msra.mxu0 0.0
        %6572 = vmatprep.subr.mxu0 0.0
        %6573 = vmatpush1.msra.mxu0 0.0
        %6574 = vmatprep.subr.mxu0 0.0
        %6575 = vmatpush1.msra.mxu0 0.0
        %6576 = vmatprep.subr.mxu0 0.0
        %6577 = vmatpush1.msra.mxu0 0.0
        %6578 = vmatprep.subr.mxu0 0.0
        %6579 = vmatpush1.msra.mxu0 0.0
        %6580 = vmatprep.subr.mxu0 0.0
        %6581 = vmatpush1.msra.mxu0 0.0
        %6582 = vmatprep.subr.mxu0 0.0
        %6583 = vmatpush1.msra.mxu0 0.0
        %6584 = vmatprep.subr.mxu0 0.0
        %6585 = vmatpush1.msra.mxu0 0.0
        %6586 = vmatprep.subr.mxu0 0.0
        %6587 = vmatpush1.msra.mxu0 0.0
        %6588 = vmatprep.subr.mxu0 0.0
        %6589 = vmatpush1.msra.mxu0 0.0
        %6590 = vmatprep.subr.mxu0 0.0
        %6591 = vmatpush1.msra.mxu0 0.0
        %6592 = vmatprep.subr.mxu0 0.0
        %6593 = vmatpush1.msra.mxu0 0.0
        %6594 = vmatprep.subr.mxu0 0.0
        %6595 = vmatpush1.msra.mxu0 0.0
        %6596 = vmatprep.subr.mxu0 0.0
        %6597 = vmatpush1.msra.mxu0 0.0
        %6598 = vmatprep.subr.mxu0 0.0
        %6599 = vmatpush1.msra.mxu0 0.0
        %6600 = vmatprep.subr.mxu0 0.0
        %6601 = vmatpush1.msra.mxu0 0.0
        %6602 = vmatprep.subr.mxu0 0.0
        %6603 = vmatpush1.msra.mxu0 0.0
        %6604 = vmatprep.subr.mxu0 0.0
        %6605 = vmatpush1.msra.mxu0 0.0
        %6606 = vmatprep.subr.mxu0 0.0
        %6607 = vmatpush1.msra.mxu0 0.0
        %6608 = vmatprep.subr.mxu0 0.0
        %6609 = vmatpush1.msra.mxu0 0.0
        %6610 = vmatprep.subr.mxu0 0.0
        %6611 = vmatpush1.msra.mxu0 0.0
        %6612 = vmatprep.subr.mxu0 0.0
        %6613 = vmatpush1.msra.mxu0 0.0
        %6614 = vmatprep.subr.mxu0 0.0
        %6615 = vmatpush1.msra.mxu0 0.0
        %6616 = vmatprep.subr.mxu0 0.0
        %6617 = vmatpush1.msra.mxu0 0.0
        %6618 = vmatprep.subr.mxu0 0.0
        %6619 = vmatpush1.msra.mxu0 0.0
        %6620 = vmatprep.subr.mxu0 0.0
        %6621 = vmatpush1.msra.mxu0 0.0
        %6622 = vmatprep.subr.mxu0 0.0
        %6623 = vmatpush1.msra.mxu0 0.0
        %6624 = vmatprep.mubr.f32.mxu0 0.0
        %v6625 = vand.u32 %v6404, 4294901760
        %v6626 = vsub.f32 %v6404, %v6625
        %6627 = vmatmul.mubr.f32.gmra.mrb[0].mxu0 %v6626
        %v6628 = vpop.f32.mrb[0].mxu0
        %v6629 = vadd.f32 %v6555, %v6628
        %v6630 = vpop.f32.mrb[0].mxu0
        %6631 = vdwg.mxu0
        %6632 = vmatprep.subr.mxu0 0.0
        %v6633 = vand.u32 %v6401, 4294901760
        %6634 = vmatpush1.msra.mxu0 %v6633
        %6635 = vmatprep.subr.mxu0 0.0
        %6636 = vmatpush1.msra.mxu0 0.0
        %6637 = vmatprep.subr.mxu0 0.0
        %6638 = vmatpush1.msra.mxu0 0.0
        %6639 = vmatprep.subr.mxu0 0.0
        %6640 = vmatpush1.msra.mxu0 0.0
        %6641 = vmatprep.subr.mxu0 0.0
        %6642 = vmatpush1.msra.mxu0 0.0
        %6643 = vmatprep.subr.mxu0 0.0
        %6644 = vmatpush1.msra.mxu0 0.0
        %6645 = vmatprep.subr.mxu0 0.0
        %6646 = vmatpush1.msra.mxu0 0.0
        %6647 = vmatprep.subr.mxu0 0.0
        %6648 = vmatpush1.msra.mxu0 0.0
        %6649 = vmatprep.subr.mxu0 0.0
        %6650 = vmatpush1.msra.mxu0 0.0
        %6651 = vmatprep.subr.mxu0 0.0
        %6652 = vmatpush1.msra.mxu0 0.0
        %6653 = vmatprep.subr.mxu0 0.0
        %6654 = vmatpush1.msra.mxu0 0.0
        %6655 = vmatprep.subr.mxu0 0.0
        %6656 = vmatpush1.msra.mxu0 0.0
        %6657 = vmatprep.subr.mxu0 0.0
        %6658 = vmatpush1.msra.mxu0 0.0
        %6659 = vmatprep.subr.mxu0 0.0
        %6660 = vmatpush1.msra.mxu0 0.0
        %6661 = vmatprep.subr.mxu0 0.0
        %6662 = vmatpush1.msra.mxu0 0.0
        %6663 = vmatprep.subr.mxu0 0.0
        %6664 = vmatpush1.msra.mxu0 0.0
        %6665 = vmatprep.subr.mxu0 0.0
        %6666 = vmatpush1.msra.mxu0 0.0
        %6667 = vmatprep.subr.mxu0 0.0
        %6668 = vmatpush1.msra.mxu0 0.0
        %6669 = vmatprep.subr.mxu0 0.0
        %6670 = vmatpush1.msra.mxu0 0.0
        %6671 = vmatprep.subr.mxu0 0.0
        %6672 = vmatpush1.msra.mxu0 0.0
        %6673 = vmatprep.subr.mxu0 0.0
        %6674 = vmatpush1.msra.mxu0 0.0
        %6675 = vmatprep.subr.mxu0 0.0
        %6676 = vmatpush1.msra.mxu0 0.0
        %6677 = vmatprep.subr.mxu0 0.0
        %6678 = vmatpush1.msra.mxu0 0.0
        %6679 = vmatprep.subr.mxu0 0.0
        %6680 = vmatpush1.msra.mxu0 0.0
        %6681 = vmatprep.subr.mxu0 0.0
        %6682 = vmatpush1.msra.mxu0 0.0
        %6683 = vmatprep.subr.mxu0 0.0
        %6684 = vmatpush1.msra.mxu0 0.0
        %6685 = vmatprep.subr.mxu0 0.0
        %6686 = vmatpush1.msra.mxu0 0.0
        %6687 = vmatprep.subr.mxu0 0.0
        %6688 = vmatpush1.msra.mxu0 0.0
        %6689 = vmatprep.subr.mxu0 0.0
        %6690 = vmatpush1.msra.mxu0 0.0
        %6691 = vmatprep.subr.mxu0 0.0
        %6692 = vmatpush1.msra.mxu0 0.0
        %6693 = vmatprep.subr.mxu0 0.0
        %6694 = vmatpush1.msra.mxu0 0.0
        %6695 = vmatprep.subr.mxu0 0.0
        %6696 = vmatpush1.msra.mxu0 0.0
        %6697 = vmatprep.mubr.f32.mxu0 0.0
        %v6698 = vand.u32 %v6404, 4294901760
        %v6699 = vsub.f32 %v6404, %v6698
        %v6700 = vand.u32 %v6699, 4294901760
        %6701 = vmatmul.mubr.f32.gmra.mrb[0].mxu0 %v6700
        %v6702 = vpop.f32.mrb[0].mxu0
        %v6703 = vadd.f32 %v6629, %v6702
        %v6704 = vpop.f32.mrb[0].mxu0
        %6705 = vdwg.mxu0
        %6706 = vmatprep.subr.mxu0 0.0
        %v6707 = vand.u32 %v6401, 4294901760
        %v6708 = vsub.f32 %v6401, %v6707
        %v6709 = vand.u32 %v6708, 4294901760
        %6710 = vmatpush1.msra.mxu0 %v6709
        %6711 = vmatprep.subr.mxu0 0.0
        %6712 = vmatpush1.msra.mxu0 0.0
        %6713 = vmatprep.subr.mxu0 0.0
        %6714 = vmatpush1.msra.mxu0 0.0
        %6715 = vmatprep.subr.mxu0 0.0
        %6716 = vmatpush1.msra.mxu0 0.0
        %6717 = vmatprep.subr.mxu0 0.0
        %6718 = vmatpush1.msra.mxu0 0.0
        %6719 = vmatprep.subr.mxu0 0.0
        %6720 = vmatpush1.msra.mxu0 0.0
        %6721 = vmatprep.subr.mxu0 0.0
        %6722 = vmatpush1.msra.mxu0 0.0
        %6723 = vmatprep.subr.mxu0 0.0
        %6724 = vmatpush1.msra.mxu0 0.0
        %6725 = vmatprep.subr.mxu0 0.0
        %6726 = vmatpush1.msra.mxu0 0.0
        %6727 = vmatprep.subr.mxu0 0.0
        %6728 = vmatpush1.msra.mxu0 0.0
        %6729 = vmatprep.subr.mxu0 0.0
        %6730 = vmatpush1.msra.mxu0 0.0
        %6731 = vmatprep.subr.mxu0 0.0
        %6732 = vmatpush1.msra.mxu0 0.0
        %6733 = vmatprep.subr.mxu0 0.0
        %6734 = vmatpush1.msra.mxu0 0.0
        %6735 = vmatprep.subr.mxu0 0.0
        %6736 = vmatpush1.msra.mxu0 0.0
        %6737 = vmatprep.subr.mxu0 0.0
        %6738 = vmatpush1.msra.mxu0 0.0
        %6739 = vmatprep.subr.mxu0 0.0
        %6740 = vmatpush1.msra.mxu0 0.0
        %6741 = vmatprep.subr.mxu0 0.0
        %6742 = vmatpush1.msra.mxu0 0.0
        %6743 = vmatprep.subr.mxu0 0.0
        %6744 = vmatpush1.msra.mxu0 0.0
        %6745 = vmatprep.subr.mxu0 0.0
        %6746 = vmatpush1.msra.mxu0 0.0
        %6747 = vmatprep.subr.mxu0 0.0
        %6748 = vmatpush1.msra.mxu0 0.0
        %6749 = vmatprep.subr.mxu0 0.0
        %6750 = vmatpush1.msra.mxu0 0.0
        %6751 = vmatprep.subr.mxu0 0.0
        %6752 = vmatpush1.msra.mxu0 0.0
        %6753 = vmatprep.subr.mxu0 0.0
        %6754 = vmatpush1.msra.mxu0 0.0
        %6755 = vmatprep.subr.mxu0 0.0
        %6756 = vmatpush1.msra.mxu0 0.0
        %6757 = vmatprep.subr.mxu0 0.0
        %6758 = vmatpush1.msra.mxu0 0.0
        %6759 = vmatprep.subr.mxu0 0.0
        %6760 = vmatpush1.msra.mxu0 0.0
        %6761 = vmatprep.subr.mxu0 0.0
        %6762 = vmatpush1.msra.mxu0 0.0
        %6763 = vmatprep.subr.mxu0 0.0
        %6764 = vmatpush1.msra.mxu0 0.0
        %6765 = vmatprep.subr.mxu0 0.0
        %6766 = vmatpush1.msra.mxu0 0.0
        %6767 = vmatprep.subr.mxu0 0.0
        %6768 = vmatpush1.msra.mxu0 0.0
        %6769 = vmatprep.subr.mxu0 0.0
        %6770 = vmatpush1.msra.mxu0 0.0
        %6771 = vmatprep.subr.mxu0 0.0
        %6772 = vmatpush1.msra.mxu0 0.0
        %6773 = vmatprep.mubr.f32.mxu0 0.0
        %v6774 = vand.u32 %v6404, 4294901760
        %6775 = vmatmul.mubr.f32.gmra.mrb[0].mxu0 %v6774
        %v6776 = vpop.f32.mrb[0].mxu0
        %v6777 = vadd.f32 %v6703, %v6776
        %v6778 = vpop.f32.mrb[0].mxu0
        %6779 = vdwg.mxu0
        %6780 = vmatprep.subr.mxu0 0.0
        %v6781 = vand.u32 %v6401, 4294901760
        %6782 = vmatpush1.msra.mxu0 %v6781
        %6783 = vmatprep.subr.mxu0 0.0
        %6784 = vmatpush1.msra.mxu0 0.0
        %6785 = vmatprep.subr.mxu0 0.0
        %6786 = vmatpush1.msra.mxu0 0.0
        %6787 = vmatprep.subr.mxu0 0.0
        %6788 = vmatpush1.msra.mxu0 0.0
        %6789 = vmatprep.subr.mxu0 0.0
        %6790 = vmatpush1.msra.mxu0 0.0
        %6791 = vmatprep.subr.mxu0 0.0
        %6792 = vmatpush1.msra.mxu0 0.0
        %6793 = vmatprep.subr.mxu0 0.0
        %6794 = vmatpush1.msra.mxu0 0.0
        %6795 = vmatprep.subr.mxu0 0.0
        %6796 = vmatpush1.msra.mxu0 0.0
        %6797 = vmatprep.subr.mxu0 0.0
        %6798 = vmatpush1.msra.mxu0 0.0
        %6799 = vmatprep.subr.mxu0 0.0
        %6800 = vmatpush1.msra.mxu0 0.0
        %6801 = vmatprep.subr.mxu0 0.0
        %6802 = vmatpush1.msra.mxu0 0.0
        %6803 = vmatprep.subr.mxu0 0.0
        %6804 = vmatpush1.msra.mxu0 0.0
        %6805 = vmatprep.subr.mxu0 0.0
        %6806 = vmatpush1.msra.mxu0 0.0
        %6807 = vmatprep.subr.mxu0 0.0
        %6808 = vmatpush1.msra.mxu0 0.0
        %6809 = vmatprep.subr.mxu0 0.0
        %6810 = vmatpush1.msra.mxu0 0.0
        %6811 = vmatprep.subr.mxu0 0.0
        %6812 = vmatpush1.msra.mxu0 0.0
        %6813 = vmatprep.subr.mxu0 0.0
        %6814 = vmatpush1.msra.mxu0 0.0
        %6815 = vmatprep.subr.mxu0 0.0
        %6816 = vmatpush1.msra.mxu0 0.0
        %6817 = vmatprep.subr.mxu0 0.0
        %6818 = vmatpush1.msra.mxu0 0.0
        %6819 = vmatprep.subr.mxu0 0.0
        %6820 = vmatpush1.msra.mxu0 0.0
        %6821 = vmatprep.subr.mxu0 0.0
        %6822 = vmatpush1.msra.mxu0 0.0
        %6823 = vmatprep.subr.mxu0 0.0
        %6824 = vmatpush1.msra.mxu0 0.0
        %6825 = vmatprep.subr.mxu0 0.0
        %6826 = vmatpush1.msra.mxu0 0.0
        %6827 = vmatprep.subr.mxu0 0.0
        %6828 = vmatpush1.msra.mxu0 0.0
        %6829 = vmatprep.subr.mxu0 0.0
        %6830 = vmatpush1.msra.mxu0 0.0
        %6831 = vmatprep.subr.mxu0 0.0
        %6832 = vmatpush1.msra.mxu0 0.0
        %6833 = vmatprep.subr.mxu0 0.0
        %6834 = vmatpush1.msra.mxu0 0.0
        %6835 = vmatprep.subr.mxu0 0.0
        %6836 = vmatpush1.msra.mxu0 0.0
        %6837 = vmatprep.subr.mxu0 0.0
        %6838 = vmatpush1.msra.mxu0 0.0
        %6839 = vmatprep.subr.mxu0 0.0
        %6840 = vmatpush1.msra.mxu0 0.0
        %6841 = vmatprep.subr.mxu0 0.0
        %6842 = vmatpush1.msra.mxu0 0.0
        %6843 = vmatprep.subr.mxu0 0.0
        %6844 = vmatpush1.msra.mxu0 0.0
        %6845 = vmatprep.mubr.f32.mxu0 0.0
        %v6846 = vand.u32 %v6404, 4294901760
        %6847 = vmatmul.mubr.f32.gmra.mrb[0].mxu0 %v6846
        %v6848 = vpop.f32.mrb[0].mxu0
        %v6849 = vadd.f32 %v6777, %v6848
        %v6850 = vpop.f32.mrb[0].mxu0
        %6851 = vdwg.mxu0
        %v6852 = vrcp.pop %v6399
        %v6853 = vmul.f32 %v6849, %v6852
        %v6855 = vsel %vm3080, %v6853, 0
        %6857 = vmatprep.subr.mxu0 0.0
        %v6858 = vand.u32 %v2997, 4294901760
        %6859 = vmatpush1.msra.mxu0 %v6858
        %6860 = vmatprep.subr.mxu0 0.0
        %6861 = vmatpush1.msra.mxu0 0.0
        %6862 = vmatprep.subr.mxu0 0.0
        %6863 = vmatpush1.msra.mxu0 0.0
        %6864 = vmatprep.subr.mxu0 0.0
        %6865 = vmatpush1.msra.mxu0 0.0
        %6866 = vmatprep.subr.mxu0 0.0
        %6867 = vmatpush1.msra.mxu0 0.0
        %6868 = vmatprep.subr.mxu0 0.0
        %6869 = vmatpush1.msra.mxu0 0.0
        %6870 = vmatprep.subr.mxu0 0.0
        %6871 = vmatpush1.msra.mxu0 0.0
        %6872 = vmatprep.subr.mxu0 0.0
        %6873 = vmatpush1.msra.mxu0 0.0
        %6874 = vmatprep.subr.mxu0 0.0
        %6875 = vmatpush1.msra.mxu0 0.0
        %6876 = vmatprep.subr.mxu0 0.0
        %6877 = vmatpush1.msra.mxu0 0.0
        %6878 = vmatprep.subr.mxu0 0.0
        %6879 = vmatpush1.msra.mxu0 0.0
        %6880 = vmatprep.subr.mxu0 0.0
        %6881 = vmatpush1.msra.mxu0 0.0
        %6882 = vmatprep.subr.mxu0 0.0
        %6883 = vmatpush1.msra.mxu0 0.0
        %6884 = vmatprep.subr.mxu0 0.0
        %6885 = vmatpush1.msra.mxu0 0.0
        %6886 = vmatprep.subr.mxu0 0.0
        %6887 = vmatpush1.msra.mxu0 0.0
        %6888 = vmatprep.subr.mxu0 0.0
        %6889 = vmatpush1.msra.mxu0 0.0
        %6890 = vmatprep.subr.mxu0 0.0
        %6891 = vmatpush1.msra.mxu0 0.0
        %6892 = vmatprep.subr.mxu0 0.0
        %6893 = vmatpush1.msra.mxu0 0.0
        %6894 = vmatprep.subr.mxu0 0.0
        %6895 = vmatpush1.msra.mxu0 0.0
        %6896 = vmatprep.subr.mxu0 0.0
        %6897 = vmatpush1.msra.mxu0 0.0
        %6898 = vmatprep.subr.mxu0 0.0
        %6899 = vmatpush1.msra.mxu0 0.0
        %6900 = vmatprep.subr.mxu0 0.0
        %6901 = vmatpush1.msra.mxu0 0.0
        %6902 = vmatprep.subr.mxu0 0.0
        %6903 = vmatpush1.msra.mxu0 0.0
        %6904 = vmatprep.subr.mxu0 0.0
        %6905 = vmatpush1.msra.mxu0 0.0
        %6906 = vmatprep.subr.mxu0 0.0
        %6907 = vmatpush1.msra.mxu0 0.0
        %6908 = vmatprep.subr.mxu0 0.0
        %6909 = vmatpush1.msra.mxu0 0.0
        %6910 = vmatprep.subr.mxu0 0.0
        %6911 = vmatpush1.msra.mxu0 0.0
        %6912 = vmatprep.subr.mxu0 0.0
        %6913 = vmatpush1.msra.mxu0 0.0
        %6914 = vmatprep.subr.mxu0 0.0
        %6915 = vmatpush1.msra.mxu0 0.0
        %6916 = vmatprep.subr.mxu0 0.0
        %6917 = vmatpush1.msra.mxu0 0.0
        %6918 = vmatprep.subr.mxu0 0.0
        %6919 = vmatpush1.msra.mxu0 0.0
        %6920 = vmatprep.subr.mxu0 0.0
        %6921 = vmatpush1.msra.mxu0 0.0
        %6922 = vmatprep.mubr.f32.mxu0 0.0
        %v6923 = vand.u32 %v6855, 4294901760
        %v6924 = vsub.f32 %v6855, %v6923
        %v6925 = vand.u32 %v6924, 4294901760
        %v6926 = vsub.f32 %v6924, %v6925
        %v6927 = vand.u32 %v6926, 4294901760
        %6928 = vmatmul.mubr.f32.gmra.mrb[0].mxu0 %v6927
        %v6929 = vpop.f32.mrb[0].mxu0
        %v6930 = vadd.f32 0.0, %v6929
        %v6931 = vpop.f32.mrb[0].mxu0
        %6932 = vdwg.mxu0
        %6933 = vmatprep.subr.mxu0 0.0
        %v6934 = vand.u32 %v2997, 4294901760
        %v6935 = vsub.f32 %v2997, %v6934
        %v6936 = vand.u32 %v6935, 4294901760
        %v6937 = vsub.f32 %v6935, %v6936
        %v6938 = vand.u32 %v6937, 4294901760
        %6939 = vmatpush1.msra.mxu0 %v6938
        %6940 = vmatprep.subr.mxu0 0.0
        %6941 = vmatpush1.msra.mxu0 0.0
        %6942 = vmatprep.subr.mxu0 0.0
        %6943 = vmatpush1.msra.mxu0 0.0
        %6944 = vmatprep.subr.mxu0 0.0
        %6945 = vmatpush1.msra.mxu0 0.0
        %6946 = vmatprep.subr.mxu0 0.0
        %6947 = vmatpush1.msra.mxu0 0.0
        %6948 = vmatprep.subr.mxu0 0.0
        %6949 = vmatpush1.msra.mxu0 0.0
        %6950 = vmatprep.subr.mxu0 0.0
        %6951 = vmatpush1.msra.mxu0 0.0
        %6952 = vmatprep.subr.mxu0 0.0
        %6953 = vmatpush1.msra.mxu0 0.0
        %6954 = vmatprep.subr.mxu0 0.0
        %6955 = vmatpush1.msra.mxu0 0.0
        %6956 = vmatprep.subr.mxu0 0.0
        %6957 = vmatpush1.msra.mxu0 0.0
        %6958 = vmatprep.subr.mxu0 0.0
        %6959 = vmatpush1.msra.mxu0 0.0
        %6960 = vmatprep.subr.mxu0 0.0
        %6961 = vmatpush1.msra.mxu0 0.0
        %6962 = vmatprep.subr.mxu0 0.0
        %6963 = vmatpush1.msra.mxu0 0.0
        %6964 = vmatprep.subr.mxu0 0.0
        %6965 = vmatpush1.msra.mxu0 0.0
        %6966 = vmatprep.subr.mxu0 0.0
        %6967 = vmatpush1.msra.mxu0 0.0
        %6968 = vmatprep.subr.mxu0 0.0
        %6969 = vmatpush1.msra.mxu0 0.0
        %6970 = vmatprep.subr.mxu0 0.0
        %6971 = vmatpush1.msra.mxu0 0.0
        %6972 = vmatprep.subr.mxu0 0.0
        %6973 = vmatpush1.msra.mxu0 0.0
        %6974 = vmatprep.subr.mxu0 0.0
        %6975 = vmatpush1.msra.mxu0 0.0
        %6976 = vmatprep.subr.mxu0 0.0
        %6977 = vmatpush1.msra.mxu0 0.0
        %6978 = vmatprep.subr.mxu0 0.0
        %6979 = vmatpush1.msra.mxu0 0.0
        %6980 = vmatprep.subr.mxu0 0.0
        %6981 = vmatpush1.msra.mxu0 0.0
        %6982 = vmatprep.subr.mxu0 0.0
        %6983 = vmatpush1.msra.mxu0 0.0
        %6984 = vmatprep.subr.mxu0 0.0
        %6985 = vmatpush1.msra.mxu0 0.0
        %6986 = vmatprep.subr.mxu0 0.0
        %6987 = vmatpush1.msra.mxu0 0.0
        %6988 = vmatprep.subr.mxu0 0.0
        %6989 = vmatpush1.msra.mxu0 0.0
        %6990 = vmatprep.subr.mxu0 0.0
        %6991 = vmatpush1.msra.mxu0 0.0
        %6992 = vmatprep.subr.mxu0 0.0
        %6993 = vmatpush1.msra.mxu0 0.0
        %6994 = vmatprep.subr.mxu0 0.0
        %6995 = vmatpush1.msra.mxu0 0.0
        %6996 = vmatprep.subr.mxu0 0.0
        %6997 = vmatpush1.msra.mxu0 0.0
        %6998 = vmatprep.subr.mxu0 0.0
        %6999 = vmatpush1.msra.mxu0 0.0
        %7000 = vmatprep.subr.mxu0 0.0
        %7001 = vmatpush1.msra.mxu0 0.0
        %7002 = vmatprep.mubr.f32.mxu0 0.0
        %v7003 = vand.u32 %v6855, 4294901760
        %7004 = vmatmul.mubr.f32.gmra.mrb[0].mxu0 %v7003
        %v7005 = vpop.f32.mrb[0].mxu0
        %v7006 = vadd.f32 %v6930, %v7005
        %v7007 = vpop.f32.mrb[0].mxu0
        %7008 = vdwg.mxu0
        %7009 = vmatprep.subr.mxu0 0.0
        %v7010 = vand.u32 %v2997, 4294901760
        %v7011 = vsub.f32 %v2997, %v7010
        %7012 = vmatpush1.msra.mxu0 %v7011
        %7013 = vmatprep.subr.mxu0 0.0
        %7014 = vmatpush1.msra.mxu0 0.0
        %7015 = vmatprep.subr.mxu0 0.0
        %7016 = vmatpush1.msra.mxu0 0.0
        %7017 = vmatprep.subr.mxu0 0.0
        %7018 = vmatpush1.msra.mxu0 0.0
        %7019 = vmatprep.subr.mxu0 0.0
        %7020 = vmatpush1.msra.mxu0 0.0
        %7021 = vmatprep.subr.mxu0 0.0
        %7022 = vmatpush1.msra.mxu0 0.0
        %7023 = vmatprep.subr.mxu0 0.0
        %7024 = vmatpush1.msra.mxu0 0.0
        %7025 = vmatprep.subr.mxu0 0.0
        %7026 = vmatpush1.msra.mxu0 0.0
        %7027 = vmatprep.subr.mxu0 0.0
        %7028 = vmatpush1.msra.mxu0 0.0
        %7029 = vmatprep.subr.mxu0 0.0
        %7030 = vmatpush1.msra.mxu0 0.0
        %7031 = vmatprep.subr.mxu0 0.0
        %7032 = vmatpush1.msra.mxu0 0.0
        %7033 = vmatprep.subr.mxu0 0.0
        %7034 = vmatpush1.msra.mxu0 0.0
        %7035 = vmatprep.subr.mxu0 0.0
        %7036 = vmatpush1.msra.mxu0 0.0
        %7037 = vmatprep.subr.mxu0 0.0
        %7038 = vmatpush1.msra.mxu0 0.0
        %7039 = vmatprep.subr.mxu0 0.0
        %7040 = vmatpush1.msra.mxu0 0.0
        %7041 = vmatprep.subr.mxu0 0.0
        %7042 = vmatpush1.msra.mxu0 0.0
        %7043 = vmatprep.subr.mxu0 0.0
        %7044 = vmatpush1.msra.mxu0 0.0
        %7045 = vmatprep.subr.mxu0 0.0
        %7046 = vmatpush1.msra.mxu0 0.0
        %7047 = vmatprep.subr.mxu0 0.0
        %7048 = vmatpush1.msra.mxu0 0.0
        %7049 = vmatprep.subr.mxu0 0.0
        %7050 = vmatpush1.msra.mxu0 0.0
        %7051 = vmatprep.subr.mxu0 0.0
        %7052 = vmatpush1.msra.mxu0 0.0
        %7053 = vmatprep.subr.mxu0 0.0
        %7054 = vmatpush1.msra.mxu0 0.0
        %7055 = vmatprep.subr.mxu0 0.0
        %7056 = vmatpush1.msra.mxu0 0.0
        %7057 = vmatprep.subr.mxu0 0.0
        %7058 = vmatpush1.msra.mxu0 0.0
        %7059 = vmatprep.subr.mxu0 0.0
        %7060 = vmatpush1.msra.mxu0 0.0
        %7061 = vmatprep.subr.mxu0 0.0
        %7062 = vmatpush1.msra.mxu0 0.0
        %7063 = vmatprep.subr.mxu0 0.0
        %7064 = vmatpush1.msra.mxu0 0.0
        %7065 = vmatprep.subr.mxu0 0.0
        %7066 = vmatpush1.msra.mxu0 0.0
        %7067 = vmatprep.subr.mxu0 0.0
        %7068 = vmatpush1.msra.mxu0 0.0
        %7069 = vmatprep.subr.mxu0 0.0
        %7070 = vmatpush1.msra.mxu0 0.0
        %7071 = vmatprep.subr.mxu0 0.0
        %7072 = vmatpush1.msra.mxu0 0.0
        %7073 = vmatprep.subr.mxu0 0.0
        %7074 = vmatpush1.msra.mxu0 0.0
        %7075 = vmatprep.mubr.f32.mxu0 0.0
        %v7076 = vand.u32 %v6855, 4294901760
        %v7077 = vsub.f32 %v6855, %v7076
        %7078 = vmatmul.mubr.f32.gmra.mrb[0].mxu0 %v7077
        %v7079 = vpop.f32.mrb[0].mxu0
        %v7080 = vadd.f32 %v7006, %v7079
        %v7081 = vpop.f32.mrb[0].mxu0
        %7082 = vdwg.mxu0
        %7083 = vmatprep.subr.mxu0 0.0
        %v7084 = vand.u32 %v2997, 4294901760
        %7085 = vmatpush1.msra.mxu0 %v7084
        %7086 = vmatprep.subr.mxu0 0.0
        %7087 = vmatpush1.msra.mxu0 0.0
        %7088 = vmatprep.subr.mxu0 0.0
        %7089 = vmatpush1.msra.mxu0 0.0
        %7090 = vmatprep.subr.mxu0 0.0
        %7091 = vmatpush1.msra.mxu0 0.0
        %7092 = vmatprep.subr.mxu0 0.0
        %7093 = vmatpush1.msra.mxu0 0.0
        %7094 = vmatprep.subr.mxu0 0.0
        %7095 = vmatpush1.msra.mxu0 0.0
        %7096 = vmatprep.subr.mxu0 0.0
        %7097 = vmatpush1.msra.mxu0 0.0
        %7098 = vmatprep.subr.mxu0 0.0
        %7099 = vmatpush1.msra.mxu0 0.0
        %7100 = vmatprep.subr.mxu0 0.0
        %7101 = vmatpush1.msra.mxu0 0.0
        %7102 = vmatprep.subr.mxu0 0.0
        %7103 = vmatpush1.msra.mxu0 0.0
        %7104 = vmatprep.subr.mxu0 0.0
        %7105 = vmatpush1.msra.mxu0 0.0
        %7106 = vmatprep.subr.mxu0 0.0
        %7107 = vmatpush1.msra.mxu0 0.0
        %7108 = vmatprep.subr.mxu0 0.0
        %7109 = vmatpush1.msra.mxu0 0.0
        %7110 = vmatprep.subr.mxu0 0.0
        %7111 = vmatpush1.msra.mxu0 0.0
        %7112 = vmatprep.subr.mxu0 0.0
        %7113 = vmatpush1.msra.mxu0 0.0
        %7114 = vmatprep.subr.mxu0 0.0
        %7115 = vmatpush1.msra.mxu0 0.0
        %7116 = vmatprep.subr.mxu0 0.0
        %7117 = vmatpush1.msra.mxu0 0.0
        %7118 = vmatprep.subr.mxu0 0.0
        %7119 = vmatpush1.msra.mxu0 0.0
        %7120 = vmatprep.subr.mxu0 0.0
        %7121 = vmatpush1.msra.mxu0 0.0
        %7122 = vmatprep.subr.mxu0 0.0
        %7123 = vmatpush1.msra.mxu0 0.0
        %7124 = vmatprep.subr.mxu0 0.0
        %7125 = vmatpush1.msra.mxu0 0.0
        %7126 = vmatprep.subr.mxu0 0.0
        %7127 = vmatpush1.msra.mxu0 0.0
        %7128 = vmatprep.subr.mxu0 0.0
        %7129 = vmatpush1.msra.mxu0 0.0
        %7130 = vmatprep.subr.mxu0 0.0
        %7131 = vmatpush1.msra.mxu0 0.0
        %7132 = vmatprep.subr.mxu0 0.0
        %7133 = vmatpush1.msra.mxu0 0.0
        %7134 = vmatprep.subr.mxu0 0.0
        %7135 = vmatpush1.msra.mxu0 0.0
        %7136 = vmatprep.subr.mxu0 0.0
        %7137 = vmatpush1.msra.mxu0 0.0
        %7138 = vmatprep.subr.mxu0 0.0
        %7139 = vmatpush1.msra.mxu0 0.0
        %7140 = vmatprep.subr.mxu0 0.0
        %7141 = vmatpush1.msra.mxu0 0.0
        %7142 = vmatprep.subr.mxu0 0.0
        %7143 = vmatpush1.msra.mxu0 0.0
        %7144 = vmatprep.subr.mxu0 0.0
        %7145 = vmatpush1.msra.mxu0 0.0
        %7146 = vmatprep.subr.mxu0 0.0
        %7147 = vmatpush1.msra.mxu0 0.0
        %7148 = vmatprep.mubr.f32.mxu0 0.0
        %v7149 = vand.u32 %v6855, 4294901760
        %v7150 = vsub.f32 %v6855, %v7149
        %v7151 = vand.u32 %v7150, 4294901760
        %7152 = vmatmul.mubr.f32.gmra.mrb[0].mxu0 %v7151
        %v7153 = vpop.f32.mrb[0].mxu0
        %v7154 = vadd.f32 %v7080, %v7153
        %v7155 = vpop.f32.mrb[0].mxu0
        %7156 = vdwg.mxu0
        %7157 = vmatprep.subr.mxu0 0.0
        %v7158 = vand.u32 %v2997, 4294901760
        %v7159 = vsub.f32 %v2997, %v7158
        %v7160 = vand.u32 %v7159, 4294901760
        %7161 = vmatpush1.msra.mxu0 %v7160
        %7162 = vmatprep.subr.mxu0 0.0
        %7163 = vmatpush1.msra.mxu0 0.0
        %7164 = vmatprep.subr.mxu0 0.0
        %7165 = vmatpush1.msra.mxu0 0.0
        %7166 = vmatprep.subr.mxu0 0.0
        %7167 = vmatpush1.msra.mxu0 0.0
        %7168 = vmatprep.subr.mxu0 0.0
        %7169 = vmatpush1.msra.mxu0 0.0
        %7170 = vmatprep.subr.mxu0 0.0
        %7171 = vmatpush1.msra.mxu0 0.0
        %7172 = vmatprep.subr.mxu0 0.0
        %7173 = vmatpush1.msra.mxu0 0.0
        %7174 = vmatprep.subr.mxu0 0.0
        %7175 = vmatpush1.msra.mxu0 0.0
        %7176 = vmatprep.subr.mxu0 0.0
        %7177 = vmatpush1.msra.mxu0 0.0
        %7178 = vmatprep.subr.mxu0 0.0
        %7179 = vmatpush1.msra.mxu0 0.0
        %7180 = vmatprep.subr.mxu0 0.0
        %7181 = vmatpush1.msra.mxu0 0.0
        %7182 = vmatprep.subr.mxu0 0.0
        %7183 = vmatpush1.msra.mxu0 0.0
        %7184 = vmatprep.subr.mxu0 0.0
        %7185 = vmatpush1.msra.mxu0 0.0
        %7186 = vmatprep.subr.mxu0 0.0
        %7187 = vmatpush1.msra.mxu0 0.0
        %7188 = vmatprep.subr.mxu0 0.0
        %7189 = vmatpush1.msra.mxu0 0.0
        %7190 = vmatprep.subr.mxu0 0.0
        %7191 = vmatpush1.msra.mxu0 0.0
        %7192 = vmatprep.subr.mxu0 0.0
        %7193 = vmatpush1.msra.mxu0 0.0
        %7194 = vmatprep.subr.mxu0 0.0
        %7195 = vmatpush1.msra.mxu0 0.0
        %7196 = vmatprep.subr.mxu0 0.0
        %7197 = vmatpush1.msra.mxu0 0.0
        %7198 = vmatprep.subr.mxu0 0.0
        %7199 = vmatpush1.msra.mxu0 0.0
        %7200 = vmatprep.subr.mxu0 0.0
        %7201 = vmatpush1.msra.mxu0 0.0
        %7202 = vmatprep.subr.mxu0 0.0
        %7203 = vmatpush1.msra.mxu0 0.0
        %7204 = vmatprep.subr.mxu0 0.0
        %7205 = vmatpush1.msra.mxu0 0.0
        %7206 = vmatprep.subr.mxu0 0.0
        %7207 = vmatpush1.msra.mxu0 0.0
        %7208 = vmatprep.subr.mxu0 0.0
        %7209 = vmatpush1.msra.mxu0 0.0
        %7210 = vmatprep.subr.mxu0 0.0
        %7211 = vmatpush1.msra.mxu0 0.0
        %7212 = vmatprep.subr.mxu0 0.0
        %7213 = vmatpush1.msra.mxu0 0.0
        %7214 = vmatprep.subr.mxu0 0.0
        %7215 = vmatpush1.msra.mxu0 0.0
        %7216 = vmatprep.subr.mxu0 0.0
        %7217 = vmatpush1.msra.mxu0 0.0
        %7218 = vmatprep.subr.mxu0 0.0
        %7219 = vmatpush1.msra.mxu0 0.0
        %7220 = vmatprep.subr.mxu0 0.0
        %7221 = vmatpush1.msra.mxu0 0.0
        %7222 = vmatprep.subr.mxu0 0.0
        %7223 = vmatpush1.msra.mxu0 0.0
        %7224 = vmatprep.mubr.f32.mxu0 0.0
        %v7225 = vand.u32 %v6855, 4294901760
        %7226 = vmatmul.mubr.f32.gmra.mrb[0].mxu0 %v7225
        %v7227 = vpop.f32.mrb[0].mxu0
        %v7228 = vadd.f32 %v7154, %v7227
        %v7229 = vpop.f32.mrb[0].mxu0
        %7230 = vdwg.mxu0
        %7231 = vmatprep.subr.mxu0 0.0
        %v7232 = vand.u32 %v2997, 4294901760
        %7233 = vmatpush1.msra.mxu0 %v7232
        %7234 = vmatprep.subr.mxu0 0.0
        %7235 = vmatpush1.msra.mxu0 0.0
        %7236 = vmatprep.subr.mxu0 0.0
        %7237 = vmatpush1.msra.mxu0 0.0
        %7238 = vmatprep.subr.mxu0 0.0
        %7239 = vmatpush1.msra.mxu0 0.0
        %7240 = vmatprep.subr.mxu0 0.0
        %7241 = vmatpush1.msra.mxu0 0.0
        %7242 = vmatprep.subr.mxu0 0.0
        %7243 = vmatpush1.msra.mxu0 0.0
        %7244 = vmatprep.subr.mxu0 0.0
        %7245 = vmatpush1.msra.mxu0 0.0
        %7246 = vmatprep.subr.mxu0 0.0
        %7247 = vmatpush1.msra.mxu0 0.0
        %7248 = vmatprep.subr.mxu0 0.0
        %7249 = vmatpush1.msra.mxu0 0.0
        %7250 = vmatprep.subr.mxu0 0.0
        %7251 = vmatpush1.msra.mxu0 0.0
        %7252 = vmatprep.subr.mxu0 0.0
        %7253 = vmatpush1.msra.mxu0 0.0
        %7254 = vmatprep.subr.mxu0 0.0
        %7255 = vmatpush1.msra.mxu0 0.0
        %7256 = vmatprep.subr.mxu0 0.0
        %7257 = vmatpush1.msra.mxu0 0.0
        %7258 = vmatprep.subr.mxu0 0.0
        %7259 = vmatpush1.msra.mxu0 0.0
        %7260 = vmatprep.subr.mxu0 0.0
        %7261 = vmatpush1.msra.mxu0 0.0
        %7262 = vmatprep.subr.mxu0 0.0
        %7263 = vmatpush1.msra.mxu0 0.0
        %7264 = vmatprep.subr.mxu0 0.0
        %7265 = vmatpush1.msra.mxu0 0.0
        %7266 = vmatprep.subr.mxu0 0.0
        %7267 = vmatpush1.msra.mxu0 0.0
        %7268 = vmatprep.subr.mxu0 0.0
        %7269 = vmatpush1.msra.mxu0 0.0
        %7270 = vmatprep.subr.mxu0 0.0
        %7271 = vmatpush1.msra.mxu0 0.0
        %7272 = vmatprep.subr.mxu0 0.0
        %7273 = vmatpush1.msra.mxu0 0.0
        %7274 = vmatprep.subr.mxu0 0.0
        %7275 = vmatpush1.msra.mxu0 0.0
        %7276 = vmatprep.subr.mxu0 0.0
        %7277 = vmatpush1.msra.mxu0 0.0
        %7278 = vmatprep.subr.mxu0 0.0
        %7279 = vmatpush1.msra.mxu0 0.0
        %7280 = vmatprep.subr.mxu0 0.0
        %7281 = vmatpush1.msra.mxu0 0.0
        %7282 = vmatprep.subr.mxu0 0.0
        %7283 = vmatpush1.msra.mxu0 0.0
        %7284 = vmatprep.subr.mxu0 0.0
        %7285 = vmatpush1.msra.mxu0 0.0
        %7286 = vmatprep.subr.mxu0 0.0
        %7287 = vmatpush1.msra.mxu0 0.0
        %7288 = vmatprep.subr.mxu0 0.0
        %7289 = vmatpush1.msra.mxu0 0.0
        %7290 = vmatprep.subr.mxu0 0.0
        %7291 = vmatpush1.msra.mxu0 0.0
        %7292 = vmatprep.subr.mxu0 0.0
        %7293 = vmatpush1.msra.mxu0 0.0
        %7294 = vmatprep.subr.mxu0 0.0
        %7295 = vmatpush1.msra.mxu0 0.0
        %7296 = vmatprep.mubr.f32.mxu0 0.0
        %v7297 = vand.u32 %v6855, 4294901760
        %7298 = vmatmul.mubr.f32.gmra.mrb[0].mxu0 %v7297
        %v7299 = vpop.f32.mrb[0].mxu0
        %v7300 = vadd.f32 %v7228, %v7299
        %v7301 = vpop.f32.mrb[0].mxu0
        %7302 = vdwg.mxu0
        %v7303 = vadd.f32 %v5870, %v7300
        %7304 = vrot.lane.b32.xlu0 %v2190, 104
        %v7305 = vpop.permute.xlu0 %7304
        %7306 = vrot.lane.b32.xlu0 %v2993, 104
        %v7307 = vpop.permute.xlu0 %7306
        %7308 = vset.pattern.permute.xlu0 3
        %7309 = vperm.xlu0 %7308, %v2948
        %v7310 = vpop.permute.xlu0 %7309
        %7311 = vset.pattern.permute.xlu0 3
        %7312 = vperm.xlu0 %7311, %v2954
        %v7313 = vpop.permute.xlu0 %7312
        %7314 = vset.pattern.permute.xlu0 3
        %7315 = vperm.xlu0 %7314, %v2960
        %v7316 = vpop.permute.xlu0 %7315
        %7317 = vset.pattern.permute.xlu0 3
        %7318 = vperm.xlu0 %7317, %v2966
        %v7319 = vpop.permute.xlu0 %7318
        %7320 = vset.pattern.permute.xlu0 3
        %7321 = vperm.xlu0 %7320, %v2972
        %v7322 = vpop.permute.xlu0 %7321
        %7323 = vset.pattern.permute.xlu0 3
        %7324 = vperm.xlu0 %7323, %v2978
        %v7325 = vpop.permute.xlu0 %7324
        %7326 = vset.pattern.permute.xlu0 3
        %7327 = vperm.xlu0 %7326, %v2984
        %v7328 = vpop.permute.xlu0 %7327
        %7329 = vset.pattern.permute.xlu0 3
        %7330 = vperm.xlu0 %7329, %v2990
        %v7331 = vpop.permute.xlu0 %7330
        %v7332 = vlaneseq
        %v7333 = vshrl.u32 %v7332, 7
        %v7334 = vsub.s32 %v3032, %v7333
        %v7335 = vrot.slane %v7310, %v7334
        %v7336 = vlaneseq
        %v7337 = vshrl.u32 %v7336, 7
        %v7338 = vsub.s32 %v3032, %v7337
        %v7339 = vrot.slane %v7313, %v7338
        %v7340 = vlaneseq
        %v7341 = vshrl.u32 %v7340, 7
        %v7342 = vsub.s32 %v3032, %v7341
        %v7343 = vrot.slane %v7316, %v7342
        %v7344 = vlaneseq
        %v7345 = vshrl.u32 %v7344, 7
        %v7346 = vsub.s32 %v3032, %v7345
        %v7347 = vrot.slane %v7319, %v7346
        %v7348 = vlaneseq
        %v7349 = vshrl.u32 %v7348, 7
        %v7350 = vsub.s32 %v3032, %v7349
        %v7351 = vrot.slane %v7322, %v7350
        %v7352 = vlaneseq
        %v7353 = vshrl.u32 %v7352, 7
        %v7354 = vsub.s32 %v3032, %v7353
        %v7355 = vrot.slane %v7325, %v7354
        %v7356 = vlaneseq
        %v7357 = vshrl.u32 %v7356, 7
        %v7358 = vsub.s32 %v3032, %v7357
        %v7359 = vrot.slane %v7328, %v7358
        %v7360 = vlaneseq
        %v7361 = vshrl.u32 %v7360, 7
        %v7362 = vsub.s32 %v3032, %v7361
        %v7363 = vrot.slane %v7331, %v7362
        %v7364 = vsel %vm3065, %v7339, %v7335
        %v7365 = vsel %vm3067, %v7343, %v7364
        %v7366 = vsel %vm3069, %v7347, %v7365
        %v7367 = vsel %vm3071, %v7351, %v7366
        %v7368 = vsel %vm3073, %v7355, %v7367
        %v7369 = vsel %vm3075, %v7359, %v7368
        %v7370 = vsel %vm3077, %v7363, %v7369
        %v7372 = vsel %vm3080, %v7305, 0
        %v7374 = vsel %vm3080, %v7307, 0
        %7376 = vmatprep.subr.mxu0 0.0
        %v7377 = vand.u32 %v7374, 4294901760
        %7378 = vmatpush1.xpose.msra.mxu0 %v7377
        %7379 = vmatprep.subr.mxu0 0.0
        %7380 = vmatpush1.xpose.msra.mxu0 0.0
        %7381 = vmatprep.subr.mxu0 0.0
        %7382 = vmatpush1.xpose.msra.mxu0 0.0
        %7383 = vmatprep.subr.mxu0 0.0
        %7384 = vmatpush1.xpose.msra.mxu0 0.0
        %7385 = vmatprep.subr.mxu0 0.0
        %7386 = vmatpush1.xpose.msra.mxu0 0.0
        %7387 = vmatprep.subr.mxu0 0.0
        %7388 = vmatpush1.xpose.msra.mxu0 0.0
        %7389 = vmatprep.subr.mxu0 0.0
        %7390 = vmatpush1.xpose.msra.mxu0 0.0
        %7391 = vmatprep.subr.mxu0 0.0
        %7392 = vmatpush1.xpose.msra.mxu0 0.0
        %7393 = vmatprep.subr.mxu0 0.0
        %7394 = vmatpush1.xpose.msra.mxu0 0.0
        %7395 = vmatprep.subr.mxu0 0.0
        %7396 = vmatpush1.xpose.msra.mxu0 0.0
        %7397 = vmatprep.subr.mxu0 0.0
        %7398 = vmatpush1.xpose.msra.mxu0 0.0
        %7399 = vmatprep.subr.mxu0 0.0
        %7400 = vmatpush1.xpose.msra.mxu0 0.0
        %7401 = vmatprep.subr.mxu0 0.0
        %7402 = vmatpush1.xpose.msra.mxu0 0.0
        %7403 = vmatprep.subr.mxu0 0.0
        %7404 = vmatpush1.xpose.msra.mxu0 0.0
        %7405 = vmatprep.subr.mxu0 0.0
        %7406 = vmatpush1.xpose.msra.mxu0 0.0
        %7407 = vmatprep.subr.mxu0 0.0
        %7408 = vmatpush1.xpose.msra.mxu0 0.0
        %7409 = vmatprep.subr.mxu0 0.0
        %7410 = vmatpush1.xpose.msra.mxu0 0.0
        %7411 = vmatprep.subr.mxu0 0.0
        %7412 = vmatpush1.xpose.msra.mxu0 0.0
        %7413 = vmatprep.subr.mxu0 0.0
        %7414 = vmatpush1.xpose.msra.mxu0 0.0
        %7415 = vmatprep.subr.mxu0 0.0
        %7416 = vmatpush1.xpose.msra.mxu0 0.0
        %7417 = vmatprep.subr.mxu0 0.0
        %7418 = vmatpush1.xpose.msra.mxu0 0.0
        %7419 = vmatprep.subr.mxu0 0.0
        %7420 = vmatpush1.xpose.msra.mxu0 0.0
        %7421 = vmatprep.subr.mxu0 0.0
        %7422 = vmatpush1.xpose.msra.mxu0 0.0
        %7423 = vmatprep.subr.mxu0 0.0
        %7424 = vmatpush1.xpose.msra.mxu0 0.0
        %7425 = vmatprep.subr.mxu0 0.0
        %7426 = vmatpush1.xpose.msra.mxu0 0.0
        %7427 = vmatprep.subr.mxu0 0.0
        %7428 = vmatpush1.xpose.msra.mxu0 0.0
        %7429 = vmatprep.subr.mxu0 0.0
        %7430 = vmatpush1.xpose.msra.mxu0 0.0
        %7431 = vmatprep.subr.mxu0 0.0
        %7432 = vmatpush1.xpose.msra.mxu0 0.0
        %7433 = vmatprep.subr.mxu0 0.0
        %7434 = vmatpush1.xpose.msra.mxu0 0.0
        %7435 = vmatprep.subr.mxu0 0.0
        %7436 = vmatpush1.xpose.msra.mxu0 0.0
        %7437 = vmatprep.subr.mxu0 0.0
        %7438 = vmatpush1.xpose.msra.mxu0 0.0
        %7439 = vmatprep.subr.mxu0 0.0
        %7440 = vmatpush1.xpose.msra.mxu0 0.0
        %7441 = vmatprep.mubr.f32.mxu0 0.0
        %v7442 = vand.u32 %v7372, 4294901760
        %v7443 = vsub.f32 %v7372, %v7442
        %v7444 = vand.u32 %v7443, 4294901760
        %v7445 = vsub.f32 %v7443, %v7444
        %v7446 = vand.u32 %v7445, 4294901760
        %7447 = vmatmul.mubr.f32.gmra.mrb[0].mxu0 %v7446
        %v7448 = vpop.f32.mrb[0].mxu0
        %v7449 = vadd.f32 %v7370, %v7448
        %v7450 = vpop.f32.mrb[0].mxu0
        %7451 = vdwg.mxu0
        %7452 = vmatprep.subr.mxu0 0.0
        %v7453 = vand.u32 %v7374, 4294901760
        %v7454 = vsub.f32 %v7374, %v7453
        %v7455 = vand.u32 %v7454, 4294901760
        %v7456 = vsub.f32 %v7454, %v7455
        %v7457 = vand.u32 %v7456, 4294901760
        %7458 = vmatpush1.xpose.msra.mxu0 %v7457
        %7459 = vmatprep.subr.mxu0 0.0
        %7460 = vmatpush1.xpose.msra.mxu0 0.0
        %7461 = vmatprep.subr.mxu0 0.0
        %7462 = vmatpush1.xpose.msra.mxu0 0.0
        %7463 = vmatprep.subr.mxu0 0.0
        %7464 = vmatpush1.xpose.msra.mxu0 0.0
        %7465 = vmatprep.subr.mxu0 0.0
        %7466 = vmatpush1.xpose.msra.mxu0 0.0
        %7467 = vmatprep.subr.mxu0 0.0
        %7468 = vmatpush1.xpose.msra.mxu0 0.0
        %7469 = vmatprep.subr.mxu0 0.0
        %7470 = vmatpush1.xpose.msra.mxu0 0.0
        %7471 = vmatprep.subr.mxu0 0.0
        %7472 = vmatpush1.xpose.msra.mxu0 0.0
        %7473 = vmatprep.subr.mxu0 0.0
        %7474 = vmatpush1.xpose.msra.mxu0 0.0
        %7475 = vmatprep.subr.mxu0 0.0
        %7476 = vmatpush1.xpose.msra.mxu0 0.0
        %7477 = vmatprep.subr.mxu0 0.0
        %7478 = vmatpush1.xpose.msra.mxu0 0.0
        %7479 = vmatprep.subr.mxu0 0.0
        %7480 = vmatpush1.xpose.msra.mxu0 0.0
        %7481 = vmatprep.subr.mxu0 0.0
        %7482 = vmatpush1.xpose.msra.mxu0 0.0
        %7483 = vmatprep.subr.mxu0 0.0
        %7484 = vmatpush1.xpose.msra.mxu0 0.0
        %7485 = vmatprep.subr.mxu0 0.0
        %7486 = vmatpush1.xpose.msra.mxu0 0.0
        %7487 = vmatprep.subr.mxu0 0.0
        %7488 = vmatpush1.xpose.msra.mxu0 0.0
        %7489 = vmatprep.subr.mxu0 0.0
        %7490 = vmatpush1.xpose.msra.mxu0 0.0
        %7491 = vmatprep.subr.mxu0 0.0
        %7492 = vmatpush1.xpose.msra.mxu0 0.0
        %7493 = vmatprep.subr.mxu0 0.0
        %7494 = vmatpush1.xpose.msra.mxu0 0.0
        %7495 = vmatprep.subr.mxu0 0.0
        %7496 = vmatpush1.xpose.msra.mxu0 0.0
        %7497 = vmatprep.subr.mxu0 0.0
        %7498 = vmatpush1.xpose.msra.mxu0 0.0
        %7499 = vmatprep.subr.mxu0 0.0
        %7500 = vmatpush1.xpose.msra.mxu0 0.0
        %7501 = vmatprep.subr.mxu0 0.0
        %7502 = vmatpush1.xpose.msra.mxu0 0.0
        %7503 = vmatprep.subr.mxu0 0.0
        %7504 = vmatpush1.xpose.msra.mxu0 0.0
        %7505 = vmatprep.subr.mxu0 0.0
        %7506 = vmatpush1.xpose.msra.mxu0 0.0
        %7507 = vmatprep.subr.mxu0 0.0
        %7508 = vmatpush1.xpose.msra.mxu0 0.0
        %7509 = vmatprep.subr.mxu0 0.0
        %7510 = vmatpush1.xpose.msra.mxu0 0.0
        %7511 = vmatprep.subr.mxu0 0.0
        %7512 = vmatpush1.xpose.msra.mxu0 0.0
        %7513 = vmatprep.subr.mxu0 0.0
        %7514 = vmatpush1.xpose.msra.mxu0 0.0
        %7515 = vmatprep.subr.mxu0 0.0
        %7516 = vmatpush1.xpose.msra.mxu0 0.0
        %7517 = vmatprep.subr.mxu0 0.0
        %7518 = vmatpush1.xpose.msra.mxu0 0.0
        %7519 = vmatprep.subr.mxu0 0.0
        %7520 = vmatpush1.xpose.msra.mxu0 0.0
        %7521 = vmatprep.mubr.f32.mxu0 0.0
        %v7522 = vand.u32 %v7372, 4294901760
        %7523 = vmatmul.mubr.f32.gmra.mrb[0].mxu0 %v7522
        %v7524 = vpop.f32.mrb[0].mxu0
        %v7525 = vadd.f32 %v7449, %v7524
        %v7526 = vpop.f32.mrb[0].mxu0
        %7527 = vdwg.mxu0
        %7528 = vmatprep.subr.mxu0 0.0
        %v7529 = vand.u32 %v7374, 4294901760
        %v7530 = vsub.f32 %v7374, %v7529
        %7531 = vmatpush1.xpose.msra.mxu0 %v7530
        %7532 = vmatprep.subr.mxu0 0.0
        %7533 = vmatpush1.xpose.msra.mxu0 0.0
        %7534 = vmatprep.subr.mxu0 0.0
        %7535 = vmatpush1.xpose.msra.mxu0 0.0
        %7536 = vmatprep.subr.mxu0 0.0
        %7537 = vmatpush1.xpose.msra.mxu0 0.0
        %7538 = vmatprep.subr.mxu0 0.0
        %7539 = vmatpush1.xpose.msra.mxu0 0.0
        %7540 = vmatprep.subr.mxu0 0.0
        %7541 = vmatpush1.xpose.msra.mxu0 0.0
        %7542 = vmatprep.subr.mxu0 0.0
        %7543 = vmatpush1.xpose.msra.mxu0 0.0
        %7544 = vmatprep.subr.mxu0 0.0
        %7545 = vmatpush1.xpose.msra.mxu0 0.0
        %7546 = vmatprep.subr.mxu0 0.0
        %7547 = vmatpush1.xpose.msra.mxu0 0.0
        %7548 = vmatprep.subr.mxu0 0.0
        %7549 = vmatpush1.xpose.msra.mxu0 0.0
        %7550 = vmatprep.subr.mxu0 0.0
        %7551 = vmatpush1.xpose.msra.mxu0 0.0
        %7552 = vmatprep.subr.mxu0 0.0
        %7553 = vmatpush1.xpose.msra.mxu0 0.0
        %7554 = vmatprep.subr.mxu0 0.0
        %7555 = vmatpush1.xpose.msra.mxu0 0.0
        %7556 = vmatprep.subr.mxu0 0.0
        %7557 = vmatpush1.xpose.msra.mxu0 0.0
        %7558 = vmatprep.subr.mxu0 0.0
        %7559 = vmatpush1.xpose.msra.mxu0 0.0
        %7560 = vmatprep.subr.mxu0 0.0
        %7561 = vmatpush1.xpose.msra.mxu0 0.0
        %7562 = vmatprep.subr.mxu0 0.0
        %7563 = vmatpush1.xpose.msra.mxu0 0.0
        %7564 = vmatprep.subr.mxu0 0.0
        %7565 = vmatpush1.xpose.msra.mxu0 0.0
        %7566 = vmatprep.subr.mxu0 0.0
        %7567 = vmatpush1.xpose.msra.mxu0 0.0
        %7568 = vmatprep.subr.mxu0 0.0
        %7569 = vmatpush1.xpose.msra.mxu0 0.0
        %7570 = vmatprep.subr.mxu0 0.0
        %7571 = vmatpush1.xpose.msra.mxu0 0.0
        %7572 = vmatprep.subr.mxu0 0.0
        %7573 = vmatpush1.xpose.msra.mxu0 0.0
        %7574 = vmatprep.subr.mxu0 0.0
        %7575 = vmatpush1.xpose.msra.mxu0 0.0
        %7576 = vmatprep.subr.mxu0 0.0
        %7577 = vmatpush1.xpose.msra.mxu0 0.0
        %7578 = vmatprep.subr.mxu0 0.0
        %7579 = vmatpush1.xpose.msra.mxu0 0.0
        %7580 = vmatprep.subr.mxu0 0.0
        %7581 = vmatpush1.xpose.msra.mxu0 0.0
        %7582 = vmatprep.subr.mxu0 0.0
        %7583 = vmatpush1.xpose.msra.mxu0 0.0
        %7584 = vmatprep.subr.mxu0 0.0
        %7585 = vmatpush1.xpose.msra.mxu0 0.0
        %7586 = vmatprep.subr.mxu0 0.0
        %7587 = vmatpush1.xpose.msra.mxu0 0.0
        %7588 = vmatprep.subr.mxu0 0.0
        %7589 = vmatpush1.xpose.msra.mxu0 0.0
        %7590 = vmatprep.subr.mxu0 0.0
        %7591 = vmatpush1.xpose.msra.mxu0 0.0
        %7592 = vmatprep.subr.mxu0 0.0
        %7593 = vmatpush1.xpose.msra.mxu0 0.0
        %7594 = vmatprep.mubr.f32.mxu0 0.0
        %v7595 = vand.u32 %v7372, 4294901760
        %v7596 = vsub.f32 %v7372, %v7595
        %7597 = vmatmul.mubr.f32.gmra.mrb[0].mxu0 %v7596
        %v7598 = vpop.f32.mrb[0].mxu0
        %v7599 = vadd.f32 %v7525, %v7598
        %v7600 = vpop.f32.mrb[0].mxu0
        %7601 = vdwg.mxu0
        %7602 = vmatprep.subr.mxu0 0.0
        %v7603 = vand.u32 %v7374, 4294901760
        %7604 = vmatpush1.xpose.msra.mxu0 %v7603
        %7605 = vmatprep.subr.mxu0 0.0
        %7606 = vmatpush1.xpose.msra.mxu0 0.0
        %7607 = vmatprep.subr.mxu0 0.0
        %7608 = vmatpush1.xpose.msra.mxu0 0.0
        %7609 = vmatprep.subr.mxu0 0.0
        %7610 = vmatpush1.xpose.msra.mxu0 0.0
        %7611 = vmatprep.subr.mxu0 0.0
        %7612 = vmatpush1.xpose.msra.mxu0 0.0
        %7613 = vmatprep.subr.mxu0 0.0
        %7614 = vmatpush1.xpose.msra.mxu0 0.0
        %7615 = vmatprep.subr.mxu0 0.0
        %7616 = vmatpush1.xpose.msra.mxu0 0.0
        %7617 = vmatprep.subr.mxu0 0.0
        %7618 = vmatpush1.xpose.msra.mxu0 0.0
        %7619 = vmatprep.subr.mxu0 0.0
        %7620 = vmatpush1.xpose.msra.mxu0 0.0
        %7621 = vmatprep.subr.mxu0 0.0
        %7622 = vmatpush1.xpose.msra.mxu0 0.0
        %7623 = vmatprep.subr.mxu0 0.0
        %7624 = vmatpush1.xpose.msra.mxu0 0.0
        %7625 = vmatprep.subr.mxu0 0.0
        %7626 = vmatpush1.xpose.msra.mxu0 0.0
        %7627 = vmatprep.subr.mxu0 0.0
        %7628 = vmatpush1.xpose.msra.mxu0 0.0
        %7629 = vmatprep.subr.mxu0 0.0
        %7630 = vmatpush1.xpose.msra.mxu0 0.0
        %7631 = vmatprep.subr.mxu0 0.0
        %7632 = vmatpush1.xpose.msra.mxu0 0.0
        %7633 = vmatprep.subr.mxu0 0.0
        %7634 = vmatpush1.xpose.msra.mxu0 0.0
        %7635 = vmatprep.subr.mxu0 0.0
        %7636 = vmatpush1.xpose.msra.mxu0 0.0
        %7637 = vmatprep.subr.mxu0 0.0
        %7638 = vmatpush1.xpose.msra.mxu0 0.0
        %7639 = vmatprep.subr.mxu0 0.0
        %7640 = vmatpush1.xpose.msra.mxu0 0.0
        %7641 = vmatprep.subr.mxu0 0.0
        %7642 = vmatpush1.xpose.msra.mxu0 0.0
        %7643 = vmatprep.subr.mxu0 0.0
        %7644 = vmatpush1.xpose.msra.mxu0 0.0
        %7645 = vmatprep.subr.mxu0 0.0
        %7646 = vmatpush1.xpose.msra.mxu0 0.0
        %7647 = vmatprep.subr.mxu0 0.0
        %7648 = vmatpush1.xpose.msra.mxu0 0.0
        %7649 = vmatprep.subr.mxu0 0.0
        %7650 = vmatpush1.xpose.msra.mxu0 0.0
        %7651 = vmatprep.subr.mxu0 0.0
        %7652 = vmatpush1.xpose.msra.mxu0 0.0
        %7653 = vmatprep.subr.mxu0 0.0
        %7654 = vmatpush1.xpose.msra.mxu0 0.0
        %7655 = vmatprep.subr.mxu0 0.0
        %7656 = vmatpush1.xpose.msra.mxu0 0.0
        %7657 = vmatprep.subr.mxu0 0.0
        %7658 = vmatpush1.xpose.msra.mxu0 0.0
        %7659 = vmatprep.subr.mxu0 0.0
        %7660 = vmatpush1.xpose.msra.mxu0 0.0
        %7661 = vmatprep.subr.mxu0 0.0
        %7662 = vmatpush1.xpose.msra.mxu0 0.0
        %7663 = vmatprep.subr.mxu0 0.0
        %7664 = vmatpush1.xpose.msra.mxu0 0.0
        %7665 = vmatprep.subr.mxu0 0.0
        %7666 = vmatpush1.xpose.msra.mxu0 0.0
        %7667 = vmatprep.mubr.f32.mxu0 0.0
        %v7668 = vand.u32 %v7372, 4294901760
        %v7669 = vsub.f32 %v7372, %v7668
        %v7670 = vand.u32 %v7669, 4294901760
        %7671 = vmatmul.mubr.f32.gmra.mrb[0].mxu0 %v7670
        %v7672 = vpop.f32.mrb[0].mxu0
        %v7673 = vadd.f32 %v7599, %v7672
        %v7674 = vpop.f32.mrb[0].mxu0
        %7675 = vdwg.mxu0
        %7676 = vmatprep.subr.mxu0 0.0
        %v7677 = vand.u32 %v7374, 4294901760
        %v7678 = vsub.f32 %v7374, %v7677
        %v7679 = vand.u32 %v7678, 4294901760
        %7680 = vmatpush1.xpose.msra.mxu0 %v7679
        %7681 = vmatprep.subr.mxu0 0.0
        %7682 = vmatpush1.xpose.msra.mxu0 0.0
        %7683 = vmatprep.subr.mxu0 0.0
        %7684 = vmatpush1.xpose.msra.mxu0 0.0
        %7685 = vmatprep.subr.mxu0 0.0
        %7686 = vmatpush1.xpose.msra.mxu0 0.0
        %7687 = vmatprep.subr.mxu0 0.0
        %7688 = vmatpush1.xpose.msra.mxu0 0.0
        %7689 = vmatprep.subr.mxu0 0.0
        %7690 = vmatpush1.xpose.msra.mxu0 0.0
        %7691 = vmatprep.subr.mxu0 0.0
        %7692 = vmatpush1.xpose.msra.mxu0 0.0
        %7693 = vmatprep.subr.mxu0 0.0
        %7694 = vmatpush1.xpose.msra.mxu0 0.0
        %7695 = vmatprep.subr.mxu0 0.0
        %7696 = vmatpush1.xpose.msra.mxu0 0.0
        %7697 = vmatprep.subr.mxu0 0.0
        %7698 = vmatpush1.xpose.msra.mxu0 0.0
        %7699 = vmatprep.subr.mxu0 0.0
        %7700 = vmatpush1.xpose.msra.mxu0 0.0
        %7701 = vmatprep.subr.mxu0 0.0
        %7702 = vmatpush1.xpose.msra.mxu0 0.0
        %7703 = vmatprep.subr.mxu0 0.0
        %7704 = vmatpush1.xpose.msra.mxu0 0.0
        %7705 = vmatprep.subr.mxu0 0.0
        %7706 = vmatpush1.xpose.msra.mxu0 0.0
        %7707 = vmatprep.subr.mxu0 0.0
        %7708 = vmatpush1.xpose.msra.mxu0 0.0
        %7709 = vmatprep.subr.mxu0 0.0
        %7710 = vmatpush1.xpose.msra.mxu0 0.0
        %7711 = vmatprep.subr.mxu0 0.0
        %7712 = vmatpush1.xpose.msra.mxu0 0.0
        %7713 = vmatprep.subr.mxu0 0.0
        %7714 = vmatpush1.xpose.msra.mxu0 0.0
        %7715 = vmatprep.subr.mxu0 0.0
        %7716 = vmatpush1.xpose.msra.mxu0 0.0
        %7717 = vmatprep.subr.mxu0 0.0
        %7718 = vmatpush1.xpose.msra.mxu0 0.0
        %7719 = vmatprep.subr.mxu0 0.0
        %7720 = vmatpush1.xpose.msra.mxu0 0.0
        %7721 = vmatprep.subr.mxu0 0.0
        %7722 = vmatpush1.xpose.msra.mxu0 0.0
        %7723 = vmatprep.subr.mxu0 0.0
        %7724 = vmatpush1.xpose.msra.mxu0 0.0
        %7725 = vmatprep.subr.mxu0 0.0
        %7726 = vmatpush1.xpose.msra.mxu0 0.0
        %7727 = vmatprep.subr.mxu0 0.0
        %7728 = vmatpush1.xpose.msra.mxu0 0.0
        %7729 = vmatprep.subr.mxu0 0.0
        %7730 = vmatpush1.xpose.msra.mxu0 0.0
        %7731 = vmatprep.subr.mxu0 0.0
        %7732 = vmatpush1.xpose.msra.mxu0 0.0
        %7733 = vmatprep.subr.mxu0 0.0
        %7734 = vmatpush1.xpose.msra.mxu0 0.0
        %7735 = vmatprep.subr.mxu0 0.0
        %7736 = vmatpush1.xpose.msra.mxu0 0.0
        %7737 = vmatprep.subr.mxu0 0.0
        %7738 = vmatpush1.xpose.msra.mxu0 0.0
        %7739 = vmatprep.subr.mxu0 0.0
        %7740 = vmatpush1.xpose.msra.mxu0 0.0
        %7741 = vmatprep.subr.mxu0 0.0
        %7742 = vmatpush1.xpose.msra.mxu0 0.0
        %7743 = vmatprep.mubr.f32.mxu0 0.0
        %v7744 = vand.u32 %v7372, 4294901760
        %7745 = vmatmul.mubr.f32.gmra.mrb[0].mxu0 %v7744
        %v7746 = vpop.f32.mrb[0].mxu0
        %v7747 = vadd.f32 %v7673, %v7746
        %v7748 = vpop.f32.mrb[0].mxu0
        %7749 = vdwg.mxu0
        %7750 = vmatprep.subr.mxu0 0.0
        %v7751 = vand.u32 %v7374, 4294901760
        %7752 = vmatpush1.xpose.msra.mxu0 %v7751
        %7753 = vmatprep.subr.mxu0 0.0
        %7754 = vmatpush1.xpose.msra.mxu0 0.0
        %7755 = vmatprep.subr.mxu0 0.0
        %7756 = vmatpush1.xpose.msra.mxu0 0.0
        %7757 = vmatprep.subr.mxu0 0.0
        %7758 = vmatpush1.xpose.msra.mxu0 0.0
        %7759 = vmatprep.subr.mxu0 0.0
        %7760 = vmatpush1.xpose.msra.mxu0 0.0
        %7761 = vmatprep.subr.mxu0 0.0
        %7762 = vmatpush1.xpose.msra.mxu0 0.0
        %7763 = vmatprep.subr.mxu0 0.0
        %7764 = vmatpush1.xpose.msra.mxu0 0.0
        %7765 = vmatprep.subr.mxu0 0.0
        %7766 = vmatpush1.xpose.msra.mxu0 0.0
        %7767 = vmatprep.subr.mxu0 0.0
        %7768 = vmatpush1.xpose.msra.mxu0 0.0
        %7769 = vmatprep.subr.mxu0 0.0
        %7770 = vmatpush1.xpose.msra.mxu0 0.0
        %7771 = vmatprep.subr.mxu0 0.0
        %7772 = vmatpush1.xpose.msra.mxu0 0.0
        %7773 = vmatprep.subr.mxu0 0.0
        %7774 = vmatpush1.xpose.msra.mxu0 0.0
        %7775 = vmatprep.subr.mxu0 0.0
        %7776 = vmatpush1.xpose.msra.mxu0 0.0
        %7777 = vmatprep.subr.mxu0 0.0
        %7778 = vmatpush1.xpose.msra.mxu0 0.0
        %7779 = vmatprep.subr.mxu0 0.0
        %7780 = vmatpush1.xpose.msra.mxu0 0.0
        %7781 = vmatprep.subr.mxu0 0.0
        %7782 = vmatpush1.xpose.msra.mxu0 0.0
        %7783 = vmatprep.subr.mxu0 0.0
        %7784 = vmatpush1.xpose.msra.mxu0 0.0
        %7785 = vmatprep.subr.mxu0 0.0
        %7786 = vmatpush1.xpose.msra.mxu0 0.0
        %7787 = vmatprep.subr.mxu0 0.0
        %7788 = vmatpush1.xpose.msra.mxu0 0.0
        %7789 = vmatprep.subr.mxu0 0.0
        %7790 = vmatpush1.xpose.msra.mxu0 0.0
        %7791 = vmatprep.subr.mxu0 0.0
        %7792 = vmatpush1.xpose.msra.mxu0 0.0
        %7793 = vmatprep.subr.mxu0 0.0
        %7794 = vmatpush1.xpose.msra.mxu0 0.0
        %7795 = vmatprep.subr.mxu0 0.0
        %7796 = vmatpush1.xpose.msra.mxu0 0.0
        %7797 = vmatprep.subr.mxu0 0.0
        %7798 = vmatpush1.xpose.msra.mxu0 0.0
        %7799 = vmatprep.subr.mxu0 0.0
        %7800 = vmatpush1.xpose.msra.mxu0 0.0
        %7801 = vmatprep.subr.mxu0 0.0
        %7802 = vmatpush1.xpose.msra.mxu0 0.0
        %7803 = vmatprep.subr.mxu0 0.0
        %7804 = vmatpush1.xpose.msra.mxu0 0.0
        %7805 = vmatprep.subr.mxu0 0.0
        %7806 = vmatpush1.xpose.msra.mxu0 0.0
        %7807 = vmatprep.subr.mxu0 0.0
        %7808 = vmatpush1.xpose.msra.mxu0 0.0
        %7809 = vmatprep.subr.mxu0 0.0
        %7810 = vmatpush1.xpose.msra.mxu0 0.0
        %7811 = vmatprep.subr.mxu0 0.0
        %7812 = vmatpush1.xpose.msra.mxu0 0.0
        %7813 = vmatprep.subr.mxu0 0.0
        %7814 = vmatpush1.xpose.msra.mxu0 0.0
        %7815 = vmatprep.mubr.f32.mxu0 0.0
        %v7816 = vand.u32 %v7372, 4294901760
        %7817 = vmatmul.mubr.f32.gmra.mrb[0].mxu0 %v7816
        %v7818 = vpop.f32.mrb[0].mxu0
        %v7819 = vadd.f32 %v7747, %v7818
        %v7820 = vpop.f32.mrb[0].mxu0
        %7821 = vdwg.mxu0
        %v7822 = vsel %vm3080, %v7819, -inf
        %7823 = vmax.xlane.f32.xlu0 %v7822
        %v7824 = vpop.xlane.xlu0 %7823
        %v7825 = vsub.f32 %v7819, %v7824
        %v7826 = vmul.f32 %v7825, 1.442695
        %v7827 = vpow.pop %v7826
        %v7828 = vsel %vm3080, %v7827, 0.0
        %7829 = vadd.xlane.f32.xlu0 %v7828
        %v7830 = vpop.xlane.xlu0 %7829
        %7831 = vrot.lane.b32.xlu0 %v2994, 104
        %v7832 = vpop.permute.xlu0 %7831
        %v7835 = vsel %vm3080, %v7827, 0
        %7837 = vmatprep.subr.mxu0 0.0
        %v7838 = vand.u32 %v7832, 4294901760
        %7839 = vmatpush1.msra.mxu0 %v7838
        %7840 = vmatprep.subr.mxu0 0.0
        %7841 = vmatpush1.msra.mxu0 0.0
        %7842 = vmatprep.subr.mxu0 0.0
        %7843 = vmatpush1.msra.mxu0 0.0
        %7844 = vmatprep.subr.mxu0 0.0
        %7845 = vmatpush1.msra.mxu0 0.0
        %7846 = vmatprep.subr.mxu0 0.0
        %7847 = vmatpush1.msra.mxu0 0.0
        %7848 = vmatprep.subr.mxu0 0.0
        %7849 = vmatpush1.msra.mxu0 0.0
        %7850 = vmatprep.subr.mxu0 0.0
        %7851 = vmatpush1.msra.mxu0 0.0
        %7852 = vmatprep.subr.mxu0 0.0
        %7853 = vmatpush1.msra.mxu0 0.0
        %7854 = vmatprep.subr.mxu0 0.0
        %7855 = vmatpush1.msra.mxu0 0.0
        %7856 = vmatprep.subr.mxu0 0.0
        %7857 = vmatpush1.msra.mxu0 0.0
        %7858 = vmatprep.subr.mxu0 0.0
        %7859 = vmatpush1.msra.mxu0 0.0
        %7860 = vmatprep.subr.mxu0 0.0
        %7861 = vmatpush1.msra.mxu0 0.0
        %7862 = vmatprep.subr.mxu0 0.0
        %7863 = vmatpush1.msra.mxu0 0.0
        %7864 = vmatprep.subr.mxu0 0.0
        %7865 = vmatpush1.msra.mxu0 0.0
        %7866 = vmatprep.subr.mxu0 0.0
        %7867 = vmatpush1.msra.mxu0 0.0
        %7868 = vmatprep.subr.mxu0 0.0
        %7869 = vmatpush1.msra.mxu0 0.0
        %7870 = vmatprep.subr.mxu0 0.0
        %7871 = vmatpush1.msra.mxu0 0.0
        %7872 = vmatprep.subr.mxu0 0.0
        %7873 = vmatpush1.msra.mxu0 0.0
        %7874 = vmatprep.subr.mxu0 0.0
        %7875 = vmatpush1.msra.mxu0 0.0
        %7876 = vmatprep.subr.mxu0 0.0
        %7877 = vmatpush1.msra.mxu0 0.0
        %7878 = vmatprep.subr.mxu0 0.0
        %7879 = vmatpush1.msra.mxu0 0.0
        %7880 = vmatprep.subr.mxu0 0.0
        %7881 = vmatpush1.msra.mxu0 0.0
        %7882 = vmatprep.subr.mxu0 0.0
        %7883 = vmatpush1.msra.mxu0 0.0
        %7884 = vmatprep.subr.mxu0 0.0
        %7885 = vmatpush1.msra.mxu0 0.0
        %7886 = vmatprep.subr.mxu0 0.0
        %7887 = vmatpush1.msra.mxu0 0.0
        %7888 = vmatprep.subr.mxu0 0.0
        %7889 = vmatpush1.msra.mxu0 0.0
        %7890 = vmatprep.subr.mxu0 0.0
        %7891 = vmatpush1.msra.mxu0 0.0
        %7892 = vmatprep.subr.mxu0 0.0
        %7893 = vmatpush1.msra.mxu0 0.0
        %7894 = vmatprep.subr.mxu0 0.0
        %7895 = vmatpush1.msra.mxu0 0.0
        %7896 = vmatprep.subr.mxu0 0.0
        %7897 = vmatpush1.msra.mxu0 0.0
        %7898 = vmatprep.subr.mxu0 0.0
        %7899 = vmatpush1.msra.mxu0 0.0
        %7900 = vmatprep.subr.mxu0 0.0
        %7901 = vmatpush1.msra.mxu0 0.0
        %7902 = vmatprep.mubr.f32.mxu0 0.0
        %v7903 = vand.u32 %v7835, 4294901760
        %v7904 = vsub.f32 %v7835, %v7903
        %v7905 = vand.u32 %v7904, 4294901760
        %v7906 = vsub.f32 %v7904, %v7905
        %v7907 = vand.u32 %v7906, 4294901760
        %7908 = vmatmul.mubr.f32.gmra.mrb[0].mxu0 %v7907
        %v7909 = vpop.f32.mrb[0].mxu0
        %v7910 = vadd.f32 0.0, %v7909
        %v7911 = vpop.f32.mrb[0].mxu0
        %7912 = vdwg.mxu0
        %7913 = vmatprep.subr.mxu0 0.0
        %v7914 = vand.u32 %v7832, 4294901760
        %v7915 = vsub.f32 %v7832, %v7914
        %v7916 = vand.u32 %v7915, 4294901760
        %v7917 = vsub.f32 %v7915, %v7916
        %v7918 = vand.u32 %v7917, 4294901760
        %7919 = vmatpush1.msra.mxu0 %v7918
        %7920 = vmatprep.subr.mxu0 0.0
        %7921 = vmatpush1.msra.mxu0 0.0
        %7922 = vmatprep.subr.mxu0 0.0
        %7923 = vmatpush1.msra.mxu0 0.0
        %7924 = vmatprep.subr.mxu0 0.0
        %7925 = vmatpush1.msra.mxu0 0.0
        %7926 = vmatprep.subr.mxu0 0.0
        %7927 = vmatpush1.msra.mxu0 0.0
        %7928 = vmatprep.subr.mxu0 0.0
        %7929 = vmatpush1.msra.mxu0 0.0
        %7930 = vmatprep.subr.mxu0 0.0
        %7931 = vmatpush1.msra.mxu0 0.0
        %7932 = vmatprep.subr.mxu0 0.0
        %7933 = vmatpush1.msra.mxu0 0.0
        %7934 = vmatprep.subr.mxu0 0.0
        %7935 = vmatpush1.msra.mxu0 0.0
        %7936 = vmatprep.subr.mxu0 0.0
        %7937 = vmatpush1.msra.mxu0 0.0
        %7938 = vmatprep.subr.mxu0 0.0
        %7939 = vmatpush1.msra.mxu0 0.0
        %7940 = vmatprep.subr.mxu0 0.0
        %7941 = vmatpush1.msra.mxu0 0.0
        %7942 = vmatprep.subr.mxu0 0.0
        %7943 = vmatpush1.msra.mxu0 0.0
        %7944 = vmatprep.subr.mxu0 0.0
        %7945 = vmatpush1.msra.mxu0 0.0
        %7946 = vmatprep.subr.mxu0 0.0
        %7947 = vmatpush1.msra.mxu0 0.0
        %7948 = vmatprep.subr.mxu0 0.0
        %7949 = vmatpush1.msra.mxu0 0.0
        %7950 = vmatprep.subr.mxu0 0.0
        %7951 = vmatpush1.msra.mxu0 0.0
        %7952 = vmatprep.subr.mxu0 0.0
        %7953 = vmatpush1.msra.mxu0 0.0
        %7954 = vmatprep.subr.mxu0 0.0
        %7955 = vmatpush1.msra.mxu0 0.0
        %7956 = vmatprep.subr.mxu0 0.0
        %7957 = vmatpush1.msra.mxu0 0.0
        %7958 = vmatprep.subr.mxu0 0.0
        %7959 = vmatpush1.msra.mxu0 0.0
        %7960 = vmatprep.subr.mxu0 0.0
        %7961 = vmatpush1.msra.mxu0 0.0
        %7962 = vmatprep.subr.mxu0 0.0
        %7963 = vmatpush1.msra.mxu0 0.0
        %7964 = vmatprep.subr.mxu0 0.0
        %7965 = vmatpush1.msra.mxu0 0.0
        %7966 = vmatprep.subr.mxu0 0.0
        %7967 = vmatpush1.msra.mxu0 0.0
        %7968 = vmatprep.subr.mxu0 0.0
        %7969 = vmatpush1.msra.mxu0 0.0
        %7970 = vmatprep.subr.mxu0 0.0
        %7971 = vmatpush1.msra.mxu0 0.0
        %7972 = vmatprep.subr.mxu0 0.0
        %7973 = vmatpush1.msra.mxu0 0.0
        %7974 = vmatprep.subr.mxu0 0.0
        %7975 = vmatpush1.msra.mxu0 0.0
        %7976 = vmatprep.subr.mxu0 0.0
        %7977 = vmatpush1.msra.mxu0 0.0
        %7978 = vmatprep.subr.mxu0 0.0
        %7979 = vmatpush1.msra.mxu0 0.0
        %7980 = vmatprep.subr.mxu0 0.0
        %7981 = vmatpush1.msra.mxu0 0.0
        %7982 = vmatprep.mubr.f32.mxu0 0.0
        %v7983 = vand.u32 %v7835, 4294901760
        %7984 = vmatmul.mubr.f32.gmra.mrb[0].mxu0 %v7983
        %v7985 = vpop.f32.mrb[0].mxu0
        %v7986 = vadd.f32 %v7910, %v7985
        %v7987 = vpop.f32.mrb[0].mxu0
        %7988 = vdwg.mxu0
        %7989 = vmatprep.subr.mxu0 0.0
        %v7990 = vand.u32 %v7832, 4294901760
        %v7991 = vsub.f32 %v7832, %v7990
        %7992 = vmatpush1.msra.mxu0 %v7991
        %7993 = vmatprep.subr.mxu0 0.0
        %7994 = vmatpush1.msra.mxu0 0.0
        %7995 = vmatprep.subr.mxu0 0.0
        %7996 = vmatpush1.msra.mxu0 0.0
        %7997 = vmatprep.subr.mxu0 0.0
        %7998 = vmatpush1.msra.mxu0 0.0
        %7999 = vmatprep.subr.mxu0 0.0
        %8000 = vmatpush1.msra.mxu0 0.0
        %8001 = vmatprep.subr.mxu0 0.0
        %8002 = vmatpush1.msra.mxu0 0.0
        %8003 = vmatprep.subr.mxu0 0.0
        %8004 = vmatpush1.msra.mxu0 0.0
        %8005 = vmatprep.subr.mxu0 0.0
        %8006 = vmatpush1.msra.mxu0 0.0
        %8007 = vmatprep.subr.mxu0 0.0
        %8008 = vmatpush1.msra.mxu0 0.0
        %8009 = vmatprep.subr.mxu0 0.0
        %8010 = vmatpush1.msra.mxu0 0.0
        %8011 = vmatprep.subr.mxu0 0.0
        %8012 = vmatpush1.msra.mxu0 0.0
        %8013 = vmatprep.subr.mxu0 0.0
        %8014 = vmatpush1.msra.mxu0 0.0
        %8015 = vmatprep.subr.mxu0 0.0
        %8016 = vmatpush1.msra.mxu0 0.0
        %8017 = vmatprep.subr.mxu0 0.0
        %8018 = vmatpush1.msra.mxu0 0.0
        %8019 = vmatprep.subr.mxu0 0.0
        %8020 = vmatpush1.msra.mxu0 0.0
        %8021 = vmatprep.subr.mxu0 0.0
        %8022 = vmatpush1.msra.mxu0 0.0
        %8023 = vmatprep.subr.mxu0 0.0
        %8024 = vmatpush1.msra.mxu0 0.0
        %8025 = vmatprep.subr.mxu0 0.0
        %8026 = vmatpush1.msra.mxu0 0.0
        %8027 = vmatprep.subr.mxu0 0.0
        %8028 = vmatpush1.msra.mxu0 0.0
        %8029 = vmatprep.subr.mxu0 0.0
        %8030 = vmatpush1.msra.mxu0 0.0
        %8031 = vmatprep.subr.mxu0 0.0
        %8032 = vmatpush1.msra.mxu0 0.0
        %8033 = vmatprep.subr.mxu0 0.0
        %8034 = vmatpush1.msra.mxu0 0.0
        %8035 = vmatprep.subr.mxu0 0.0
        %8036 = vmatpush1.msra.mxu0 0.0
        %8037 = vmatprep.subr.mxu0 0.0
        %8038 = vmatpush1.msra.mxu0 0.0
        %8039 = vmatprep.subr.mxu0 0.0
        %8040 = vmatpush1.msra.mxu0 0.0
        %8041 = vmatprep.subr.mxu0 0.0
        %8042 = vmatpush1.msra.mxu0 0.0
        %8043 = vmatprep.subr.mxu0 0.0
        %8044 = vmatpush1.msra.mxu0 0.0
        %8045 = vmatprep.subr.mxu0 0.0
        %8046 = vmatpush1.msra.mxu0 0.0
        %8047 = vmatprep.subr.mxu0 0.0
        %8048 = vmatpush1.msra.mxu0 0.0
        %8049 = vmatprep.subr.mxu0 0.0
        %8050 = vmatpush1.msra.mxu0 0.0
        %8051 = vmatprep.subr.mxu0 0.0
        %8052 = vmatpush1.msra.mxu0 0.0
        %8053 = vmatprep.subr.mxu0 0.0
        %8054 = vmatpush1.msra.mxu0 0.0
        %8055 = vmatprep.mubr.f32.mxu0 0.0
        %v8056 = vand.u32 %v7835, 4294901760
        %v8057 = vsub.f32 %v7835, %v8056
        %8058 = vmatmul.mubr.f32.gmra.mrb[0].mxu0 %v8057
        %v8059 = vpop.f32.mrb[0].mxu0
        %v8060 = vadd.f32 %v7986, %v8059
        %v8061 = vpop.f32.mrb[0].mxu0
        %8062 = vdwg.mxu0
        %8063 = vmatprep.subr.mxu0 0.0
        %v8064 = vand.u32 %v7832, 4294901760
        %8065 = vmatpush1.msra.mxu0 %v8064
        %8066 = vmatprep.subr.mxu0 0.0
        %8067 = vmatpush1.msra.mxu0 0.0
        %8068 = vmatprep.subr.mxu0 0.0
        %8069 = vmatpush1.msra.mxu0 0.0
        %8070 = vmatprep.subr.mxu0 0.0
        %8071 = vmatpush1.msra.mxu0 0.0
        %8072 = vmatprep.subr.mxu0 0.0
        %8073 = vmatpush1.msra.mxu0 0.0
        %8074 = vmatprep.subr.mxu0 0.0
        %8075 = vmatpush1.msra.mxu0 0.0
        %8076 = vmatprep.subr.mxu0 0.0
        %8077 = vmatpush1.msra.mxu0 0.0
        %8078 = vmatprep.subr.mxu0 0.0
        %8079 = vmatpush1.msra.mxu0 0.0
        %8080 = vmatprep.subr.mxu0 0.0
        %8081 = vmatpush1.msra.mxu0 0.0
        %8082 = vmatprep.subr.mxu0 0.0
        %8083 = vmatpush1.msra.mxu0 0.0
        %8084 = vmatprep.subr.mxu0 0.0
        %8085 = vmatpush1.msra.mxu0 0.0
        %8086 = vmatprep.subr.mxu0 0.0
        %8087 = vmatpush1.msra.mxu0 0.0
        %8088 = vmatprep.subr.mxu0 0.0
        %8089 = vmatpush1.msra.mxu0 0.0
        %8090 = vmatprep.subr.mxu0 0.0
        %8091 = vmatpush1.msra.mxu0 0.0
        %8092 = vmatprep.subr.mxu0 0.0
        %8093 = vmatpush1.msra.mxu0 0.0
        %8094 = vmatprep.subr.mxu0 0.0
        %8095 = vmatpush1.msra.mxu0 0.0
        %8096 = vmatprep.subr.mxu0 0.0
        %8097 = vmatpush1.msra.mxu0 0.0
        %8098 = vmatprep.subr.mxu0 0.0
        %8099 = vmatpush1.msra.mxu0 0.0
        %8100 = vmatprep.subr.mxu0 0.0
        %8101 = vmatpush1.msra.mxu0 0.0
        %8102 = vmatprep.subr.mxu0 0.0
        %8103 = vmatpush1.msra.mxu0 0.0
        %8104 = vmatprep.subr.mxu0 0.0
        %8105 = vmatpush1.msra.mxu0 0.0
        %8106 = vmatprep.subr.mxu0 0.0
        %8107 = vmatpush1.msra.mxu0 0.0
        %8108 = vmatprep.subr.mxu0 0.0
        %8109 = vmatpush1.msra.mxu0 0.0
        %8110 = vmatprep.subr.mxu0 0.0
        %8111 = vmatpush1.msra.mxu0 0.0
        %8112 = vmatprep.subr.mxu0 0.0
        %8113 = vmatpush1.msra.mxu0 0.0
        %8114 = vmatprep.subr.mxu0 0.0
        %8115 = vmatpush1.msra.mxu0 0.0
        %8116 = vmatprep.subr.mxu0 0.0
        %8117 = vmatpush1.msra.mxu0 0.0
        %8118 = vmatprep.subr.mxu0 0.0
        %8119 = vmatpush1.msra.mxu0 0.0
        %8120 = vmatprep.subr.mxu0 0.0
        %8121 = vmatpush1.msra.mxu0 0.0
        %8122 = vmatprep.subr.mxu0 0.0
        %8123 = vmatpush1.msra.mxu0 0.0
        %8124 = vmatprep.subr.mxu0 0.0
        %8125 = vmatpush1.msra.mxu0 0.0
        %8126 = vmatprep.subr.mxu0 0.0
        %8127 = vmatpush1.msra.mxu0 0.0
        %8128 = vmatprep.mubr.f32.mxu0 0.0
        %v8129 = vand.u32 %v7835, 4294901760
        %v8130 = vsub.f32 %v7835, %v8129
        %v8131 = vand.u32 %v8130, 4294901760
        %8132 = vmatmul.mubr.f32.gmra.mrb[0].mxu0 %v8131
        %v8133 = vpop.f32.mrb[0].mxu0
        %v8134 = vadd.f32 %v8060, %v8133
        %v8135 = vpop.f32.mrb[0].mxu0
        %8136 = vdwg.mxu0
        %8137 = vmatprep.subr.mxu0 0.0
        %v8138 = vand.u32 %v7832, 4294901760
        %v8139 = vsub.f32 %v7832, %v8138
        %v8140 = vand.u32 %v8139, 4294901760
        %8141 = vmatpush1.msra.mxu0 %v8140
        %8142 = vmatprep.subr.mxu0 0.0
        %8143 = vmatpush1.msra.mxu0 0.0
        %8144 = vmatprep.subr.mxu0 0.0
        %8145 = vmatpush1.msra.mxu0 0.0
        %8146 = vmatprep.subr.mxu0 0.0
        %8147 = vmatpush1.msra.mxu0 0.0
        %8148 = vmatprep.subr.mxu0 0.0
        %8149 = vmatpush1.msra.mxu0 0.0
        %8150 = vmatprep.subr.mxu0 0.0
        %8151 = vmatpush1.msra.mxu0 0.0
        %8152 = vmatprep.subr.mxu0 0.0
        %8153 = vmatpush1.msra.mxu0 0.0
        %8154 = vmatprep.subr.mxu0 0.0
        %8155 = vmatpush1.msra.mxu0 0.0
        %8156 = vmatprep.subr.mxu0 0.0
        %8157 = vmatpush1.msra.mxu0 0.0
        %8158 = vmatprep.subr.mxu0 0.0
        %8159 = vmatpush1.msra.mxu0 0.0
        %8160 = vmatprep.subr.mxu0 0.0
        %8161 = vmatpush1.msra.mxu0 0.0
        %8162 = vmatprep.subr.mxu0 0.0
        %8163 = vmatpush1.msra.mxu0 0.0
        %8164 = vmatprep.subr.mxu0 0.0
        %8165 = vmatpush1.msra.mxu0 0.0
        %8166 = vmatprep.subr.mxu0 0.0
        %8167 = vmatpush1.msra.mxu0 0.0
        %8168 = vmatprep.subr.mxu0 0.0
        %8169 = vmatpush1.msra.mxu0 0.0
        %8170 = vmatprep.subr.mxu0 0.0
        %8171 = vmatpush1.msra.mxu0 0.0
        %8172 = vmatprep.subr.mxu0 0.0
        %8173 = vmatpush1.msra.mxu0 0.0
        %8174 = vmatprep.subr.mxu0 0.0
        %8175 = vmatpush1.msra.mxu0 0.0
        %8176 = vmatprep.subr.mxu0 0.0
        %8177 = vmatpush1.msra.mxu0 0.0
        %8178 = vmatprep.subr.mxu0 0.0
        %8179 = vmatpush1.msra.mxu0 0.0
        %8180 = vmatprep.subr.mxu0 0.0
        %8181 = vmatpush1.msra.mxu0 0.0
        %8182 = vmatprep.subr.mxu0 0.0
        %8183 = vmatpush1.msra.mxu0 0.0
        %8184 = vmatprep.subr.mxu0 0.0
        %8185 = vmatpush1.msra.mxu0 0.0
        %8186 = vmatprep.subr.mxu0 0.0
        %8187 = vmatpush1.msra.mxu0 0.0
        %8188 = vmatprep.subr.mxu0 0.0
        %8189 = vmatpush1.msra.mxu0 0.0
        %8190 = vmatprep.subr.mxu0 0.0
        %8191 = vmatpush1.msra.mxu0 0.0
        %8192 = vmatprep.subr.mxu0 0.0
        %8193 = vmatpush1.msra.mxu0 0.0
        %8194 = vmatprep.subr.mxu0 0.0
        %8195 = vmatpush1.msra.mxu0 0.0
        %8196 = vmatprep.subr.mxu0 0.0
        %8197 = vmatpush1.msra.mxu0 0.0
        %8198 = vmatprep.subr.mxu0 0.0
        %8199 = vmatpush1.msra.mxu0 0.0
        %8200 = vmatprep.subr.mxu0 0.0
        %8201 = vmatpush1.msra.mxu0 0.0
        %8202 = vmatprep.subr.mxu0 0.0
        %8203 = vmatpush1.msra.mxu0 0.0
        %8204 = vmatprep.mubr.f32.mxu0 0.0
        %v8205 = vand.u32 %v7835, 4294901760
        %8206 = vmatmul.mubr.f32.gmra.mrb[0].mxu0 %v8205
        %v8207 = vpop.f32.mrb[0].mxu0
        %v8208 = vadd.f32 %v8134, %v8207
        %v8209 = vpop.f32.mrb[0].mxu0
        %8210 = vdwg.mxu0
        %8211 = vmatprep.subr.mxu0 0.0
        %v8212 = vand.u32 %v7832, 4294901760
        %8213 = vmatpush1.msra.mxu0 %v8212
        %8214 = vmatprep.subr.mxu0 0.0
        %8215 = vmatpush1.msra.mxu0 0.0
        %8216 = vmatprep.subr.mxu0 0.0
        %8217 = vmatpush1.msra.mxu0 0.0
        %8218 = vmatprep.subr.mxu0 0.0
        %8219 = vmatpush1.msra.mxu0 0.0
        %8220 = vmatprep.subr.mxu0 0.0
        %8221 = vmatpush1.msra.mxu0 0.0
        %8222 = vmatprep.subr.mxu0 0.0
        %8223 = vmatpush1.msra.mxu0 0.0
        %8224 = vmatprep.subr.mxu0 0.0
        %8225 = vmatpush1.msra.mxu0 0.0
        %8226 = vmatprep.subr.mxu0 0.0
        %8227 = vmatpush1.msra.mxu0 0.0
        %8228 = vmatprep.subr.mxu0 0.0
        %8229 = vmatpush1.msra.mxu0 0.0
        %8230 = vmatprep.subr.mxu0 0.0
        %8231 = vmatpush1.msra.mxu0 0.0
        %8232 = vmatprep.subr.mxu0 0.0
        %8233 = vmatpush1.msra.mxu0 0.0
        %8234 = vmatprep.subr.mxu0 0.0
        %8235 = vmatpush1.msra.mxu0 0.0
        %8236 = vmatprep.subr.mxu0 0.0
        %8237 = vmatpush1.msra.mxu0 0.0
        %8238 = vmatprep.subr.mxu0 0.0
        %8239 = vmatpush1.msra.mxu0 0.0
        %8240 = vmatprep.subr.mxu0 0.0
        %8241 = vmatpush1.msra.mxu0 0.0
        %8242 = vmatprep.subr.mxu0 0.0
        %8243 = vmatpush1.msra.mxu0 0.0
        %8244 = vmatprep.subr.mxu0 0.0
        %8245 = vmatpush1.msra.mxu0 0.0
        %8246 = vmatprep.subr.mxu0 0.0
        %8247 = vmatpush1.msra.mxu0 0.0
        %8248 = vmatprep.subr.mxu0 0.0
        %8249 = vmatpush1.msra.mxu0 0.0
        %8250 = vmatprep.subr.mxu0 0.0
        %8251 = vmatpush1.msra.mxu0 0.0
        %8252 = vmatprep.subr.mxu0 0.0
        %8253 = vmatpush1.msra.mxu0 0.0
        %8254 = vmatprep.subr.mxu0 0.0
        %8255 = vmatpush1.msra.mxu0 0.0
        %8256 = vmatprep.subr.mxu0 0.0
        %8257 = vmatpush1.msra.mxu0 0.0
        %8258 = vmatprep.subr.mxu0 0.0
        %8259 = vmatpush1.msra.mxu0 0.0
        %8260 = vmatprep.subr.mxu0 0.0
        %8261 = vmatpush1.msra.mxu0 0.0
        %8262 = vmatprep.subr.mxu0 0.0
        %8263 = vmatpush1.msra.mxu0 0.0
        %8264 = vmatprep.subr.mxu0 0.0
        %8265 = vmatpush1.msra.mxu0 0.0
        %8266 = vmatprep.subr.mxu0 0.0
        %8267 = vmatpush1.msra.mxu0 0.0
        %8268 = vmatprep.subr.mxu0 0.0
        %8269 = vmatpush1.msra.mxu0 0.0
        %8270 = vmatprep.subr.mxu0 0.0
        %8271 = vmatpush1.msra.mxu0 0.0
        %8272 = vmatprep.subr.mxu0 0.0
        %8273 = vmatpush1.msra.mxu0 0.0
        %8274 = vmatprep.subr.mxu0 0.0
        %8275 = vmatpush1.msra.mxu0 0.0
        %8276 = vmatprep.mubr.f32.mxu0 0.0
        %v8277 = vand.u32 %v7835, 4294901760
        %8278 = vmatmul.mubr.f32.gmra.mrb[0].mxu0 %v8277
        %v8279 = vpop.f32.mrb[0].mxu0
        %v8280 = vadd.f32 %v8208, %v8279
        %v8281 = vpop.f32.mrb[0].mxu0
        %8282 = vdwg.mxu0
        %v8283 = vrcp.pop %v7830
        %v8284 = vmul.f32 %v8280, %v8283
        %v8286 = vsel %vm3080, %v8284, 0
        %8288 = vmatprep.subr.mxu0 0.0
        %v8289 = vand.u32 %v2998, 4294901760
        %8290 = vmatpush1.msra.mxu0 %v8289
        %8291 = vmatprep.subr.mxu0 0.0
        %8292 = vmatpush1.msra.mxu0 0.0
        %8293 = vmatprep.subr.mxu0 0.0
        %8294 = vmatpush1.msra.mxu0 0.0
        %8295 = vmatprep.subr.mxu0 0.0
        %8296 = vmatpush1.msra.mxu0 0.0
        %8297 = vmatprep.subr.mxu0 0.0
        %8298 = vmatpush1.msra.mxu0 0.0
        %8299 = vmatprep.subr.mxu0 0.0
        %8300 = vmatpush1.msra.mxu0 0.0
        %8301 = vmatprep.subr.mxu0 0.0
        %8302 = vmatpush1.msra.mxu0 0.0
        %8303 = vmatprep.subr.mxu0 0.0
        %8304 = vmatpush1.msra.mxu0 0.0
        %8305 = vmatprep.subr.mxu0 0.0
        %8306 = vmatpush1.msra.mxu0 0.0
        %8307 = vmatprep.subr.mxu0 0.0
        %8308 = vmatpush1.msra.mxu0 0.0
        %8309 = vmatprep.subr.mxu0 0.0
        %8310 = vmatpush1.msra.mxu0 0.0
        %8311 = vmatprep.subr.mxu0 0.0
        %8312 = vmatpush1.msra.mxu0 0.0
        %8313 = vmatprep.subr.mxu0 0.0
        %8314 = vmatpush1.msra.mxu0 0.0
        %8315 = vmatprep.subr.mxu0 0.0
        %8316 = vmatpush1.msra.mxu0 0.0
        %8317 = vmatprep.subr.mxu0 0.0
        %8318 = vmatpush1.msra.mxu0 0.0
        %8319 = vmatprep.subr.mxu0 0.0
        %8320 = vmatpush1.msra.mxu0 0.0
        %8321 = vmatprep.subr.mxu0 0.0
        %8322 = vmatpush1.msra.mxu0 0.0
        %8323 = vmatprep.subr.mxu0 0.0
        %8324 = vmatpush1.msra.mxu0 0.0
        %8325 = vmatprep.subr.mxu0 0.0
        %8326 = vmatpush1.msra.mxu0 0.0
        %8327 = vmatprep.subr.mxu0 0.0
        %8328 = vmatpush1.msra.mxu0 0.0
        %8329 = vmatprep.subr.mxu0 0.0
        %8330 = vmatpush1.msra.mxu0 0.0
        %8331 = vmatprep.subr.mxu0 0.0
        %8332 = vmatpush1.msra.mxu0 0.0
        %8333 = vmatprep.subr.mxu0 0.0
        %8334 = vmatpush1.msra.mxu0 0.0
        %8335 = vmatprep.subr.mxu0 0.0
        %8336 = vmatpush1.msra.mxu0 0.0
        %8337 = vmatprep.subr.mxu0 0.0
        %8338 = vmatpush1.msra.mxu0 0.0
        %8339 = vmatprep.subr.mxu0 0.0
        %8340 = vmatpush1.msra.mxu0 0.0
        %8341 = vmatprep.subr.mxu0 0.0
        %8342 = vmatpush1.msra.mxu0 0.0
        %8343 = vmatprep.subr.mxu0 0.0
        %8344 = vmatpush1.msra.mxu0 0.0
        %8345 = vmatprep.subr.mxu0 0.0
        %8346 = vmatpush1.msra.mxu0 0.0
        %8347 = vmatprep.subr.mxu0 0.0
        %8348 = vmatpush1.msra.mxu0 0.0
        %8349 = vmatprep.subr.mxu0 0.0
        %8350 = vmatpush1.msra.mxu0 0.0
        %8351 = vmatprep.subr.mxu0 0.0
        %8352 = vmatpush1.msra.mxu0 0.0
        %8353 = vmatprep.mubr.f32.mxu0 0.0
        %v8354 = vand.u32 %v8286, 4294901760
        %v8355 = vsub.f32 %v8286, %v8354
        %v8356 = vand.u32 %v8355, 4294901760
        %v8357 = vsub.f32 %v8355, %v8356
        %v8358 = vand.u32 %v8357, 4294901760
        %8359 = vmatmul.mubr.f32.gmra.mrb[0].mxu0 %v8358
        %v8360 = vpop.f32.mrb[0].mxu0
        %v8361 = vadd.f32 0.0, %v8360
        %v8362 = vpop.f32.mrb[0].mxu0
        %8363 = vdwg.mxu0
        %8364 = vmatprep.subr.mxu0 0.0
        %v8365 = vand.u32 %v2998, 4294901760
        %v8366 = vsub.f32 %v2998, %v8365
        %v8367 = vand.u32 %v8366, 4294901760
        %v8368 = vsub.f32 %v8366, %v8367
        %v8369 = vand.u32 %v8368, 4294901760
        %8370 = vmatpush1.msra.mxu0 %v8369
        %8371 = vmatprep.subr.mxu0 0.0
        %8372 = vmatpush1.msra.mxu0 0.0
        %8373 = vmatprep.subr.mxu0 0.0
        %8374 = vmatpush1.msra.mxu0 0.0
        %8375 = vmatprep.subr.mxu0 0.0
        %8376 = vmatpush1.msra.mxu0 0.0
        %8377 = vmatprep.subr.mxu0 0.0
        %8378 = vmatpush1.msra.mxu0 0.0
        %8379 = vmatprep.subr.mxu0 0.0
        %8380 = vmatpush1.msra.mxu0 0.0
        %8381 = vmatprep.subr.mxu0 0.0
        %8382 = vmatpush1.msra.mxu0 0.0
        %8383 = vmatprep.subr.mxu0 0.0
        %8384 = vmatpush1.msra.mxu0 0.0
        %8385 = vmatprep.subr.mxu0 0.0
        %8386 = vmatpush1.msra.mxu0 0.0
        %8387 = vmatprep.subr.mxu0 0.0
        %8388 = vmatpush1.msra.mxu0 0.0
        %8389 = vmatprep.subr.mxu0 0.0
        %8390 = vmatpush1.msra.mxu0 0.0
        %8391 = vmatprep.subr.mxu0 0.0
        %8392 = vmatpush1.msra.mxu0 0.0
        %8393 = vmatprep.subr.mxu0 0.0
        %8394 = vmatpush1.msra.mxu0 0.0
        %8395 = vmatprep.subr.mxu0 0.0
        %8396 = vmatpush1.msra.mxu0 0.0
        %8397 = vmatprep.subr.mxu0 0.0
        %8398 = vmatpush1.msra.mxu0 0.0
        %8399 = vmatprep.subr.mxu0 0.0
        %8400 = vmatpush1.msra.mxu0 0.0
        %8401 = vmatprep.subr.mxu0 0.0
        %8402 = vmatpush1.msra.mxu0 0.0
        %8403 = vmatprep.subr.mxu0 0.0
        %8404 = vmatpush1.msra.mxu0 0.0
        %8405 = vmatprep.subr.mxu0 0.0
        %8406 = vmatpush1.msra.mxu0 0.0
        %8407 = vmatprep.subr.mxu0 0.0
        %8408 = vmatpush1.msra.mxu0 0.0
        %8409 = vmatprep.subr.mxu0 0.0
        %8410 = vmatpush1.msra.mxu0 0.0
        %8411 = vmatprep.subr.mxu0 0.0
        %8412 = vmatpush1.msra.mxu0 0.0
        %8413 = vmatprep.subr.mxu0 0.0
        %8414 = vmatpush1.msra.mxu0 0.0
        %8415 = vmatprep.subr.mxu0 0.0
        %8416 = vmatpush1.msra.mxu0 0.0
        %8417 = vmatprep.subr.mxu0 0.0
        %8418 = vmatpush1.msra.mxu0 0.0
        %8419 = vmatprep.subr.mxu0 0.0
        %8420 = vmatpush1.msra.mxu0 0.0
        %8421 = vmatprep.subr.mxu0 0.0
        %8422 = vmatpush1.msra.mxu0 0.0
        %8423 = vmatprep.subr.mxu0 0.0
        %8424 = vmatpush1.msra.mxu0 0.0
        %8425 = vmatprep.subr.mxu0 0.0
        %8426 = vmatpush1.msra.mxu0 0.0
        %8427 = vmatprep.subr.mxu0 0.0
        %8428 = vmatpush1.msra.mxu0 0.0
        %8429 = vmatprep.subr.mxu0 0.0
        %8430 = vmatpush1.msra.mxu0 0.0
        %8431 = vmatprep.subr.mxu0 0.0
        %8432 = vmatpush1.msra.mxu0 0.0
        %8433 = vmatprep.mubr.f32.mxu0 0.0
        %v8434 = vand.u32 %v8286, 4294901760
        %8435 = vmatmul.mubr.f32.gmra.mrb[0].mxu0 %v8434
        %v8436 = vpop.f32.mrb[0].mxu0
        %v8437 = vadd.f32 %v8361, %v8436
        %v8438 = vpop.f32.mrb[0].mxu0
        %8439 = vdwg.mxu0
        %8440 = vmatprep.subr.mxu0 0.0
        %v8441 = vand.u32 %v2998, 4294901760
        %v8442 = vsub.f32 %v2998, %v8441
        %8443 = vmatpush1.msra.mxu0 %v8442
        %8444 = vmatprep.subr.mxu0 0.0
        %8445 = vmatpush1.msra.mxu0 0.0
        %8446 = vmatprep.subr.mxu0 0.0
        %8447 = vmatpush1.msra.mxu0 0.0
        %8448 = vmatprep.subr.mxu0 0.0
        %8449 = vmatpush1.msra.mxu0 0.0
        %8450 = vmatprep.subr.mxu0 0.0
        %8451 = vmatpush1.msra.mxu0 0.0
        %8452 = vmatprep.subr.mxu0 0.0
        %8453 = vmatpush1.msra.mxu0 0.0
        %8454 = vmatprep.subr.mxu0 0.0
        %8455 = vmatpush1.msra.mxu0 0.0
        %8456 = vmatprep.subr.mxu0 0.0
        %8457 = vmatpush1.msra.mxu0 0.0
        %8458 = vmatprep.subr.mxu0 0.0
        %8459 = vmatpush1.msra.mxu0 0.0
        %8460 = vmatprep.subr.mxu0 0.0
        %8461 = vmatpush1.msra.mxu0 0.0
        %8462 = vmatprep.subr.mxu0 0.0
        %8463 = vmatpush1.msra.mxu0 0.0
        %8464 = vmatprep.subr.mxu0 0.0
        %8465 = vmatpush1.msra.mxu0 0.0
        %8466 = vmatprep.subr.mxu0 0.0
        %8467 = vmatpush1.msra.mxu0 0.0
        %8468 = vmatprep.subr.mxu0 0.0
        %8469 = vmatpush1.msra.mxu0 0.0
        %8470 = vmatprep.subr.mxu0 0.0
        %8471 = vmatpush1.msra.mxu0 0.0
        %8472 = vmatprep.subr.mxu0 0.0
        %8473 = vmatpush1.msra.mxu0 0.0
        %8474 = vmatprep.subr.mxu0 0.0
        %8475 = vmatpush1.msra.mxu0 0.0
        %8476 = vmatprep.subr.mxu0 0.0
        %8477 = vmatpush1.msra.mxu0 0.0
        %8478 = vmatprep.subr.mxu0 0.0
        %8479 = vmatpush1.msra.mxu0 0.0
        %8480 = vmatprep.subr.mxu0 0.0
        %8481 = vmatpush1.msra.mxu0 0.0
        %8482 = vmatprep.subr.mxu0 0.0
        %8483 = vmatpush1.msra.mxu0 0.0
        %8484 = vmatprep.subr.mxu0 0.0
        %8485 = vmatpush1.msra.mxu0 0.0
        %8486 = vmatprep.subr.mxu0 0.0
        %8487 = vmatpush1.msra.mxu0 0.0
        %8488 = vmatprep.subr.mxu0 0.0
        %8489 = vmatpush1.msra.mxu0 0.0
        %8490 = vmatprep.subr.mxu0 0.0
        %8491 = vmatpush1.msra.mxu0 0.0
        %8492 = vmatprep.subr.mxu0 0.0
        %8493 = vmatpush1.msra.mxu0 0.0
        %8494 = vmatprep.subr.mxu0 0.0
        %8495 = vmatpush1.msra.mxu0 0.0
        %8496 = vmatprep.subr.mxu0 0.0
        %8497 = vmatpush1.msra.mxu0 0.0
        %8498 = vmatprep.subr.mxu0 0.0
        %8499 = vmatpush1.msra.mxu0 0.0
        %8500 = vmatprep.subr.mxu0 0.0
        %8501 = vmatpush1.msra.mxu0 0.0
        %8502 = vmatprep.subr.mxu0 0.0
        %8503 = vmatpush1.msra.mxu0 0.0
        %8504 = vmatprep.subr.mxu0 0.0
        %8505 = vmatpush1.msra.mxu0 0.0
        %8506 = vmatprep.mubr.f32.mxu0 0.0
        %v8507 = vand.u32 %v8286, 4294901760
        %v8508 = vsub.f32 %v8286, %v8507
        %8509 = vmatmul.mubr.f32.gmra.mrb[0].mxu0 %v8508
        %v8510 = vpop.f32.mrb[0].mxu0
        %v8511 = vadd.f32 %v8437, %v8510
        %v8512 = vpop.f32.mrb[0].mxu0
        %8513 = vdwg.mxu0
        %8514 = vmatprep.subr.mxu0 0.0
        %v8515 = vand.u32 %v2998, 4294901760
        %8516 = vmatpush1.msra.mxu0 %v8515
        %8517 = vmatprep.subr.mxu0 0.0
        %8518 = vmatpush1.msra.mxu0 0.0
        %8519 = vmatprep.subr.mxu0 0.0
        %8520 = vmatpush1.msra.mxu0 0.0
        %8521 = vmatprep.subr.mxu0 0.0
        %8522 = vmatpush1.msra.mxu0 0.0
        %8523 = vmatprep.subr.mxu0 0.0
        %8524 = vmatpush1.msra.mxu0 0.0
        %8525 = vmatprep.subr.mxu0 0.0
        %8526 = vmatpush1.msra.mxu0 0.0
        %8527 = vmatprep.subr.mxu0 0.0
        %8528 = vmatpush1.msra.mxu0 0.0
        %8529 = vmatprep.subr.mxu0 0.0
        %8530 = vmatpush1.msra.mxu0 0.0
        %8531 = vmatprep.subr.mxu0 0.0
        %8532 = vmatpush1.msra.mxu0 0.0
        %8533 = vmatprep.subr.mxu0 0.0
        %8534 = vmatpush1.msra.mxu0 0.0
        %8535 = vmatprep.subr.mxu0 0.0
        %8536 = vmatpush1.msra.mxu0 0.0
        %8537 = vmatprep.subr.mxu0 0.0
        %8538 = vmatpush1.msra.mxu0 0.0
        %8539 = vmatprep.subr.mxu0 0.0
        %8540 = vmatpush1.msra.mxu0 0.0
        %8541 = vmatprep.subr.mxu0 0.0
        %8542 = vmatpush1.msra.mxu0 0.0
        %8543 = vmatprep.subr.mxu0 0.0
        %8544 = vmatpush1.msra.mxu0 0.0
        %8545 = vmatprep.subr.mxu0 0.0
        %8546 = vmatpush1.msra.mxu0 0.0
        %8547 = vmatprep.subr.mxu0 0.0
        %8548 = vmatpush1.msra.mxu0 0.0
        %8549 = vmatprep.subr.mxu0 0.0
        %8550 = vmatpush1.msra.mxu0 0.0
        %8551 = vmatprep.subr.mxu0 0.0
        %8552 = vmatpush1.msra.mxu0 0.0
        %8553 = vmatprep.subr.mxu0 0.0
        %8554 = vmatpush1.msra.mxu0 0.0
        %8555 = vmatprep.subr.mxu0 0.0
        %8556 = vmatpush1.msra.mxu0 0.0
        %8557 = vmatprep.subr.mxu0 0.0
        %8558 = vmatpush1.msra.mxu0 0.0
        %8559 = vmatprep.subr.mxu0 0.0
        %8560 = vmatpush1.msra.mxu0 0.0
        %8561 = vmatprep.subr.mxu0 0.0
        %8562 = vmatpush1.msra.mxu0 0.0
        %8563 = vmatprep.subr.mxu0 0.0
        %8564 = vmatpush1.msra.mxu0 0.0
        %8565 = vmatprep.subr.mxu0 0.0
        %8566 = vmatpush1.msra.mxu0 0.0
        %8567 = vmatprep.subr.mxu0 0.0
        %8568 = vmatpush1.msra.mxu0 0.0
        %8569 = vmatprep.subr.mxu0 0.0
        %8570 = vmatpush1.msra.mxu0 0.0
        %8571 = vmatprep.subr.mxu0 0.0
        %8572 = vmatpush1.msra.mxu0 0.0
        %8573 = vmatprep.subr.mxu0 0.0
        %8574 = vmatpush1.msra.mxu0 0.0
        %8575 = vmatprep.subr.mxu0 0.0
        %8576 = vmatpush1.msra.mxu0 0.0
        %8577 = vmatprep.subr.mxu0 0.0
        %8578 = vmatpush1.msra.mxu0 0.0
        %8579 = vmatprep.mubr.f32.mxu0 0.0
        %v8580 = vand.u32 %v8286, 4294901760
        %v8581 = vsub.f32 %v8286, %v8580
        %v8582 = vand.u32 %v8581, 4294901760
        %8583 = vmatmul.mubr.f32.gmra.mrb[0].mxu0 %v8582
        %v8584 = vpop.f32.mrb[0].mxu0
        %v8585 = vadd.f32 %v8511, %v8584
        %v8586 = vpop.f32.mrb[0].mxu0
        %8587 = vdwg.mxu0
        %8588 = vmatprep.subr.mxu0 0.0
        %v8589 = vand.u32 %v2998, 4294901760
        %v8590 = vsub.f32 %v2998, %v8589
        %v8591 = vand.u32 %v8590, 4294901760
        %8592 = vmatpush1.msra.mxu0 %v8591
        %8593 = vmatprep.subr.mxu0 0.0
        %8594 = vmatpush1.msra.mxu0 0.0
        %8595 = vmatprep.subr.mxu0 0.0
        %8596 = vmatpush1.msra.mxu0 0.0
        %8597 = vmatprep.subr.mxu0 0.0
        %8598 = vmatpush1.msra.mxu0 0.0
        %8599 = vmatprep.subr.mxu0 0.0
        %8600 = vmatpush1.msra.mxu0 0.0
        %8601 = vmatprep.subr.mxu0 0.0
        %8602 = vmatpush1.msra.mxu0 0.0
        %8603 = vmatprep.subr.mxu0 0.0
        %8604 = vmatpush1.msra.mxu0 0.0
        %8605 = vmatprep.subr.mxu0 0.0
        %8606 = vmatpush1.msra.mxu0 0.0
        %8607 = vmatprep.subr.mxu0 0.0
        %8608 = vmatpush1.msra.mxu0 0.0
        %8609 = vmatprep.subr.mxu0 0.0
        %8610 = vmatpush1.msra.mxu0 0.0
        %8611 = vmatprep.subr.mxu0 0.0
        %8612 = vmatpush1.msra.mxu0 0.0
        %8613 = vmatprep.subr.mxu0 0.0
        %8614 = vmatpush1.msra.mxu0 0.0
        %8615 = vmatprep.subr.mxu0 0.0
        %8616 = vmatpush1.msra.mxu0 0.0
        %8617 = vmatprep.subr.mxu0 0.0
        %8618 = vmatpush1.msra.mxu0 0.0
        %8619 = vmatprep.subr.mxu0 0.0
        %8620 = vmatpush1.msra.mxu0 0.0
        %8621 = vmatprep.subr.mxu0 0.0
        %8622 = vmatpush1.msra.mxu0 0.0
        %8623 = vmatprep.subr.mxu0 0.0
        %8624 = vmatpush1.msra.mxu0 0.0
        %8625 = vmatprep.subr.mxu0 0.0
        %8626 = vmatpush1.msra.mxu0 0.0
        %8627 = vmatprep.subr.mxu0 0.0
        %8628 = vmatpush1.msra.mxu0 0.0
        %8629 = vmatprep.subr.mxu0 0.0
        %8630 = vmatpush1.msra.mxu0 0.0
        %8631 = vmatprep.subr.mxu0 0.0
        %8632 = vmatpush1.msra.mxu0 0.0
        %8633 = vmatprep.subr.mxu0 0.0
        %8634 = vmatpush1.msra.mxu0 0.0
        %8635 = vmatprep.subr.mxu0 0.0
        %8636 = vmatpush1.msra.mxu0 0.0
        %8637 = vmatprep.subr.mxu0 0.0
        %8638 = vmatpush1.msra.mxu0 0.0
        %8639 = vmatprep.subr.mxu0 0.0
        %8640 = vmatpush1.msra.mxu0 0.0
        %8641 = vmatprep.subr.mxu0 0.0
        %8642 = vmatpush1.msra.mxu0 0.0
        %8643 = vmatprep.subr.mxu0 0.0
        %8644 = vmatpush1.msra.mxu0 0.0
        %8645 = vmatprep.subr.mxu0 0.0
        %8646 = vmatpush1.msra.mxu0 0.0
        %8647 = vmatprep.subr.mxu0 0.0
        %8648 = vmatpush1.msra.mxu0 0.0
        %8649 = vmatprep.subr.mxu0 0.0
        %8650 = vmatpush1.msra.mxu0 0.0
        %8651 = vmatprep.subr.mxu0 0.0
        %8652 = vmatpush1.msra.mxu0 0.0
        %8653 = vmatprep.subr.mxu0 0.0
        %8654 = vmatpush1.msra.mxu0 0.0
        %8655 = vmatprep.mubr.f32.mxu0 0.0
        %v8656 = vand.u32 %v8286, 4294901760
        %8657 = vmatmul.mubr.f32.gmra.mrb[0].mxu0 %v8656
        %v8658 = vpop.f32.mrb[0].mxu0
        %v8659 = vadd.f32 %v8585, %v8658
        %v8660 = vpop.f32.mrb[0].mxu0
        %8661 = vdwg.mxu0
        %8662 = vmatprep.subr.mxu0 0.0
        %v8663 = vand.u32 %v2998, 4294901760
        %8664 = vmatpush1.msra.mxu0 %v8663
        %8665 = vmatprep.subr.mxu0 0.0
        %8666 = vmatpush1.msra.mxu0 0.0
        %8667 = vmatprep.subr.mxu0 0.0
        %8668 = vmatpush1.msra.mxu0 0.0
        %8669 = vmatprep.subr.mxu0 0.0
        %8670 = vmatpush1.msra.mxu0 0.0
        %8671 = vmatprep.subr.mxu0 0.0
        %8672 = vmatpush1.msra.mxu0 0.0
        %8673 = vmatprep.subr.mxu0 0.0
        %8674 = vmatpush1.msra.mxu0 0.0
        %8675 = vmatprep.subr.mxu0 0.0
        %8676 = vmatpush1.msra.mxu0 0.0
        %8677 = vmatprep.subr.mxu0 0.0
        %8678 = vmatpush1.msra.mxu0 0.0
        %8679 = vmatprep.subr.mxu0 0.0
        %8680 = vmatpush1.msra.mxu0 0.0
        %8681 = vmatprep.subr.mxu0 0.0
        %8682 = vmatpush1.msra.mxu0 0.0
        %8683 = vmatprep.subr.mxu0 0.0
        %8684 = vmatpush1.msra.mxu0 0.0
        %8685 = vmatprep.subr.mxu0 0.0
        %8686 = vmatpush1.msra.mxu0 0.0
        %8687 = vmatprep.subr.mxu0 0.0
        %8688 = vmatpush1.msra.mxu0 0.0
        %8689 = vmatprep.subr.mxu0 0.0
        %8690 = vmatpush1.msra.mxu0 0.0
        %8691 = vmatprep.subr.mxu0 0.0
        %8692 = vmatpush1.msra.mxu0 0.0
        %8693 = vmatprep.subr.mxu0 0.0
        %8694 = vmatpush1.msra.mxu0 0.0
        %8695 = vmatprep.subr.mxu0 0.0
        %8696 = vmatpush1.msra.mxu0 0.0
        %8697 = vmatprep.subr.mxu0 0.0
        %8698 = vmatpush1.msra.mxu0 0.0
        %8699 = vmatprep.subr.mxu0 0.0
        %8700 = vmatpush1.msra.mxu0 0.0
        %8701 = vmatprep.subr.mxu0 0.0
        %8702 = vmatpush1.msra.mxu0 0.0
        %8703 = vmatprep.subr.mxu0 0.0
        %8704 = vmatpush1.msra.mxu0 0.0
        %8705 = vmatprep.subr.mxu0 0.0
        %8706 = vmatpush1.msra.mxu0 0.0
        %8707 = vmatprep.subr.mxu0 0.0
        %8708 = vmatpush1.msra.mxu0 0.0
        %8709 = vmatprep.subr.mxu0 0.0
        %8710 = vmatpush1.msra.mxu0 0.0
        %8711 = vmatprep.subr.mxu0 0.0
        %8712 = vmatpush1.msra.mxu0 0.0
        %8713 = vmatprep.subr.mxu0 0.0
        %8714 = vmatpush1.msra.mxu0 0.0
        %8715 = vmatprep.subr.mxu0 0.0
        %8716 = vmatpush1.msra.mxu0 0.0
        %8717 = vmatprep.subr.mxu0 0.0
        %8718 = vmatpush1.msra.mxu0 0.0
        %8719 = vmatprep.subr.mxu0 0.0
        %8720 = vmatpush1.msra.mxu0 0.0
        %8721 = vmatprep.subr.mxu0 0.0
        %8722 = vmatpush1.msra.mxu0 0.0
        %8723 = vmatprep.subr.mxu0 0.0
        %8724 = vmatpush1.msra.mxu0 0.0
        %8725 = vmatprep.subr.mxu0 0.0
        %8726 = vmatpush1.msra.mxu0 0.0
        %8727 = vmatprep.mubr.f32.mxu0 0.0
        %v8728 = vand.u32 %v8286, 4294901760
        %8729 = vmatmul.mubr.f32.gmra.mrb[0].mxu0 %v8728
        %v8730 = vpop.f32.mrb[0].mxu0
        %v8731 = vadd.f32 %v8659, %v8730
        %v8732 = vpop.f32.mrb[0].mxu0
        %8733 = vdwg.mxu0
        %v8734 = vadd.f32 %v7303, %v8731
        %v8735 = vld [vmem:[%s13] sm:$0x1]
        %v8737 = vlaneseq
        %v8738 = vshrl.u32 %v8737, 7
        %v8739 = vsub.s32 0, %v8738
        %v8740 = vrot.slane %v8735, %v8739
        %v8742 = vadd.f32 %v8734, %v8740
        %8743 = vst.msk [vmem:[%s680] sm:$0xff] %vm1701, %v8742
        %s8744 = sand.u32 %s379, 1
        %s8745 = scalar_lea.sflag [#allocation6], %s8744
        %s8746 = sand.u32 %s379, 1
        %s8747 = smul.addr %s8746, 8
        %s8748 = scalar_lea.vmem [#allocation19], %s8747
        // Predicated region
        $region117: #{tpu_custom_call.1} parent=75 // pred_check
          %p8749 = pneg %p389
        $region118: #{tpu_custom_call.1} parent=75 // pred_check_branch
          %8751 = sbr.rel (%p8749) target = $region120
        $region119: #{tpu_custom_call.1} parent=75 // pred_region
          %s8753 = ssub.s32 128, 128
          %8754 = vsyncadd %s8745, %s8753
          %s8755 = sadd.s32 %s44, %s43
          %s8756 = smul.addr %s8755, 128
          %s8757 = scalar_lea.hbm %s14, %s8756
          %s8759 = sshll.u32 %s8748, 4
          %s8760 = int_to_ptr.vmem [resolvable:$true] %s8759
          %8762 = dma.vmem_to_hbm [thread:$0]  %s8760, 128, %s8757, %s8745
        $region120: #{tpu_custom_call.1} parent=75 // pred_fallthru
          _
      $region76: #{tpu_custom_call.1} parent=5 // pred_fallthru
        _
      %p8763 = scmp.le.s32.totalorder 2, %s34
      // Predicated region
      $region121: #{tpu_custom_call.1} parent=5 // pred_check
        %p8764 = pneg %p8763
      $region122: #{tpu_custom_call.1} parent=5 // pred_check_branch
        %8766 = sbr.rel (%p8764) target = $region124
      $region123: #{tpu_custom_call.1} parent=5 // pred_region
        %s8767 = ssub.s32 %s34, 2
        // Predicated region
        $region125: #{tpu_custom_call.1} parent=123 // pred_check
          %p8768 = pneg %p395
        $region126: #{tpu_custom_call.1} parent=123 // pred_check_branch
          %8770 = sbr.rel (%p8768) target = $region128
        $region127: #{tpu_custom_call.1} parent=123 // pred_region
          %s8771 = sand.u32 %s380, 1
          %s8772 = scalar_lea.sflag [#allocation6], %s8771
          %s8773 = sand.u32 %s380, 1
          %s8774 = smul.addr %s8773, 8
          %s8775 = scalar_lea.vmem [#allocation19], %s8774
          %8776 = dma.done %s8772, 128
        $region128: #{tpu_custom_call.1} parent=123 // pred_fallthru
          _
      $region124: #{tpu_custom_call.1} parent=5 // pred_fallthru
        _
    $region6: #{tpu_custom_call.1} parent=1 // loop_footer
      %s38 = sadd.s32 1, %s34
    $region7: #{tpu_custom_call.1} parent=1 // loop_footer_branch
      %33 = sbr.rel target = $region3
    $region8: #{tpu_custom_call.1} parent=1 // loop_exit
      _
    %8777 = vsyncpa [#allocation5], 1
    %s8778 = scalar_lea.sflag [#allocation5], 1
    %8779 = vsyncpa %s8778, 1
    %8780 = vsyncpa [#allocation8], 1
    %s8781 = scalar_lea.sflag [#allocation8], 1
    %8782 = vsyncpa %s8781, 1
    %8783 = vsyncpa [#allocation11], 1
    %s8784 = scalar_lea.sflag [#allocation11], 1
    %8785 = vsyncpa %s8784, 1
    %8786 = vsyncpa [#allocation14], 1
    %8787 = vsyncpa [#allocation17], 1
    %8788 = vsyncpa [#allocation6], 1
    %s8789 = scalar_lea.sflag [#allocation6], 1
    %8790 = vsyncpa %s8789, 1

</llo_original>
